<compile_context>
chip_gen: v5e
topology: v5e:2x2
jax: 0.10.0
libtpu: 0.0.40
codegen_flags: <defaults>
</compile_context>

<pallas_src>
import functools

import numpy as np
import jax
import jax.numpy as jnp
from jax.experimental import pallas as pl
from jax.experimental.pallas import tpu as pltpu

OUT_DIM = {2: 39, 4: 35, 6: 31}
LANE = 128


# ----------------------------------------------------------------------------
# Fused decoder kernel (one grid step == one batch element)
# ----------------------------------------------------------------------------
def _decoder_kernel(*refs, nf, n_dec1, K, L):
    # refs layout:
    #   [0] h_rep     (1, 1, F*nf)   h[b] repeated nf times along lanes
    #   [1] kron      (nf, F*nf)     0/1 mask, kron(ones(F), I_nf)
    #   [2] fcw_mat   (F*nf, L)      fc weight in flat planar layout (zero-padded)
    #   [3] fcb_flat  (nf, L)        fc bias, masked to the valid 39x39 region
    #   then per stride-1 layer: w1_all (nf, 9*nf), b1_flat (nf, L) [masked]
    #   then: w2_all (4*cout, 4*nf), b2_flat (4*cout, L)
    #   out_ref (1, 4*cout, L)   four parity planes, all output channels
    #   stack_ref VMEM scratch (9*nf, L)
    hrep_ref, kron_ref, fcw_ref, fcb_ref = refs[0], refs[1], refs[2], refs[3]
    p = 4
    dec1 = []
    for _ in range(n_dec1):
        dec1.append((refs[p], refs[p + 1]))
        p += 2
    w2_ref, b2_ref = refs[p], refs[p + 1]
    out_ref = refs[p + 2]
    stack_ref = refs[p + 3]

    f32 = jnp.float32

    def shifted(x, s):
        # result[:, q] = x[:, q - s] for q >= s, else 0 (zero-fill right shift).
        # In the flat planar layout a shift by ky*LANE + kx realises the
        # ConvTranspose tap offset (ky, kx); column padding (>= valid width)
        # is kept exactly zero by construction so cross-row leakage is zero.
        if s == 0:
            return x
        pad = jnp.zeros((x.shape[0], s), dtype=x.dtype)
        return jnp.concatenate([pad, x[:, :L - s]], axis=1)

    # ---- Stage 1: fc + ReLU, directly in the flat planar layout ------------
    # A = kron(h, I_nf) so that  A @ fcw_mat  == per-channel fc output planes.
    a_mat = kron_ref[...] * hrep_ref[0]                       # (nf, F*nf)
    x = jnp.dot(a_mat, fcw_ref[...], preferred_element_type=f32)
    x = jnp.maximum(x + fcb_ref[...], 0.0)                    # (nf, L), padding==0

    # ---- Stage 2: stride-1 ConvTranspose2d layers (+ReLU) ------------------
    # 9 shifted copies stacked along sublanes, then one MXU matmul fuses the
    # channel contraction and the tap sum:  (nf, 9*nf) @ (9*nf, L).
    for li in range(n_dec1):
        w1_ref, b1_ref = dec1[li]
        for t in range(K * K):
            ky, kx = divmod(t, K)
            stack_ref[t * nf:(t + 1) * nf, :] = shifted(x, ky * LANE + kx)
        y = jnp.dot(w1_ref[...], stack_ref[...], preferred_element_type=f32)
        x = jnp.maximum(y + b1_ref[...], 0.0)                 # padding stays 0

    # ---- Stage 3: stride-2 ConvTranspose2d, output_padding=1 ---------------
    # Output-parity decomposition: out[2*oy+py, 2*ox+px] only mixes taps with
    # ky ≡ py, kx ≡ px (mod 2), i.e. plain shifts by (dy, dx) in {0,1}^2 of the
    # input.  One matmul produces all 4 parity planes for all cout channels.
    for d in range(4):
        dy, dx = divmod(d, 2)
        stack_ref[d * nf:(d + 1) * nf, :] = shifted(x, dy * LANE + dx)
    res = jnp.dot(w2_ref[...], stack_ref[0:4 * nf, :],
                  preferred_element_type=f32)                 # (4*cout, L)
    out_ref[0] = res + b2_ref[...]


# ----------------------------------------------------------------------------
# Decoder wrapper
# ----------------------------------------------------------------------------
class DecoderPallas:
    def __init__(self, key, obs_shape, feature_dim, num_layers=2, num_filters=8):
        assert num_layers in OUT_DIM
        self.num_layers = num_layers
        self.num_filters = num_filters
        self.feature_dim = feature_dim
        self.obs_c = obs_shape[0]
        self.out_dim = OUT_DIM[num_layers]
        self.K = 3
        self.n_dec1 = num_layers - 1
        self.dlast = self.out_dim + 2 * self.n_dec1     # 41 for every config
        self.R = self.dlast + 1                         # 42 rows in flat layout
        self.L = self.R * LANE                          # 5376 lanes
        self.out_h = 2 * self.R                         # 84

        nf, d0, K, cout, R, L = (num_filters, self.out_dim, self.K,
                                 self.obs_c, self.R, self.L)
        n_out = nf * d0 * d0
        keys = jax.random.split(key, 2 * (num_layers + 1))
        scale = 0.05  # deterministic synthetic init

        # ---------------- raw parameters (used by the JAX reference) --------
        fc_w = scale * jax.random.normal(keys[0], (feature_dim, n_out), jnp.float32)
        fc_b = scale * jax.random.normal(keys[1], (n_out,), jnp.float32)
        self.fc_w, self.fc_b = fc_w, fc_b

        # ---------------- kernel-side prepacked parameters ------------------
        # kron mask: kron[ci, k*nf + ci'] = [ci' == ci]
        self.kron = jnp.tile(jnp.eye(nf, dtype=jnp.float32), (1, feature_dim))
        # fc weight into flat planar layout, zero padded outside the 39x39 map
        fcw4 = fc_w.reshape(feature_dim, nf, d0, d0)
        fcw_pad = jnp.zeros((feature_dim, nf, R, LANE), jnp.float32)
        fcw_pad = fcw_pad.at[:, :, :d0, :d0].set(fcw4)
        self.fcw_mat = fcw_pad.reshape(feature_dim * nf, L)
        fcb_pad = jnp.zeros((nf, R, LANE), jnp.float32)
        fcb_pad = fcb_pad.at[:, :d0, :d0].set(fc_b.reshape(nf, d0, d0))
        self.fcb_flat = fcb_pad.reshape(nf, L)

        # stride-1 deconv layers: W1_all[co, (ky*K+kx)*nf + ci] = w[ci,co,ky,kx]
        self.dec1_raw = []
        self.dec1_prep = []
        k = 2
        for li in range(self.n_dec1):
            w = scale * jax.random.normal(keys[k], (nf, nf, K, K), jnp.float32)
            bb = scale * jax.random.normal(keys[k + 1], (nf,), jnp.float32)
            self.dec1_raw.append((w, bb))
            w_all = jnp.transpose(w, (1, 2, 3, 0)).reshape(nf, K * K * nf)
            dout = d0 + 2 * (li + 1)
            b_pad = jnp.zeros((nf, R, LANE), jnp.float32)
            b_pad = b_pad.at[:, :dout, :dout].set(
                jnp.broadcast_to(bb[:, None, None], (nf, dout, dout)))
            self.dec1_prep.append((w_all, b_pad.reshape(nf, L)))
            k += 2

        # final stride-2 deconv: parity-decomposed weight matrix
        w2 = scale * jax.random.normal(keys[k], (nf, cout, K, K), jnp.float32)
        b2 = scale * jax.random.normal(keys[k + 1], (cout,), jnp.float32)
        self.dec2_raw = (w2, b2)
        w2_np = np.asarray(w2)
        w2_all = np.zeros((2, 2, cout, 2, 2, nf), np.float32)
        for py in range(2):
            for px in range(2):
                for dy in range(2):
                    for dx in range(2):
                        ky, kx = py + 2 * dy, px + 2 * dx
                        if ky < K and kx < K:
                            w2_all[py, px, :, dy, dx, :] = w2_np[:, :, ky, kx].T
        self.w2_all = jnp.asarray(w2_all.reshape(4 * cout, 4 * nf))
        b2_rows = np.tile(np.asarray(b2, np.float32), 4)[:, None]
        self.b2_flat = jnp.asarray(np.broadcast_to(b2_rows, (4 * cout, L)).copy())

    def __call__(self, h):
        h = jnp.asarray(h, jnp.float32)
        B = h.shape[0]
        nf, K, cout, R, L = (self.num_filters, self.K, self.obs_c, self.R, self.L)
        FKN = self.feature_dim * nf

        # kron(h, I_nf) lane replication of h (pure layout plumbing)
        h_rep = jnp.repeat(h, nf, axis=-1).reshape(B, 1, FKN)

        def const2(b):
            return (0, 0)

        in_specs = [
            pl.BlockSpec((1, 1, FKN), lambda b: (b, 0, 0)),   # h_rep (per step)
            pl.BlockSpec((nf, FKN), const2),                  # kron mask
            pl.BlockSpec((FKN, L), const2),                   # fc weight
            pl.BlockSpec((nf, L), const2),                    # fc bias (masked)
        ]
        args = [h_rep, self.kron, self.fcw_mat, self.fcb_flat]
        for (w_all, b_flat) in self.dec1_prep:
            in_specs += [pl.BlockSpec((nf, K * K * nf), const2),
                         pl.BlockSpec((nf, L), const2)]
            args += [w_all, b_flat]
        in_specs += [pl.BlockSpec((4 * cout, 4 * nf), const2),
                     pl.BlockSpec((4 * cout, L), const2)]
        args += [self.w2_all, self.b2_flat]

        kernel = functools.partial(_decoder_kernel, nf=nf, n_dec1=self.n_dec1,
                                   K=K, L=L)

        # advisory cost estimate for the XLA scheduler
        flops_per = (2 * nf * FKN * L
                     + self.n_dec1 * 2 * nf * (K * K * nf) * L
                     + 2 * (4 * cout) * (4 * nf) * L)
        bytes_accessed = 4 * (h_rep.size + self.kron.size + self.fcw_mat.size
                              + self.fcb_flat.size
                              + sum(w.size + b.size for (w, b) in self.dec1_prep)
                              + self.w2_all.size + self.b2_flat.size
                              + B * 4 * cout * L)

        ko = pl.pallas_call(
            kernel,
            out_shape=jax.ShapeDtypeStruct((B, 4 * cout, L), jnp.float32),
            grid=(B,),
            in_specs=in_specs,
            out_specs=pl.BlockSpec((1, 4 * cout, L), lambda b: (b, 0, 0)),
            scratch_shapes=[pltpu.VMEM((K * K * nf, L), jnp.float32)],
            compiler_params=pltpu.CompilerParams(
                dimension_semantics=("parallel",),
                vmem_limit_bytes=32 * 1024 * 1024),
            cost_estimate=pl.CostEstimate(
                flops=int(B * flops_per), transcendentals=0,
                bytes_accessed=int(bytes_accessed)),
        )(*args)

        # Parity interleave + crop (cheap XLA-side layout plumbing).
        half = self.out_h // 2                      # == R
        ko = ko.reshape(B, 2, 2, cout, R, LANE)[:, :, :, :, :half, :half]
        obs = ko.transpose(0, 3, 4, 1, 5, 2).reshape(B, cout, self.out_h, self.out_h)
        return obs


# ----------------------------------------------------------------------------
# Pure-JAX reference (PyTorch ConvTranspose2d semantics) for self-check
# ----------------------------------------------------------------------------
def _conv_transpose_ref(x, w, b, stride, output_padding):
    cin, cout_, K, _ = w.shape
    wf = jnp.transpose(w[:, :, ::-1, ::-1], (1, 0, 2, 3))   # (Cout, Cin, K, K)
    y = jax.lax.conv_general_dilated(
        x, wf, window_strides=(1, 1),
        padding=[(K - 1, K - 1 + output_padding)] * 2,
        lhs_dilation=(stride, stride),
        dimension_numbers=("NCHW", "OIHW", "NCHW"),
        precision=jax.lax.Precision.HIGHEST)
    return y + b.reshape(1, cout_, 1, 1)


def _reference_forward(dec, h):
    x = jnp.maximum(
        jnp.dot(h, dec.fc_w, precision=jax.lax.Precision.HIGHEST) + dec.fc_b, 0.0)
    x = x.reshape(h.shape[0], dec.num_filters, dec.out_dim, dec.out_dim)
    for (w, bb) in dec.dec1_raw:
        x = jnp.maximum(_conv_transpose_ref(x, w, bb, 1, 0), 0.0)
    w, bb = dec.dec2_raw
    return _conv_transpose_ref(x, w, bb, 2, 1)


# ----------------------------------------------------------------------------
if __name__ == "__main__":
    key = jax.random.PRNGKey(0)
    k_params, k_input = jax.random.split(key)

    batch = 2
    feature_dim = 16
    num_filters = 8
    obs_shape = (3, 84, 84)   # num_layers=2 -> 39 -> 41 -> 84

    decoder = DecoderPallas(k_params, obs_shape, feature_dim,
                            num_layers=2, num_filters=num_filters)

    h = jax.random.normal(k_input, (batch, feature_dim), jnp.float32)

    obs = jax.block_until_ready(decoder(h))

    assert obs.shape == (batch, obs_shape[0], 84, 84), obs.shape
    assert obs.dtype == jnp.float32
    assert bool(jnp.all(jnp.isfinite(obs)))

    ref = jax.block_until_ready(_reference_forward(decoder, h))
    err = float(jnp.max(jnp.abs(obs - ref)))
    assert err < 2e-3, f"max abs err vs reference: {err}"

    print("KERNEL_OK")
</pallas_src>

<mosaic_0001>
module attributes {stable_mosaic.version = 11 : i64} {
  func.func @_decoder_kernel(%arg0: i32, %arg1: memref<1x1x128xf32, #tpu.memory_space<vmem>>, %arg2: memref<8x128xf32, #tpu.memory_space<vmem>>, %arg3: memref<128x5376xf32, #tpu.memory_space<vmem>>, %arg4: memref<8x5376xf32, #tpu.memory_space<vmem>>, %arg5: memref<8x72xf32, #tpu.memory_space<vmem>>, %arg6: memref<8x5376xf32, #tpu.memory_space<vmem>>, %arg7: memref<12x32xf32, #tpu.memory_space<vmem>>, %arg8: memref<12x5376xf32, #tpu.memory_space<vmem>>, %arg9: memref<1x12x5376xf32, #tpu.memory_space<vmem>>, %arg10: memref<72x5376xf32, #tpu.memory_space<vmem>>) attributes {dimension_semantics = [#tpu.dimension_semantics<parallel>], iteration_bounds = array<i64: 2>, scalar_prefetch = 0 : i64, scratch_operands = 1 : i64, tpu.core_type = #tpu.core_type<tc>, window_params = [{transform_indices = @transform_0, window_bounds = array<i64: 1, 1, 128>}, {pipeline_mode = #tpu.pipeline_mode<synchronous>, transform_indices = @transform_1, window_bounds = array<i64: 8, 128>}, {pipeline_mode = #tpu.pipeline_mode<synchronous>, transform_indices = @transform_2, window_bounds = array<i64: 128, 5376>}, {pipeline_mode = #tpu.pipeline_mode<synchronous>, transform_indices = @transform_3, window_bounds = array<i64: 8, 5376>}, {pipeline_mode = #tpu.pipeline_mode<synchronous>, transform_indices = @transform_4, window_bounds = array<i64: 8, 72>}, {pipeline_mode = #tpu.pipeline_mode<synchronous>, transform_indices = @transform_5, window_bounds = array<i64: 8, 5376>}, {pipeline_mode = #tpu.pipeline_mode<synchronous>, transform_indices = @transform_6, window_bounds = array<i64: 12, 32>}, {pipeline_mode = #tpu.pipeline_mode<synchronous>, transform_indices = @transform_7, window_bounds = array<i64: 12, 5376>}, {transform_indices = @transform_8, window_bounds = array<i64: 1, 12, 5376>}]} {
    %c0 = arith.constant 0 : index
    %c0_0 = arith.constant 0 : index
    %0 = vector.load %arg2[%c0, %c0_0] : memref<8x128xf32, #tpu.memory_space<vmem>>, vector<8x128xf32>
    %c0_1 = arith.constant 0 : index
    %c0_2 = arith.constant 0 : index
    %c0_3 = arith.constant 0 : index
    %1 = vector.load %arg1[%c0_1, %c0_2, %c0_3] : memref<1x1x128xf32, #tpu.memory_space<vmem>>, vector<1x1x128xf32>
    %2 = vector.shape_cast %1 : vector<1x1x128xf32> to vector<1x128xf32>
    %3 = vector.broadcast %2 : vector<1x128xf32> to vector<8x128xf32>
    %4 = arith.mulf %0, %3 : vector<8x128xf32>
    %c0_4 = arith.constant 0 : index
    %c0_5 = arith.constant 0 : index
    %5 = vector.load %arg3[%c0_4, %c0_5] : memref<128x5376xf32, #tpu.memory_space<vmem>>, vector<128x5376xf32>
    %cst = arith.constant dense<0.000000e+00> : vector<8x5376xf32>
    %6 = tpu.matmul %4, %5, %cst {dimension_numbers = #tpu.dot_dimension_numbers<[1], [0], [0], [1], [0, 0, 1, 1], [], []>} : vector<8x128xf32>, vector<128x5376xf32>, vector<8x5376xf32> -> vector<8x5376xf32>
    %c0_6 = arith.constant 0 : index
    %c0_7 = arith.constant 0 : index
    %7 = vector.load %arg4[%c0_6, %c0_7] : memref<8x5376xf32, #tpu.memory_space<vmem>>, vector<8x5376xf32>
    %8 = arith.addf %6, %7 : vector<8x5376xf32>
    %cst_8 = arith.constant 0.000000e+00 : f32
    %9 = vector.broadcast %cst_8 : f32 to vector<8x5376xf32>
    %10 = arith.maximumf %8, %9 : vector<8x5376xf32>
    %c0_9 = arith.constant 0 : index
    %c0_10 = arith.constant 0 : index
    %11 = vector.load %arg10[%c0_9, %c0_10] : memref<72x5376xf32, #tpu.memory_space<vmem>>, vector<8x5376xf32>
    tpu.vector_store %arg10[%c0_9, %c0_10], %10 {strides = array<i32>} : memref<72x5376xf32, #tpu.memory_space<vmem>>, vector<8x5376xf32>,
    %cst_11 = arith.constant 0.000000e+00 : f32
    %12 = vector.broadcast %cst_11 : f32 to vector<8x1xf32>
    %13 = vector.extract_strided_slice %10 {offsets = [0, 0], sizes = [8, 5375], strides = [1, 1]} : vector<8x5376xf32> to vector<8x5375xf32>
    %14 = tpu.concatenate %12, %13 in 1 : vector<8x1xf32>, vector<8x5375xf32> -> vector<8x5376xf32>
    %c8 = arith.constant 8 : index
    %c0_12 = arith.constant 0 : index
    %15 = vector.load %arg10[%c8, %c0_12] : memref<72x5376xf32, #tpu.memory_space<vmem>>, vector<8x5376xf32>
    tpu.vector_store %arg10[%c8, %c0_12], %14 {strides = array<i32>} : memref<72x5376xf32, #tpu.memory_space<vmem>>, vector<8x5376xf32>,
    %cst_13 = arith.constant 0.000000e+00 : f32
    %16 = vector.broadcast %cst_13 : f32 to vector<8x2xf32>
    %17 = vector.extract_strided_slice %10 {offsets = [0, 0], sizes = [8, 5374], strides = [1, 1]} : vector<8x5376xf32> to vector<8x5374xf32>
    %18 = tpu.concatenate %16, %17 in 1 : vector<8x2xf32>, vector<8x5374xf32> -> vector<8x5376xf32>
    %c16 = arith.constant 16 : index
    %c0_14 = arith.constant 0 : index
    %19 = vector.load %arg10[%c16, %c0_14] : memref<72x5376xf32, #tpu.memory_space<vmem>>, vector<8x5376xf32>
    tpu.vector_store %arg10[%c16, %c0_14], %18 {strides = array<i32>} : memref<72x5376xf32, #tpu.memory_space<vmem>>, vector<8x5376xf32>,
    %cst_15 = arith.constant 0.000000e+00 : f32
    %20 = vector.broadcast %cst_15 : f32 to vector<8x128xf32>
    %21 = vector.extract_strided_slice %10 {offsets = [0, 0], sizes = [8, 5248], strides = [1, 1]} : vector<8x5376xf32> to vector<8x5248xf32>
    %22 = tpu.concatenate %20, %21 in 1 : vector<8x128xf32>, vector<8x5248xf32> -> vector<8x5376xf32>
    %c24 = arith.constant 24 : index
    %c0_16 = arith.constant 0 : index
    %23 = vector.load %arg10[%c24, %c0_16] : memref<72x5376xf32, #tpu.memory_space<vmem>>, vector<8x5376xf32>
    tpu.vector_store %arg10[%c24, %c0_16], %22 {strides = array<i32>} : memref<72x5376xf32, #tpu.memory_space<vmem>>, vector<8x5376xf32>,
    %cst_17 = arith.constant 0.000000e+00 : f32
    %24 = vector.broadcast %cst_17 : f32 to vector<8x129xf32>
    %25 = vector.extract_strided_slice %10 {offsets = [0, 0], sizes = [8, 5247], strides = [1, 1]} : vector<8x5376xf32> to vector<8x5247xf32>
    %26 = tpu.concatenate %24, %25 in 1 : vector<8x129xf32>, vector<8x5247xf32> -> vector<8x5376xf32>
    %c32 = arith.constant 32 : index
    %c0_18 = arith.constant 0 : index
    %27 = vector.load %arg10[%c32, %c0_18] : memref<72x5376xf32, #tpu.memory_space<vmem>>, vector<8x5376xf32>
    tpu.vector_store %arg10[%c32, %c0_18], %26 {strides = array<i32>} : memref<72x5376xf32, #tpu.memory_space<vmem>>, vector<8x5376xf32>,
    %cst_19 = arith.constant 0.000000e+00 : f32
    %28 = vector.broadcast %cst_19 : f32 to vector<8x130xf32>
    %29 = vector.extract_strided_slice %10 {offsets = [0, 0], sizes = [8, 5246], strides = [1, 1]} : vector<8x5376xf32> to vector<8x5246xf32>
    %30 = tpu.concatenate %28, %29 in 1 : vector<8x130xf32>, vector<8x5246xf32> -> vector<8x5376xf32>
    %c40 = arith.constant 40 : index
    %c0_20 = arith.constant 0 : index
    %31 = vector.load %arg10[%c40, %c0_20] : memref<72x5376xf32, #tpu.memory_space<vmem>>, vector<8x5376xf32>
    tpu.vector_store %arg10[%c40, %c0_20], %30 {strides = array<i32>} : memref<72x5376xf32, #tpu.memory_space<vmem>>, vector<8x5376xf32>,
    %cst_21 = arith.constant 0.000000e+00 : f32
    %32 = vector.broadcast %cst_21 : f32 to vector<8x256xf32>
    %33 = vector.extract_strided_slice %10 {offsets = [0, 0], sizes = [8, 5120], strides = [1, 1]} : vector<8x5376xf32> to vector<8x5120xf32>
    %34 = tpu.concatenate %32, %33 in 1 : vector<8x256xf32>, vector<8x5120xf32> -> vector<8x5376xf32>
    %c48 = arith.constant 48 : index
    %c0_22 = arith.constant 0 : index
    %35 = vector.load %arg10[%c48, %c0_22] : memref<72x5376xf32, #tpu.memory_space<vmem>>, vector<8x5376xf32>
    tpu.vector_store %arg10[%c48, %c0_22], %34 {strides = array<i32>} : memref<72x5376xf32, #tpu.memory_space<vmem>>, vector<8x5376xf32>,
    %cst_23 = arith.constant 0.000000e+00 : f32
    %36 = vector.broadcast %cst_23 : f32 to vector<8x257xf32>
    %37 = vector.extract_strided_slice %10 {offsets = [0, 0], sizes = [8, 5119], strides = [1, 1]} : vector<8x5376xf32> to vector<8x5119xf32>
    %38 = tpu.concatenate %36, %37 in 1 : vector<8x257xf32>, vector<8x5119xf32> -> vector<8x5376xf32>
    %c56 = arith.constant 56 : index
    %c0_24 = arith.constant 0 : index
    %39 = vector.load %arg10[%c56, %c0_24] : memref<72x5376xf32, #tpu.memory_space<vmem>>, vector<8x5376xf32>
    tpu.vector_store %arg10[%c56, %c0_24], %38 {strides = array<i32>} : memref<72x5376xf32, #tpu.memory_space<vmem>>, vector<8x5376xf32>,
    %cst_25 = arith.constant 0.000000e+00 : f32
    %40 = vector.broadcast %cst_25 : f32 to vector<8x258xf32>
    %41 = vector.extract_strided_slice %10 {offsets = [0, 0], sizes = [8, 5118], strides = [1, 1]} : vector<8x5376xf32> to vector<8x5118xf32>
    %42 = tpu.concatenate %40, %41 in 1 : vector<8x258xf32>, vector<8x5118xf32> -> vector<8x5376xf32>
    %c64 = arith.constant 64 : index
    %c0_26 = arith.constant 0 : index
    %43 = vector.load %arg10[%c64, %c0_26] : memref<72x5376xf32, #tpu.memory_space<vmem>>, vector<8x5376xf32>
    tpu.vector_store %arg10[%c64, %c0_26], %42 {strides = array<i32>} : memref<72x5376xf32, #tpu.memory_space<vmem>>, vector<8x5376xf32>,
    %c0_27 = arith.constant 0 : index
    %c0_28 = arith.constant 0 : index
    %44 = vector.load %arg5[%c0_27, %c0_28] : memref<8x72xf32, #tpu.memory_space<vmem>>, vector<8x72xf32>
    %c0_29 = arith.constant 0 : index
    %c0_30 = arith.constant 0 : index
    %45 = vector.load %arg10[%c0_29, %c0_30] : memref<72x5376xf32, #tpu.memory_space<vmem>>, vector<72x5376xf32>
    %cst_31 = arith.constant dense<0.000000e+00> : vector<8x5376xf32>
    %46 = tpu.matmul %44, %45, %cst_31 {dimension_numbers = #tpu.dot_dimension_numbers<[1], [0], [0], [1], [0, 0, 1, 1], [], []>} : vector<8x72xf32>, vector<72x5376xf32>, vector<8x5376xf32> -> vector<8x5376xf32>
    %c0_32 = arith.constant 0 : index
    %c0_33 = arith.constant 0 : index
    %47 = vector.load %arg6[%c0_32, %c0_33] : memref<8x5376xf32, #tpu.memory_space<vmem>>, vector<8x5376xf32>
    %48 = arith.addf %46, %47 : vector<8x5376xf32>
    %cst_34 = arith.constant 0.000000e+00 : f32
    %49 = vector.broadcast %cst_34 : f32 to vector<8x5376xf32>
    %50 = arith.maximumf %48, %49 : vector<8x5376xf32>
    %c0_35 = arith.constant 0 : index
    %c0_36 = arith.constant 0 : index
    %51 = vector.load %arg10[%c0_35, %c0_36] : memref<72x5376xf32, #tpu.memory_space<vmem>>, vector<8x5376xf32>
    tpu.vector_store %arg10[%c0_35, %c0_36], %50 {strides = array<i32>} : memref<72x5376xf32, #tpu.memory_space<vmem>>, vector<8x5376xf32>,
    %cst_37 = arith.constant 0.000000e+00 : f32
    %52 = vector.broadcast %cst_37 : f32 to vector<8x1xf32>
    %53 = vector.extract_strided_slice %50 {offsets = [0, 0], sizes = [8, 5375], strides = [1, 1]} : vector<8x5376xf32> to vector<8x5375xf32>
    %54 = tpu.concatenate %52, %53 in 1 : vector<8x1xf32>, vector<8x5375xf32> -> vector<8x5376xf32>
    %c8_38 = arith.constant 8 : index
    %c0_39 = arith.constant 0 : index
    %55 = vector.load %arg10[%c8_38, %c0_39] : memref<72x5376xf32, #tpu.memory_space<vmem>>, vector<8x5376xf32>
    tpu.vector_store %arg10[%c8_38, %c0_39], %54 {strides = array<i32>} : memref<72x5376xf32, #tpu.memory_space<vmem>>, vector<8x5376xf32>,
    %cst_40 = arith.constant 0.000000e+00 : f32
    %56 = vector.broadcast %cst_40 : f32 to vector<8x128xf32>
    %57 = vector.extract_strided_slice %50 {offsets = [0, 0], sizes = [8, 5248], strides = [1, 1]} : vector<8x5376xf32> to vector<8x5248xf32>
    %58 = tpu.concatenate %56, %57 in 1 : vector<8x128xf32>, vector<8x5248xf32> -> vector<8x5376xf32>
    %c16_41 = arith.constant 16 : index
    %c0_42 = arith.constant 0 : index
    %59 = vector.load %arg10[%c16_41, %c0_42] : memref<72x5376xf32, #tpu.memory_space<vmem>>, vector<8x5376xf32>
    tpu.vector_store %arg10[%c16_41, %c0_42], %58 {strides = array<i32>} : memref<72x5376xf32, #tpu.memory_space<vmem>>, vector<8x5376xf32>,
    %cst_43 = arith.constant 0.000000e+00 : f32
    %60 = vector.broadcast %cst_43 : f32 to vector<8x129xf32>
    %61 = vector.extract_strided_slice %50 {offsets = [0, 0], sizes = [8, 5247], strides = [1, 1]} : vector<8x5376xf32> to vector<8x5247xf32>
    %62 = tpu.concatenate %60, %61 in 1 : vector<8x129xf32>, vector<8x5247xf32> -> vector<8x5376xf32>
    %c24_44 = arith.constant 24 : index
    %c0_45 = arith.constant 0 : index
    %63 = vector.load %arg10[%c24_44, %c0_45] : memref<72x5376xf32, #tpu.memory_space<vmem>>, vector<8x5376xf32>
    tpu.vector_store %arg10[%c24_44, %c0_45], %62 {strides = array<i32>} : memref<72x5376xf32, #tpu.memory_space<vmem>>, vector<8x5376xf32>,
    %c0_46 = arith.constant 0 : index
    %c0_47 = arith.constant 0 : index
    %64 = vector.load %arg7[%c0_46, %c0_47] : memref<12x32xf32, #tpu.memory_space<vmem>>, vector<12x32xf32>
    %c0_48 = arith.constant 0 : index
    %c0_49 = arith.constant 0 : index
    %65 = vector.load %arg10[%c0_48, %c0_49] : memref<72x5376xf32, #tpu.memory_space<vmem>>, vector<32x5376xf32>
    %cst_50 = arith.constant dense<0.000000e+00> : vector<12x5376xf32>
    %66 = tpu.matmul %64, %65, %cst_50 {dimension_numbers = #tpu.dot_dimension_numbers<[1], [0], [0], [1], [0, 0, 1, 1], [], []>} : vector<12x32xf32>, vector<32x5376xf32>, vector<12x5376xf32> -> vector<12x5376xf32>
    %c0_51 = arith.constant 0 : index
    %c0_52 = arith.constant 0 : index
    %67 = vector.load %arg8[%c0_51, %c0_52] : memref<12x5376xf32, #tpu.memory_space<vmem>>, vector<12x5376xf32>
    %68 = arith.addf %66, %67 : vector<12x5376xf32>
    %c0_53 = arith.constant 0 : index
    %c0_54 = arith.constant 0 : index
    %c0_55 = arith.constant 0 : index
    %69 = vector.load %arg9[%c0_53, %c0_54, %c0_55] : memref<1x12x5376xf32, #tpu.memory_space<vmem>>, vector<1x12x5376xf32>
    %70 = vector.shape_cast %69 : vector<1x12x5376xf32> to vector<12x5376xf32>
    %71 = vector.shape_cast %68 : vector<12x5376xf32> to vector<1x12x5376xf32>
    tpu.vector_store %arg9[%c0_53, %c0_54, %c0_55], %71 {strides = array<i32>} : memref<1x12x5376xf32, #tpu.memory_space<vmem>>, vector<1x12x5376xf32>,
    return
  }
  func.func @transform_0(%arg0: i32) -> (i32, i32, i32) {
    %c0_i32 = arith.constant 0 : i32
    %c0_i32_0 = arith.constant 0 : i32
    %c0_i32_1 = arith.constant 0 : i32
    return %arg0, %c0_i32, %c0_i32_0 : i32, i32, i32
  }
  func.func @transform_1(%arg0: i32) -> (i32, i32) {
    %c0_i32 = arith.constant 0 : i32
    %c0_i32_0 = arith.constant 0 : i32
    %c0_i32_1 = arith.constant 0 : i32
    return %c0_i32, %c0_i32_0 : i32, i32
  }
  func.func @transform_2(%arg0: i32) -> (i32, i32) {
    %c0_i32 = arith.constant 0 : i32
    %c0_i32_0 = arith.constant 0 : i32
    %c0_i32_1 = arith.constant 0 : i32
    return %c0_i32, %c0_i32_0 : i32, i32
  }
  func.func @transform_3(%arg0: i32) -> (i32, i32) {
    %c0_i32 = arith.constant 0 : i32
    %c0_i32_0 = arith.constant 0 : i32
    %c0_i32_1 = arith.constant 0 : i32
    return %c0_i32, %c0_i32_0 : i32, i32
  }
  func.func @transform_4(%arg0: i32) -> (i32, i32) {
    %c0_i32 = arith.constant 0 : i32
    %c0_i32_0 = arith.constant 0 : i32
    %c0_i32_1 = arith.constant 0 : i32
    return %c0_i32, %c0_i32_0 : i32, i32
  }
  func.func @transform_5(%arg0: i32) -> (i32, i32) {
    %c0_i32 = arith.constant 0 : i32
    %c0_i32_0 = arith.constant 0 : i32
    %c0_i32_1 = arith.constant 0 : i32
    return %c0_i32, %c0_i32_0 : i32, i32
  }
  func.func @transform_6(%arg0: i32) -> (i32, i32) {
    %c0_i32 = arith.constant 0 : i32
    %c0_i32_0 = arith.constant 0 : i32
    %c0_i32_1 = arith.constant 0 : i32
    return %c0_i32, %c0_i32_0 : i32, i32
  }
  func.func @transform_7(%arg0: i32) -> (i32, i32) {
    %c0_i32 = arith.constant 0 : i32
    %c0_i32_0 = arith.constant 0 : i32
    %c0_i32_1 = arith.constant 0 : i32
    return %c0_i32, %c0_i32_0 : i32, i32
  }
  func.func @transform_8(%arg0: i32) -> (i32, i32, i32) {
    %c0_i32 = arith.constant 0 : i32
    %c0_i32_0 = arith.constant 0 : i32
    %c0_i32_1 = arith.constant 0 : i32
    return %arg0, %c0_i32, %c0_i32_0 : i32, i32, i32
  }
}

</mosaic_0001>

<llo_original>
// kernel: tpu_custom_call.1
$region0: #{tpu_custom_call.1}
  #allocation0 [shape = 'u32[]', space=smem, size = 0x4, offset = 0x4, fixed_abs, tag = 'smem constant byte address 0x4 - core index']
  #allocation1 [shape = 'u32[72,128]{1,0:T(1,128)}', space=vmem, size = 0x9000, scoped, tag = 'internal scratch']
  #allocation2 [shape = 'f32[72,5376]{1,0:T(8,128)}', space=vmem, size = 0x17a000, scoped, tag = 'scratch operand']
  %s0 = inlined_call_operand.hbm [shape: f32[2,1,128], index: 0, kind: input, shape index: {}]
  %s1 = inlined_call_operand.hbm [shape: f32[8,128], index: 1, kind: input, shape index: {}]
  %s2 = inlined_call_operand.hbm [shape: f32[128,5376], index: 2, kind: input, shape index: {}]
  %s3 = inlined_call_operand.hbm [shape: f32[8,5376], index: 3, kind: input, shape index: {}]
  %s4 = inlined_call_operand.hbm [shape: f32[8,72], index: 4, kind: input, shape index: {}]
  %s5 = inlined_call_operand.hbm [shape: f32[8,5376], index: 5, kind: input, shape index: {}]
  %s6 = inlined_call_operand.hbm [shape: f32[12,32], index: 6, kind: input, shape index: {}]
  %s7 = inlined_call_operand.hbm [shape: f32[12,5376], index: 7, kind: input, shape index: {}]
  %s8 = inlined_call_operand.vmem [shape: f32[2,12,5376], index: 8, kind: output, shape index: {}]
  %s9 = sld [smem:[#allocation0]]
  $region97: #{tpu_custom_call.1} parent=0
    _
  %s11 = ssub.s32 1, %s9
  %s12 = scalar_select 0, %s11, %s9
  $region1: #{tpu_custom_call.1} parent=0
    #allocation3 [shape = 'u8[1024]{0}', space=vmem, size = 0x400, scoped, tag = 'input window, operand 0']
    #allocation4 [shape = 's32[2]{0}', space=sflag, size = 0x8, scoped, tag = 'scoped memory for tpu_custom_call.1']
    #allocation5 [shape = 'u8[4096]{0}', space=vmem, size = 0x1000, scoped, tag = 'input window, operand 1, single buffered']
    #allocation6 [shape = 's32[1]{0}', space=sflag, size = 0x4, scoped, tag = 'scoped memory for tpu_custom_call.1']
    #allocation7 [shape = 'u8[2752512]{0}', space=vmem, size = 0x2a0000, scoped, tag = 'input window, operand 2, single buffered']
    #allocation8 [shape = 'u8[172032]{0}', space=vmem, size = 0x2a000, scoped, tag = 'input window, operand 3, single buffered']
    #allocation9 [shape = 's32[1]{0}', space=sflag, size = 0x4, scoped, tag = 'scoped memory for tpu_custom_call.1']
    #allocation10 [shape = 'u8[4096]{0}', space=vmem, size = 0x1000, scoped, tag = 'input window, operand 4, single buffered']
    #allocation11 [shape = 'u8[172032]{0}', space=vmem, size = 0x2a000, scoped, tag = 'input window, operand 5, single buffered']
    #allocation12 [shape = 's32[1]{0}', space=sflag, size = 0x4, scoped, tag = 'scoped memory for tpu_custom_call.1']
    #allocation13 [shape = 'u8[8192]{0}', space=vmem, size = 0x2000, scoped, tag = 'input window, operand 6, single buffered']
    #allocation14 [shape = 'u8[344064]{0}', space=vmem, size = 0x54000, scoped, tag = 'input window, operand 7, single buffered']
    #allocation15 [shape = 's32[1]{0}', space=sflag, size = 0x4, scoped, tag = 'scoped memory for tpu_custom_call.1']
    %13 = vsyncpa [#allocation4], 0
    %s14 = scalar_lea.sflag [#allocation4], 1
    %15 = vsyncpa %s14, 0
    %16 = vsyncpa [#allocation6], 0
    %17 = vsyncpa [#allocation9], 0
    %18 = vsyncpa [#allocation12], 0
    %19 = vsyncpa [#allocation15], 0
    loop: start=0, step=1, limit=4
    $region2: #{tpu_custom_call.1} parent=1 // loop_pre_header
      _
    $region3: #{tpu_custom_call.1} parent=1 // loop_header
      %s21 = sphi 0, %s25
      %p22 = scmp.ge.s32.totalorder %s21, 4
      %s31 = sphi 0, %s33
      %s34 = sphi 0, %s31
      %s35 = sphi 0, %s34
      %s51 = sphi 0, %s35
      %s55 = sphi 0, %s55
      %s57 = sphi 0, %s55
      %s58 = sphi 0, %s57
      %s72 = sphi 0, %s58
      %s76 = sphi 0, %s76
      %s78 = sphi 0, %s76
      %s79 = sphi 0, %s78
      %s93 = sphi 0, %s79
      %s97 = sphi 0, %s97
      %s99 = sphi 0, %s97
      %s100 = sphi 0, %s99
      %s114 = sphi 0, %s100
      %s118 = sphi 0, %s118
      %s120 = sphi 0, %s118
      %s121 = sphi 0, %s120
      %s135 = sphi 0, %s121
      %s139 = sphi 0, %s139
      %s141 = sphi 0, %s139
      %s142 = sphi 0, %s141
      %s156 = sphi 0, %s142
      %s160 = sphi 0, %s160
      %s162 = sphi 0, %s160
      %s163 = sphi 0, %s162
      %s177 = sphi 0, %s163
      %s181 = sphi 0, %s181
      %s183 = sphi 0, %s181
      %s184 = sphi 0, %s183
      %s198 = sphi 0, %s184
      %s204 = sphi 0, %s206
      %s207 = sphi 0, %s204
      %s208 = sphi 0, %s207
      %s224 = sphi 0, %s208
    $region4: #{tpu_custom_call.1} parent=1 // loop_header_branch
      %24 = sbr.rel (%p22) target = $region8
    $region5: #{tpu_custom_call.1} parent=1 // loop_body
      %s26 = ssub.s32 %s21, 1
      %s27 = ssub.s32 %s21, 2
      %s28 = sadd.s32 %s21, 1
      %s29 = ssub.s32 %s21, %s28
      %p30 = scmp.eq.s32.totalorder %s29, 0
      %s32 = sadd.s32 %s31, 1
      %s33 = scalar_select %p30, %s31, %s32
      %p36 = pneg %p30
      %p37 = scmp.eq.s32.totalorder %s21, 1
      %p38 = por %p36, %p37
      %p39 = scmp.ne.s32.totalorder %s31, %s34
      %p40 = scmp.eq.s32.totalorder %s21, 0
      %p41 = por %p39, %p40
      %p42 = scmp.ne.s32.totalorder %s31, %s34
      %p43 = scmp.eq.s32.totalorder %s26, 1
      %p44 = por %p42, %p43
      %p45 = scmp.ne.s32.totalorder %s34, %s35
      %p46 = scmp.eq.s32.totalorder %s26, 0
      %p47 = por %p45, %p46
      %p48 = scmp.ne.s32.totalorder %s34, %s35
      %p49 = scmp.eq.s32.totalorder %s27, 1
      %p50 = por %p48, %p49
      %p52 = scmp.ne.s32.totalorder %s35, %s51
      %p53 = scmp.eq.s32.totalorder %s27, 0
      %p54 = por %p52, %p53
      %s56 = sadd.s32 %s55, 1
      %p59 = scmp.eq.s32.totalorder %s21, 1
      %p60 = scmp.ne.s32.totalorder %s55, %s57
      %p61 = scmp.eq.s32.totalorder %s21, 0
      %p62 = por %p60, %p61
      %p63 = scmp.ne.s32.totalorder %s55, %s57
      %p64 = scmp.eq.s32.totalorder %s26, 1
      %p65 = por %p63, %p64
      %p66 = scmp.ne.s32.totalorder %s57, %s58
      %p67 = scmp.eq.s32.totalorder %s26, 0
      %p68 = por %p66, %p67
      %p69 = scmp.ne.s32.totalorder %s57, %s58
      %p70 = scmp.eq.s32.totalorder %s27, 1
      %p71 = por %p69, %p70
      %p73 = scmp.ne.s32.totalorder %s58, %s72
      %p74 = scmp.eq.s32.totalorder %s27, 0
      %p75 = por %p73, %p74
      %s77 = sadd.s32 %s76, 1
      %p80 = scmp.eq.s32.totalorder %s21, 1
      %p81 = scmp.ne.s32.totalorder %s76, %s78
      %p82 = scmp.eq.s32.totalorder %s21, 0
      %p83 = por %p81, %p82
      %p84 = scmp.ne.s32.totalorder %s76, %s78
      %p85 = scmp.eq.s32.totalorder %s26, 1
      %p86 = por %p84, %p85
      %p87 = scmp.ne.s32.totalorder %s78, %s79
      %p88 = scmp.eq.s32.totalorder %s26, 0
      %p89 = por %p87, %p88
      %p90 = scmp.ne.s32.totalorder %s78, %s79
      %p91 = scmp.eq.s32.totalorder %s27, 1
      %p92 = por %p90, %p91
      %p94 = scmp.ne.s32.totalorder %s79, %s93
      %p95 = scmp.eq.s32.totalorder %s27, 0
      %p96 = por %p94, %p95
      %s98 = sadd.s32 %s97, 1
      %p101 = scmp.eq.s32.totalorder %s21, 1
      %p102 = scmp.ne.s32.totalorder %s97, %s99
      %p103 = scmp.eq.s32.totalorder %s21, 0
      %p104 = por %p102, %p103
      %p105 = scmp.ne.s32.totalorder %s97, %s99
      %p106 = scmp.eq.s32.totalorder %s26, 1
      %p107 = por %p105, %p106
      %p108 = scmp.ne.s32.totalorder %s99, %s100
      %p109 = scmp.eq.s32.totalorder %s26, 0
      %p110 = por %p108, %p109
      %p111 = scmp.ne.s32.totalorder %s99, %s100
      %p112 = scmp.eq.s32.totalorder %s27, 1
      %p113 = por %p111, %p112
      %p115 = scmp.ne.s32.totalorder %s100, %s114
      %p116 = scmp.eq.s32.totalorder %s27, 0
      %p117 = por %p115, %p116
      %s119 = sadd.s32 %s118, 1
      %p122 = scmp.eq.s32.totalorder %s21, 1
      %p123 = scmp.ne.s32.totalorder %s118, %s120
      %p124 = scmp.eq.s32.totalorder %s21, 0
      %p125 = por %p123, %p124
      %p126 = scmp.ne.s32.totalorder %s118, %s120
      %p127 = scmp.eq.s32.totalorder %s26, 1
      %p128 = por %p126, %p127
      %p129 = scmp.ne.s32.totalorder %s120, %s121
      %p130 = scmp.eq.s32.totalorder %s26, 0
      %p131 = por %p129, %p130
      %p132 = scmp.ne.s32.totalorder %s120, %s121
      %p133 = scmp.eq.s32.totalorder %s27, 1
      %p134 = por %p132, %p133
      %p136 = scmp.ne.s32.totalorder %s121, %s135
      %p137 = scmp.eq.s32.totalorder %s27, 0
      %p138 = por %p136, %p137
      %s140 = sadd.s32 %s139, 1
      %p143 = scmp.eq.s32.totalorder %s21, 1
      %p144 = scmp.ne.s32.totalorder %s139, %s141
      %p145 = scmp.eq.s32.totalorder %s21, 0
      %p146 = por %p144, %p145
      %p147 = scmp.ne.s32.totalorder %s139, %s141
      %p148 = scmp.eq.s32.totalorder %s26, 1
      %p149 = por %p147, %p148
      %p150 = scmp.ne.s32.totalorder %s141, %s142
      %p151 = scmp.eq.s32.totalorder %s26, 0
      %p152 = por %p150, %p151
      %p153 = scmp.ne.s32.totalorder %s141, %s142
      %p154 = scmp.eq.s32.totalorder %s27, 1
      %p155 = por %p153, %p154
      %p157 = scmp.ne.s32.totalorder %s142, %s156
      %p158 = scmp.eq.s32.totalorder %s27, 0
      %p159 = por %p157, %p158
      %s161 = sadd.s32 %s160, 1
      %p164 = scmp.eq.s32.totalorder %s21, 1
      %p165 = scmp.ne.s32.totalorder %s160, %s162
      %p166 = scmp.eq.s32.totalorder %s21, 0
      %p167 = por %p165, %p166
      %p168 = scmp.ne.s32.totalorder %s160, %s162
      %p169 = scmp.eq.s32.totalorder %s26, 1
      %p170 = por %p168, %p169
      %p171 = scmp.ne.s32.totalorder %s162, %s163
      %p172 = scmp.eq.s32.totalorder %s26, 0
      %p173 = por %p171, %p172
      %p174 = scmp.ne.s32.totalorder %s162, %s163
      %p175 = scmp.eq.s32.totalorder %s27, 1
      %p176 = por %p174, %p175
      %p178 = scmp.ne.s32.totalorder %s163, %s177
      %p179 = scmp.eq.s32.totalorder %s27, 0
      %p180 = por %p178, %p179
      %s182 = sadd.s32 %s181, 1
      %p185 = scmp.eq.s32.totalorder %s21, 1
      %p186 = scmp.ne.s32.totalorder %s181, %s183
      %p187 = scmp.eq.s32.totalorder %s21, 0
      %p188 = por %p186, %p187
      %p189 = scmp.ne.s32.totalorder %s181, %s183
      %p190 = scmp.eq.s32.totalorder %s26, 1
      %p191 = por %p189, %p190
      %p192 = scmp.ne.s32.totalorder %s183, %s184
      %p193 = scmp.eq.s32.totalorder %s26, 0
      %p194 = por %p192, %p193
      %p195 = scmp.ne.s32.totalorder %s183, %s184
      %p196 = scmp.eq.s32.totalorder %s27, 1
      %p197 = por %p195, %p196
      %p199 = scmp.ne.s32.totalorder %s184, %s198
      %p200 = scmp.eq.s32.totalorder %s27, 0
      %p201 = por %p199, %p200
      %s202 = ssub.s32 %s21, %s28
      %p203 = scmp.eq.s32.totalorder %s202, 0
      %s205 = sadd.s32 %s204, 1
      %s206 = scalar_select %p203, %s204, %s205
      %p209 = pneg %p203
      %p210 = scmp.eq.s32.totalorder %s21, 1
      %p211 = por %p209, %p210
      %p212 = scmp.ne.s32.totalorder %s204, %s207
      %p213 = scmp.eq.s32.totalorder %s21, 0
      %p214 = por %p212, %p213
      %p215 = scmp.ne.s32.totalorder %s204, %s207
      %p216 = scmp.eq.s32.totalorder %s26, 1
      %p217 = por %p215, %p216
      %p218 = scmp.ne.s32.totalorder %s207, %s208
      %p219 = scmp.eq.s32.totalorder %s26, 0
      %p220 = por %p218, %p219
      %p221 = scmp.ne.s32.totalorder %s207, %s208
      %p222 = scmp.eq.s32.totalorder %s27, 1
      %p223 = por %p221, %p222
      %p225 = scmp.ne.s32.totalorder %s208, %s224
      %p226 = scmp.eq.s32.totalorder %s27, 0
      %p227 = por %p225, %p226
      %p228 = scmp.le.s32.totalorder 1, %s21
      %p229 = scmp.lt.s32.totalorder %s21, 3
      %p230 = pnand %p228, %p229
      %p231 = pneg %p230
      // Predicated region
      $region9: #{tpu_custom_call.1} parent=5 // pred_check
        _
      $region10: #{tpu_custom_call.1} parent=5 // pred_check_branch
        %233 = sbr.rel (%p230) target = $region12
      $region11: #{tpu_custom_call.1} parent=5 // pred_region
        %s234 = ssub.s32 %s21, 1
        // Predicated region
        $region13: #{tpu_custom_call.1} parent=11 // pred_check
          %p235 = pneg %p68
        $region14: #{tpu_custom_call.1} parent=11 // pred_check_branch
          %237 = sbr.rel (%p235) target = $region16
        $region15: #{tpu_custom_call.1} parent=11 // pred_region
          %239 = vsyncadd [#allocation6], 0
          %s241 = sshll.u32 %s1, 4
          %s242 = int_to_ptr.hbm [resolvable:$true] %s241
          %s243 = sshll.u32 [#allocation5], 4
          %s244 = int_to_ptr.vmem [resolvable:$true] %s243
          %246 = dma.hbm_to_vmem [thread:$0]  %s242, 128, %s244, [#allocation6]
        $region16: #{tpu_custom_call.1} parent=11 // pred_fallthru
          _
        // Predicated region
        $region17: #{tpu_custom_call.1} parent=11 // pred_check
          %p247 = pneg %p89
        $region18: #{tpu_custom_call.1} parent=11 // pred_check_branch
          %249 = sbr.rel (%p247) target = $region20
        $region19: #{tpu_custom_call.1} parent=11 // pred_region
          %251 = vsyncadd [#allocation6], 0
          %s252 = sshll.u32 %s2, 4
          %s253 = int_to_ptr.hbm [resolvable:$true] %s252
          %s254 = sshll.u32 [#allocation7], 4
          %s255 = int_to_ptr.vmem [resolvable:$true] %s254
          %260 = dma.hbm_to_vmem [thread:$0]  %s253, 86016, %s255, [#allocation6], 5376, 5376, 336
        $region20: #{tpu_custom_call.1} parent=11 // pred_fallthru
          _
        // Predicated region
        $region21: #{tpu_custom_call.1} parent=11 // pred_check
          %p261 = pneg %p110
        $region22: #{tpu_custom_call.1} parent=11 // pred_check_branch
          %263 = sbr.rel (%p261) target = $region24
        $region23: #{tpu_custom_call.1} parent=11 // pred_region
          %265 = vsyncadd [#allocation9], 0
          %s267 = sshll.u32 %s3, 4
          %s268 = int_to_ptr.hbm [resolvable:$true] %s267
          %s269 = sshll.u32 [#allocation8], 4
          %s270 = int_to_ptr.vmem [resolvable:$true] %s269
          %272 = dma.hbm_to_vmem [thread:$0]  %s268, 5376, %s270, [#allocation9]
        $region24: #{tpu_custom_call.1} parent=11 // pred_fallthru
          _
        // Predicated region
        $region25: #{tpu_custom_call.1} parent=11 // pred_check
          %p273 = pneg %p131
        $region26: #{tpu_custom_call.1} parent=11 // pred_check_branch
          %275 = sbr.rel (%p273) target = $region28
        $region27: #{tpu_custom_call.1} parent=11 // pred_region
          %277 = vsyncadd [#allocation9], 0
          %s279 = sshll.u32 %s4, 4
          %s280 = int_to_ptr.hbm [resolvable:$true] %s279
          %s281 = sshll.u32 [#allocation10], 4
          %s282 = int_to_ptr.vmem [resolvable:$true] %s281
          %284 = dma.hbm_to_vmem [thread:$0]  %s280, 128, %s282, [#allocation9]
        $region28: #{tpu_custom_call.1} parent=11 // pred_fallthru
          _
        // Predicated region
        $region29: #{tpu_custom_call.1} parent=11 // pred_check
          %p285 = pneg %p152
        $region30: #{tpu_custom_call.1} parent=11 // pred_check_branch
          %287 = sbr.rel (%p285) target = $region32
        $region31: #{tpu_custom_call.1} parent=11 // pred_region
          %289 = vsyncadd [#allocation12], 0
          %s291 = sshll.u32 %s5, 4
          %s292 = int_to_ptr.hbm [resolvable:$true] %s291
          %s293 = sshll.u32 [#allocation11], 4
          %s294 = int_to_ptr.vmem [resolvable:$true] %s293
          %296 = dma.hbm_to_vmem [thread:$0]  %s292, 5376, %s294, [#allocation12]
        $region32: #{tpu_custom_call.1} parent=11 // pred_fallthru
          _
        // Predicated region
        $region33: #{tpu_custom_call.1} parent=11 // pred_check
          %p297 = pneg %p173
        $region34: #{tpu_custom_call.1} parent=11 // pred_check_branch
          %299 = sbr.rel (%p297) target = $region36
        $region35: #{tpu_custom_call.1} parent=11 // pred_region
          %301 = vsyncadd [#allocation12], 0
          %s302 = sshll.u32 %s6, 4
          %s303 = int_to_ptr.hbm [resolvable:$true] %s302
          %s304 = sshll.u32 [#allocation13], 4
          %s305 = int_to_ptr.vmem [resolvable:$true] %s304
          %310 = dma.hbm_to_vmem [thread:$0]  %s303, 256, %s305, [#allocation12], 128, 128, 8
        $region36: #{tpu_custom_call.1} parent=11 // pred_fallthru
          _
        // Predicated region
        $region37: #{tpu_custom_call.1} parent=11 // pred_check
          %p311 = pneg %p194
        $region38: #{tpu_custom_call.1} parent=11 // pred_check_branch
          %313 = sbr.rel (%p311) target = $region40
        $region39: #{tpu_custom_call.1} parent=11 // pred_region
          %315 = vsyncadd [#allocation15], 0
          %s316 = sshll.u32 %s7, 4
          %s317 = int_to_ptr.hbm [resolvable:$true] %s316
          %s318 = sshll.u32 [#allocation14], 4
          %s319 = int_to_ptr.vmem [resolvable:$true] %s318
          %324 = dma.hbm_to_vmem [thread:$0]  %s317, 10752, %s319, [#allocation15], 5376, 5376, 336
        $region40: #{tpu_custom_call.1} parent=11 // pred_fallthru
          _
      $region12: #{tpu_custom_call.1} parent=5 // pred_fallthru
        _
      %p325 = scmp.lt.s32.totalorder %s21, 2
      // Predicated region
      $region41: #{tpu_custom_call.1} parent=5 // pred_check
        %p326 = pneg %p325
      $region42: #{tpu_custom_call.1} parent=5 // pred_check_branch
        %328 = sbr.rel (%p326) target = $region44
      $region43: #{tpu_custom_call.1} parent=5 // pred_region
        // Predicated region
        $region45: #{tpu_custom_call.1} parent=43 // pred_check
          %p329 = pneg %p41
        $region46: #{tpu_custom_call.1} parent=43 // pred_check_branch
          %331 = sbr.rel (%p329) target = $region48
        $region47: #{tpu_custom_call.1} parent=43 // pred_region
          %s332 = sand.u32 %s31, 1
          %s333 = scalar_lea.sflag [#allocation4], %s332
          %s334 = sand.u32 %s31, 1
          %s335 = scalar_lea.vmem [#allocation3], %s334
          %337 = vsyncadd %s333, 0
          %s338 = scalar_lea.hbm %s0, %s21
          %s340 = sshll.u32 %s338, 4
          %s341 = int_to_ptr.hbm [resolvable:$true] %s340
          %s342 = sshll.u32 %s335, 4
          %s343 = int_to_ptr.vmem [resolvable:$true] %s342
          %345 = dma.hbm_to_vmem [thread:$0]  %s341, 16, %s343, %s333
        $region48: #{tpu_custom_call.1} parent=43 // pred_fallthru
          _
      $region44: #{tpu_custom_call.1} parent=5 // pred_fallthru
        _
      %p346 = scmp.le.s32.totalorder 1, %s21
      %p347 = scmp.lt.s32.totalorder %s21, 3
      %p348 = pnand %p346, %p347
      %p349 = pneg %p348
      // Predicated region
      $region49: #{tpu_custom_call.1} parent=5 // pred_check
        _
      $region50: #{tpu_custom_call.1} parent=5 // pred_check_branch
        %351 = sbr.rel (%p348) target = $region52
      $region51: #{tpu_custom_call.1} parent=5 // pred_region
        %s352 = ssub.s32 %s21, 1
        %s353 = sand.u32 %s34, 1
        %s354 = scalar_lea.sflag [#allocation4], %s353
        %s355 = sand.u32 %s34, 1
        %s356 = scalar_lea.vmem [#allocation3], %s355
        // Predicated region
        $region53: #{tpu_custom_call.1} parent=51 // pred_check
          %p357 = pneg %p47
        $region54: #{tpu_custom_call.1} parent=51 // pred_check_branch
          %359 = sbr.rel (%p357) target = $region56
        $region55: #{tpu_custom_call.1} parent=51 // pred_region
          %361 = dma.done %s354, 16
        $region56: #{tpu_custom_call.1} parent=51 // pred_fallthru
          _
        // Predicated region
        $region57: #{tpu_custom_call.1} parent=51 // pred_check
          %p362 = pneg %p68
        $region58: #{tpu_custom_call.1} parent=51 // pred_check_branch
          %364 = sbr.rel (%p362) target = $region60
        $region59: #{tpu_custom_call.1} parent=51 // pred_region
          %366 = dma.done [#allocation6], 128
        $region60: #{tpu_custom_call.1} parent=51 // pred_fallthru
          _
        // Predicated region
        $region61: #{tpu_custom_call.1} parent=51 // pred_check
          %p367 = pneg %p89
        $region62: #{tpu_custom_call.1} parent=51 // pred_check_branch
          %369 = sbr.rel (%p367) target = $region64
        $region63: #{tpu_custom_call.1} parent=51 // pred_region
          %371 = dma.done [#allocation6], 86016
        $region64: #{tpu_custom_call.1} parent=51 // pred_fallthru
          _
        // Predicated region
        $region65: #{tpu_custom_call.1} parent=51 // pred_check
          %p372 = pneg %p110
        $region66: #{tpu_custom_call.1} parent=51 // pred_check_branch
          %374 = sbr.rel (%p372) target = $region68
        $region67: #{tpu_custom_call.1} parent=51 // pred_region
          %376 = dma.done [#allocation9], 5376
        $region68: #{tpu_custom_call.1} parent=51 // pred_fallthru
          _
        // Predicated region
        $region69: #{tpu_custom_call.1} parent=51 // pred_check
          %p377 = pneg %p131
        $region70: #{tpu_custom_call.1} parent=51 // pred_check_branch
          %379 = sbr.rel (%p377) target = $region72
        $region71: #{tpu_custom_call.1} parent=51 // pred_region
          %381 = dma.done [#allocation9], 128
        $region72: #{tpu_custom_call.1} parent=51 // pred_fallthru
          _
        // Predicated region
        $region73: #{tpu_custom_call.1} parent=51 // pred_check
          %p382 = pneg %p152
        $region74: #{tpu_custom_call.1} parent=51 // pred_check_branch
          %384 = sbr.rel (%p382) target = $region76
        $region75: #{tpu_custom_call.1} parent=51 // pred_region
          %386 = dma.done [#allocation12], 5376
        $region76: #{tpu_custom_call.1} parent=51 // pred_fallthru
          _
        // Predicated region
        $region77: #{tpu_custom_call.1} parent=51 // pred_check
          %p387 = pneg %p173
        $region78: #{tpu_custom_call.1} parent=51 // pred_check_branch
          %389 = sbr.rel (%p387) target = $region80
        $region79: #{tpu_custom_call.1} parent=51 // pred_region
          %391 = dma.done [#allocation12], 256
        $region80: #{tpu_custom_call.1} parent=51 // pred_fallthru
          _
        // Predicated region
        $region81: #{tpu_custom_call.1} parent=51 // pred_check
          %p392 = pneg %p194
        $region82: #{tpu_custom_call.1} parent=51 // pred_check_branch
          %394 = sbr.rel (%p392) target = $region84
        $region83: #{tpu_custom_call.1} parent=51 // pred_region
          %396 = dma.done [#allocation15], 10752
        $region84: #{tpu_custom_call.1} parent=51 // pred_fallthru
          _
        %s397 = sand.u32 %s34, 1
        %s398 = scalar_lea.sflag [#allocation4], %s397
        %s399 = sand.u32 %s34, 1
        %s400 = scalar_lea.vmem [#allocation3], %s399
        %p401 = pneg %p47
        %p402 = pneg %p44
        %p403 = pneg %p68
        %p404 = pneg %p65
        %p405 = pneg %p89
        %p406 = pneg %p86
        %p407 = pneg %p110
        %p408 = pneg %p107
        %p409 = pneg %p131
        %p410 = pneg %p128
        %p411 = pneg %p152
        %p412 = pneg %p149
        %p413 = pneg %p173
        %p414 = pneg %p170
        %p415 = pneg %p194
        %p416 = pneg %p191
        %p417 = pneg %p220
        %p418 = pneg %p217
        %p419 = scmp.lt.s32.totalorder %s26, 1
        %s420 = scalar_select %p419, %s26, 1
        %s421 = smul.addr %s420, 84
        %s422 = smul.addr %s421, 8
        %s423 = scalar_lea.vmem %s8, %s422
        %p424 = scmp.lt.s32.totalorder %s26, 1
        %s425 = scalar_select %p424, %s26, 1
        %s426 = smul.addr %s425, 84
        %s427 = smul.addr %s426, 8
        %s428 = scalar_lea.vmem %s8, %s427
        %v429 = vld [vmem:[#allocation5] sm:$0xff]
        %v430 = vld [vmem:[%s356] sm:$0x1]
        %v432 = vperm.slane %v430, 0
        %v434 = vmul.f32 %v429, %v432
        %v435 = vld [vmem:[#allocation7] sm:$0xff]
        %v436 = vld [vmem:[#allocation7 + $0x8] sm:$0xff]
        %v437 = vld [vmem:[#allocation7 + $0x10] sm:$0xff]
        %v438 = vld [vmem:[#allocation7 + $0x18] sm:$0xff]
        %v439 = vld [vmem:[#allocation7 + $0x20] sm:$0xff]
        %v440 = vld [vmem:[#allocation7 + $0x28] sm:$0xff]
        %v441 = vld [vmem:[#allocation7 + $0x30] sm:$0xff]
        %v442 = vld [vmem:[#allocation7 + $0x38] sm:$0xff]
        %v443 = vld [vmem:[#allocation7 + $0x40] sm:$0xff]
        %v444 = vld [vmem:[#allocation7 + $0x48] sm:$0xff]
        %v445 = vld [vmem:[#allocation7 + $0x50] sm:$0xff]
        %v446 = vld [vmem:[#allocation7 + $0x58] sm:$0xff]
        %v447 = vld [vmem:[#allocation7 + $0x60] sm:$0xff]
        %v448 = vld [vmem:[#allocation7 + $0x68] sm:$0xff]
        %v449 = vld [vmem:[#allocation7 + $0x70] sm:$0xff]
        %v450 = vld [vmem:[#allocation7 + $0x78] sm:$0xff]
        %v451 = vld [vmem:[#allocation7 + $0x80] sm:$0xff]
        %v452 = vld [vmem:[#allocation7 + $0x88] sm:$0xff]
        %v453 = vld [vmem:[#allocation7 + $0x90] sm:$0xff]
        %v454 = vld [vmem:[#allocation7 + $0x98] sm:$0xff]
        %v455 = vld [vmem:[#allocation7 + $0xa0] sm:$0xff]
        %v456 = vld [vmem:[#allocation7 + $0xa8] sm:$0xff]
        %v457 = vld [vmem:[#allocation7 + $0xb0] sm:$0xff]
        %v458 = vld [vmem:[#allocation7 + $0xb8] sm:$0xff]
        %v459 = vld [vmem:[#allocation7 + $0xc0] sm:$0xff]
        %v460 = vld [vmem:[#allocation7 + $0xc8] sm:$0xff]
        %v461 = vld [vmem:[#allocation7 + $0xd0] sm:$0xff]
        %v462 = vld [vmem:[#allocation7 + $0xd8] sm:$0xff]
        %v463 = vld [vmem:[#allocation7 + $0xe0] sm:$0xff]
        %v464 = vld [vmem:[#allocation7 + $0xe8] sm:$0xff]
        %v465 = vld [vmem:[#allocation7 + $0xf0] sm:$0xff]
        %v466 = vld [vmem:[#allocation7 + $0xf8] sm:$0xff]
        %v467 = vld [vmem:[#allocation7 + $0x100] sm:$0xff]
        %v468 = vld [vmem:[#allocation7 + $0x108] sm:$0xff]
        %v469 = vld [vmem:[#allocation7 + $0x110] sm:$0xff]
        %v470 = vld [vmem:[#allocation7 + $0x118] sm:$0xff]
        %v471 = vld [vmem:[#allocation7 + $0x120] sm:$0xff]
        %v472 = vld [vmem:[#allocation7 + $0x128] sm:$0xff]
        %v473 = vld [vmem:[#allocation7 + $0x130] sm:$0xff]
        %v474 = vld [vmem:[#allocation7 + $0x138] sm:$0xff]
        %v475 = vld [vmem:[#allocation7 + $0x140] sm:$0xff]
        %v476 = vld [vmem:[#allocation7 + $0x148] sm:$0xff]
        %v477 = vld [vmem:[#allocation7 + $0x150] sm:$0xff]
        %v478 = vld [vmem:[#allocation7 + $0x158] sm:$0xff]
        %v479 = vld [vmem:[#allocation7 + $0x160] sm:$0xff]
        %v480 = vld [vmem:[#allocation7 + $0x168] sm:$0xff]
        %v481 = vld [vmem:[#allocation7 + $0x170] sm:$0xff]
        %v482 = vld [vmem:[#allocation7 + $0x178] sm:$0xff]
        %v483 = vld [vmem:[#allocation7 + $0x180] sm:$0xff]
        %v484 = vld [vmem:[#allocation7 + $0x188] sm:$0xff]
        %v485 = vld [vmem:[#allocation7 + $0x190] sm:$0xff]
        %v486 = vld [vmem:[#allocation7 + $0x198] sm:$0xff]
        %v487 = vld [vmem:[#allocation7 + $0x1a0] sm:$0xff]
        %v488 = vld [vmem:[#allocation7 + $0x1a8] sm:$0xff]
        %v489 = vld [vmem:[#allocation7 + $0x1b0] sm:$0xff]
        %v490 = vld [vmem:[#allocation7 + $0x1b8] sm:$0xff]
        %v491 = vld [vmem:[#allocation7 + $0x1c0] sm:$0xff]
        %v492 = vld [vmem:[#allocation7 + $0x1c8] sm:$0xff]
        %v493 = vld [vmem:[#allocation7 + $0x1d0] sm:$0xff]
        %v494 = vld [vmem:[#allocation7 + $0x1d8] sm:$0xff]
        %v495 = vld [vmem:[#allocation7 + $0x1e0] sm:$0xff]
        %v496 = vld [vmem:[#allocation7 + $0x1e8] sm:$0xff]
        %v497 = vld [vmem:[#allocation7 + $0x1f0] sm:$0xff]
        %v498 = vld [vmem:[#allocation7 + $0x1f8] sm:$0xff]
        %v499 = vld [vmem:[#allocation7 + $0x200] sm:$0xff]
        %v500 = vld [vmem:[#allocation7 + $0x208] sm:$0xff]
        %v501 = vld [vmem:[#allocation7 + $0x210] sm:$0xff]
        %v502 = vld [vmem:[#allocation7 + $0x218] sm:$0xff]
        %v503 = vld [vmem:[#allocation7 + $0x220] sm:$0xff]
        %v504 = vld [vmem:[#allocation7 + $0x228] sm:$0xff]
        %v505 = vld [vmem:[#allocation7 + $0x230] sm:$0xff]
        %v506 = vld [vmem:[#allocation7 + $0x238] sm:$0xff]
        %v507 = vld [vmem:[#allocation7 + $0x240] sm:$0xff]
        %v508 = vld [vmem:[#allocation7 + $0x248] sm:$0xff]
        %v509 = vld [vmem:[#allocation7 + $0x250] sm:$0xff]
        %v510 = vld [vmem:[#allocation7 + $0x258] sm:$0xff]
        %v511 = vld [vmem:[#allocation7 + $0x260] sm:$0xff]
        %v512 = vld [vmem:[#allocation7 + $0x268] sm:$0xff]
        %v513 = vld [vmem:[#allocation7 + $0x270] sm:$0xff]
        %v514 = vld [vmem:[#allocation7 + $0x278] sm:$0xff]
        %v515 = vld [vmem:[#allocation7 + $0x280] sm:$0xff]
        %v516 = vld [vmem:[#allocation7 + $0x288] sm:$0xff]
        %v517 = vld [vmem:[#allocation7 + $0x290] sm:$0xff]
        %v518 = vld [vmem:[#allocation7 + $0x298] sm:$0xff]
        %v519 = vld [vmem:[#allocation7 + $0x2a0] sm:$0xff]
        %v520 = vld [vmem:[#allocation7 + $0x2a8] sm:$0xff]
        %v521 = vld [vmem:[#allocation7 + $0x2b0] sm:$0xff]
        %v522 = vld [vmem:[#allocation7 + $0x2b8] sm:$0xff]
        %v523 = vld [vmem:[#allocation7 + $0x2c0] sm:$0xff]
        %v524 = vld [vmem:[#allocation7 + $0x2c8] sm:$0xff]
        %v525 = vld [vmem:[#allocation7 + $0x2d0] sm:$0xff]
        %v526 = vld [vmem:[#allocation7 + $0x2d8] sm:$0xff]
        %v527 = vld [vmem:[#allocation7 + $0x2e0] sm:$0xff]
        %v528 = vld [vmem:[#allocation7 + $0x2e8] sm:$0xff]
        %v529 = vld [vmem:[#allocation7 + $0x2f0] sm:$0xff]
        %v530 = vld [vmem:[#allocation7 + $0x2f8] sm:$0xff]
        %v531 = vld [vmem:[#allocation7 + $0x300] sm:$0xff]
        %v532 = vld [vmem:[#allocation7 + $0x308] sm:$0xff]
        %v533 = vld [vmem:[#allocation7 + $0x310] sm:$0xff]
        %v534 = vld [vmem:[#allocation7 + $0x318] sm:$0xff]
        %v535 = vld [vmem:[#allocation7 + $0x320] sm:$0xff]
        %v536 = vld [vmem:[#allocation7 + $0x328] sm:$0xff]
        %v537 = vld [vmem:[#allocation7 + $0x330] sm:$0xff]
        %v538 = vld [vmem:[#allocation7 + $0x338] sm:$0xff]
        %v539 = vld [vmem:[#allocation7 + $0x340] sm:$0xff]
        %v540 = vld [vmem:[#allocation7 + $0x348] sm:$0xff]
        %v541 = vld [vmem:[#allocation7 + $0x350] sm:$0xff]
        %v542 = vld [vmem:[#allocation7 + $0x358] sm:$0xff]
        %v543 = vld [vmem:[#allocation7 + $0x360] sm:$0xff]
        %v544 = vld [vmem:[#allocation7 + $0x368] sm:$0xff]
        %v545 = vld [vmem:[#allocation7 + $0x370] sm:$0xff]
        %v546 = vld [vmem:[#allocation7 + $0x378] sm:$0xff]
        %v547 = vld [vmem:[#allocation7 + $0x380] sm:$0xff]
        %v548 = vld [vmem:[#allocation7 + $0x388] sm:$0xff]
        %v549 = vld [vmem:[#allocation7 + $0x390] sm:$0xff]
        %v550 = vld [vmem:[#allocation7 + $0x398] sm:$0xff]
        %v551 = vld [vmem:[#allocation7 + $0x3a0] sm:$0xff]
        %v552 = vld [vmem:[#allocation7 + $0x3a8] sm:$0xff]
        %v553 = vld [vmem:[#allocation7 + $0x3b0] sm:$0xff]
        %v554 = vld [vmem:[#allocation7 + $0x3b8] sm:$0xff]
        %v555 = vld [vmem:[#allocation7 + $0x3c0] sm:$0xff]
        %v556 = vld [vmem:[#allocation7 + $0x3c8] sm:$0xff]
        %v557 = vld [vmem:[#allocation7 + $0x3d0] sm:$0xff]
        %v558 = vld [vmem:[#allocation7 + $0x3d8] sm:$0xff]
        %v559 = vld [vmem:[#allocation7 + $0x3e0] sm:$0xff]
        %v560 = vld [vmem:[#allocation7 + $0x3e8] sm:$0xff]
        %v561 = vld [vmem:[#allocation7 + $0x3f0] sm:$0xff]
        %v562 = vld [vmem:[#allocation7 + $0x3f8] sm:$0xff]
        %v563 = vld [vmem:[#allocation7 + $0x400] sm:$0xff]
        %v564 = vld [vmem:[#allocation7 + $0x408] sm:$0xff]
        %v565 = vld [vmem:[#allocation7 + $0x410] sm:$0xff]
        %v566 = vld [vmem:[#allocation7 + $0x418] sm:$0xff]
        %v567 = vld [vmem:[#allocation7 + $0x420] sm:$0xff]
        %v568 = vld [vmem:[#allocation7 + $0x428] sm:$0xff]
        %v569 = vld [vmem:[#allocation7 + $0x430] sm:$0xff]
        %v570 = vld [vmem:[#allocation7 + $0x438] sm:$0xff]
        %v571 = vld [vmem:[#allocation7 + $0x440] sm:$0xff]
        %v572 = vld [vmem:[#allocation7 + $0x448] sm:$0xff]
        %v573 = vld [vmem:[#allocation7 + $0x450] sm:$0xff]
        %v574 = vld [vmem:[#allocation7 + $0x458] sm:$0xff]
        %v575 = vld [vmem:[#allocation7 + $0x460] sm:$0xff]
        %v576 = vld [vmem:[#allocation7 + $0x468] sm:$0xff]
        %v577 = vld [vmem:[#allocation7 + $0x470] sm:$0xff]
        %v578 = vld [vmem:[#allocation7 + $0x478] sm:$0xff]
        %v579 = vld [vmem:[#allocation7 + $0x480] sm:$0xff]
        %v580 = vld [vmem:[#allocation7 + $0x488] sm:$0xff]
        %v581 = vld [vmem:[#allocation7 + $0x490] sm:$0xff]
        %v582 = vld [vmem:[#allocation7 + $0x498] sm:$0xff]
        %v583 = vld [vmem:[#allocation7 + $0x4a0] sm:$0xff]
        %v584 = vld [vmem:[#allocation7 + $0x4a8] sm:$0xff]
        %v585 = vld [vmem:[#allocation7 + $0x4b0] sm:$0xff]
        %v586 = vld [vmem:[#allocation7 + $0x4b8] sm:$0xff]
        %v587 = vld [vmem:[#allocation7 + $0x4c0] sm:$0xff]
        %v588 = vld [vmem:[#allocation7 + $0x4c8] sm:$0xff]
        %v589 = vld [vmem:[#allocation7 + $0x4d0] sm:$0xff]
        %v590 = vld [vmem:[#allocation7 + $0x4d8] sm:$0xff]
        %v591 = vld [vmem:[#allocation7 + $0x4e0] sm:$0xff]
        %v592 = vld [vmem:[#allocation7 + $0x4e8] sm:$0xff]
        %v593 = vld [vmem:[#allocation7 + $0x4f0] sm:$0xff]
        %v594 = vld [vmem:[#allocation7 + $0x4f8] sm:$0xff]
        %v595 = vld [vmem:[#allocation7 + $0x500] sm:$0xff]
        %v596 = vld [vmem:[#allocation7 + $0x508] sm:$0xff]
        %v597 = vld [vmem:[#allocation7 + $0x510] sm:$0xff]
        %v598 = vld [vmem:[#allocation7 + $0x518] sm:$0xff]
        %v599 = vld [vmem:[#allocation7 + $0x520] sm:$0xff]
        %v600 = vld [vmem:[#allocation7 + $0x528] sm:$0xff]
        %v601 = vld [vmem:[#allocation7 + $0x530] sm:$0xff]
        %v602 = vld [vmem:[#allocation7 + $0x538] sm:$0xff]
        %v603 = vld [vmem:[#allocation7 + $0x540] sm:$0xff]
        %v604 = vld [vmem:[#allocation7 + $0x548] sm:$0xff]
        %v605 = vld [vmem:[#allocation7 + $0x550] sm:$0xff]
        %v606 = vld [vmem:[#allocation7 + $0x558] sm:$0xff]
        %v607 = vld [vmem:[#allocation7 + $0x560] sm:$0xff]
        %v608 = vld [vmem:[#allocation7 + $0x568] sm:$0xff]
        %v609 = vld [vmem:[#allocation7 + $0x570] sm:$0xff]
        %v610 = vld [vmem:[#allocation7 + $0x578] sm:$0xff]
        %v611 = vld [vmem:[#allocation7 + $0x580] sm:$0xff]
        %v612 = vld [vmem:[#allocation7 + $0x588] sm:$0xff]
        %v613 = vld [vmem:[#allocation7 + $0x590] sm:$0xff]
        %v614 = vld [vmem:[#allocation7 + $0x598] sm:$0xff]
        %v615 = vld [vmem:[#allocation7 + $0x5a0] sm:$0xff]
        %v616 = vld [vmem:[#allocation7 + $0x5a8] sm:$0xff]
        %v617 = vld [vmem:[#allocation7 + $0x5b0] sm:$0xff]
        %v618 = vld [vmem:[#allocation7 + $0x5b8] sm:$0xff]
        %v619 = vld [vmem:[#allocation7 + $0x5c0] sm:$0xff]
        %v620 = vld [vmem:[#allocation7 + $0x5c8] sm:$0xff]
        %v621 = vld [vmem:[#allocation7 + $0x5d0] sm:$0xff]
        %v622 = vld [vmem:[#allocation7 + $0x5d8] sm:$0xff]
        %v623 = vld [vmem:[#allocation7 + $0x5e0] sm:$0xff]
        %v624 = vld [vmem:[#allocation7 + $0x5e8] sm:$0xff]
        %v625 = vld [vmem:[#allocation7 + $0x5f0] sm:$0xff]
        %v626 = vld [vmem:[#allocation7 + $0x5f8] sm:$0xff]
        %v627 = vld [vmem:[#allocation7 + $0x600] sm:$0xff]
        %v628 = vld [vmem:[#allocation7 + $0x608] sm:$0xff]
        %v629 = vld [vmem:[#allocation7 + $0x610] sm:$0xff]
        %v630 = vld [vmem:[#allocation7 + $0x618] sm:$0xff]
        %v631 = vld [vmem:[#allocation7 + $0x620] sm:$0xff]
        %v632 = vld [vmem:[#allocation7 + $0x628] sm:$0xff]
        %v633 = vld [vmem:[#allocation7 + $0x630] sm:$0xff]
        %v634 = vld [vmem:[#allocation7 + $0x638] sm:$0xff]
        %v635 = vld [vmem:[#allocation7 + $0x640] sm:$0xff]
        %v636 = vld [vmem:[#allocation7 + $0x648] sm:$0xff]
        %v637 = vld [vmem:[#allocation7 + $0x650] sm:$0xff]
        %v638 = vld [vmem:[#allocation7 + $0x658] sm:$0xff]
        %v639 = vld [vmem:[#allocation7 + $0x660] sm:$0xff]
        %v640 = vld [vmem:[#allocation7 + $0x668] sm:$0xff]
        %v641 = vld [vmem:[#allocation7 + $0x670] sm:$0xff]
        %v642 = vld [vmem:[#allocation7 + $0x678] sm:$0xff]
        %v643 = vld [vmem:[#allocation7 + $0x680] sm:$0xff]
        %v644 = vld [vmem:[#allocation7 + $0x688] sm:$0xff]
        %v645 = vld [vmem:[#allocation7 + $0x690] sm:$0xff]
        %v646 = vld [vmem:[#allocation7 + $0x698] sm:$0xff]
        %v647 = vld [vmem:[#allocation7 + $0x6a0] sm:$0xff]
        %v648 = vld [vmem:[#allocation7 + $0x6a8] sm:$0xff]
        %v649 = vld [vmem:[#allocation7 + $0x6b0] sm:$0xff]
        %v650 = vld [vmem:[#allocation7 + $0x6b8] sm:$0xff]
        %v651 = vld [vmem:[#allocation7 + $0x6c0] sm:$0xff]
        %v652 = vld [vmem:[#allocation7 + $0x6c8] sm:$0xff]
        %v653 = vld [vmem:[#allocation7 + $0x6d0] sm:$0xff]
        %v654 = vld [vmem:[#allocation7 + $0x6d8] sm:$0xff]
        %v655 = vld [vmem:[#allocation7 + $0x6e0] sm:$0xff]
        %v656 = vld [vmem:[#allocation7 + $0x6e8] sm:$0xff]
        %v657 = vld [vmem:[#allocation7 + $0x6f0] sm:$0xff]
        %v658 = vld [vmem:[#allocation7 + $0x6f8] sm:$0xff]
        %v659 = vld [vmem:[#allocation7 + $0x700] sm:$0xff]
        %v660 = vld [vmem:[#allocation7 + $0x708] sm:$0xff]
        %v661 = vld [vmem:[#allocation7 + $0x710] sm:$0xff]
        %v662 = vld [vmem:[#allocation7 + $0x718] sm:$0xff]
        %v663 = vld [vmem:[#allocation7 + $0x720] sm:$0xff]
        %v664 = vld [vmem:[#allocation7 + $0x728] sm:$0xff]
        %v665 = vld [vmem:[#allocation7 + $0x730] sm:$0xff]
        %v666 = vld [vmem:[#allocation7 + $0x738] sm:$0xff]
        %v667 = vld [vmem:[#allocation7 + $0x740] sm:$0xff]
        %v668 = vld [vmem:[#allocation7 + $0x748] sm:$0xff]
        %v669 = vld [vmem:[#allocation7 + $0x750] sm:$0xff]
        %v670 = vld [vmem:[#allocation7 + $0x758] sm:$0xff]
        %v671 = vld [vmem:[#allocation7 + $0x760] sm:$0xff]
        %v672 = vld [vmem:[#allocation7 + $0x768] sm:$0xff]
        %v673 = vld [vmem:[#allocation7 + $0x770] sm:$0xff]
        %v674 = vld [vmem:[#allocation7 + $0x778] sm:$0xff]
        %v675 = vld [vmem:[#allocation7 + $0x780] sm:$0xff]
        %v676 = vld [vmem:[#allocation7 + $0x788] sm:$0xff]
        %v677 = vld [vmem:[#allocation7 + $0x790] sm:$0xff]
        %v678 = vld [vmem:[#allocation7 + $0x798] sm:$0xff]
        %v679 = vld [vmem:[#allocation7 + $0x7a0] sm:$0xff]
        %v680 = vld [vmem:[#allocation7 + $0x7a8] sm:$0xff]
        %v681 = vld [vmem:[#allocation7 + $0x7b0] sm:$0xff]
        %v682 = vld [vmem:[#allocation7 + $0x7b8] sm:$0xff]
        %v683 = vld [vmem:[#allocation7 + $0x7c0] sm:$0xff]
        %v684 = vld [vmem:[#allocation7 + $0x7c8] sm:$0xff]
        %v685 = vld [vmem:[#allocation7 + $0x7d0] sm:$0xff]
        %v686 = vld [vmem:[#allocation7 + $0x7d8] sm:$0xff]
        %v687 = vld [vmem:[#allocation7 + $0x7e0] sm:$0xff]
        %v688 = vld [vmem:[#allocation7 + $0x7e8] sm:$0xff]
        %v689 = vld [vmem:[#allocation7 + $0x7f0] sm:$0xff]
        %v690 = vld [vmem:[#allocation7 + $0x7f8] sm:$0xff]
        %v691 = vld [vmem:[#allocation7 + $0x800] sm:$0xff]
        %v692 = vld [vmem:[#allocation7 + $0x808] sm:$0xff]
        %v693 = vld [vmem:[#allocation7 + $0x810] sm:$0xff]
        %v694 = vld [vmem:[#allocation7 + $0x818] sm:$0xff]
        %v695 = vld [vmem:[#allocation7 + $0x820] sm:$0xff]
        %v696 = vld [vmem:[#allocation7 + $0x828] sm:$0xff]
        %v697 = vld [vmem:[#allocation7 + $0x830] sm:$0xff]
        %v698 = vld [vmem:[#allocation7 + $0x838] sm:$0xff]
        %v699 = vld [vmem:[#allocation7 + $0x840] sm:$0xff]
        %v700 = vld [vmem:[#allocation7 + $0x848] sm:$0xff]
        %v701 = vld [vmem:[#allocation7 + $0x850] sm:$0xff]
        %v702 = vld [vmem:[#allocation7 + $0x858] sm:$0xff]
        %v703 = vld [vmem:[#allocation7 + $0x860] sm:$0xff]
        %v704 = vld [vmem:[#allocation7 + $0x868] sm:$0xff]
        %v705 = vld [vmem:[#allocation7 + $0x870] sm:$0xff]
        %v706 = vld [vmem:[#allocation7 + $0x878] sm:$0xff]
        %v707 = vld [vmem:[#allocation7 + $0x880] sm:$0xff]
        %v708 = vld [vmem:[#allocation7 + $0x888] sm:$0xff]
        %v709 = vld [vmem:[#allocation7 + $0x890] sm:$0xff]
        %v710 = vld [vmem:[#allocation7 + $0x898] sm:$0xff]
        %v711 = vld [vmem:[#allocation7 + $0x8a0] sm:$0xff]
        %v712 = vld [vmem:[#allocation7 + $0x8a8] sm:$0xff]
        %v713 = vld [vmem:[#allocation7 + $0x8b0] sm:$0xff]
        %v714 = vld [vmem:[#allocation7 + $0x8b8] sm:$0xff]
        %v715 = vld [vmem:[#allocation7 + $0x8c0] sm:$0xff]
        %v716 = vld [vmem:[#allocation7 + $0x8c8] sm:$0xff]
        %v717 = vld [vmem:[#allocation7 + $0x8d0] sm:$0xff]
        %v718 = vld [vmem:[#allocation7 + $0x8d8] sm:$0xff]
        %v719 = vld [vmem:[#allocation7 + $0x8e0] sm:$0xff]
        %v720 = vld [vmem:[#allocation7 + $0x8e8] sm:$0xff]
        %v721 = vld [vmem:[#allocation7 + $0x8f0] sm:$0xff]
        %v722 = vld [vmem:[#allocation7 + $0x8f8] sm:$0xff]
        %v723 = vld [vmem:[#allocation7 + $0x900] sm:$0xff]
        %v724 = vld [vmem:[#allocation7 + $0x908] sm:$0xff]
        %v725 = vld [vmem:[#allocation7 + $0x910] sm:$0xff]
        %v726 = vld [vmem:[#allocation7 + $0x918] sm:$0xff]
        %v727 = vld [vmem:[#allocation7 + $0x920] sm:$0xff]
        %v728 = vld [vmem:[#allocation7 + $0x928] sm:$0xff]
        %v729 = vld [vmem:[#allocation7 + $0x930] sm:$0xff]
        %v730 = vld [vmem:[#allocation7 + $0x938] sm:$0xff]
        %v731 = vld [vmem:[#allocation7 + $0x940] sm:$0xff]
        %v732 = vld [vmem:[#allocation7 + $0x948] sm:$0xff]
        %v733 = vld [vmem:[#allocation7 + $0x950] sm:$0xff]
        %v734 = vld [vmem:[#allocation7 + $0x958] sm:$0xff]
        %v735 = vld [vmem:[#allocation7 + $0x960] sm:$0xff]
        %v736 = vld [vmem:[#allocation7 + $0x968] sm:$0xff]
        %v737 = vld [vmem:[#allocation7 + $0x970] sm:$0xff]
        %v738 = vld [vmem:[#allocation7 + $0x978] sm:$0xff]
        %v739 = vld [vmem:[#allocation7 + $0x980] sm:$0xff]
        %v740 = vld [vmem:[#allocation7 + $0x988] sm:$0xff]
        %v741 = vld [vmem:[#allocation7 + $0x990] sm:$0xff]
        %v742 = vld [vmem:[#allocation7 + $0x998] sm:$0xff]
        %v743 = vld [vmem:[#allocation7 + $0x9a0] sm:$0xff]
        %v744 = vld [vmem:[#allocation7 + $0x9a8] sm:$0xff]
        %v745 = vld [vmem:[#allocation7 + $0x9b0] sm:$0xff]
        %v746 = vld [vmem:[#allocation7 + $0x9b8] sm:$0xff]
        %v747 = vld [vmem:[#allocation7 + $0x9c0] sm:$0xff]
        %v748 = vld [vmem:[#allocation7 + $0x9c8] sm:$0xff]
        %v749 = vld [vmem:[#allocation7 + $0x9d0] sm:$0xff]
        %v750 = vld [vmem:[#allocation7 + $0x9d8] sm:$0xff]
        %v751 = vld [vmem:[#allocation7 + $0x9e0] sm:$0xff]
        %v752 = vld [vmem:[#allocation7 + $0x9e8] sm:$0xff]
        %v753 = vld [vmem:[#allocation7 + $0x9f0] sm:$0xff]
        %v754 = vld [vmem:[#allocation7 + $0x9f8] sm:$0xff]
        %v755 = vld [vmem:[#allocation7 + $0xa00] sm:$0xff]
        %v756 = vld [vmem:[#allocation7 + $0xa08] sm:$0xff]
        %v757 = vld [vmem:[#allocation7 + $0xa10] sm:$0xff]
        %v758 = vld [vmem:[#allocation7 + $0xa18] sm:$0xff]
        %v759 = vld [vmem:[#allocation7 + $0xa20] sm:$0xff]
        %v760 = vld [vmem:[#allocation7 + $0xa28] sm:$0xff]
        %v761 = vld [vmem:[#allocation7 + $0xa30] sm:$0xff]
        %v762 = vld [vmem:[#allocation7 + $0xa38] sm:$0xff]
        %v763 = vld [vmem:[#allocation7 + $0xa40] sm:$0xff]
        %v764 = vld [vmem:[#allocation7 + $0xa48] sm:$0xff]
        %v765 = vld [vmem:[#allocation7 + $0xa50] sm:$0xff]
        %v766 = vld [vmem:[#allocation7 + $0xa58] sm:$0xff]
        %v767 = vld [vmem:[#allocation7 + $0xa60] sm:$0xff]
        %v768 = vld [vmem:[#allocation7 + $0xa68] sm:$0xff]
        %v769 = vld [vmem:[#allocation7 + $0xa70] sm:$0xff]
        %v770 = vld [vmem:[#allocation7 + $0xa78] sm:$0xff]
        %v771 = vld [vmem:[#allocation7 + $0xa80] sm:$0xff]
        %v772 = vld [vmem:[#allocation7 + $0xa88] sm:$0xff]
        %v773 = vld [vmem:[#allocation7 + $0xa90] sm:$0xff]
        %v774 = vld [vmem:[#allocation7 + $0xa98] sm:$0xff]
        %v775 = vld [vmem:[#allocation7 + $0xaa0] sm:$0xff]
        %v776 = vld [vmem:[#allocation7 + $0xaa8] sm:$0xff]
        %v777 = vld [vmem:[#allocation7 + $0xab0] sm:$0xff]
        %v778 = vld [vmem:[#allocation7 + $0xab8] sm:$0xff]
        %v779 = vld [vmem:[#allocation7 + $0xac0] sm:$0xff]
        %v780 = vld [vmem:[#allocation7 + $0xac8] sm:$0xff]
        %v781 = vld [vmem:[#allocation7 + $0xad0] sm:$0xff]
        %v782 = vld [vmem:[#allocation7 + $0xad8] sm:$0xff]
        %v783 = vld [vmem:[#allocation7 + $0xae0] sm:$0xff]
        %v784 = vld [vmem:[#allocation7 + $0xae8] sm:$0xff]
        %v785 = vld [vmem:[#allocation7 + $0xaf0] sm:$0xff]
        %v786 = vld [vmem:[#allocation7 + $0xaf8] sm:$0xff]
        %v787 = vld [vmem:[#allocation7 + $0xb00] sm:$0xff]
        %v788 = vld [vmem:[#allocation7 + $0xb08] sm:$0xff]
        %v789 = vld [vmem:[#allocation7 + $0xb10] sm:$0xff]
        %v790 = vld [vmem:[#allocation7 + $0xb18] sm:$0xff]
        %v791 = vld [vmem:[#allocation7 + $0xb20] sm:$0xff]
        %v792 = vld [vmem:[#allocation7 + $0xb28] sm:$0xff]
        %v793 = vld [vmem:[#allocation7 + $0xb30] sm:$0xff]
        %v794 = vld [vmem:[#allocation7 + $0xb38] sm:$0xff]
        %v795 = vld [vmem:[#allocation7 + $0xb40] sm:$0xff]
        %v796 = vld [vmem:[#allocation7 + $0xb48] sm:$0xff]
        %v797 = vld [vmem:[#allocation7 + $0xb50] sm:$0xff]
        %v798 = vld [vmem:[#allocation7 + $0xb58] sm:$0xff]
        %v799 = vld [vmem:[#allocation7 + $0xb60] sm:$0xff]
        %v800 = vld [vmem:[#allocation7 + $0xb68] sm:$0xff]
        %v801 = vld [vmem:[#allocation7 + $0xb70] sm:$0xff]
        %v802 = vld [vmem:[#allocation7 + $0xb78] sm:$0xff]
        %v803 = vld [vmem:[#allocation7 + $0xb80] sm:$0xff]
        %v804 = vld [vmem:[#allocation7 + $0xb88] sm:$0xff]
        %v805 = vld [vmem:[#allocation7 + $0xb90] sm:$0xff]
        %v806 = vld [vmem:[#allocation7 + $0xb98] sm:$0xff]
        %v807 = vld [vmem:[#allocation7 + $0xba0] sm:$0xff]
        %v808 = vld [vmem:[#allocation7 + $0xba8] sm:$0xff]
        %v809 = vld [vmem:[#allocation7 + $0xbb0] sm:$0xff]
        %v810 = vld [vmem:[#allocation7 + $0xbb8] sm:$0xff]
        %v811 = vld [vmem:[#allocation7 + $0xbc0] sm:$0xff]
        %v812 = vld [vmem:[#allocation7 + $0xbc8] sm:$0xff]
        %v813 = vld [vmem:[#allocation7 + $0xbd0] sm:$0xff]
        %v814 = vld [vmem:[#allocation7 + $0xbd8] sm:$0xff]
        %v815 = vld [vmem:[#allocation7 + $0xbe0] sm:$0xff]
        %v816 = vld [vmem:[#allocation7 + $0xbe8] sm:$0xff]
        %v817 = vld [vmem:[#allocation7 + $0xbf0] sm:$0xff]
        %v818 = vld [vmem:[#allocation7 + $0xbf8] sm:$0xff]
        %v819 = vld [vmem:[#allocation7 + $0xc00] sm:$0xff]
        %v820 = vld [vmem:[#allocation7 + $0xc08] sm:$0xff]
        %v821 = vld [vmem:[#allocation7 + $0xc10] sm:$0xff]
        %v822 = vld [vmem:[#allocation7 + $0xc18] sm:$0xff]
        %v823 = vld [vmem:[#allocation7 + $0xc20] sm:$0xff]
        %v824 = vld [vmem:[#allocation7 + $0xc28] sm:$0xff]
        %v825 = vld [vmem:[#allocation7 + $0xc30] sm:$0xff]
        %v826 = vld [vmem:[#allocation7 + $0xc38] sm:$0xff]
        %v827 = vld [vmem:[#allocation7 + $0xc40] sm:$0xff]
        %v828 = vld [vmem:[#allocation7 + $0xc48] sm:$0xff]
        %v829 = vld [vmem:[#allocation7 + $0xc50] sm:$0xff]
        %v830 = vld [vmem:[#allocation7 + $0xc58] sm:$0xff]
        %v831 = vld [vmem:[#allocation7 + $0xc60] sm:$0xff]
        %v832 = vld [vmem:[#allocation7 + $0xc68] sm:$0xff]
        %v833 = vld [vmem:[#allocation7 + $0xc70] sm:$0xff]
        %v834 = vld [vmem:[#allocation7 + $0xc78] sm:$0xff]
        %v835 = vld [vmem:[#allocation7 + $0xc80] sm:$0xff]
        %v836 = vld [vmem:[#allocation7 + $0xc88] sm:$0xff]
        %v837 = vld [vmem:[#allocation7 + $0xc90] sm:$0xff]
        %v838 = vld [vmem:[#allocation7 + $0xc98] sm:$0xff]
        %v839 = vld [vmem:[#allocation7 + $0xca0] sm:$0xff]
        %v840 = vld [vmem:[#allocation7 + $0xca8] sm:$0xff]
        %v841 = vld [vmem:[#allocation7 + $0xcb0] sm:$0xff]
        %v842 = vld [vmem:[#allocation7 + $0xcb8] sm:$0xff]
        %v843 = vld [vmem:[#allocation7 + $0xcc0] sm:$0xff]
        %v844 = vld [vmem:[#allocation7 + $0xcc8] sm:$0xff]
        %v845 = vld [vmem:[#allocation7 + $0xcd0] sm:$0xff]
        %v846 = vld [vmem:[#allocation7 + $0xcd8] sm:$0xff]
        %v847 = vld [vmem:[#allocation7 + $0xce0] sm:$0xff]
        %v848 = vld [vmem:[#allocation7 + $0xce8] sm:$0xff]
        %v849 = vld [vmem:[#allocation7 + $0xcf0] sm:$0xff]
        %v850 = vld [vmem:[#allocation7 + $0xcf8] sm:$0xff]
        %v851 = vld [vmem:[#allocation7 + $0xd00] sm:$0xff]
        %v852 = vld [vmem:[#allocation7 + $0xd08] sm:$0xff]
        %v853 = vld [vmem:[#allocation7 + $0xd10] sm:$0xff]
        %v854 = vld [vmem:[#allocation7 + $0xd18] sm:$0xff]
        %v855 = vld [vmem:[#allocation7 + $0xd20] sm:$0xff]
        %v856 = vld [vmem:[#allocation7 + $0xd28] sm:$0xff]
        %v857 = vld [vmem:[#allocation7 + $0xd30] sm:$0xff]
        %v858 = vld [vmem:[#allocation7 + $0xd38] sm:$0xff]
        %v859 = vld [vmem:[#allocation7 + $0xd40] sm:$0xff]
        %v860 = vld [vmem:[#allocation7 + $0xd48] sm:$0xff]
        %v861 = vld [vmem:[#allocation7 + $0xd50] sm:$0xff]
        %v862 = vld [vmem:[#allocation7 + $0xd58] sm:$0xff]
        %v863 = vld [vmem:[#allocation7 + $0xd60] sm:$0xff]
        %v864 = vld [vmem:[#allocation7 + $0xd68] sm:$0xff]
        %v865 = vld [vmem:[#allocation7 + $0xd70] sm:$0xff]
        %v866 = vld [vmem:[#allocation7 + $0xd78] sm:$0xff]
        %v867 = vld [vmem:[#allocation7 + $0xd80] sm:$0xff]
        %v868 = vld [vmem:[#allocation7 + $0xd88] sm:$0xff]
        %v869 = vld [vmem:[#allocation7 + $0xd90] sm:$0xff]
        %v870 = vld [vmem:[#allocation7 + $0xd98] sm:$0xff]
        %v871 = vld [vmem:[#allocation7 + $0xda0] sm:$0xff]
        %v872 = vld [vmem:[#allocation7 + $0xda8] sm:$0xff]
        %v873 = vld [vmem:[#allocation7 + $0xdb0] sm:$0xff]
        %v874 = vld [vmem:[#allocation7 + $0xdb8] sm:$0xff]
        %v875 = vld [vmem:[#allocation7 + $0xdc0] sm:$0xff]
        %v876 = vld [vmem:[#allocation7 + $0xdc8] sm:$0xff]
        %v877 = vld [vmem:[#allocation7 + $0xdd0] sm:$0xff]
        %v878 = vld [vmem:[#allocation7 + $0xdd8] sm:$0xff]
        %v879 = vld [vmem:[#allocation7 + $0xde0] sm:$0xff]
        %v880 = vld [vmem:[#allocation7 + $0xde8] sm:$0xff]
        %v881 = vld [vmem:[#allocation7 + $0xdf0] sm:$0xff]
        %v882 = vld [vmem:[#allocation7 + $0xdf8] sm:$0xff]
        %v883 = vld [vmem:[#allocation7 + $0xe00] sm:$0xff]
        %v884 = vld [vmem:[#allocation7 + $0xe08] sm:$0xff]
        %v885 = vld [vmem:[#allocation7 + $0xe10] sm:$0xff]
        %v886 = vld [vmem:[#allocation7 + $0xe18] sm:$0xff]
        %v887 = vld [vmem:[#allocation7 + $0xe20] sm:$0xff]
        %v888 = vld [vmem:[#allocation7 + $0xe28] sm:$0xff]
        %v889 = vld [vmem:[#allocation7 + $0xe30] sm:$0xff]
        %v890 = vld [vmem:[#allocation7 + $0xe38] sm:$0xff]
        %v891 = vld [vmem:[#allocation7 + $0xe40] sm:$0xff]
        %v892 = vld [vmem:[#allocation7 + $0xe48] sm:$0xff]
        %v893 = vld [vmem:[#allocation7 + $0xe50] sm:$0xff]
        %v894 = vld [vmem:[#allocation7 + $0xe58] sm:$0xff]
        %v895 = vld [vmem:[#allocation7 + $0xe60] sm:$0xff]
        %v896 = vld [vmem:[#allocation7 + $0xe68] sm:$0xff]
        %v897 = vld [vmem:[#allocation7 + $0xe70] sm:$0xff]
        %v898 = vld [vmem:[#allocation7 + $0xe78] sm:$0xff]
        %v899 = vld [vmem:[#allocation7 + $0xe80] sm:$0xff]
        %v900 = vld [vmem:[#allocation7 + $0xe88] sm:$0xff]
        %v901 = vld [vmem:[#allocation7 + $0xe90] sm:$0xff]
        %v902 = vld [vmem:[#allocation7 + $0xe98] sm:$0xff]
        %v903 = vld [vmem:[#allocation7 + $0xea0] sm:$0xff]
        %v904 = vld [vmem:[#allocation7 + $0xea8] sm:$0xff]
        %v905 = vld [vmem:[#allocation7 + $0xeb0] sm:$0xff]
        %v906 = vld [vmem:[#allocation7 + $0xeb8] sm:$0xff]
        %v907 = vld [vmem:[#allocation7 + $0xec0] sm:$0xff]
        %v908 = vld [vmem:[#allocation7 + $0xec8] sm:$0xff]
        %v909 = vld [vmem:[#allocation7 + $0xed0] sm:$0xff]
        %v910 = vld [vmem:[#allocation7 + $0xed8] sm:$0xff]
        %v911 = vld [vmem:[#allocation7 + $0xee0] sm:$0xff]
        %v912 = vld [vmem:[#allocation7 + $0xee8] sm:$0xff]
        %v913 = vld [vmem:[#allocation7 + $0xef0] sm:$0xff]
        %v914 = vld [vmem:[#allocation7 + $0xef8] sm:$0xff]
        %v915 = vld [vmem:[#allocation7 + $0xf00] sm:$0xff]
        %v916 = vld [vmem:[#allocation7 + $0xf08] sm:$0xff]
        %v917 = vld [vmem:[#allocation7 + $0xf10] sm:$0xff]
        %v918 = vld [vmem:[#allocation7 + $0xf18] sm:$0xff]
        %v919 = vld [vmem:[#allocation7 + $0xf20] sm:$0xff]
        %v920 = vld [vmem:[#allocation7 + $0xf28] sm:$0xff]
        %v921 = vld [vmem:[#allocation7 + $0xf30] sm:$0xff]
        %v922 = vld [vmem:[#allocation7 + $0xf38] sm:$0xff]
        %v923 = vld [vmem:[#allocation7 + $0xf40] sm:$0xff]
        %v924 = vld [vmem:[#allocation7 + $0xf48] sm:$0xff]
        %v925 = vld [vmem:[#allocation7 + $0xf50] sm:$0xff]
        %v926 = vld [vmem:[#allocation7 + $0xf58] sm:$0xff]
        %v927 = vld [vmem:[#allocation7 + $0xf60] sm:$0xff]
        %v928 = vld [vmem:[#allocation7 + $0xf68] sm:$0xff]
        %v929 = vld [vmem:[#allocation7 + $0xf70] sm:$0xff]
        %v930 = vld [vmem:[#allocation7 + $0xf78] sm:$0xff]
        %v931 = vld [vmem:[#allocation7 + $0xf80] sm:$0xff]
        %v932 = vld [vmem:[#allocation7 + $0xf88] sm:$0xff]
        %v933 = vld [vmem:[#allocation7 + $0xf90] sm:$0xff]
        %v934 = vld [vmem:[#allocation7 + $0xf98] sm:$0xff]
        %v935 = vld [vmem:[#allocation7 + $0xfa0] sm:$0xff]
        %v936 = vld [vmem:[#allocation7 + $0xfa8] sm:$0xff]
        %v937 = vld [vmem:[#allocation7 + $0xfb0] sm:$0xff]
        %v938 = vld [vmem:[#allocation7 + $0xfb8] sm:$0xff]
        %v939 = vld [vmem:[#allocation7 + $0xfc0] sm:$0xff]
        %v940 = vld [vmem:[#allocation7 + $0xfc8] sm:$0xff]
        %v941 = vld [vmem:[#allocation7 + $0xfd0] sm:$0xff]
        %v942 = vld [vmem:[#allocation7 + $0xfd8] sm:$0xff]
        %v943 = vld [vmem:[#allocation7 + $0xfe0] sm:$0xff]
        %v944 = vld [vmem:[#allocation7 + $0xfe8] sm:$0xff]
        %v945 = vld [vmem:[#allocation7 + $0xff0] sm:$0xff]
        %v946 = vld [vmem:[#allocation7 + $0xff8] sm:$0xff]
        %v947 = vld [vmem:[#allocation7 + $0x1000] sm:$0xff]
        %v948 = vld [vmem:[#allocation7 + $0x1008] sm:$0xff]
        %v949 = vld [vmem:[#allocation7 + $0x1010] sm:$0xff]
        %v950 = vld [vmem:[#allocation7 + $0x1018] sm:$0xff]
        %v951 = vld [vmem:[#allocation7 + $0x1020] sm:$0xff]
        %v952 = vld [vmem:[#allocation7 + $0x1028] sm:$0xff]
        %v953 = vld [vmem:[#allocation7 + $0x1030] sm:$0xff]
        %v954 = vld [vmem:[#allocation7 + $0x1038] sm:$0xff]
        %v955 = vld [vmem:[#allocation7 + $0x1040] sm:$0xff]
        %v956 = vld [vmem:[#allocation7 + $0x1048] sm:$0xff]
        %v957 = vld [vmem:[#allocation7 + $0x1050] sm:$0xff]
        %v958 = vld [vmem:[#allocation7 + $0x1058] sm:$0xff]
        %v959 = vld [vmem:[#allocation7 + $0x1060] sm:$0xff]
        %v960 = vld [vmem:[#allocation7 + $0x1068] sm:$0xff]
        %v961 = vld [vmem:[#allocation7 + $0x1070] sm:$0xff]
        %v962 = vld [vmem:[#allocation7 + $0x1078] sm:$0xff]
        %v963 = vld [vmem:[#allocation7 + $0x1080] sm:$0xff]
        %v964 = vld [vmem:[#allocation7 + $0x1088] sm:$0xff]
        %v965 = vld [vmem:[#allocation7 + $0x1090] sm:$0xff]
        %v966 = vld [vmem:[#allocation7 + $0x1098] sm:$0xff]
        %v967 = vld [vmem:[#allocation7 + $0x10a0] sm:$0xff]
        %v968 = vld [vmem:[#allocation7 + $0x10a8] sm:$0xff]
        %v969 = vld [vmem:[#allocation7 + $0x10b0] sm:$0xff]
        %v970 = vld [vmem:[#allocation7 + $0x10b8] sm:$0xff]
        %v971 = vld [vmem:[#allocation7 + $0x10c0] sm:$0xff]
        %v972 = vld [vmem:[#allocation7 + $0x10c8] sm:$0xff]
        %v973 = vld [vmem:[#allocation7 + $0x10d0] sm:$0xff]
        %v974 = vld [vmem:[#allocation7 + $0x10d8] sm:$0xff]
        %v975 = vld [vmem:[#allocation7 + $0x10e0] sm:$0xff]
        %v976 = vld [vmem:[#allocation7 + $0x10e8] sm:$0xff]
        %v977 = vld [vmem:[#allocation7 + $0x10f0] sm:$0xff]
        %v978 = vld [vmem:[#allocation7 + $0x10f8] sm:$0xff]
        %v979 = vld [vmem:[#allocation7 + $0x1100] sm:$0xff]
        %v980 = vld [vmem:[#allocation7 + $0x1108] sm:$0xff]
        %v981 = vld [vmem:[#allocation7 + $0x1110] sm:$0xff]
        %v982 = vld [vmem:[#allocation7 + $0x1118] sm:$0xff]
        %v983 = vld [vmem:[#allocation7 + $0x1120] sm:$0xff]
        %v984 = vld [vmem:[#allocation7 + $0x1128] sm:$0xff]
        %v985 = vld [vmem:[#allocation7 + $0x1130] sm:$0xff]
        %v986 = vld [vmem:[#allocation7 + $0x1138] sm:$0xff]
        %v987 = vld [vmem:[#allocation7 + $0x1140] sm:$0xff]
        %v988 = vld [vmem:[#allocation7 + $0x1148] sm:$0xff]
        %v989 = vld [vmem:[#allocation7 + $0x1150] sm:$0xff]
        %v990 = vld [vmem:[#allocation7 + $0x1158] sm:$0xff]
        %v991 = vld [vmem:[#allocation7 + $0x1160] sm:$0xff]
        %v992 = vld [vmem:[#allocation7 + $0x1168] sm:$0xff]
        %v993 = vld [vmem:[#allocation7 + $0x1170] sm:$0xff]
        %v994 = vld [vmem:[#allocation7 + $0x1178] sm:$0xff]
        %v995 = vld [vmem:[#allocation7 + $0x1180] sm:$0xff]
        %v996 = vld [vmem:[#allocation7 + $0x1188] sm:$0xff]
        %v997 = vld [vmem:[#allocation7 + $0x1190] sm:$0xff]
        %v998 = vld [vmem:[#allocation7 + $0x1198] sm:$0xff]
        %v999 = vld [vmem:[#allocation7 + $0x11a0] sm:$0xff]
        %v1000 = vld [vmem:[#allocation7 + $0x11a8] sm:$0xff]
        %v1001 = vld [vmem:[#allocation7 + $0x11b0] sm:$0xff]
        %v1002 = vld [vmem:[#allocation7 + $0x11b8] sm:$0xff]
        %v1003 = vld [vmem:[#allocation7 + $0x11c0] sm:$0xff]
        %v1004 = vld [vmem:[#allocation7 + $0x11c8] sm:$0xff]
        %v1005 = vld [vmem:[#allocation7 + $0x11d0] sm:$0xff]
        %v1006 = vld [vmem:[#allocation7 + $0x11d8] sm:$0xff]
        %v1007 = vld [vmem:[#allocation7 + $0x11e0] sm:$0xff]
        %v1008 = vld [vmem:[#allocation7 + $0x11e8] sm:$0xff]
        %v1009 = vld [vmem:[#allocation7 + $0x11f0] sm:$0xff]
        %v1010 = vld [vmem:[#allocation7 + $0x11f8] sm:$0xff]
        %v1011 = vld [vmem:[#allocation7 + $0x1200] sm:$0xff]
        %v1012 = vld [vmem:[#allocation7 + $0x1208] sm:$0xff]
        %v1013 = vld [vmem:[#allocation7 + $0x1210] sm:$0xff]
        %v1014 = vld [vmem:[#allocation7 + $0x1218] sm:$0xff]
        %v1015 = vld [vmem:[#allocation7 + $0x1220] sm:$0xff]
        %v1016 = vld [vmem:[#allocation7 + $0x1228] sm:$0xff]
        %v1017 = vld [vmem:[#allocation7 + $0x1230] sm:$0xff]
        %v1018 = vld [vmem:[#allocation7 + $0x1238] sm:$0xff]
        %v1019 = vld [vmem:[#allocation7 + $0x1240] sm:$0xff]
        %v1020 = vld [vmem:[#allocation7 + $0x1248] sm:$0xff]
        %v1021 = vld [vmem:[#allocation7 + $0x1250] sm:$0xff]
        %v1022 = vld [vmem:[#allocation7 + $0x1258] sm:$0xff]
        %v1023 = vld [vmem:[#allocation7 + $0x1260] sm:$0xff]
        %v1024 = vld [vmem:[#allocation7 + $0x1268] sm:$0xff]
        %v1025 = vld [vmem:[#allocation7 + $0x1270] sm:$0xff]
        %v1026 = vld [vmem:[#allocation7 + $0x1278] sm:$0xff]
        %v1027 = vld [vmem:[#allocation7 + $0x1280] sm:$0xff]
        %v1028 = vld [vmem:[#allocation7 + $0x1288] sm:$0xff]
        %v1029 = vld [vmem:[#allocation7 + $0x1290] sm:$0xff]
        %v1030 = vld [vmem:[#allocation7 + $0x1298] sm:$0xff]
        %v1031 = vld [vmem:[#allocation7 + $0x12a0] sm:$0xff]
        %v1032 = vld [vmem:[#allocation7 + $0x12a8] sm:$0xff]
        %v1033 = vld [vmem:[#allocation7 + $0x12b0] sm:$0xff]
        %v1034 = vld [vmem:[#allocation7 + $0x12b8] sm:$0xff]
        %v1035 = vld [vmem:[#allocation7 + $0x12c0] sm:$0xff]
        %v1036 = vld [vmem:[#allocation7 + $0x12c8] sm:$0xff]
        %v1037 = vld [vmem:[#allocation7 + $0x12d0] sm:$0xff]
        %v1038 = vld [vmem:[#allocation7 + $0x12d8] sm:$0xff]
        %v1039 = vld [vmem:[#allocation7 + $0x12e0] sm:$0xff]
        %v1040 = vld [vmem:[#allocation7 + $0x12e8] sm:$0xff]
        %v1041 = vld [vmem:[#allocation7 + $0x12f0] sm:$0xff]
        %v1042 = vld [vmem:[#allocation7 + $0x12f8] sm:$0xff]
        %v1043 = vld [vmem:[#allocation7 + $0x1300] sm:$0xff]
        %v1044 = vld [vmem:[#allocation7 + $0x1308] sm:$0xff]
        %v1045 = vld [vmem:[#allocation7 + $0x1310] sm:$0xff]
        %v1046 = vld [vmem:[#allocation7 + $0x1318] sm:$0xff]
        %v1047 = vld [vmem:[#allocation7 + $0x1320] sm:$0xff]
        %v1048 = vld [vmem:[#allocation7 + $0x1328] sm:$0xff]
        %v1049 = vld [vmem:[#allocation7 + $0x1330] sm:$0xff]
        %v1050 = vld [vmem:[#allocation7 + $0x1338] sm:$0xff]
        %v1051 = vld [vmem:[#allocation7 + $0x1340] sm:$0xff]
        %v1052 = vld [vmem:[#allocation7 + $0x1348] sm:$0xff]
        %v1053 = vld [vmem:[#allocation7 + $0x1350] sm:$0xff]
        %v1054 = vld [vmem:[#allocation7 + $0x1358] sm:$0xff]
        %v1055 = vld [vmem:[#allocation7 + $0x1360] sm:$0xff]
        %v1056 = vld [vmem:[#allocation7 + $0x1368] sm:$0xff]
        %v1057 = vld [vmem:[#allocation7 + $0x1370] sm:$0xff]
        %v1058 = vld [vmem:[#allocation7 + $0x1378] sm:$0xff]
        %v1059 = vld [vmem:[#allocation7 + $0x1380] sm:$0xff]
        %v1060 = vld [vmem:[#allocation7 + $0x1388] sm:$0xff]
        %v1061 = vld [vmem:[#allocation7 + $0x1390] sm:$0xff]
        %v1062 = vld [vmem:[#allocation7 + $0x1398] sm:$0xff]
        %v1063 = vld [vmem:[#allocation7 + $0x13a0] sm:$0xff]
        %v1064 = vld [vmem:[#allocation7 + $0x13a8] sm:$0xff]
        %v1065 = vld [vmem:[#allocation7 + $0x13b0] sm:$0xff]
        %v1066 = vld [vmem:[#allocation7 + $0x13b8] sm:$0xff]
        %v1067 = vld [vmem:[#allocation7 + $0x13c0] sm:$0xff]
        %v1068 = vld [vmem:[#allocation7 + $0x13c8] sm:$0xff]
        %v1069 = vld [vmem:[#allocation7 + $0x13d0] sm:$0xff]
        %v1070 = vld [vmem:[#allocation7 + $0x13d8] sm:$0xff]
        %v1071 = vld [vmem:[#allocation7 + $0x13e0] sm:$0xff]
        %v1072 = vld [vmem:[#allocation7 + $0x13e8] sm:$0xff]
        %v1073 = vld [vmem:[#allocation7 + $0x13f0] sm:$0xff]
        %v1074 = vld [vmem:[#allocation7 + $0x13f8] sm:$0xff]
        %v1075 = vld [vmem:[#allocation7 + $0x1400] sm:$0xff]
        %v1076 = vld [vmem:[#allocation7 + $0x1408] sm:$0xff]
        %v1077 = vld [vmem:[#allocation7 + $0x1410] sm:$0xff]
        %v1078 = vld [vmem:[#allocation7 + $0x1418] sm:$0xff]
        %v1079 = vld [vmem:[#allocation7 + $0x1420] sm:$0xff]
        %v1080 = vld [vmem:[#allocation7 + $0x1428] sm:$0xff]
        %v1081 = vld [vmem:[#allocation7 + $0x1430] sm:$0xff]
        %v1082 = vld [vmem:[#allocation7 + $0x1438] sm:$0xff]
        %v1083 = vld [vmem:[#allocation7 + $0x1440] sm:$0xff]
        %v1084 = vld [vmem:[#allocation7 + $0x1448] sm:$0xff]
        %v1085 = vld [vmem:[#allocation7 + $0x1450] sm:$0xff]
        %v1086 = vld [vmem:[#allocation7 + $0x1458] sm:$0xff]
        %v1087 = vld [vmem:[#allocation7 + $0x1460] sm:$0xff]
        %v1088 = vld [vmem:[#allocation7 + $0x1468] sm:$0xff]
        %v1089 = vld [vmem:[#allocation7 + $0x1470] sm:$0xff]
        %v1090 = vld [vmem:[#allocation7 + $0x1478] sm:$0xff]
        %v1091 = vld [vmem:[#allocation7 + $0x1480] sm:$0xff]
        %v1092 = vld [vmem:[#allocation7 + $0x1488] sm:$0xff]
        %v1093 = vld [vmem:[#allocation7 + $0x1490] sm:$0xff]
        %v1094 = vld [vmem:[#allocation7 + $0x1498] sm:$0xff]
        %v1095 = vld [vmem:[#allocation7 + $0x14a0] sm:$0xff]
        %v1096 = vld [vmem:[#allocation7 + $0x14a8] sm:$0xff]
        %v1097 = vld [vmem:[#allocation7 + $0x14b0] sm:$0xff]
        %v1098 = vld [vmem:[#allocation7 + $0x14b8] sm:$0xff]
        %v1099 = vld [vmem:[#allocation7 + $0x14c0] sm:$0xff]
        %v1100 = vld [vmem:[#allocation7 + $0x14c8] sm:$0xff]
        %v1101 = vld [vmem:[#allocation7 + $0x14d0] sm:$0xff]
        %v1102 = vld [vmem:[#allocation7 + $0x14d8] sm:$0xff]
        %v1103 = vld [vmem:[#allocation7 + $0x14e0] sm:$0xff]
        %v1104 = vld [vmem:[#allocation7 + $0x14e8] sm:$0xff]
        %v1105 = vld [vmem:[#allocation7 + $0x14f0] sm:$0xff]
        %v1106 = vld [vmem:[#allocation7 + $0x14f8] sm:$0xff]
        %v1107 = vld [vmem:[#allocation8] sm:$0xff]
        %v1108 = vld [vmem:[#allocation8 + $0x8] sm:$0xff]
        %v1109 = vld [vmem:[#allocation8 + $0x10] sm:$0xff]
        %v1110 = vld [vmem:[#allocation8 + $0x18] sm:$0xff]
        %v1111 = vld [vmem:[#allocation8 + $0x20] sm:$0xff]
        %v1112 = vld [vmem:[#allocation8 + $0x28] sm:$0xff]
        %v1113 = vld [vmem:[#allocation8 + $0x30] sm:$0xff]
        %v1114 = vld [vmem:[#allocation8 + $0x38] sm:$0xff]
        %v1115 = vld [vmem:[#allocation8 + $0x40] sm:$0xff]
        %v1116 = vld [vmem:[#allocation8 + $0x48] sm:$0xff]
        %v1117 = vld [vmem:[#allocation8 + $0x50] sm:$0xff]
        %v1118 = vld [vmem:[#allocation8 + $0x58] sm:$0xff]
        %v1119 = vld [vmem:[#allocation8 + $0x60] sm:$0xff]
        %v1120 = vld [vmem:[#allocation8 + $0x68] sm:$0xff]
        %v1121 = vld [vmem:[#allocation8 + $0x70] sm:$0xff]
        %v1122 = vld [vmem:[#allocation8 + $0x78] sm:$0xff]
        %v1123 = vld [vmem:[#allocation8 + $0x80] sm:$0xff]
        %v1124 = vld [vmem:[#allocation8 + $0x88] sm:$0xff]
        %v1125 = vld [vmem:[#allocation8 + $0x90] sm:$0xff]
        %v1126 = vld [vmem:[#allocation8 + $0x98] sm:$0xff]
        %v1127 = vld [vmem:[#allocation8 + $0xa0] sm:$0xff]
        %v1128 = vld [vmem:[#allocation8 + $0xa8] sm:$0xff]
        %v1129 = vld [vmem:[#allocation8 + $0xb0] sm:$0xff]
        %v1130 = vld [vmem:[#allocation8 + $0xb8] sm:$0xff]
        %v1131 = vld [vmem:[#allocation8 + $0xc0] sm:$0xff]
        %v1132 = vld [vmem:[#allocation8 + $0xc8] sm:$0xff]
        %v1133 = vld [vmem:[#allocation8 + $0xd0] sm:$0xff]
        %v1134 = vld [vmem:[#allocation8 + $0xd8] sm:$0xff]
        %v1135 = vld [vmem:[#allocation8 + $0xe0] sm:$0xff]
        %v1136 = vld [vmem:[#allocation8 + $0xe8] sm:$0xff]
        %v1137 = vld [vmem:[#allocation8 + $0xf0] sm:$0xff]
        %v1138 = vld [vmem:[#allocation8 + $0xf8] sm:$0xff]
        %v1139 = vld [vmem:[#allocation8 + $0x100] sm:$0xff]
        %v1140 = vld [vmem:[#allocation8 + $0x108] sm:$0xff]
        %v1141 = vld [vmem:[#allocation8 + $0x110] sm:$0xff]
        %v1142 = vld [vmem:[#allocation8 + $0x118] sm:$0xff]
        %v1143 = vld [vmem:[#allocation8 + $0x120] sm:$0xff]
        %v1144 = vld [vmem:[#allocation8 + $0x128] sm:$0xff]
        %v1145 = vld [vmem:[#allocation8 + $0x130] sm:$0xff]
        %v1146 = vld [vmem:[#allocation8 + $0x138] sm:$0xff]
        %v1147 = vld [vmem:[#allocation8 + $0x140] sm:$0xff]
        %v1148 = vld [vmem:[#allocation8 + $0x148] sm:$0xff]
        %1149 = vmatpush.msra.mxu0 %v1065
        %1150 = vmatpush.msra.mxu0 %v1023
        %1151 = vmatpush.msra.mxu0 %v981
        %1152 = vmatpush.msra.mxu0 %v939
        %1153 = vmatpush.msra.mxu0 %v897
        %1154 = vmatpush.msra.mxu0 %v855
        %1155 = vmatpush.msra.mxu0 %v813
        %1156 = vmatpush.msra.mxu0 %v771
        %1157 = vmatpush.msra.mxu0 %v729
        %1158 = vmatpush.msra.mxu0 %v687
        %1159 = vmatpush.msra.mxu0 %v645
        %1160 = vmatpush.msra.mxu0 %v603
        %1161 = vmatpush.msra.mxu0 %v561
        %1162 = vmatpush.msra.mxu0 %v519
        %1163 = vmatpush.msra.mxu0 %v477
        %1164 = vmatpush.msra.mxu0 %v435
        %1165 = vmatmul.f32.gmra.mxu0 %v434
        %v1166 = vpop.f32.mrf.mxu0
        %v1167 = vadd.f32 %v1107, %v1166
        %1168 = vdwg.mxu0
        %1169 = vmatpush.msra.mxu0 %v1066
        %1170 = vmatpush.msra.mxu0 %v1024
        %1171 = vmatpush.msra.mxu0 %v982
        %1172 = vmatpush.msra.mxu0 %v940
        %1173 = vmatpush.msra.mxu0 %v898
        %1174 = vmatpush.msra.mxu0 %v856
        %1175 = vmatpush.msra.mxu0 %v814
        %1176 = vmatpush.msra.mxu0 %v772
        %1177 = vmatpush.msra.mxu0 %v730
        %1178 = vmatpush.msra.mxu0 %v688
        %1179 = vmatpush.msra.mxu0 %v646
        %1180 = vmatpush.msra.mxu0 %v604
        %1181 = vmatpush.msra.mxu0 %v562
        %1182 = vmatpush.msra.mxu0 %v520
        %1183 = vmatpush.msra.mxu0 %v478
        %1184 = vmatpush.msra.mxu0 %v436
        %1185 = vmatmul.f32.gmra.mxu0 %v434
        %v1186 = vpop.f32.mrf.mxu0
        %v1187 = vadd.f32 %v1108, %v1186
        %1188 = vdwg.mxu0
        %1189 = vmatpush.msra.mxu0 %v1067
        %1190 = vmatpush.msra.mxu0 %v1025
        %1191 = vmatpush.msra.mxu0 %v983
        %1192 = vmatpush.msra.mxu0 %v941
        %1193 = vmatpush.msra.mxu0 %v899
        %1194 = vmatpush.msra.mxu0 %v857
        %1195 = vmatpush.msra.mxu0 %v815
        %1196 = vmatpush.msra.mxu0 %v773
        %1197 = vmatpush.msra.mxu0 %v731
        %1198 = vmatpush.msra.mxu0 %v689
        %1199 = vmatpush.msra.mxu0 %v647
        %1200 = vmatpush.msra.mxu0 %v605
        %1201 = vmatpush.msra.mxu0 %v563
        %1202 = vmatpush.msra.mxu0 %v521
        %1203 = vmatpush.msra.mxu0 %v479
        %1204 = vmatpush.msra.mxu0 %v437
        %1205 = vmatmul.f32.gmra.mxu0 %v434
        %v1206 = vpop.f32.mrf.mxu0
        %v1207 = vadd.f32 %v1109, %v1206
        %1208 = vdwg.mxu0
        %1209 = vmatpush.msra.mxu0 %v1068
        %1210 = vmatpush.msra.mxu0 %v1026
        %1211 = vmatpush.msra.mxu0 %v984
        %1212 = vmatpush.msra.mxu0 %v942
        %1213 = vmatpush.msra.mxu0 %v900
        %1214 = vmatpush.msra.mxu0 %v858
        %1215 = vmatpush.msra.mxu0 %v816
        %1216 = vmatpush.msra.mxu0 %v774
        %1217 = vmatpush.msra.mxu0 %v732
        %1218 = vmatpush.msra.mxu0 %v690
        %1219 = vmatpush.msra.mxu0 %v648
        %1220 = vmatpush.msra.mxu0 %v606
        %1221 = vmatpush.msra.mxu0 %v564
        %1222 = vmatpush.msra.mxu0 %v522
        %1223 = vmatpush.msra.mxu0 %v480
        %1224 = vmatpush.msra.mxu0 %v438
        %1225 = vmatmul.f32.gmra.mxu0 %v434
        %v1226 = vpop.f32.mrf.mxu0
        %v1227 = vadd.f32 %v1110, %v1226
        %1228 = vdwg.mxu0
        %1229 = vmatpush.msra.mxu0 %v1069
        %1230 = vmatpush.msra.mxu0 %v1027
        %1231 = vmatpush.msra.mxu0 %v985
        %1232 = vmatpush.msra.mxu0 %v943
        %1233 = vmatpush.msra.mxu0 %v901
        %1234 = vmatpush.msra.mxu0 %v859
        %1235 = vmatpush.msra.mxu0 %v817
        %1236 = vmatpush.msra.mxu0 %v775
        %1237 = vmatpush.msra.mxu0 %v733
        %1238 = vmatpush.msra.mxu0 %v691
        %1239 = vmatpush.msra.mxu0 %v649
        %1240 = vmatpush.msra.mxu0 %v607
        %1241 = vmatpush.msra.mxu0 %v565
        %1242 = vmatpush.msra.mxu0 %v523
        %1243 = vmatpush.msra.mxu0 %v481
        %1244 = vmatpush.msra.mxu0 %v439
        %1245 = vmatmul.f32.gmra.mxu0 %v434
        %v1246 = vpop.f32.mrf.mxu0
        %v1247 = vadd.f32 %v1111, %v1246
        %1248 = vdwg.mxu0
        %1249 = vmatpush.msra.mxu0 %v1070
        %1250 = vmatpush.msra.mxu0 %v1028
        %1251 = vmatpush.msra.mxu0 %v986
        %1252 = vmatpush.msra.mxu0 %v944
        %1253 = vmatpush.msra.mxu0 %v902
        %1254 = vmatpush.msra.mxu0 %v860
        %1255 = vmatpush.msra.mxu0 %v818
        %1256 = vmatpush.msra.mxu0 %v776
        %1257 = vmatpush.msra.mxu0 %v734
        %1258 = vmatpush.msra.mxu0 %v692
        %1259 = vmatpush.msra.mxu0 %v650
        %1260 = vmatpush.msra.mxu0 %v608
        %1261 = vmatpush.msra.mxu0 %v566
        %1262 = vmatpush.msra.mxu0 %v524
        %1263 = vmatpush.msra.mxu0 %v482
        %1264 = vmatpush.msra.mxu0 %v440
        %1265 = vmatmul.f32.gmra.mxu0 %v434
        %v1266 = vpop.f32.mrf.mxu0
        %v1267 = vadd.f32 %v1112, %v1266
        %1268 = vdwg.mxu0
        %1269 = vmatpush.msra.mxu0 %v1071
        %1270 = vmatpush.msra.mxu0 %v1029
        %1271 = vmatpush.msra.mxu0 %v987
        %1272 = vmatpush.msra.mxu0 %v945
        %1273 = vmatpush.msra.mxu0 %v903
        %1274 = vmatpush.msra.mxu0 %v861
        %1275 = vmatpush.msra.mxu0 %v819
        %1276 = vmatpush.msra.mxu0 %v777
        %1277 = vmatpush.msra.mxu0 %v735
        %1278 = vmatpush.msra.mxu0 %v693
        %1279 = vmatpush.msra.mxu0 %v651
        %1280 = vmatpush.msra.mxu0 %v609
        %1281 = vmatpush.msra.mxu0 %v567
        %1282 = vmatpush.msra.mxu0 %v525
        %1283 = vmatpush.msra.mxu0 %v483
        %1284 = vmatpush.msra.mxu0 %v441
        %1285 = vmatmul.f32.gmra.mxu0 %v434
        %v1286 = vpop.f32.mrf.mxu0
        %v1287 = vadd.f32 %v1113, %v1286
        %1288 = vdwg.mxu0
        %1289 = vmatpush.msra.mxu0 %v1072
        %1290 = vmatpush.msra.mxu0 %v1030
        %1291 = vmatpush.msra.mxu0 %v988
        %1292 = vmatpush.msra.mxu0 %v946
        %1293 = vmatpush.msra.mxu0 %v904
        %1294 = vmatpush.msra.mxu0 %v862
        %1295 = vmatpush.msra.mxu0 %v820
        %1296 = vmatpush.msra.mxu0 %v778
        %1297 = vmatpush.msra.mxu0 %v736
        %1298 = vmatpush.msra.mxu0 %v694
        %1299 = vmatpush.msra.mxu0 %v652
        %1300 = vmatpush.msra.mxu0 %v610
        %1301 = vmatpush.msra.mxu0 %v568
        %1302 = vmatpush.msra.mxu0 %v526
        %1303 = vmatpush.msra.mxu0 %v484
        %1304 = vmatpush.msra.mxu0 %v442
        %1305 = vmatmul.f32.gmra.mxu0 %v434
        %v1306 = vpop.f32.mrf.mxu0
        %v1307 = vadd.f32 %v1114, %v1306
        %1308 = vdwg.mxu0
        %1309 = vmatpush.msra.mxu0 %v1073
        %1310 = vmatpush.msra.mxu0 %v1031
        %1311 = vmatpush.msra.mxu0 %v989
        %1312 = vmatpush.msra.mxu0 %v947
        %1313 = vmatpush.msra.mxu0 %v905
        %1314 = vmatpush.msra.mxu0 %v863
        %1315 = vmatpush.msra.mxu0 %v821
        %1316 = vmatpush.msra.mxu0 %v779
        %1317 = vmatpush.msra.mxu0 %v737
        %1318 = vmatpush.msra.mxu0 %v695
        %1319 = vmatpush.msra.mxu0 %v653
        %1320 = vmatpush.msra.mxu0 %v611
        %1321 = vmatpush.msra.mxu0 %v569
        %1322 = vmatpush.msra.mxu0 %v527
        %1323 = vmatpush.msra.mxu0 %v485
        %1324 = vmatpush.msra.mxu0 %v443
        %1325 = vmatmul.f32.gmra.mxu0 %v434
        %v1326 = vpop.f32.mrf.mxu0
        %v1327 = vadd.f32 %v1115, %v1326
        %1328 = vdwg.mxu0
        %1329 = vmatpush.msra.mxu0 %v1074
        %1330 = vmatpush.msra.mxu0 %v1032
        %1331 = vmatpush.msra.mxu0 %v990
        %1332 = vmatpush.msra.mxu0 %v948
        %1333 = vmatpush.msra.mxu0 %v906
        %1334 = vmatpush.msra.mxu0 %v864
        %1335 = vmatpush.msra.mxu0 %v822
        %1336 = vmatpush.msra.mxu0 %v780
        %1337 = vmatpush.msra.mxu0 %v738
        %1338 = vmatpush.msra.mxu0 %v696
        %1339 = vmatpush.msra.mxu0 %v654
        %1340 = vmatpush.msra.mxu0 %v612
        %1341 = vmatpush.msra.mxu0 %v570
        %1342 = vmatpush.msra.mxu0 %v528
        %1343 = vmatpush.msra.mxu0 %v486
        %1344 = vmatpush.msra.mxu0 %v444
        %1345 = vmatmul.f32.gmra.mxu0 %v434
        %v1346 = vpop.f32.mrf.mxu0
        %v1347 = vadd.f32 %v1116, %v1346
        %1348 = vdwg.mxu0
        %1349 = vmatpush.msra.mxu0 %v1075
        %1350 = vmatpush.msra.mxu0 %v1033
        %1351 = vmatpush.msra.mxu0 %v991
        %1352 = vmatpush.msra.mxu0 %v949
        %1353 = vmatpush.msra.mxu0 %v907
        %1354 = vmatpush.msra.mxu0 %v865
        %1355 = vmatpush.msra.mxu0 %v823
        %1356 = vmatpush.msra.mxu0 %v781
        %1357 = vmatpush.msra.mxu0 %v739
        %1358 = vmatpush.msra.mxu0 %v697
        %1359 = vmatpush.msra.mxu0 %v655
        %1360 = vmatpush.msra.mxu0 %v613
        %1361 = vmatpush.msra.mxu0 %v571
        %1362 = vmatpush.msra.mxu0 %v529
        %1363 = vmatpush.msra.mxu0 %v487
        %1364 = vmatpush.msra.mxu0 %v445
        %1365 = vmatmul.f32.gmra.mxu0 %v434
        %v1366 = vpop.f32.mrf.mxu0
        %v1367 = vadd.f32 %v1117, %v1366
        %1368 = vdwg.mxu0
        %1369 = vmatpush.msra.mxu0 %v1076
        %1370 = vmatpush.msra.mxu0 %v1034
        %1371 = vmatpush.msra.mxu0 %v992
        %1372 = vmatpush.msra.mxu0 %v950
        %1373 = vmatpush.msra.mxu0 %v908
        %1374 = vmatpush.msra.mxu0 %v866
        %1375 = vmatpush.msra.mxu0 %v824
        %1376 = vmatpush.msra.mxu0 %v782
        %1377 = vmatpush.msra.mxu0 %v740
        %1378 = vmatpush.msra.mxu0 %v698
        %1379 = vmatpush.msra.mxu0 %v656
        %1380 = vmatpush.msra.mxu0 %v614
        %1381 = vmatpush.msra.mxu0 %v572
        %1382 = vmatpush.msra.mxu0 %v530
        %1383 = vmatpush.msra.mxu0 %v488
        %1384 = vmatpush.msra.mxu0 %v446
        %1385 = vmatmul.f32.gmra.mxu0 %v434
        %v1386 = vpop.f32.mrf.mxu0
        %v1387 = vadd.f32 %v1118, %v1386
        %1388 = vdwg.mxu0
        %1389 = vmatpush.msra.mxu0 %v1077
        %1390 = vmatpush.msra.mxu0 %v1035
        %1391 = vmatpush.msra.mxu0 %v993
        %1392 = vmatpush.msra.mxu0 %v951
        %1393 = vmatpush.msra.mxu0 %v909
        %1394 = vmatpush.msra.mxu0 %v867
        %1395 = vmatpush.msra.mxu0 %v825
        %1396 = vmatpush.msra.mxu0 %v783
        %1397 = vmatpush.msra.mxu0 %v741
        %1398 = vmatpush.msra.mxu0 %v699
        %1399 = vmatpush.msra.mxu0 %v657
        %1400 = vmatpush.msra.mxu0 %v615
        %1401 = vmatpush.msra.mxu0 %v573
        %1402 = vmatpush.msra.mxu0 %v531
        %1403 = vmatpush.msra.mxu0 %v489
        %1404 = vmatpush.msra.mxu0 %v447
        %1405 = vmatmul.f32.gmra.mxu0 %v434
        %v1406 = vpop.f32.mrf.mxu0
        %v1407 = vadd.f32 %v1119, %v1406
        %1408 = vdwg.mxu0
        %1409 = vmatpush.msra.mxu0 %v1078
        %1410 = vmatpush.msra.mxu0 %v1036
        %1411 = vmatpush.msra.mxu0 %v994
        %1412 = vmatpush.msra.mxu0 %v952
        %1413 = vmatpush.msra.mxu0 %v910
        %1414 = vmatpush.msra.mxu0 %v868
        %1415 = vmatpush.msra.mxu0 %v826
        %1416 = vmatpush.msra.mxu0 %v784
        %1417 = vmatpush.msra.mxu0 %v742
        %1418 = vmatpush.msra.mxu0 %v700
        %1419 = vmatpush.msra.mxu0 %v658
        %1420 = vmatpush.msra.mxu0 %v616
        %1421 = vmatpush.msra.mxu0 %v574
        %1422 = vmatpush.msra.mxu0 %v532
        %1423 = vmatpush.msra.mxu0 %v490
        %1424 = vmatpush.msra.mxu0 %v448
        %1425 = vmatmul.f32.gmra.mxu0 %v434
        %v1426 = vpop.f32.mrf.mxu0
        %v1427 = vadd.f32 %v1120, %v1426
        %1428 = vdwg.mxu0
        %1429 = vmatpush.msra.mxu0 %v1079
        %1430 = vmatpush.msra.mxu0 %v1037
        %1431 = vmatpush.msra.mxu0 %v995
        %1432 = vmatpush.msra.mxu0 %v953
        %1433 = vmatpush.msra.mxu0 %v911
        %1434 = vmatpush.msra.mxu0 %v869
        %1435 = vmatpush.msra.mxu0 %v827
        %1436 = vmatpush.msra.mxu0 %v785
        %1437 = vmatpush.msra.mxu0 %v743
        %1438 = vmatpush.msra.mxu0 %v701
        %1439 = vmatpush.msra.mxu0 %v659
        %1440 = vmatpush.msra.mxu0 %v617
        %1441 = vmatpush.msra.mxu0 %v575
        %1442 = vmatpush.msra.mxu0 %v533
        %1443 = vmatpush.msra.mxu0 %v491
        %1444 = vmatpush.msra.mxu0 %v449
        %1445 = vmatmul.f32.gmra.mxu0 %v434
        %v1446 = vpop.f32.mrf.mxu0
        %v1447 = vadd.f32 %v1121, %v1446
        %1448 = vdwg.mxu0
        %1449 = vmatpush.msra.mxu0 %v1080
        %1450 = vmatpush.msra.mxu0 %v1038
        %1451 = vmatpush.msra.mxu0 %v996
        %1452 = vmatpush.msra.mxu0 %v954
        %1453 = vmatpush.msra.mxu0 %v912
        %1454 = vmatpush.msra.mxu0 %v870
        %1455 = vmatpush.msra.mxu0 %v828
        %1456 = vmatpush.msra.mxu0 %v786
        %1457 = vmatpush.msra.mxu0 %v744
        %1458 = vmatpush.msra.mxu0 %v702
        %1459 = vmatpush.msra.mxu0 %v660
        %1460 = vmatpush.msra.mxu0 %v618
        %1461 = vmatpush.msra.mxu0 %v576
        %1462 = vmatpush.msra.mxu0 %v534
        %1463 = vmatpush.msra.mxu0 %v492
        %1464 = vmatpush.msra.mxu0 %v450
        %1465 = vmatmul.f32.gmra.mxu0 %v434
        %v1466 = vpop.f32.mrf.mxu0
        %v1467 = vadd.f32 %v1122, %v1466
        %1468 = vdwg.mxu0
        %1469 = vmatpush.msra.mxu0 %v1081
        %1470 = vmatpush.msra.mxu0 %v1039
        %1471 = vmatpush.msra.mxu0 %v997
        %1472 = vmatpush.msra.mxu0 %v955
        %1473 = vmatpush.msra.mxu0 %v913
        %1474 = vmatpush.msra.mxu0 %v871
        %1475 = vmatpush.msra.mxu0 %v829
        %1476 = vmatpush.msra.mxu0 %v787
        %1477 = vmatpush.msra.mxu0 %v745
        %1478 = vmatpush.msra.mxu0 %v703
        %1479 = vmatpush.msra.mxu0 %v661
        %1480 = vmatpush.msra.mxu0 %v619
        %1481 = vmatpush.msra.mxu0 %v577
        %1482 = vmatpush.msra.mxu0 %v535
        %1483 = vmatpush.msra.mxu0 %v493
        %1484 = vmatpush.msra.mxu0 %v451
        %1485 = vmatmul.f32.gmra.mxu0 %v434
        %v1486 = vpop.f32.mrf.mxu0
        %v1487 = vadd.f32 %v1123, %v1486
        %1488 = vdwg.mxu0
        %1489 = vmatpush.msra.mxu0 %v1082
        %1490 = vmatpush.msra.mxu0 %v1040
        %1491 = vmatpush.msra.mxu0 %v998
        %1492 = vmatpush.msra.mxu0 %v956
        %1493 = vmatpush.msra.mxu0 %v914
        %1494 = vmatpush.msra.mxu0 %v872
        %1495 = vmatpush.msra.mxu0 %v830
        %1496 = vmatpush.msra.mxu0 %v788
        %1497 = vmatpush.msra.mxu0 %v746
        %1498 = vmatpush.msra.mxu0 %v704
        %1499 = vmatpush.msra.mxu0 %v662
        %1500 = vmatpush.msra.mxu0 %v620
        %1501 = vmatpush.msra.mxu0 %v578
        %1502 = vmatpush.msra.mxu0 %v536
        %1503 = vmatpush.msra.mxu0 %v494
        %1504 = vmatpush.msra.mxu0 %v452
        %1505 = vmatmul.f32.gmra.mxu0 %v434
        %v1506 = vpop.f32.mrf.mxu0
        %v1507 = vadd.f32 %v1124, %v1506
        %1508 = vdwg.mxu0
        %1509 = vmatpush.msra.mxu0 %v1083
        %1510 = vmatpush.msra.mxu0 %v1041
        %1511 = vmatpush.msra.mxu0 %v999
        %1512 = vmatpush.msra.mxu0 %v957
        %1513 = vmatpush.msra.mxu0 %v915
        %1514 = vmatpush.msra.mxu0 %v873
        %1515 = vmatpush.msra.mxu0 %v831
        %1516 = vmatpush.msra.mxu0 %v789
        %1517 = vmatpush.msra.mxu0 %v747
        %1518 = vmatpush.msra.mxu0 %v705
        %1519 = vmatpush.msra.mxu0 %v663
        %1520 = vmatpush.msra.mxu0 %v621
        %1521 = vmatpush.msra.mxu0 %v579
        %1522 = vmatpush.msra.mxu0 %v537
        %1523 = vmatpush.msra.mxu0 %v495
        %1524 = vmatpush.msra.mxu0 %v453
        %1525 = vmatmul.f32.gmra.mxu0 %v434
        %v1526 = vpop.f32.mrf.mxu0
        %v1527 = vadd.f32 %v1125, %v1526
        %1528 = vdwg.mxu0
        %1529 = vmatpush.msra.mxu0 %v1084
        %1530 = vmatpush.msra.mxu0 %v1042
        %1531 = vmatpush.msra.mxu0 %v1000
        %1532 = vmatpush.msra.mxu0 %v958
        %1533 = vmatpush.msra.mxu0 %v916
        %1534 = vmatpush.msra.mxu0 %v874
        %1535 = vmatpush.msra.mxu0 %v832
        %1536 = vmatpush.msra.mxu0 %v790
        %1537 = vmatpush.msra.mxu0 %v748
        %1538 = vmatpush.msra.mxu0 %v706
        %1539 = vmatpush.msra.mxu0 %v664
        %1540 = vmatpush.msra.mxu0 %v622
        %1541 = vmatpush.msra.mxu0 %v580
        %1542 = vmatpush.msra.mxu0 %v538
        %1543 = vmatpush.msra.mxu0 %v496
        %1544 = vmatpush.msra.mxu0 %v454
        %1545 = vmatmul.f32.gmra.mxu0 %v434
        %v1546 = vpop.f32.mrf.mxu0
        %v1547 = vadd.f32 %v1126, %v1546
        %1548 = vdwg.mxu0
        %1549 = vmatpush.msra.mxu0 %v1085
        %1550 = vmatpush.msra.mxu0 %v1043
        %1551 = vmatpush.msra.mxu0 %v1001
        %1552 = vmatpush.msra.mxu0 %v959
        %1553 = vmatpush.msra.mxu0 %v917
        %1554 = vmatpush.msra.mxu0 %v875
        %1555 = vmatpush.msra.mxu0 %v833
        %1556 = vmatpush.msra.mxu0 %v791
        %1557 = vmatpush.msra.mxu0 %v749
        %1558 = vmatpush.msra.mxu0 %v707
        %1559 = vmatpush.msra.mxu0 %v665
        %1560 = vmatpush.msra.mxu0 %v623
        %1561 = vmatpush.msra.mxu0 %v581
        %1562 = vmatpush.msra.mxu0 %v539
        %1563 = vmatpush.msra.mxu0 %v497
        %1564 = vmatpush.msra.mxu0 %v455
        %1565 = vmatmul.f32.gmra.mxu0 %v434
        %v1566 = vpop.f32.mrf.mxu0
        %v1567 = vadd.f32 %v1127, %v1566
        %1568 = vdwg.mxu0
        %1569 = vmatpush.msra.mxu0 %v1086
        %1570 = vmatpush.msra.mxu0 %v1044
        %1571 = vmatpush.msra.mxu0 %v1002
        %1572 = vmatpush.msra.mxu0 %v960
        %1573 = vmatpush.msra.mxu0 %v918
        %1574 = vmatpush.msra.mxu0 %v876
        %1575 = vmatpush.msra.mxu0 %v834
        %1576 = vmatpush.msra.mxu0 %v792
        %1577 = vmatpush.msra.mxu0 %v750
        %1578 = vmatpush.msra.mxu0 %v708
        %1579 = vmatpush.msra.mxu0 %v666
        %1580 = vmatpush.msra.mxu0 %v624
        %1581 = vmatpush.msra.mxu0 %v582
        %1582 = vmatpush.msra.mxu0 %v540
        %1583 = vmatpush.msra.mxu0 %v498
        %1584 = vmatpush.msra.mxu0 %v456
        %1585 = vmatmul.f32.gmra.mxu0 %v434
        %v1586 = vpop.f32.mrf.mxu0
        %v1587 = vadd.f32 %v1128, %v1586
        %1588 = vdwg.mxu0
        %1589 = vmatpush.msra.mxu0 %v1087
        %1590 = vmatpush.msra.mxu0 %v1045
        %1591 = vmatpush.msra.mxu0 %v1003
        %1592 = vmatpush.msra.mxu0 %v961
        %1593 = vmatpush.msra.mxu0 %v919
        %1594 = vmatpush.msra.mxu0 %v877
        %1595 = vmatpush.msra.mxu0 %v835
        %1596 = vmatpush.msra.mxu0 %v793
        %1597 = vmatpush.msra.mxu0 %v751
        %1598 = vmatpush.msra.mxu0 %v709
        %1599 = vmatpush.msra.mxu0 %v667
        %1600 = vmatpush.msra.mxu0 %v625
        %1601 = vmatpush.msra.mxu0 %v583
        %1602 = vmatpush.msra.mxu0 %v541
        %1603 = vmatpush.msra.mxu0 %v499
        %1604 = vmatpush.msra.mxu0 %v457
        %1605 = vmatmul.f32.gmra.mxu0 %v434
        %v1606 = vpop.f32.mrf.mxu0
        %v1607 = vadd.f32 %v1129, %v1606
        %1608 = vdwg.mxu0
        %1609 = vmatpush.msra.mxu0 %v1088
        %1610 = vmatpush.msra.mxu0 %v1046
        %1611 = vmatpush.msra.mxu0 %v1004
        %1612 = vmatpush.msra.mxu0 %v962
        %1613 = vmatpush.msra.mxu0 %v920
        %1614 = vmatpush.msra.mxu0 %v878
        %1615 = vmatpush.msra.mxu0 %v836
        %1616 = vmatpush.msra.mxu0 %v794
        %1617 = vmatpush.msra.mxu0 %v752
        %1618 = vmatpush.msra.mxu0 %v710
        %1619 = vmatpush.msra.mxu0 %v668
        %1620 = vmatpush.msra.mxu0 %v626
        %1621 = vmatpush.msra.mxu0 %v584
        %1622 = vmatpush.msra.mxu0 %v542
        %1623 = vmatpush.msra.mxu0 %v500
        %1624 = vmatpush.msra.mxu0 %v458
        %1625 = vmatmul.f32.gmra.mxu0 %v434
        %v1626 = vpop.f32.mrf.mxu0
        %v1627 = vadd.f32 %v1130, %v1626
        %1628 = vdwg.mxu0
        %1629 = vmatpush.msra.mxu0 %v1089
        %1630 = vmatpush.msra.mxu0 %v1047
        %1631 = vmatpush.msra.mxu0 %v1005
        %1632 = vmatpush.msra.mxu0 %v963
        %1633 = vmatpush.msra.mxu0 %v921
        %1634 = vmatpush.msra.mxu0 %v879
        %1635 = vmatpush.msra.mxu0 %v837
        %1636 = vmatpush.msra.mxu0 %v795
        %1637 = vmatpush.msra.mxu0 %v753
        %1638 = vmatpush.msra.mxu0 %v711
        %1639 = vmatpush.msra.mxu0 %v669
        %1640 = vmatpush.msra.mxu0 %v627
        %1641 = vmatpush.msra.mxu0 %v585
        %1642 = vmatpush.msra.mxu0 %v543
        %1643 = vmatpush.msra.mxu0 %v501
        %1644 = vmatpush.msra.mxu0 %v459
        %1645 = vmatmul.f32.gmra.mxu0 %v434
        %v1646 = vpop.f32.mrf.mxu0
        %v1647 = vadd.f32 %v1131, %v1646
        %1648 = vdwg.mxu0
        %1649 = vmatpush.msra.mxu0 %v1090
        %1650 = vmatpush.msra.mxu0 %v1048
        %1651 = vmatpush.msra.mxu0 %v1006
        %1652 = vmatpush.msra.mxu0 %v964
        %1653 = vmatpush.msra.mxu0 %v922
        %1654 = vmatpush.msra.mxu0 %v880
        %1655 = vmatpush.msra.mxu0 %v838
        %1656 = vmatpush.msra.mxu0 %v796
        %1657 = vmatpush.msra.mxu0 %v754
        %1658 = vmatpush.msra.mxu0 %v712
        %1659 = vmatpush.msra.mxu0 %v670
        %1660 = vmatpush.msra.mxu0 %v628
        %1661 = vmatpush.msra.mxu0 %v586
        %1662 = vmatpush.msra.mxu0 %v544
        %1663 = vmatpush.msra.mxu0 %v502
        %1664 = vmatpush.msra.mxu0 %v460
        %1665 = vmatmul.f32.gmra.mxu0 %v434
        %v1666 = vpop.f32.mrf.mxu0
        %v1667 = vadd.f32 %v1132, %v1666
        %1668 = vdwg.mxu0
        %1669 = vmatpush.msra.mxu0 %v1091
        %1670 = vmatpush.msra.mxu0 %v1049
        %1671 = vmatpush.msra.mxu0 %v1007
        %1672 = vmatpush.msra.mxu0 %v965
        %1673 = vmatpush.msra.mxu0 %v923
        %1674 = vmatpush.msra.mxu0 %v881
        %1675 = vmatpush.msra.mxu0 %v839
        %1676 = vmatpush.msra.mxu0 %v797
        %1677 = vmatpush.msra.mxu0 %v755
        %1678 = vmatpush.msra.mxu0 %v713
        %1679 = vmatpush.msra.mxu0 %v671
        %1680 = vmatpush.msra.mxu0 %v629
        %1681 = vmatpush.msra.mxu0 %v587
        %1682 = vmatpush.msra.mxu0 %v545
        %1683 = vmatpush.msra.mxu0 %v503
        %1684 = vmatpush.msra.mxu0 %v461
        %1685 = vmatmul.f32.gmra.mxu0 %v434
        %v1686 = vpop.f32.mrf.mxu0
        %v1687 = vadd.f32 %v1133, %v1686
        %1688 = vdwg.mxu0
        %1689 = vmatpush.msra.mxu0 %v1092
        %1690 = vmatpush.msra.mxu0 %v1050
        %1691 = vmatpush.msra.mxu0 %v1008
        %1692 = vmatpush.msra.mxu0 %v966
        %1693 = vmatpush.msra.mxu0 %v924
        %1694 = vmatpush.msra.mxu0 %v882
        %1695 = vmatpush.msra.mxu0 %v840
        %1696 = vmatpush.msra.mxu0 %v798
        %1697 = vmatpush.msra.mxu0 %v756
        %1698 = vmatpush.msra.mxu0 %v714
        %1699 = vmatpush.msra.mxu0 %v672
        %1700 = vmatpush.msra.mxu0 %v630
        %1701 = vmatpush.msra.mxu0 %v588
        %1702 = vmatpush.msra.mxu0 %v546
        %1703 = vmatpush.msra.mxu0 %v504
        %1704 = vmatpush.msra.mxu0 %v462
        %1705 = vmatmul.f32.gmra.mxu0 %v434
        %v1706 = vpop.f32.mrf.mxu0
        %v1707 = vadd.f32 %v1134, %v1706
        %1708 = vdwg.mxu0
        %1709 = vmatpush.msra.mxu0 %v1093
        %1710 = vmatpush.msra.mxu0 %v1051
        %1711 = vmatpush.msra.mxu0 %v1009
        %1712 = vmatpush.msra.mxu0 %v967
        %1713 = vmatpush.msra.mxu0 %v925
        %1714 = vmatpush.msra.mxu0 %v883
        %1715 = vmatpush.msra.mxu0 %v841
        %1716 = vmatpush.msra.mxu0 %v799
        %1717 = vmatpush.msra.mxu0 %v757
        %1718 = vmatpush.msra.mxu0 %v715
        %1719 = vmatpush.msra.mxu0 %v673
        %1720 = vmatpush.msra.mxu0 %v631
        %1721 = vmatpush.msra.mxu0 %v589
        %1722 = vmatpush.msra.mxu0 %v547
        %1723 = vmatpush.msra.mxu0 %v505
        %1724 = vmatpush.msra.mxu0 %v463
        %1725 = vmatmul.f32.gmra.mxu0 %v434
        %v1726 = vpop.f32.mrf.mxu0
        %v1727 = vadd.f32 %v1135, %v1726
        %1728 = vdwg.mxu0
        %1729 = vmatpush.msra.mxu0 %v1094
        %1730 = vmatpush.msra.mxu0 %v1052
        %1731 = vmatpush.msra.mxu0 %v1010
        %1732 = vmatpush.msra.mxu0 %v968
        %1733 = vmatpush.msra.mxu0 %v926
        %1734 = vmatpush.msra.mxu0 %v884
        %1735 = vmatpush.msra.mxu0 %v842
        %1736 = vmatpush.msra.mxu0 %v800
        %1737 = vmatpush.msra.mxu0 %v758
        %1738 = vmatpush.msra.mxu0 %v716
        %1739 = vmatpush.msra.mxu0 %v674
        %1740 = vmatpush.msra.mxu0 %v632
        %1741 = vmatpush.msra.mxu0 %v590
        %1742 = vmatpush.msra.mxu0 %v548
        %1743 = vmatpush.msra.mxu0 %v506
        %1744 = vmatpush.msra.mxu0 %v464
        %1745 = vmatmul.f32.gmra.mxu0 %v434
        %v1746 = vpop.f32.mrf.mxu0
        %v1747 = vadd.f32 %v1136, %v1746
        %1748 = vdwg.mxu0
        %1749 = vmatpush.msra.mxu0 %v1095
        %1750 = vmatpush.msra.mxu0 %v1053
        %1751 = vmatpush.msra.mxu0 %v1011
        %1752 = vmatpush.msra.mxu0 %v969
        %1753 = vmatpush.msra.mxu0 %v927
        %1754 = vmatpush.msra.mxu0 %v885
        %1755 = vmatpush.msra.mxu0 %v843
        %1756 = vmatpush.msra.mxu0 %v801
        %1757 = vmatpush.msra.mxu0 %v759
        %1758 = vmatpush.msra.mxu0 %v717
        %1759 = vmatpush.msra.mxu0 %v675
        %1760 = vmatpush.msra.mxu0 %v633
        %1761 = vmatpush.msra.mxu0 %v591
        %1762 = vmatpush.msra.mxu0 %v549
        %1763 = vmatpush.msra.mxu0 %v507
        %1764 = vmatpush.msra.mxu0 %v465
        %1765 = vmatmul.f32.gmra.mxu0 %v434
        %v1766 = vpop.f32.mrf.mxu0
        %v1767 = vadd.f32 %v1137, %v1766
        %1768 = vdwg.mxu0
        %1769 = vmatpush.msra.mxu0 %v1096
        %1770 = vmatpush.msra.mxu0 %v1054
        %1771 = vmatpush.msra.mxu0 %v1012
        %1772 = vmatpush.msra.mxu0 %v970
        %1773 = vmatpush.msra.mxu0 %v928
        %1774 = vmatpush.msra.mxu0 %v886
        %1775 = vmatpush.msra.mxu0 %v844
        %1776 = vmatpush.msra.mxu0 %v802
        %1777 = vmatpush.msra.mxu0 %v760
        %1778 = vmatpush.msra.mxu0 %v718
        %1779 = vmatpush.msra.mxu0 %v676
        %1780 = vmatpush.msra.mxu0 %v634
        %1781 = vmatpush.msra.mxu0 %v592
        %1782 = vmatpush.msra.mxu0 %v550
        %1783 = vmatpush.msra.mxu0 %v508
        %1784 = vmatpush.msra.mxu0 %v466
        %1785 = vmatmul.f32.gmra.mxu0 %v434
        %v1786 = vpop.f32.mrf.mxu0
        %v1787 = vadd.f32 %v1138, %v1786
        %1788 = vdwg.mxu0
        %1789 = vmatpush.msra.mxu0 %v1097
        %1790 = vmatpush.msra.mxu0 %v1055
        %1791 = vmatpush.msra.mxu0 %v1013
        %1792 = vmatpush.msra.mxu0 %v971
        %1793 = vmatpush.msra.mxu0 %v929
        %1794 = vmatpush.msra.mxu0 %v887
        %1795 = vmatpush.msra.mxu0 %v845
        %1796 = vmatpush.msra.mxu0 %v803
        %1797 = vmatpush.msra.mxu0 %v761
        %1798 = vmatpush.msra.mxu0 %v719
        %1799 = vmatpush.msra.mxu0 %v677
        %1800 = vmatpush.msra.mxu0 %v635
        %1801 = vmatpush.msra.mxu0 %v593
        %1802 = vmatpush.msra.mxu0 %v551
        %1803 = vmatpush.msra.mxu0 %v509
        %1804 = vmatpush.msra.mxu0 %v467
        %1805 = vmatmul.f32.gmra.mxu0 %v434
        %v1806 = vpop.f32.mrf.mxu0
        %v1807 = vadd.f32 %v1139, %v1806
        %1808 = vdwg.mxu0
        %1809 = vmatpush.msra.mxu0 %v1098
        %1810 = vmatpush.msra.mxu0 %v1056
        %1811 = vmatpush.msra.mxu0 %v1014
        %1812 = vmatpush.msra.mxu0 %v972
        %1813 = vmatpush.msra.mxu0 %v930
        %1814 = vmatpush.msra.mxu0 %v888
        %1815 = vmatpush.msra.mxu0 %v846
        %1816 = vmatpush.msra.mxu0 %v804
        %1817 = vmatpush.msra.mxu0 %v762
        %1818 = vmatpush.msra.mxu0 %v720
        %1819 = vmatpush.msra.mxu0 %v678
        %1820 = vmatpush.msra.mxu0 %v636
        %1821 = vmatpush.msra.mxu0 %v594
        %1822 = vmatpush.msra.mxu0 %v552
        %1823 = vmatpush.msra.mxu0 %v510
        %1824 = vmatpush.msra.mxu0 %v468
        %1825 = vmatmul.f32.gmra.mxu0 %v434
        %v1826 = vpop.f32.mrf.mxu0
        %v1827 = vadd.f32 %v1140, %v1826
        %1828 = vdwg.mxu0
        %1829 = vmatpush.msra.mxu0 %v1099
        %1830 = vmatpush.msra.mxu0 %v1057
        %1831 = vmatpush.msra.mxu0 %v1015
        %1832 = vmatpush.msra.mxu0 %v973
        %1833 = vmatpush.msra.mxu0 %v931
        %1834 = vmatpush.msra.mxu0 %v889
        %1835 = vmatpush.msra.mxu0 %v847
        %1836 = vmatpush.msra.mxu0 %v805
        %1837 = vmatpush.msra.mxu0 %v763
        %1838 = vmatpush.msra.mxu0 %v721
        %1839 = vmatpush.msra.mxu0 %v679
        %1840 = vmatpush.msra.mxu0 %v637
        %1841 = vmatpush.msra.mxu0 %v595
        %1842 = vmatpush.msra.mxu0 %v553
        %1843 = vmatpush.msra.mxu0 %v511
        %1844 = vmatpush.msra.mxu0 %v469
        %1845 = vmatmul.f32.gmra.mxu0 %v434
        %v1846 = vpop.f32.mrf.mxu0
        %v1847 = vadd.f32 %v1141, %v1846
        %1848 = vdwg.mxu0
        %1849 = vmatpush.msra.mxu0 %v1100
        %1850 = vmatpush.msra.mxu0 %v1058
        %1851 = vmatpush.msra.mxu0 %v1016
        %1852 = vmatpush.msra.mxu0 %v974
        %1853 = vmatpush.msra.mxu0 %v932
        %1854 = vmatpush.msra.mxu0 %v890
        %1855 = vmatpush.msra.mxu0 %v848
        %1856 = vmatpush.msra.mxu0 %v806
        %1857 = vmatpush.msra.mxu0 %v764
        %1858 = vmatpush.msra.mxu0 %v722
        %1859 = vmatpush.msra.mxu0 %v680
        %1860 = vmatpush.msra.mxu0 %v638
        %1861 = vmatpush.msra.mxu0 %v596
        %1862 = vmatpush.msra.mxu0 %v554
        %1863 = vmatpush.msra.mxu0 %v512
        %1864 = vmatpush.msra.mxu0 %v470
        %1865 = vmatmul.f32.gmra.mxu0 %v434
        %v1866 = vpop.f32.mrf.mxu0
        %v1867 = vadd.f32 %v1142, %v1866
        %1868 = vdwg.mxu0
        %1869 = vmatpush.msra.mxu0 %v1101
        %1870 = vmatpush.msra.mxu0 %v1059
        %1871 = vmatpush.msra.mxu0 %v1017
        %1872 = vmatpush.msra.mxu0 %v975
        %1873 = vmatpush.msra.mxu0 %v933
        %1874 = vmatpush.msra.mxu0 %v891
        %1875 = vmatpush.msra.mxu0 %v849
        %1876 = vmatpush.msra.mxu0 %v807
        %1877 = vmatpush.msra.mxu0 %v765
        %1878 = vmatpush.msra.mxu0 %v723
        %1879 = vmatpush.msra.mxu0 %v681
        %1880 = vmatpush.msra.mxu0 %v639
        %1881 = vmatpush.msra.mxu0 %v597
        %1882 = vmatpush.msra.mxu0 %v555
        %1883 = vmatpush.msra.mxu0 %v513
        %1884 = vmatpush.msra.mxu0 %v471
        %1885 = vmatmul.f32.gmra.mxu0 %v434
        %v1886 = vpop.f32.mrf.mxu0
        %v1887 = vadd.f32 %v1143, %v1886
        %1888 = vdwg.mxu0
        %1889 = vmatpush.msra.mxu0 %v1102
        %1890 = vmatpush.msra.mxu0 %v1060
        %1891 = vmatpush.msra.mxu0 %v1018
        %1892 = vmatpush.msra.mxu0 %v976
        %1893 = vmatpush.msra.mxu0 %v934
        %1894 = vmatpush.msra.mxu0 %v892
        %1895 = vmatpush.msra.mxu0 %v850
        %1896 = vmatpush.msra.mxu0 %v808
        %1897 = vmatpush.msra.mxu0 %v766
        %1898 = vmatpush.msra.mxu0 %v724
        %1899 = vmatpush.msra.mxu0 %v682
        %1900 = vmatpush.msra.mxu0 %v640
        %1901 = vmatpush.msra.mxu0 %v598
        %1902 = vmatpush.msra.mxu0 %v556
        %1903 = vmatpush.msra.mxu0 %v514
        %1904 = vmatpush.msra.mxu0 %v472
        %1905 = vmatmul.f32.gmra.mxu0 %v434
        %v1906 = vpop.f32.mrf.mxu0
        %v1907 = vadd.f32 %v1144, %v1906
        %1908 = vdwg.mxu0
        %1909 = vmatpush.msra.mxu0 %v1103
        %1910 = vmatpush.msra.mxu0 %v1061
        %1911 = vmatpush.msra.mxu0 %v1019
        %1912 = vmatpush.msra.mxu0 %v977
        %1913 = vmatpush.msra.mxu0 %v935
        %1914 = vmatpush.msra.mxu0 %v893
        %1915 = vmatpush.msra.mxu0 %v851
        %1916 = vmatpush.msra.mxu0 %v809
        %1917 = vmatpush.msra.mxu0 %v767
        %1918 = vmatpush.msra.mxu0 %v725
        %1919 = vmatpush.msra.mxu0 %v683
        %1920 = vmatpush.msra.mxu0 %v641
        %1921 = vmatpush.msra.mxu0 %v599
        %1922 = vmatpush.msra.mxu0 %v557
        %1923 = vmatpush.msra.mxu0 %v515
        %1924 = vmatpush.msra.mxu0 %v473
        %1925 = vmatmul.f32.gmra.mxu0 %v434
        %v1926 = vpop.f32.mrf.mxu0
        %v1927 = vadd.f32 %v1145, %v1926
        %1928 = vdwg.mxu0
        %1929 = vmatpush.msra.mxu0 %v1104
        %1930 = vmatpush.msra.mxu0 %v1062
        %1931 = vmatpush.msra.mxu0 %v1020
        %1932 = vmatpush.msra.mxu0 %v978
        %1933 = vmatpush.msra.mxu0 %v936
        %1934 = vmatpush.msra.mxu0 %v894
        %1935 = vmatpush.msra.mxu0 %v852
        %1936 = vmatpush.msra.mxu0 %v810
        %1937 = vmatpush.msra.mxu0 %v768
        %1938 = vmatpush.msra.mxu0 %v726
        %1939 = vmatpush.msra.mxu0 %v684
        %1940 = vmatpush.msra.mxu0 %v642
        %1941 = vmatpush.msra.mxu0 %v600
        %1942 = vmatpush.msra.mxu0 %v558
        %1943 = vmatpush.msra.mxu0 %v516
        %1944 = vmatpush.msra.mxu0 %v474
        %1945 = vmatmul.f32.gmra.mxu0 %v434
        %v1946 = vpop.f32.mrf.mxu0
        %v1947 = vadd.f32 %v1146, %v1946
        %1948 = vdwg.mxu0
        %1949 = vmatpush.msra.mxu0 %v1105
        %1950 = vmatpush.msra.mxu0 %v1063
        %1951 = vmatpush.msra.mxu0 %v1021
        %1952 = vmatpush.msra.mxu0 %v979
        %1953 = vmatpush.msra.mxu0 %v937
        %1954 = vmatpush.msra.mxu0 %v895
        %1955 = vmatpush.msra.mxu0 %v853
        %1956 = vmatpush.msra.mxu0 %v811
        %1957 = vmatpush.msra.mxu0 %v769
        %1958 = vmatpush.msra.mxu0 %v727
        %1959 = vmatpush.msra.mxu0 %v685
        %1960 = vmatpush.msra.mxu0 %v643
        %1961 = vmatpush.msra.mxu0 %v601
        %1962 = vmatpush.msra.mxu0 %v559
        %1963 = vmatpush.msra.mxu0 %v517
        %1964 = vmatpush.msra.mxu0 %v475
        %1965 = vmatmul.f32.gmra.mxu0 %v434
        %v1966 = vpop.f32.mrf.mxu0
        %v1967 = vadd.f32 %v1147, %v1966
        %1968 = vdwg.mxu0
        %1969 = vmatpush.msra.mxu0 %v1106
        %1970 = vmatpush.msra.mxu0 %v1064
        %1971 = vmatpush.msra.mxu0 %v1022
        %1972 = vmatpush.msra.mxu0 %v980
        %1973 = vmatpush.msra.mxu0 %v938
        %1974 = vmatpush.msra.mxu0 %v896
        %1975 = vmatpush.msra.mxu0 %v854
        %1976 = vmatpush.msra.mxu0 %v812
        %1977 = vmatpush.msra.mxu0 %v770
        %1978 = vmatpush.msra.mxu0 %v728
        %1979 = vmatpush.msra.mxu0 %v686
        %1980 = vmatpush.msra.mxu0 %v644
        %1981 = vmatpush.msra.mxu0 %v602
        %1982 = vmatpush.msra.mxu0 %v560
        %1983 = vmatpush.msra.mxu0 %v518
        %1984 = vmatpush.msra.mxu0 %v476
        %1985 = vmatmul.f32.gmra.mxu0 %v434
        %v1986 = vpop.f32.mrf.mxu0
        %v1987 = vadd.f32 %v1148, %v1986
        %1988 = vdwg.mxu0
        %v1989 = vmax.f32 %v1167, 0.0
        %v1990 = vmax.f32 %v1187, 0.0
        %v1991 = vmax.f32 %v1207, 0.0
        %v1992 = vmax.f32 %v1227, 0.0
        %v1993 = vmax.f32 %v1247, 0.0
        %v1994 = vmax.f32 %v1267, 0.0
        %v1995 = vmax.f32 %v1287, 0.0
        %v1996 = vmax.f32 %v1307, 0.0
        %v1997 = vmax.f32 %v1327, 0.0
        %v1998 = vmax.f32 %v1347, 0.0
        %v1999 = vmax.f32 %v1367, 0.0
        %v2000 = vmax.f32 %v1387, 0.0
        %v2001 = vmax.f32 %v1407, 0.0
        %v2002 = vmax.f32 %v1427, 0.0
        %v2003 = vmax.f32 %v1447, 0.0
        %v2004 = vmax.f32 %v1467, 0.0
        %v2005 = vmax.f32 %v1487, 0.0
        %v2006 = vmax.f32 %v1507, 0.0
        %v2007 = vmax.f32 %v1527, 0.0
        %v2008 = vmax.f32 %v1547, 0.0
        %v2009 = vmax.f32 %v1567, 0.0
        %v2010 = vmax.f32 %v1587, 0.0
        %v2011 = vmax.f32 %v1607, 0.0
        %v2012 = vmax.f32 %v1627, 0.0
        %v2013 = vmax.f32 %v1647, 0.0
        %v2014 = vmax.f32 %v1667, 0.0
        %v2015 = vmax.f32 %v1687, 0.0
        %v2016 = vmax.f32 %v1707, 0.0
        %v2017 = vmax.f32 %v1727, 0.0
        %v2018 = vmax.f32 %v1747, 0.0
        %v2019 = vmax.f32 %v1767, 0.0
        %v2020 = vmax.f32 %v1787, 0.0
        %v2021 = vmax.f32 %v1807, 0.0
        %v2022 = vmax.f32 %v1827, 0.0
        %v2023 = vmax.f32 %v1847, 0.0
        %v2024 = vmax.f32 %v1867, 0.0
        %v2025 = vmax.f32 %v1887, 0.0
        %v2026 = vmax.f32 %v1907, 0.0
        %v2027 = vmax.f32 %v1927, 0.0
        %v2028 = vmax.f32 %v1947, 0.0
        %v2029 = vmax.f32 %v1967, 0.0
        %v2030 = vmax.f32 %v1987, 0.0
        %2031 = vst [vmem:[#allocation2] sm:$0xff] %v1989
        %2032 = vst [vmem:[#allocation2 + $0x8] sm:$0xff] %v1990
        %2033 = vst [vmem:[#allocation2 + $0x10] sm:$0xff] %v1991
        %2034 = vst [vmem:[#allocation2 + $0x18] sm:$0xff] %v1992
        %2035 = vst [vmem:[#allocation2 + $0x20] sm:$0xff] %v1993
        %2036 = vst [vmem:[#allocation2 + $0x28] sm:$0xff] %v1994
        %2037 = vst [vmem:[#allocation2 + $0x30] sm:$0xff] %v1995
        %2038 = vst [vmem:[#allocation2 + $0x38] sm:$0xff] %v1996
        %2039 = vst [vmem:[#allocation2 + $0x40] sm:$0xff] %v1997
        %2040 = vst [vmem:[#allocation2 + $0x48] sm:$0xff] %v1998
        %2041 = vst [vmem:[#allocation2 + $0x50] sm:$0xff] %v1999
        %2042 = vst [vmem:[#allocation2 + $0x58] sm:$0xff] %v2000
        %2043 = vst [vmem:[#allocation2 + $0x60] sm:$0xff] %v2001
        %2044 = vst [vmem:[#allocation2 + $0x68] sm:$0xff] %v2002
        %2045 = vst [vmem:[#allocation2 + $0x70] sm:$0xff] %v2003
        %2046 = vst [vmem:[#allocation2 + $0x78] sm:$0xff] %v2004
        %2047 = vst [vmem:[#allocation2 + $0x80] sm:$0xff] %v2005
        %2048 = vst [vmem:[#allocation2 + $0x88] sm:$0xff] %v2006
        %2049 = vst [vmem:[#allocation2 + $0x90] sm:$0xff] %v2007
        %2050 = vst [vmem:[#allocation2 + $0x98] sm:$0xff] %v2008
        %2051 = vst [vmem:[#allocation2 + $0xa0] sm:$0xff] %v2009
        %2052 = vst [vmem:[#allocation2 + $0xa8] sm:$0xff] %v2010
        %2053 = vst [vmem:[#allocation2 + $0xb0] sm:$0xff] %v2011
        %2054 = vst [vmem:[#allocation2 + $0xb8] sm:$0xff] %v2012
        %2055 = vst [vmem:[#allocation2 + $0xc0] sm:$0xff] %v2013
        %2056 = vst [vmem:[#allocation2 + $0xc8] sm:$0xff] %v2014
        %2057 = vst [vmem:[#allocation2 + $0xd0] sm:$0xff] %v2015
        %2058 = vst [vmem:[#allocation2 + $0xd8] sm:$0xff] %v2016
        %2059 = vst [vmem:[#allocation2 + $0xe0] sm:$0xff] %v2017
        %2060 = vst [vmem:[#allocation2 + $0xe8] sm:$0xff] %v2018
        %2061 = vst [vmem:[#allocation2 + $0xf0] sm:$0xff] %v2019
        %2062 = vst [vmem:[#allocation2 + $0xf8] sm:$0xff] %v2020
        %2063 = vst [vmem:[#allocation2 + $0x100] sm:$0xff] %v2021
        %2064 = vst [vmem:[#allocation2 + $0x108] sm:$0xff] %v2022
        %2065 = vst [vmem:[#allocation2 + $0x110] sm:$0xff] %v2023
        %2066 = vst [vmem:[#allocation2 + $0x118] sm:$0xff] %v2024
        %2067 = vst [vmem:[#allocation2 + $0x120] sm:$0xff] %v2025
        %2068 = vst [vmem:[#allocation2 + $0x128] sm:$0xff] %v2026
        %2069 = vst [vmem:[#allocation2 + $0x130] sm:$0xff] %v2027
        %2070 = vst [vmem:[#allocation2 + $0x138] sm:$0xff] %v2028
        %2071 = vst [vmem:[#allocation2 + $0x140] sm:$0xff] %v2029
        %2072 = vst [vmem:[#allocation2 + $0x148] sm:$0xff] %v2030
        %2115 = vrot.lane.b32.xlu0 %v1989, 1
        %v2116 = vpop.permute.xlu0 %2115
        %2117 = vrot.lane.b32.xlu0 %v1990, 1
        %v2118 = vpop.permute.xlu0 %2117
        %2119 = vrot.lane.b32.xlu0 %v1991, 1
        %v2120 = vpop.permute.xlu0 %2119
        %2121 = vrot.lane.b32.xlu0 %v1992, 1
        %v2122 = vpop.permute.xlu0 %2121
        %2123 = vrot.lane.b32.xlu0 %v1993, 1
        %v2124 = vpop.permute.xlu0 %2123
        %2125 = vrot.lane.b32.xlu0 %v1994, 1
        %v2126 = vpop.permute.xlu0 %2125
        %2127 = vrot.lane.b32.xlu0 %v1995, 1
        %v2128 = vpop.permute.xlu0 %2127
        %2129 = vrot.lane.b32.xlu0 %v1996, 1
        %v2130 = vpop.permute.xlu0 %2129
        %2131 = vrot.lane.b32.xlu0 %v1997, 1
        %v2132 = vpop.permute.xlu0 %2131
        %2133 = vrot.lane.b32.xlu0 %v1998, 1
        %v2134 = vpop.permute.xlu0 %2133
        %2135 = vrot.lane.b32.xlu0 %v1999, 1
        %v2136 = vpop.permute.xlu0 %2135
        %2137 = vrot.lane.b32.xlu0 %v2000, 1
        %v2138 = vpop.permute.xlu0 %2137
        %2139 = vrot.lane.b32.xlu0 %v2001, 1
        %v2140 = vpop.permute.xlu0 %2139
        %2141 = vrot.lane.b32.xlu0 %v2002, 1
        %v2142 = vpop.permute.xlu0 %2141
        %2143 = vrot.lane.b32.xlu0 %v2003, 1
        %v2144 = vpop.permute.xlu0 %2143
        %2145 = vrot.lane.b32.xlu0 %v2004, 1
        %v2146 = vpop.permute.xlu0 %2145
        %2147 = vrot.lane.b32.xlu0 %v2005, 1
        %v2148 = vpop.permute.xlu0 %2147
        %2149 = vrot.lane.b32.xlu0 %v2006, 1
        %v2150 = vpop.permute.xlu0 %2149
        %2151 = vrot.lane.b32.xlu0 %v2007, 1
        %v2152 = vpop.permute.xlu0 %2151
        %2153 = vrot.lane.b32.xlu0 %v2008, 1
        %v2154 = vpop.permute.xlu0 %2153
        %2155 = vrot.lane.b32.xlu0 %v2009, 1
        %v2156 = vpop.permute.xlu0 %2155
        %2157 = vrot.lane.b32.xlu0 %v2010, 1
        %v2158 = vpop.permute.xlu0 %2157
        %2159 = vrot.lane.b32.xlu0 %v2011, 1
        %v2160 = vpop.permute.xlu0 %2159
        %2161 = vrot.lane.b32.xlu0 %v2012, 1
        %v2162 = vpop.permute.xlu0 %2161
        %2163 = vrot.lane.b32.xlu0 %v2013, 1
        %v2164 = vpop.permute.xlu0 %2163
        %2165 = vrot.lane.b32.xlu0 %v2014, 1
        %v2166 = vpop.permute.xlu0 %2165
        %2167 = vrot.lane.b32.xlu0 %v2015, 1
        %v2168 = vpop.permute.xlu0 %2167
        %2169 = vrot.lane.b32.xlu0 %v2016, 1
        %v2170 = vpop.permute.xlu0 %2169
        %2171 = vrot.lane.b32.xlu0 %v2017, 1
        %v2172 = vpop.permute.xlu0 %2171
        %2173 = vrot.lane.b32.xlu0 %v2018, 1
        %v2174 = vpop.permute.xlu0 %2173
        %2175 = vrot.lane.b32.xlu0 %v2019, 1
        %v2176 = vpop.permute.xlu0 %2175
        %2177 = vrot.lane.b32.xlu0 %v2020, 1
        %v2178 = vpop.permute.xlu0 %2177
        %2179 = vrot.lane.b32.xlu0 %v2021, 1
        %v2180 = vpop.permute.xlu0 %2179
        %2181 = vrot.lane.b32.xlu0 %v2022, 1
        %v2182 = vpop.permute.xlu0 %2181
        %2183 = vrot.lane.b32.xlu0 %v2023, 1
        %v2184 = vpop.permute.xlu0 %2183
        %2185 = vrot.lane.b32.xlu0 %v2024, 1
        %v2186 = vpop.permute.xlu0 %2185
        %2187 = vrot.lane.b32.xlu0 %v2025, 1
        %v2188 = vpop.permute.xlu0 %2187
        %2189 = vrot.lane.b32.xlu0 %v2026, 1
        %v2190 = vpop.permute.xlu0 %2189
        %2191 = vrot.lane.b32.xlu0 %v2027, 1
        %v2192 = vpop.permute.xlu0 %2191
        %2193 = vrot.lane.b32.xlu0 %v2028, 1
        %v2194 = vpop.permute.xlu0 %2193
        %2195 = vrot.lane.b32.xlu0 %v2029, 1
        %v2196 = vpop.permute.xlu0 %2195
        %2197 = vrot.lane.b32.xlu0 %v2030, 1
        %v2198 = vpop.permute.xlu0 %2197
        %vm2199 = vcmask 7168
        %v2200 = vsel %vm2199, %v2116, %v2118
        %v2201 = vsel %vm2199, %v2118, %v2120
        %v2202 = vsel %vm2199, %v2120, %v2122
        %v2203 = vsel %vm2199, %v2122, %v2124
        %v2204 = vsel %vm2199, %v2124, %v2126
        %v2205 = vsel %vm2199, %v2126, %v2128
        %v2206 = vsel %vm2199, %v2128, %v2130
        %v2207 = vsel %vm2199, %v2130, %v2132
        %v2208 = vsel %vm2199, %v2132, %v2134
        %v2209 = vsel %vm2199, %v2134, %v2136
        %v2210 = vsel %vm2199, %v2136, %v2138
        %v2211 = vsel %vm2199, %v2138, %v2140
        %v2212 = vsel %vm2199, %v2140, %v2142
        %v2213 = vsel %vm2199, %v2142, %v2144
        %v2214 = vsel %vm2199, %v2144, %v2146
        %v2215 = vsel %vm2199, %v2146, %v2148
        %v2216 = vsel %vm2199, %v2148, %v2150
        %v2217 = vsel %vm2199, %v2150, %v2152
        %v2218 = vsel %vm2199, %v2152, %v2154
        %v2219 = vsel %vm2199, %v2154, %v2156
        %v2220 = vsel %vm2199, %v2156, %v2158
        %v2221 = vsel %vm2199, %v2158, %v2160
        %v2222 = vsel %vm2199, %v2160, %v2162
        %v2223 = vsel %vm2199, %v2162, %v2164
        %v2224 = vsel %vm2199, %v2164, %v2166
        %v2225 = vsel %vm2199, %v2166, %v2168
        %v2226 = vsel %vm2199, %v2168, %v2170
        %v2227 = vsel %vm2199, %v2170, %v2172
        %v2228 = vsel %vm2199, %v2172, %v2174
        %v2229 = vsel %vm2199, %v2174, %v2176
        %v2230 = vsel %vm2199, %v2176, %v2178
        %v2231 = vsel %vm2199, %v2178, %v2180
        %v2232 = vsel %vm2199, %v2180, %v2182
        %v2233 = vsel %vm2199, %v2182, %v2184
        %v2234 = vsel %vm2199, %v2184, %v2186
        %v2235 = vsel %vm2199, %v2186, %v2188
        %v2236 = vsel %vm2199, %v2188, %v2190
        %v2237 = vsel %vm2199, %v2190, %v2192
        %v2238 = vsel %vm2199, %v2192, %v2194
        %v2239 = vsel %vm2199, %v2194, %v2196
        %v2240 = vsel %vm2199, %v2196, %v2198
        %v2283 = vsel %vm2199, 0.0, %v2116
        %2284 = vst [vmem:[#allocation2 + $0x150] sm:$0xff] %v2283
        %2285 = vst [vmem:[#allocation2 + $0x158] sm:$0xff] %v2200
        %2286 = vst [vmem:[#allocation2 + $0x160] sm:$0xff] %v2201
        %2287 = vst [vmem:[#allocation2 + $0x168] sm:$0xff] %v2202
        %2288 = vst [vmem:[#allocation2 + $0x170] sm:$0xff] %v2203
        %2289 = vst [vmem:[#allocation2 + $0x178] sm:$0xff] %v2204
        %2290 = vst [vmem:[#allocation2 + $0x180] sm:$0xff] %v2205
        %2291 = vst [vmem:[#allocation2 + $0x188] sm:$0xff] %v2206
        %2292 = vst [vmem:[#allocation2 + $0x190] sm:$0xff] %v2207
        %2293 = vst [vmem:[#allocation2 + $0x198] sm:$0xff] %v2208
        %2294 = vst [vmem:[#allocation2 + $0x1a0] sm:$0xff] %v2209
        %2295 = vst [vmem:[#allocation2 + $0x1a8] sm:$0xff] %v2210
        %2296 = vst [vmem:[#allocation2 + $0x1b0] sm:$0xff] %v2211
        %2297 = vst [vmem:[#allocation2 + $0x1b8] sm:$0xff] %v2212
        %2298 = vst [vmem:[#allocation2 + $0x1c0] sm:$0xff] %v2213
        %2299 = vst [vmem:[#allocation2 + $0x1c8] sm:$0xff] %v2214
        %2300 = vst [vmem:[#allocation2 + $0x1d0] sm:$0xff] %v2215
        %2301 = vst [vmem:[#allocation2 + $0x1d8] sm:$0xff] %v2216
        %2302 = vst [vmem:[#allocation2 + $0x1e0] sm:$0xff] %v2217
        %2303 = vst [vmem:[#allocation2 + $0x1e8] sm:$0xff] %v2218
        %2304 = vst [vmem:[#allocation2 + $0x1f0] sm:$0xff] %v2219
        %2305 = vst [vmem:[#allocation2 + $0x1f8] sm:$0xff] %v2220
        %2306 = vst [vmem:[#allocation2 + $0x200] sm:$0xff] %v2221
        %2307 = vst [vmem:[#allocation2 + $0x208] sm:$0xff] %v2222
        %2308 = vst [vmem:[#allocation2 + $0x210] sm:$0xff] %v2223
        %2309 = vst [vmem:[#allocation2 + $0x218] sm:$0xff] %v2224
        %2310 = vst [vmem:[#allocation2 + $0x220] sm:$0xff] %v2225
        %2311 = vst [vmem:[#allocation2 + $0x228] sm:$0xff] %v2226
        %2312 = vst [vmem:[#allocation2 + $0x230] sm:$0xff] %v2227
        %2313 = vst [vmem:[#allocation2 + $0x238] sm:$0xff] %v2228
        %2314 = vst [vmem:[#allocation2 + $0x240] sm:$0xff] %v2229
        %2315 = vst [vmem:[#allocation2 + $0x248] sm:$0xff] %v2230
        %2316 = vst [vmem:[#allocation2 + $0x250] sm:$0xff] %v2231
        %2317 = vst [vmem:[#allocation2 + $0x258] sm:$0xff] %v2232
        %2318 = vst [vmem:[#allocation2 + $0x260] sm:$0xff] %v2233
        %2319 = vst [vmem:[#allocation2 + $0x268] sm:$0xff] %v2234
        %2320 = vst [vmem:[#allocation2 + $0x270] sm:$0xff] %v2235
        %2321 = vst [vmem:[#allocation2 + $0x278] sm:$0xff] %v2236
        %2322 = vst [vmem:[#allocation2 + $0x280] sm:$0xff] %v2237
        %2323 = vst [vmem:[#allocation2 + $0x288] sm:$0xff] %v2238
        %2324 = vst [vmem:[#allocation2 + $0x290] sm:$0xff] %v2239
        %2325 = vst [vmem:[#allocation2 + $0x298] sm:$0xff] %v2240
        %2326 = vrot.lane.b32.xlu0 %v1989, 2
        %v2327 = vpop.permute.xlu0 %2326
        %2328 = vrot.lane.b32.xlu0 %v1990, 2
        %v2329 = vpop.permute.xlu0 %2328
        %2330 = vrot.lane.b32.xlu0 %v1991, 2
        %v2331 = vpop.permute.xlu0 %2330
        %2332 = vrot.lane.b32.xlu0 %v1992, 2
        %v2333 = vpop.permute.xlu0 %2332
        %2334 = vrot.lane.b32.xlu0 %v1993, 2
        %v2335 = vpop.permute.xlu0 %2334
        %2336 = vrot.lane.b32.xlu0 %v1994, 2
        %v2337 = vpop.permute.xlu0 %2336
        %2338 = vrot.lane.b32.xlu0 %v1995, 2
        %v2339 = vpop.permute.xlu0 %2338
        %2340 = vrot.lane.b32.xlu0 %v1996, 2
        %v2341 = vpop.permute.xlu0 %2340
        %2342 = vrot.lane.b32.xlu0 %v1997, 2
        %v2343 = vpop.permute.xlu0 %2342
        %2344 = vrot.lane.b32.xlu0 %v1998, 2
        %v2345 = vpop.permute.xlu0 %2344
        %2346 = vrot.lane.b32.xlu0 %v1999, 2
        %v2347 = vpop.permute.xlu0 %2346
        %2348 = vrot.lane.b32.xlu0 %v2000, 2
        %v2349 = vpop.permute.xlu0 %2348
        %2350 = vrot.lane.b32.xlu0 %v2001, 2
        %v2351 = vpop.permute.xlu0 %2350
        %2352 = vrot.lane.b32.xlu0 %v2002, 2
        %v2353 = vpop.permute.xlu0 %2352
        %2354 = vrot.lane.b32.xlu0 %v2003, 2
        %v2355 = vpop.permute.xlu0 %2354
        %2356 = vrot.lane.b32.xlu0 %v2004, 2
        %v2357 = vpop.permute.xlu0 %2356
        %2358 = vrot.lane.b32.xlu0 %v2005, 2
        %v2359 = vpop.permute.xlu0 %2358
        %2360 = vrot.lane.b32.xlu0 %v2006, 2
        %v2361 = vpop.permute.xlu0 %2360
        %2362 = vrot.lane.b32.xlu0 %v2007, 2
        %v2363 = vpop.permute.xlu0 %2362
        %2364 = vrot.lane.b32.xlu0 %v2008, 2
        %v2365 = vpop.permute.xlu0 %2364
        %2366 = vrot.lane.b32.xlu0 %v2009, 2
        %v2367 = vpop.permute.xlu0 %2366
        %2368 = vrot.lane.b32.xlu0 %v2010, 2
        %v2369 = vpop.permute.xlu0 %2368
        %2370 = vrot.lane.b32.xlu0 %v2011, 2
        %v2371 = vpop.permute.xlu0 %2370
        %2372 = vrot.lane.b32.xlu0 %v2012, 2
        %v2373 = vpop.permute.xlu0 %2372
        %2374 = vrot.lane.b32.xlu0 %v2013, 2
        %v2375 = vpop.permute.xlu0 %2374
        %2376 = vrot.lane.b32.xlu0 %v2014, 2
        %v2377 = vpop.permute.xlu0 %2376
        %2378 = vrot.lane.b32.xlu0 %v2015, 2
        %v2379 = vpop.permute.xlu0 %2378
        %2380 = vrot.lane.b32.xlu0 %v2016, 2
        %v2381 = vpop.permute.xlu0 %2380
        %2382 = vrot.lane.b32.xlu0 %v2017, 2
        %v2383 = vpop.permute.xlu0 %2382
        %2384 = vrot.lane.b32.xlu0 %v2018, 2
        %v2385 = vpop.permute.xlu0 %2384
        %2386 = vrot.lane.b32.xlu0 %v2019, 2
        %v2387 = vpop.permute.xlu0 %2386
        %2388 = vrot.lane.b32.xlu0 %v2020, 2
        %v2389 = vpop.permute.xlu0 %2388
        %2390 = vrot.lane.b32.xlu0 %v2021, 2
        %v2391 = vpop.permute.xlu0 %2390
        %2392 = vrot.lane.b32.xlu0 %v2022, 2
        %v2393 = vpop.permute.xlu0 %2392
        %2394 = vrot.lane.b32.xlu0 %v2023, 2
        %v2395 = vpop.permute.xlu0 %2394
        %2396 = vrot.lane.b32.xlu0 %v2024, 2
        %v2397 = vpop.permute.xlu0 %2396
        %2398 = vrot.lane.b32.xlu0 %v2025, 2
        %v2399 = vpop.permute.xlu0 %2398
        %2400 = vrot.lane.b32.xlu0 %v2026, 2
        %v2401 = vpop.permute.xlu0 %2400
        %2402 = vrot.lane.b32.xlu0 %v2027, 2
        %v2403 = vpop.permute.xlu0 %2402
        %2404 = vrot.lane.b32.xlu0 %v2028, 2
        %v2405 = vpop.permute.xlu0 %2404
        %2406 = vrot.lane.b32.xlu0 %v2029, 2
        %v2407 = vpop.permute.xlu0 %2406
        %2408 = vrot.lane.b32.xlu0 %v2030, 2
        %v2409 = vpop.permute.xlu0 %2408
        %vm2410 = vcmask 15360
        %v2411 = vsel %vm2410, %v2327, %v2329
        %v2412 = vsel %vm2410, %v2329, %v2331
        %v2413 = vsel %vm2410, %v2331, %v2333
        %v2414 = vsel %vm2410, %v2333, %v2335
        %v2415 = vsel %vm2410, %v2335, %v2337
        %v2416 = vsel %vm2410, %v2337, %v2339
        %v2417 = vsel %vm2410, %v2339, %v2341
        %v2418 = vsel %vm2410, %v2341, %v2343
        %v2419 = vsel %vm2410, %v2343, %v2345
        %v2420 = vsel %vm2410, %v2345, %v2347
        %v2421 = vsel %vm2410, %v2347, %v2349
        %v2422 = vsel %vm2410, %v2349, %v2351
        %v2423 = vsel %vm2410, %v2351, %v2353
        %v2424 = vsel %vm2410, %v2353, %v2355
        %v2425 = vsel %vm2410, %v2355, %v2357
        %v2426 = vsel %vm2410, %v2357, %v2359
        %v2427 = vsel %vm2410, %v2359, %v2361
        %v2428 = vsel %vm2410, %v2361, %v2363
        %v2429 = vsel %vm2410, %v2363, %v2365
        %v2430 = vsel %vm2410, %v2365, %v2367
        %v2431 = vsel %vm2410, %v2367, %v2369
        %v2432 = vsel %vm2410, %v2369, %v2371
        %v2433 = vsel %vm2410, %v2371, %v2373
        %v2434 = vsel %vm2410, %v2373, %v2375
        %v2435 = vsel %vm2410, %v2375, %v2377
        %v2436 = vsel %vm2410, %v2377, %v2379
        %v2437 = vsel %vm2410, %v2379, %v2381
        %v2438 = vsel %vm2410, %v2381, %v2383
        %v2439 = vsel %vm2410, %v2383, %v2385
        %v2440 = vsel %vm2410, %v2385, %v2387
        %v2441 = vsel %vm2410, %v2387, %v2389
        %v2442 = vsel %vm2410, %v2389, %v2391
        %v2443 = vsel %vm2410, %v2391, %v2393
        %v2444 = vsel %vm2410, %v2393, %v2395
        %v2445 = vsel %vm2410, %v2395, %v2397
        %v2446 = vsel %vm2410, %v2397, %v2399
        %v2447 = vsel %vm2410, %v2399, %v2401
        %v2448 = vsel %vm2410, %v2401, %v2403
        %v2449 = vsel %vm2410, %v2403, %v2405
        %v2450 = vsel %vm2410, %v2405, %v2407
        %v2451 = vsel %vm2410, %v2407, %v2409
        %v2494 = vsel %vm2410, 0.0, %v2327
        %2495 = vst [vmem:[#allocation2 + $0x2a0] sm:$0xff] %v2494
        %2496 = vst [vmem:[#allocation2 + $0x2a8] sm:$0xff] %v2411
        %2497 = vst [vmem:[#allocation2 + $0x2b0] sm:$0xff] %v2412
        %2498 = vst [vmem:[#allocation2 + $0x2b8] sm:$0xff] %v2413
        %2499 = vst [vmem:[#allocation2 + $0x2c0] sm:$0xff] %v2414
        %2500 = vst [vmem:[#allocation2 + $0x2c8] sm:$0xff] %v2415
        %2501 = vst [vmem:[#allocation2 + $0x2d0] sm:$0xff] %v2416
        %2502 = vst [vmem:[#allocation2 + $0x2d8] sm:$0xff] %v2417
        %2503 = vst [vmem:[#allocation2 + $0x2e0] sm:$0xff] %v2418
        %2504 = vst [vmem:[#allocation2 + $0x2e8] sm:$0xff] %v2419
        %2505 = vst [vmem:[#allocation2 + $0x2f0] sm:$0xff] %v2420
        %2506 = vst [vmem:[#allocation2 + $0x2f8] sm:$0xff] %v2421
        %2507 = vst [vmem:[#allocation2 + $0x300] sm:$0xff] %v2422
        %2508 = vst [vmem:[#allocation2 + $0x308] sm:$0xff] %v2423
        %2509 = vst [vmem:[#allocation2 + $0x310] sm:$0xff] %v2424
        %2510 = vst [vmem:[#allocation2 + $0x318] sm:$0xff] %v2425
        %2511 = vst [vmem:[#allocation2 + $0x320] sm:$0xff] %v2426
        %2512 = vst [vmem:[#allocation2 + $0x328] sm:$0xff] %v2427
        %2513 = vst [vmem:[#allocation2 + $0x330] sm:$0xff] %v2428
        %2514 = vst [vmem:[#allocation2 + $0x338] sm:$0xff] %v2429
        %2515 = vst [vmem:[#allocation2 + $0x340] sm:$0xff] %v2430
        %2516 = vst [vmem:[#allocation2 + $0x348] sm:$0xff] %v2431
        %2517 = vst [vmem:[#allocation2 + $0x350] sm:$0xff] %v2432
        %2518 = vst [vmem:[#allocation2 + $0x358] sm:$0xff] %v2433
        %2519 = vst [vmem:[#allocation2 + $0x360] sm:$0xff] %v2434
        %2520 = vst [vmem:[#allocation2 + $0x368] sm:$0xff] %v2435
        %2521 = vst [vmem:[#allocation2 + $0x370] sm:$0xff] %v2436
        %2522 = vst [vmem:[#allocation2 + $0x378] sm:$0xff] %v2437
        %2523 = vst [vmem:[#allocation2 + $0x380] sm:$0xff] %v2438
        %2524 = vst [vmem:[#allocation2 + $0x388] sm:$0xff] %v2439
        %2525 = vst [vmem:[#allocation2 + $0x390] sm:$0xff] %v2440
        %2526 = vst [vmem:[#allocation2 + $0x398] sm:$0xff] %v2441
        %2527 = vst [vmem:[#allocation2 + $0x3a0] sm:$0xff] %v2442
        %2528 = vst [vmem:[#allocation2 + $0x3a8] sm:$0xff] %v2443
        %2529 = vst [vmem:[#allocation2 + $0x3b0] sm:$0xff] %v2444
        %2530 = vst [vmem:[#allocation2 + $0x3b8] sm:$0xff] %v2445
        %2531 = vst [vmem:[#allocation2 + $0x3c0] sm:$0xff] %v2446
        %2532 = vst [vmem:[#allocation2 + $0x3c8] sm:$0xff] %v2447
        %2533 = vst [vmem:[#allocation2 + $0x3d0] sm:$0xff] %v2448
        %2534 = vst [vmem:[#allocation2 + $0x3d8] sm:$0xff] %v2449
        %2535 = vst [vmem:[#allocation2 + $0x3e0] sm:$0xff] %v2450
        %2536 = vst [vmem:[#allocation2 + $0x3e8] sm:$0xff] %v2451
        %2537 = vst [vmem:[#allocation2 + $0x3f0] sm:$0xff] 0.0
        %2538 = vst [vmem:[#allocation2 + $0x3f8] sm:$0xff] %v1989
        %2539 = vst [vmem:[#allocation2 + $0x400] sm:$0xff] %v1990
        %2540 = vst [vmem:[#allocation2 + $0x408] sm:$0xff] %v1991
        %2541 = vst [vmem:[#allocation2 + $0x410] sm:$0xff] %v1992
        %2542 = vst [vmem:[#allocation2 + $0x418] sm:$0xff] %v1993
        %2543 = vst [vmem:[#allocation2 + $0x420] sm:$0xff] %v1994
        %2544 = vst [vmem:[#allocation2 + $0x428] sm:$0xff] %v1995
        %2545 = vst [vmem:[#allocation2 + $0x430] sm:$0xff] %v1996
        %2546 = vst [vmem:[#allocation2 + $0x438] sm:$0xff] %v1997
        %2547 = vst [vmem:[#allocation2 + $0x440] sm:$0xff] %v1998
        %2548 = vst [vmem:[#allocation2 + $0x448] sm:$0xff] %v1999
        %2549 = vst [vmem:[#allocation2 + $0x450] sm:$0xff] %v2000
        %2550 = vst [vmem:[#allocation2 + $0x458] sm:$0xff] %v2001
        %2551 = vst [vmem:[#allocation2 + $0x460] sm:$0xff] %v2002
        %2552 = vst [vmem:[#allocation2 + $0x468] sm:$0xff] %v2003
        %2553 = vst [vmem:[#allocation2 + $0x470] sm:$0xff] %v2004
        %2554 = vst [vmem:[#allocation2 + $0x478] sm:$0xff] %v2005
        %2555 = vst [vmem:[#allocation2 + $0x480] sm:$0xff] %v2006
        %2556 = vst [vmem:[#allocation2 + $0x488] sm:$0xff] %v2007
        %2557 = vst [vmem:[#allocation2 + $0x490] sm:$0xff] %v2008
        %2558 = vst [vmem:[#allocation2 + $0x498] sm:$0xff] %v2009
        %2559 = vst [vmem:[#allocation2 + $0x4a0] sm:$0xff] %v2010
        %2560 = vst [vmem:[#allocation2 + $0x4a8] sm:$0xff] %v2011
        %2561 = vst [vmem:[#allocation2 + $0x4b0] sm:$0xff] %v2012
        %2562 = vst [vmem:[#allocation2 + $0x4b8] sm:$0xff] %v2013
        %2563 = vst [vmem:[#allocation2 + $0x4c0] sm:$0xff] %v2014
        %2564 = vst [vmem:[#allocation2 + $0x4c8] sm:$0xff] %v2015
        %2565 = vst [vmem:[#allocation2 + $0x4d0] sm:$0xff] %v2016
        %2566 = vst [vmem:[#allocation2 + $0x4d8] sm:$0xff] %v2017
        %2567 = vst [vmem:[#allocation2 + $0x4e0] sm:$0xff] %v2018
        %2568 = vst [vmem:[#allocation2 + $0x4e8] sm:$0xff] %v2019
        %2569 = vst [vmem:[#allocation2 + $0x4f0] sm:$0xff] %v2020
        %2570 = vst [vmem:[#allocation2 + $0x4f8] sm:$0xff] %v2021
        %2571 = vst [vmem:[#allocation2 + $0x500] sm:$0xff] %v2022
        %2572 = vst [vmem:[#allocation2 + $0x508] sm:$0xff] %v2023
        %2573 = vst [vmem:[#allocation2 + $0x510] sm:$0xff] %v2024
        %2574 = vst [vmem:[#allocation2 + $0x518] sm:$0xff] %v2025
        %2575 = vst [vmem:[#allocation2 + $0x520] sm:$0xff] %v2026
        %2576 = vst [vmem:[#allocation2 + $0x528] sm:$0xff] %v2027
        %2577 = vst [vmem:[#allocation2 + $0x530] sm:$0xff] %v2028
        %2578 = vst [vmem:[#allocation2 + $0x538] sm:$0xff] %v2029
        %2579 = vst [vmem:[#allocation2 + $0x540] sm:$0xff] 0.0
        %2580 = vst [vmem:[#allocation2 + $0x548] sm:$0xff] %v2283
        %2581 = vst [vmem:[#allocation2 + $0x550] sm:$0xff] %v2200
        %2582 = vst [vmem:[#allocation2 + $0x558] sm:$0xff] %v2201
        %2583 = vst [vmem:[#allocation2 + $0x560] sm:$0xff] %v2202
        %2584 = vst [vmem:[#allocation2 + $0x568] sm:$0xff] %v2203
        %2585 = vst [vmem:[#allocation2 + $0x570] sm:$0xff] %v2204
        %2586 = vst [vmem:[#allocation2 + $0x578] sm:$0xff] %v2205
        %2587 = vst [vmem:[#allocation2 + $0x580] sm:$0xff] %v2206
        %2588 = vst [vmem:[#allocation2 + $0x588] sm:$0xff] %v2207
        %2589 = vst [vmem:[#allocation2 + $0x590] sm:$0xff] %v2208
        %2590 = vst [vmem:[#allocation2 + $0x598] sm:$0xff] %v2209
        %2591 = vst [vmem:[#allocation2 + $0x5a0] sm:$0xff] %v2210
        %2592 = vst [vmem:[#allocation2 + $0x5a8] sm:$0xff] %v2211
        %2593 = vst [vmem:[#allocation2 + $0x5b0] sm:$0xff] %v2212
        %2594 = vst [vmem:[#allocation2 + $0x5b8] sm:$0xff] %v2213
        %2595 = vst [vmem:[#allocation2 + $0x5c0] sm:$0xff] %v2214
        %2596 = vst [vmem:[#allocation2 + $0x5c8] sm:$0xff] %v2215
        %2597 = vst [vmem:[#allocation2 + $0x5d0] sm:$0xff] %v2216
        %2598 = vst [vmem:[#allocation2 + $0x5d8] sm:$0xff] %v2217
        %2599 = vst [vmem:[#allocation2 + $0x5e0] sm:$0xff] %v2218
        %2600 = vst [vmem:[#allocation2 + $0x5e8] sm:$0xff] %v2219
        %2601 = vst [vmem:[#allocation2 + $0x5f0] sm:$0xff] %v2220
        %2602 = vst [vmem:[#allocation2 + $0x5f8] sm:$0xff] %v2221
        %2603 = vst [vmem:[#allocation2 + $0x600] sm:$0xff] %v2222
        %2604 = vst [vmem:[#allocation2 + $0x608] sm:$0xff] %v2223
        %2605 = vst [vmem:[#allocation2 + $0x610] sm:$0xff] %v2224
        %2606 = vst [vmem:[#allocation2 + $0x618] sm:$0xff] %v2225
        %2607 = vst [vmem:[#allocation2 + $0x620] sm:$0xff] %v2226
        %2608 = vst [vmem:[#allocation2 + $0x628] sm:$0xff] %v2227
        %2609 = vst [vmem:[#allocation2 + $0x630] sm:$0xff] %v2228
        %2610 = vst [vmem:[#allocation2 + $0x638] sm:$0xff] %v2229
        %2611 = vst [vmem:[#allocation2 + $0x640] sm:$0xff] %v2230
        %2612 = vst [vmem:[#allocation2 + $0x648] sm:$0xff] %v2231
        %2613 = vst [vmem:[#allocation2 + $0x650] sm:$0xff] %v2232
        %2614 = vst [vmem:[#allocation2 + $0x658] sm:$0xff] %v2233
        %2615 = vst [vmem:[#allocation2 + $0x660] sm:$0xff] %v2234
        %2616 = vst [vmem:[#allocation2 + $0x668] sm:$0xff] %v2235
        %2617 = vst [vmem:[#allocation2 + $0x670] sm:$0xff] %v2236
        %2618 = vst [vmem:[#allocation2 + $0x678] sm:$0xff] %v2237
        %2619 = vst [vmem:[#allocation2 + $0x680] sm:$0xff] %v2238
        %2620 = vst [vmem:[#allocation2 + $0x688] sm:$0xff] %v2239
        %2621 = vst [vmem:[#allocation2 + $0x690] sm:$0xff] 0.0
        %2622 = vst [vmem:[#allocation2 + $0x698] sm:$0xff] %v2494
        %2623 = vst [vmem:[#allocation2 + $0x6a0] sm:$0xff] %v2411
        %2624 = vst [vmem:[#allocation2 + $0x6a8] sm:$0xff] %v2412
        %2625 = vst [vmem:[#allocation2 + $0x6b0] sm:$0xff] %v2413
        %2626 = vst [vmem:[#allocation2 + $0x6b8] sm:$0xff] %v2414
        %2627 = vst [vmem:[#allocation2 + $0x6c0] sm:$0xff] %v2415
        %2628 = vst [vmem:[#allocation2 + $0x6c8] sm:$0xff] %v2416
        %2629 = vst [vmem:[#allocation2 + $0x6d0] sm:$0xff] %v2417
        %2630 = vst [vmem:[#allocation2 + $0x6d8] sm:$0xff] %v2418
        %2631 = vst [vmem:[#allocation2 + $0x6e0] sm:$0xff] %v2419
        %2632 = vst [vmem:[#allocation2 + $0x6e8] sm:$0xff] %v2420
        %2633 = vst [vmem:[#allocation2 + $0x6f0] sm:$0xff] %v2421
        %2634 = vst [vmem:[#allocation2 + $0x6f8] sm:$0xff] %v2422
        %2635 = vst [vmem:[#allocation2 + $0x700] sm:$0xff] %v2423
        %2636 = vst [vmem:[#allocation2 + $0x708] sm:$0xff] %v2424
        %2637 = vst [vmem:[#allocation2 + $0x710] sm:$0xff] %v2425
        %2638 = vst [vmem:[#allocation2 + $0x718] sm:$0xff] %v2426
        %2639 = vst [vmem:[#allocation2 + $0x720] sm:$0xff] %v2427
        %2640 = vst [vmem:[#allocation2 + $0x728] sm:$0xff] %v2428
        %2641 = vst [vmem:[#allocation2 + $0x730] sm:$0xff] %v2429
        %2642 = vst [vmem:[#allocation2 + $0x738] sm:$0xff] %v2430
        %2643 = vst [vmem:[#allocation2 + $0x740] sm:$0xff] %v2431
        %2644 = vst [vmem:[#allocation2 + $0x748] sm:$0xff] %v2432
        %2645 = vst [vmem:[#allocation2 + $0x750] sm:$0xff] %v2433
        %2646 = vst [vmem:[#allocation2 + $0x758] sm:$0xff] %v2434
        %2647 = vst [vmem:[#allocation2 + $0x760] sm:$0xff] %v2435
        %2648 = vst [vmem:[#allocation2 + $0x768] sm:$0xff] %v2436
        %2649 = vst [vmem:[#allocation2 + $0x770] sm:$0xff] %v2437
        %2650 = vst [vmem:[#allocation2 + $0x778] sm:$0xff] %v2438
        %2651 = vst [vmem:[#allocation2 + $0x780] sm:$0xff] %v2439
        %2652 = vst [vmem:[#allocation2 + $0x788] sm:$0xff] %v2440
        %2653 = vst [vmem:[#allocation2 + $0x790] sm:$0xff] %v2441
        %2654 = vst [vmem:[#allocation2 + $0x798] sm:$0xff] %v2442
        %2655 = vst [vmem:[#allocation2 + $0x7a0] sm:$0xff] %v2443
        %2656 = vst [vmem:[#allocation2 + $0x7a8] sm:$0xff] %v2444
        %2657 = vst [vmem:[#allocation2 + $0x7b0] sm:$0xff] %v2445
        %2658 = vst [vmem:[#allocation2 + $0x7b8] sm:$0xff] %v2446
        %2659 = vst [vmem:[#allocation2 + $0x7c0] sm:$0xff] %v2447
        %2660 = vst [vmem:[#allocation2 + $0x7c8] sm:$0xff] %v2448
        %2661 = vst [vmem:[#allocation2 + $0x7d0] sm:$0xff] %v2449
        %2662 = vst [vmem:[#allocation2 + $0x7d8] sm:$0xff] %v2450
        %2663 = vst [vmem:[#allocation2 + $0x7e0] sm:$0xff] 0.0
        %2664 = vst [vmem:[#allocation2 + $0x7e8] sm:$0xff] 0.0
        %2665 = vst [vmem:[#allocation2 + $0x7f0] sm:$0xff] %v1989
        %2666 = vst [vmem:[#allocation2 + $0x7f8] sm:$0xff] %v1990
        %2667 = vst [vmem:[#allocation2 + $0x800] sm:$0xff] %v1991
        %2668 = vst [vmem:[#allocation2 + $0x808] sm:$0xff] %v1992
        %2669 = vst [vmem:[#allocation2 + $0x810] sm:$0xff] %v1993
        %2670 = vst [vmem:[#allocation2 + $0x818] sm:$0xff] %v1994
        %2671 = vst [vmem:[#allocation2 + $0x820] sm:$0xff] %v1995
        %2672 = vst [vmem:[#allocation2 + $0x828] sm:$0xff] %v1996
        %2673 = vst [vmem:[#allocation2 + $0x830] sm:$0xff] %v1997
        %2674 = vst [vmem:[#allocation2 + $0x838] sm:$0xff] %v1998
        %2675 = vst [vmem:[#allocation2 + $0x840] sm:$0xff] %v1999
        %2676 = vst [vmem:[#allocation2 + $0x848] sm:$0xff] %v2000
        %2677 = vst [vmem:[#allocation2 + $0x850] sm:$0xff] %v2001
        %2678 = vst [vmem:[#allocation2 + $0x858] sm:$0xff] %v2002
        %2679 = vst [vmem:[#allocation2 + $0x860] sm:$0xff] %v2003
        %2680 = vst [vmem:[#allocation2 + $0x868] sm:$0xff] %v2004
        %2681 = vst [vmem:[#allocation2 + $0x870] sm:$0xff] %v2005
        %2682 = vst [vmem:[#allocation2 + $0x878] sm:$0xff] %v2006
        %2683 = vst [vmem:[#allocation2 + $0x880] sm:$0xff] %v2007
        %2684 = vst [vmem:[#allocation2 + $0x888] sm:$0xff] %v2008
        %2685 = vst [vmem:[#allocation2 + $0x890] sm:$0xff] %v2009
        %2686 = vst [vmem:[#allocation2 + $0x898] sm:$0xff] %v2010
        %2687 = vst [vmem:[#allocation2 + $0x8a0] sm:$0xff] %v2011
        %2688 = vst [vmem:[#allocation2 + $0x8a8] sm:$0xff] %v2012
        %2689 = vst [vmem:[#allocation2 + $0x8b0] sm:$0xff] %v2013
        %2690 = vst [vmem:[#allocation2 + $0x8b8] sm:$0xff] %v2014
        %2691 = vst [vmem:[#allocation2 + $0x8c0] sm:$0xff] %v2015
        %2692 = vst [vmem:[#allocation2 + $0x8c8] sm:$0xff] %v2016
        %2693 = vst [vmem:[#allocation2 + $0x8d0] sm:$0xff] %v2017
        %2694 = vst [vmem:[#allocation2 + $0x8d8] sm:$0xff] %v2018
        %2695 = vst [vmem:[#allocation2 + $0x8e0] sm:$0xff] %v2019
        %2696 = vst [vmem:[#allocation2 + $0x8e8] sm:$0xff] %v2020
        %2697 = vst [vmem:[#allocation2 + $0x8f0] sm:$0xff] %v2021
        %2698 = vst [vmem:[#allocation2 + $0x8f8] sm:$0xff] %v2022
        %2699 = vst [vmem:[#allocation2 + $0x900] sm:$0xff] %v2023
        %2700 = vst [vmem:[#allocation2 + $0x908] sm:$0xff] %v2024
        %2701 = vst [vmem:[#allocation2 + $0x910] sm:$0xff] %v2025
        %2702 = vst [vmem:[#allocation2 + $0x918] sm:$0xff] %v2026
        %2703 = vst [vmem:[#allocation2 + $0x920] sm:$0xff] %v2027
        %2704 = vst [vmem:[#allocation2 + $0x928] sm:$0xff] %v2028
        %2705 = vst [vmem:[#allocation2 + $0x930] sm:$0xff] 0.0
        %2706 = vst [vmem:[#allocation2 + $0x938] sm:$0xff] 0.0
        %2707 = vst [vmem:[#allocation2 + $0x940] sm:$0xff] %v2283
        %2708 = vst [vmem:[#allocation2 + $0x948] sm:$0xff] %v2200
        %2709 = vst [vmem:[#allocation2 + $0x950] sm:$0xff] %v2201
        %2710 = vst [vmem:[#allocation2 + $0x958] sm:$0xff] %v2202
        %2711 = vst [vmem:[#allocation2 + $0x960] sm:$0xff] %v2203
        %2712 = vst [vmem:[#allocation2 + $0x968] sm:$0xff] %v2204
        %2713 = vst [vmem:[#allocation2 + $0x970] sm:$0xff] %v2205
        %2714 = vst [vmem:[#allocation2 + $0x978] sm:$0xff] %v2206
        %2715 = vst [vmem:[#allocation2 + $0x980] sm:$0xff] %v2207
        %2716 = vst [vmem:[#allocation2 + $0x988] sm:$0xff] %v2208
        %2717 = vst [vmem:[#allocation2 + $0x990] sm:$0xff] %v2209
        %2718 = vst [vmem:[#allocation2 + $0x998] sm:$0xff] %v2210
        %2719 = vst [vmem:[#allocation2 + $0x9a0] sm:$0xff] %v2211
        %2720 = vst [vmem:[#allocation2 + $0x9a8] sm:$0xff] %v2212
        %2721 = vst [vmem:[#allocation2 + $0x9b0] sm:$0xff] %v2213
        %2722 = vst [vmem:[#allocation2 + $0x9b8] sm:$0xff] %v2214
        %2723 = vst [vmem:[#allocation2 + $0x9c0] sm:$0xff] %v2215
        %2724 = vst [vmem:[#allocation2 + $0x9c8] sm:$0xff] %v2216
        %2725 = vst [vmem:[#allocation2 + $0x9d0] sm:$0xff] %v2217
        %2726 = vst [vmem:[#allocation2 + $0x9d8] sm:$0xff] %v2218
        %2727 = vst [vmem:[#allocation2 + $0x9e0] sm:$0xff] %v2219
        %2728 = vst [vmem:[#allocation2 + $0x9e8] sm:$0xff] %v2220
        %2729 = vst [vmem:[#allocation2 + $0x9f0] sm:$0xff] %v2221
        %2730 = vst [vmem:[#allocation2 + $0x9f8] sm:$0xff] %v2222
        %2731 = vst [vmem:[#allocation2 + $0xa00] sm:$0xff] %v2223
        %2732 = vst [vmem:[#allocation2 + $0xa08] sm:$0xff] %v2224
        %2733 = vst [vmem:[#allocation2 + $0xa10] sm:$0xff] %v2225
        %2734 = vst [vmem:[#allocation2 + $0xa18] sm:$0xff] %v2226
        %2735 = vst [vmem:[#allocation2 + $0xa20] sm:$0xff] %v2227
        %2736 = vst [vmem:[#allocation2 + $0xa28] sm:$0xff] %v2228
        %2737 = vst [vmem:[#allocation2 + $0xa30] sm:$0xff] %v2229
        %2738 = vst [vmem:[#allocation2 + $0xa38] sm:$0xff] %v2230
        %2739 = vst [vmem:[#allocation2 + $0xa40] sm:$0xff] %v2231
        %2740 = vst [vmem:[#allocation2 + $0xa48] sm:$0xff] %v2232
        %2741 = vst [vmem:[#allocation2 + $0xa50] sm:$0xff] %v2233
        %2742 = vst [vmem:[#allocation2 + $0xa58] sm:$0xff] %v2234
        %2743 = vst [vmem:[#allocation2 + $0xa60] sm:$0xff] %v2235
        %2744 = vst [vmem:[#allocation2 + $0xa68] sm:$0xff] %v2236
        %2745 = vst [vmem:[#allocation2 + $0xa70] sm:$0xff] %v2237
        %2746 = vst [vmem:[#allocation2 + $0xa78] sm:$0xff] %v2238
        %2747 = vst [vmem:[#allocation2 + $0xa80] sm:$0xff] 0.0
        %2748 = vst [vmem:[#allocation2 + $0xa88] sm:$0xff] 0.0
        %2749 = vst [vmem:[#allocation2 + $0xa90] sm:$0xff] %v2494
        %2750 = vst [vmem:[#allocation2 + $0xa98] sm:$0xff] %v2411
        %2751 = vst [vmem:[#allocation2 + $0xaa0] sm:$0xff] %v2412
        %2752 = vst [vmem:[#allocation2 + $0xaa8] sm:$0xff] %v2413
        %2753 = vst [vmem:[#allocation2 + $0xab0] sm:$0xff] %v2414
        %2754 = vst [vmem:[#allocation2 + $0xab8] sm:$0xff] %v2415
        %2755 = vst [vmem:[#allocation2 + $0xac0] sm:$0xff] %v2416
        %2756 = vst [vmem:[#allocation2 + $0xac8] sm:$0xff] %v2417
        %2757 = vst [vmem:[#allocation2 + $0xad0] sm:$0xff] %v2418
        %2758 = vst [vmem:[#allocation2 + $0xad8] sm:$0xff] %v2419
        %2759 = vst [vmem:[#allocation2 + $0xae0] sm:$0xff] %v2420
        %2760 = vst [vmem:[#allocation2 + $0xae8] sm:$0xff] %v2421
        %2761 = vst [vmem:[#allocation2 + $0xaf0] sm:$0xff] %v2422
        %2762 = vst [vmem:[#allocation2 + $0xaf8] sm:$0xff] %v2423
        %2763 = vst [vmem:[#allocation2 + $0xb00] sm:$0xff] %v2424
        %2764 = vst [vmem:[#allocation2 + $0xb08] sm:$0xff] %v2425
        %2765 = vst [vmem:[#allocation2 + $0xb10] sm:$0xff] %v2426
        %2766 = vst [vmem:[#allocation2 + $0xb18] sm:$0xff] %v2427
        %2767 = vst [vmem:[#allocation2 + $0xb20] sm:$0xff] %v2428
        %2768 = vst [vmem:[#allocation2 + $0xb28] sm:$0xff] %v2429
        %2769 = vst [vmem:[#allocation2 + $0xb30] sm:$0xff] %v2430
        %2770 = vst [vmem:[#allocation2 + $0xb38] sm:$0xff] %v2431
        %2771 = vst [vmem:[#allocation2 + $0xb40] sm:$0xff] %v2432
        %2772 = vst [vmem:[#allocation2 + $0xb48] sm:$0xff] %v2433
        %2773 = vst [vmem:[#allocation2 + $0xb50] sm:$0xff] %v2434
        %2774 = vst [vmem:[#allocation2 + $0xb58] sm:$0xff] %v2435
        %2775 = vst [vmem:[#allocation2 + $0xb60] sm:$0xff] %v2436
        %2776 = vst [vmem:[#allocation2 + $0xb68] sm:$0xff] %v2437
        %2777 = vst [vmem:[#allocation2 + $0xb70] sm:$0xff] %v2438
        %2778 = vst [vmem:[#allocation2 + $0xb78] sm:$0xff] %v2439
        %2779 = vst [vmem:[#allocation2 + $0xb80] sm:$0xff] %v2440
        %2780 = vst [vmem:[#allocation2 + $0xb88] sm:$0xff] %v2441
        %2781 = vst [vmem:[#allocation2 + $0xb90] sm:$0xff] %v2442
        %2782 = vst [vmem:[#allocation2 + $0xb98] sm:$0xff] %v2443
        %2783 = vst [vmem:[#allocation2 + $0xba0] sm:$0xff] %v2444
        %2784 = vst [vmem:[#allocation2 + $0xba8] sm:$0xff] %v2445
        %2785 = vst [vmem:[#allocation2 + $0xbb0] sm:$0xff] %v2446
        %2786 = vst [vmem:[#allocation2 + $0xbb8] sm:$0xff] %v2447
        %2787 = vst [vmem:[#allocation2 + $0xbc0] sm:$0xff] %v2448
        %2788 = vst [vmem:[#allocation2 + $0xbc8] sm:$0xff] %v2449
        %v2789 = vld [vmem:[#allocation10] sm:$0xff]
        %v2790 = vld [vmem:[#allocation2] sm:$0xff]
        %v2791 = vld [vmem:[#allocation2 + $0x8] sm:$0xff]
        %v2792 = vld [vmem:[#allocation2 + $0x10] sm:$0xff]
        %v2793 = vld [vmem:[#allocation2 + $0x18] sm:$0xff]
        %v2794 = vld [vmem:[#allocation2 + $0x20] sm:$0xff]
        %v2795 = vld [vmem:[#allocation2 + $0x28] sm:$0xff]
        %v2796 = vld [vmem:[#allocation2 + $0x30] sm:$0xff]
        %v2797 = vld [vmem:[#allocation2 + $0x38] sm:$0xff]
        %v2798 = vld [vmem:[#allocation2 + $0x40] sm:$0xff]
        %v2799 = vld [vmem:[#allocation2 + $0x48] sm:$0xff]
        %v2800 = vld [vmem:[#allocation2 + $0x50] sm:$0xff]
        %v2801 = vld [vmem:[#allocation2 + $0x58] sm:$0xff]
        %v2802 = vld [vmem:[#allocation2 + $0x60] sm:$0xff]
        %v2803 = vld [vmem:[#allocation2 + $0x68] sm:$0xff]
        %v2804 = vld [vmem:[#allocation2 + $0x70] sm:$0xff]
        %v2805 = vld [vmem:[#allocation2 + $0x78] sm:$0xff]
        %v2806 = vld [vmem:[#allocation2 + $0x80] sm:$0xff]
        %v2807 = vld [vmem:[#allocation2 + $0x88] sm:$0xff]
        %v2808 = vld [vmem:[#allocation2 + $0x90] sm:$0xff]
        %v2809 = vld [vmem:[#allocation2 + $0x98] sm:$0xff]
        %v2810 = vld [vmem:[#allocation2 + $0xa0] sm:$0xff]
        %v2811 = vld [vmem:[#allocation2 + $0xa8] sm:$0xff]
        %v2812 = vld [vmem:[#allocation2 + $0xb0] sm:$0xff]
        %v2813 = vld [vmem:[#allocation2 + $0xb8] sm:$0xff]
        %v2814 = vld [vmem:[#allocation2 + $0xc0] sm:$0xff]
        %v2815 = vld [vmem:[#allocation2 + $0xc8] sm:$0xff]
        %v2816 = vld [vmem:[#allocation2 + $0xd0] sm:$0xff]
        %v2817 = vld [vmem:[#allocation2 + $0xd8] sm:$0xff]
        %v2818 = vld [vmem:[#allocation2 + $0xe0] sm:$0xff]
        %v2819 = vld [vmem:[#allocation2 + $0xe8] sm:$0xff]
        %v2820 = vld [vmem:[#allocation2 + $0xf0] sm:$0xff]
        %v2821 = vld [vmem:[#allocation2 + $0xf8] sm:$0xff]
        %v2822 = vld [vmem:[#allocation2 + $0x100] sm:$0xff]
        %v2823 = vld [vmem:[#allocation2 + $0x108] sm:$0xff]
        %v2824 = vld [vmem:[#allocation2 + $0x110] sm:$0xff]
        %v2825 = vld [vmem:[#allocation2 + $0x118] sm:$0xff]
        %v2826 = vld [vmem:[#allocation2 + $0x120] sm:$0xff]
        %v2827 = vld [vmem:[#allocation2 + $0x128] sm:$0xff]
        %v2828 = vld [vmem:[#allocation2 + $0x130] sm:$0xff]
        %v2829 = vld [vmem:[#allocation2 + $0x138] sm:$0xff]
        %v2830 = vld [vmem:[#allocation2 + $0x140] sm:$0xff]
        %v2831 = vld [vmem:[#allocation2 + $0x148] sm:$0xff]
        %v2832 = vld [vmem:[#allocation2 + $0x150] sm:$0xff]
        %v2833 = vld [vmem:[#allocation2 + $0x158] sm:$0xff]
        %v2834 = vld [vmem:[#allocation2 + $0x160] sm:$0xff]
        %v2835 = vld [vmem:[#allocation2 + $0x168] sm:$0xff]
        %v2836 = vld [vmem:[#allocation2 + $0x170] sm:$0xff]
        %v2837 = vld [vmem:[#allocation2 + $0x178] sm:$0xff]
        %v2838 = vld [vmem:[#allocation2 + $0x180] sm:$0xff]
        %v2839 = vld [vmem:[#allocation2 + $0x188] sm:$0xff]
        %v2840 = vld [vmem:[#allocation2 + $0x190] sm:$0xff]
        %v2841 = vld [vmem:[#allocation2 + $0x198] sm:$0xff]
        %v2842 = vld [vmem:[#allocation2 + $0x1a0] sm:$0xff]
        %v2843 = vld [vmem:[#allocation2 + $0x1a8] sm:$0xff]
        %v2844 = vld [vmem:[#allocation2 + $0x1b0] sm:$0xff]
        %v2845 = vld [vmem:[#allocation2 + $0x1b8] sm:$0xff]
        %v2846 = vld [vmem:[#allocation2 + $0x1c0] sm:$0xff]
        %v2847 = vld [vmem:[#allocation2 + $0x1c8] sm:$0xff]
        %v2848 = vld [vmem:[#allocation2 + $0x1d0] sm:$0xff]
        %v2849 = vld [vmem:[#allocation2 + $0x1d8] sm:$0xff]
        %v2850 = vld [vmem:[#allocation2 + $0x1e0] sm:$0xff]
        %v2851 = vld [vmem:[#allocation2 + $0x1e8] sm:$0xff]
        %v2852 = vld [vmem:[#allocation2 + $0x1f0] sm:$0xff]
        %v2853 = vld [vmem:[#allocation2 + $0x1f8] sm:$0xff]
        %v2854 = vld [vmem:[#allocation2 + $0x200] sm:$0xff]
        %v2855 = vld [vmem:[#allocation2 + $0x208] sm:$0xff]
        %v2856 = vld [vmem:[#allocation2 + $0x210] sm:$0xff]
        %v2857 = vld [vmem:[#allocation2 + $0x218] sm:$0xff]
        %v2858 = vld [vmem:[#allocation2 + $0x220] sm:$0xff]
        %v2859 = vld [vmem:[#allocation2 + $0x228] sm:$0xff]
        %v2860 = vld [vmem:[#allocation2 + $0x230] sm:$0xff]
        %v2861 = vld [vmem:[#allocation2 + $0x238] sm:$0xff]
        %v2862 = vld [vmem:[#allocation2 + $0x240] sm:$0xff]
        %v2863 = vld [vmem:[#allocation2 + $0x248] sm:$0xff]
        %v2864 = vld [vmem:[#allocation2 + $0x250] sm:$0xff]
        %v2865 = vld [vmem:[#allocation2 + $0x258] sm:$0xff]
        %v2866 = vld [vmem:[#allocation2 + $0x260] sm:$0xff]
        %v2867 = vld [vmem:[#allocation2 + $0x268] sm:$0xff]
        %v2868 = vld [vmem:[#allocation2 + $0x270] sm:$0xff]
        %v2869 = vld [vmem:[#allocation2 + $0x278] sm:$0xff]
        %v2870 = vld [vmem:[#allocation2 + $0x280] sm:$0xff]
        %v2871 = vld [vmem:[#allocation2 + $0x288] sm:$0xff]
        %v2872 = vld [vmem:[#allocation2 + $0x290] sm:$0xff]
        %v2873 = vld [vmem:[#allocation2 + $0x298] sm:$0xff]
        %v2874 = vld [vmem:[#allocation2 + $0x2a0] sm:$0xff]
        %v2875 = vld [vmem:[#allocation2 + $0x2a8] sm:$0xff]
        %v2876 = vld [vmem:[#allocation2 + $0x2b0] sm:$0xff]
        %v2877 = vld [vmem:[#allocation2 + $0x2b8] sm:$0xff]
        %v2878 = vld [vmem:[#allocation2 + $0x2c0] sm:$0xff]
        %v2879 = vld [vmem:[#allocation2 + $0x2c8] sm:$0xff]
        %v2880 = vld [vmem:[#allocation2 + $0x2d0] sm:$0xff]
        %v2881 = vld [vmem:[#allocation2 + $0x2d8] sm:$0xff]
        %v2882 = vld [vmem:[#allocation2 + $0x2e0] sm:$0xff]
        %v2883 = vld [vmem:[#allocation2 + $0x2e8] sm:$0xff]
        %v2884 = vld [vmem:[#allocation2 + $0x2f0] sm:$0xff]
        %v2885 = vld [vmem:[#allocation2 + $0x2f8] sm:$0xff]
        %v2886 = vld [vmem:[#allocation2 + $0x300] sm:$0xff]
        %v2887 = vld [vmem:[#allocation2 + $0x308] sm:$0xff]
        %v2888 = vld [vmem:[#allocation2 + $0x310] sm:$0xff]
        %v2889 = vld [vmem:[#allocation2 + $0x318] sm:$0xff]
        %v2890 = vld [vmem:[#allocation2 + $0x320] sm:$0xff]
        %v2891 = vld [vmem:[#allocation2 + $0x328] sm:$0xff]
        %v2892 = vld [vmem:[#allocation2 + $0x330] sm:$0xff]
        %v2893 = vld [vmem:[#allocation2 + $0x338] sm:$0xff]
        %v2894 = vld [vmem:[#allocation2 + $0x340] sm:$0xff]
        %v2895 = vld [vmem:[#allocation2 + $0x348] sm:$0xff]
        %v2896 = vld [vmem:[#allocation2 + $0x350] sm:$0xff]
        %v2897 = vld [vmem:[#allocation2 + $0x358] sm:$0xff]
        %v2898 = vld [vmem:[#allocation2 + $0x360] sm:$0xff]
        %v2899 = vld [vmem:[#allocation2 + $0x368] sm:$0xff]
        %v2900 = vld [vmem:[#allocation2 + $0x370] sm:$0xff]
        %v2901 = vld [vmem:[#allocation2 + $0x378] sm:$0xff]
        %v2902 = vld [vmem:[#allocation2 + $0x380] sm:$0xff]
        %v2903 = vld [vmem:[#allocation2 + $0x388] sm:$0xff]
        %v2904 = vld [vmem:[#allocation2 + $0x390] sm:$0xff]
        %v2905 = vld [vmem:[#allocation2 + $0x398] sm:$0xff]
        %v2906 = vld [vmem:[#allocation2 + $0x3a0] sm:$0xff]
        %v2907 = vld [vmem:[#allocation2 + $0x3a8] sm:$0xff]
        %v2908 = vld [vmem:[#allocation2 + $0x3b0] sm:$0xff]
        %v2909 = vld [vmem:[#allocation2 + $0x3b8] sm:$0xff]
        %v2910 = vld [vmem:[#allocation2 + $0x3c0] sm:$0xff]
        %v2911 = vld [vmem:[#allocation2 + $0x3c8] sm:$0xff]
        %v2912 = vld [vmem:[#allocation2 + $0x3d0] sm:$0xff]
        %v2913 = vld [vmem:[#allocation2 + $0x3d8] sm:$0xff]
        %v2914 = vld [vmem:[#allocation2 + $0x3e0] sm:$0xff]
        %v2915 = vld [vmem:[#allocation2 + $0x3e8] sm:$0xff]
        %v2916 = vld [vmem:[#allocation2 + $0x3f0] sm:$0xff]
        %v2917 = vld [vmem:[#allocation2 + $0x3f8] sm:$0xff]
        %v2918 = vld [vmem:[#allocation2 + $0x400] sm:$0xff]
        %v2919 = vld [vmem:[#allocation2 + $0x408] sm:$0xff]
        %v2920 = vld [vmem:[#allocation2 + $0x410] sm:$0xff]
        %v2921 = vld [vmem:[#allocation2 + $0x418] sm:$0xff]
        %v2922 = vld [vmem:[#allocation2 + $0x420] sm:$0xff]
        %v2923 = vld [vmem:[#allocation2 + $0x428] sm:$0xff]
        %v2924 = vld [vmem:[#allocation2 + $0x430] sm:$0xff]
        %v2925 = vld [vmem:[#allocation2 + $0x438] sm:$0xff]
        %v2926 = vld [vmem:[#allocation2 + $0x440] sm:$0xff]
        %v2927 = vld [vmem:[#allocation2 + $0x448] sm:$0xff]
        %v2928 = vld [vmem:[#allocation2 + $0x450] sm:$0xff]
        %v2929 = vld [vmem:[#allocation2 + $0x458] sm:$0xff]
        %v2930 = vld [vmem:[#allocation2 + $0x460] sm:$0xff]
        %v2931 = vld [vmem:[#allocation2 + $0x468] sm:$0xff]
        %v2932 = vld [vmem:[#allocation2 + $0x470] sm:$0xff]
        %v2933 = vld [vmem:[#allocation2 + $0x478] sm:$0xff]
        %v2934 = vld [vmem:[#allocation2 + $0x480] sm:$0xff]
        %v2935 = vld [vmem:[#allocation2 + $0x488] sm:$0xff]
        %v2936 = vld [vmem:[#allocation2 + $0x490] sm:$0xff]
        %v2937 = vld [vmem:[#allocation2 + $0x498] sm:$0xff]
        %v2938 = vld [vmem:[#allocation2 + $0x4a0] sm:$0xff]
        %v2939 = vld [vmem:[#allocation2 + $0x4a8] sm:$0xff]
        %v2940 = vld [vmem:[#allocation2 + $0x4b0] sm:$0xff]
        %v2941 = vld [vmem:[#allocation2 + $0x4b8] sm:$0xff]
        %v2942 = vld [vmem:[#allocation2 + $0x4c0] sm:$0xff]
        %v2943 = vld [vmem:[#allocation2 + $0x4c8] sm:$0xff]
        %v2944 = vld [vmem:[#allocation2 + $0x4d0] sm:$0xff]
        %v2945 = vld [vmem:[#allocation2 + $0x4d8] sm:$0xff]
        %v2946 = vld [vmem:[#allocation2 + $0x4e0] sm:$0xff]
        %v2947 = vld [vmem:[#allocation2 + $0x4e8] sm:$0xff]
        %v2948 = vld [vmem:[#allocation2 + $0x4f0] sm:$0xff]
        %v2949 = vld [vmem:[#allocation2 + $0x4f8] sm:$0xff]
        %v2950 = vld [vmem:[#allocation2 + $0x500] sm:$0xff]
        %v2951 = vld [vmem:[#allocation2 + $0x508] sm:$0xff]
        %v2952 = vld [vmem:[#allocation2 + $0x510] sm:$0xff]
        %v2953 = vld [vmem:[#allocation2 + $0x518] sm:$0xff]
        %v2954 = vld [vmem:[#allocation2 + $0x520] sm:$0xff]
        %v2955 = vld [vmem:[#allocation2 + $0x528] sm:$0xff]
        %v2956 = vld [vmem:[#allocation2 + $0x530] sm:$0xff]
        %v2957 = vld [vmem:[#allocation2 + $0x538] sm:$0xff]
        %v2958 = vld [vmem:[#allocation2 + $0x540] sm:$0xff]
        %v2959 = vld [vmem:[#allocation2 + $0x548] sm:$0xff]
        %v2960 = vld [vmem:[#allocation2 + $0x550] sm:$0xff]
        %v2961 = vld [vmem:[#allocation2 + $0x558] sm:$0xff]
        %v2962 = vld [vmem:[#allocation2 + $0x560] sm:$0xff]
        %v2963 = vld [vmem:[#allocation2 + $0x568] sm:$0xff]
        %v2964 = vld [vmem:[#allocation2 + $0x570] sm:$0xff]
        %v2965 = vld [vmem:[#allocation2 + $0x578] sm:$0xff]
        %v2966 = vld [vmem:[#allocation2 + $0x580] sm:$0xff]
        %v2967 = vld [vmem:[#allocation2 + $0x588] sm:$0xff]
        %v2968 = vld [vmem:[#allocation2 + $0x590] sm:$0xff]
        %v2969 = vld [vmem:[#allocation2 + $0x598] sm:$0xff]
        %v2970 = vld [vmem:[#allocation2 + $0x5a0] sm:$0xff]
        %v2971 = vld [vmem:[#allocation2 + $0x5a8] sm:$0xff]
        %v2972 = vld [vmem:[#allocation2 + $0x5b0] sm:$0xff]
        %v2973 = vld [vmem:[#allocation2 + $0x5b8] sm:$0xff]
        %v2974 = vld [vmem:[#allocation2 + $0x5c0] sm:$0xff]
        %v2975 = vld [vmem:[#allocation2 + $0x5c8] sm:$0xff]
        %v2976 = vld [vmem:[#allocation2 + $0x5d0] sm:$0xff]
        %v2977 = vld [vmem:[#allocation2 + $0x5d8] sm:$0xff]
        %v2978 = vld [vmem:[#allocation2 + $0x5e0] sm:$0xff]
        %v2979 = vld [vmem:[#allocation2 + $0x5e8] sm:$0xff]
        %v2980 = vld [vmem:[#allocation2 + $0x5f0] sm:$0xff]
        %v2981 = vld [vmem:[#allocation2 + $0x5f8] sm:$0xff]
        %v2982 = vld [vmem:[#allocation2 + $0x600] sm:$0xff]
        %v2983 = vld [vmem:[#allocation2 + $0x608] sm:$0xff]
        %v2984 = vld [vmem:[#allocation2 + $0x610] sm:$0xff]
        %v2985 = vld [vmem:[#allocation2 + $0x618] sm:$0xff]
        %v2986 = vld [vmem:[#allocation2 + $0x620] sm:$0xff]
        %v2987 = vld [vmem:[#allocation2 + $0x628] sm:$0xff]
        %v2988 = vld [vmem:[#allocation2 + $0x630] sm:$0xff]
        %v2989 = vld [vmem:[#allocation2 + $0x638] sm:$0xff]
        %v2990 = vld [vmem:[#allocation2 + $0x640] sm:$0xff]
        %v2991 = vld [vmem:[#allocation2 + $0x648] sm:$0xff]
        %v2992 = vld [vmem:[#allocation2 + $0x650] sm:$0xff]
        %v2993 = vld [vmem:[#allocation2 + $0x658] sm:$0xff]
        %v2994 = vld [vmem:[#allocation2 + $0x660] sm:$0xff]
        %v2995 = vld [vmem:[#allocation2 + $0x668] sm:$0xff]
        %v2996 = vld [vmem:[#allocation2 + $0x670] sm:$0xff]
        %v2997 = vld [vmem:[#allocation2 + $0x678] sm:$0xff]
        %v2998 = vld [vmem:[#allocation2 + $0x680] sm:$0xff]
        %v2999 = vld [vmem:[#allocation2 + $0x688] sm:$0xff]
        %v3000 = vld [vmem:[#allocation2 + $0x690] sm:$0xff]
        %v3001 = vld [vmem:[#allocation2 + $0x698] sm:$0xff]
        %v3002 = vld [vmem:[#allocation2 + $0x6a0] sm:$0xff]
        %v3003 = vld [vmem:[#allocation2 + $0x6a8] sm:$0xff]
        %v3004 = vld [vmem:[#allocation2 + $0x6b0] sm:$0xff]
        %v3005 = vld [vmem:[#allocation2 + $0x6b8] sm:$0xff]
        %v3006 = vld [vmem:[#allocation2 + $0x6c0] sm:$0xff]
        %v3007 = vld [vmem:[#allocation2 + $0x6c8] sm:$0xff]
        %v3008 = vld [vmem:[#allocation2 + $0x6d0] sm:$0xff]
        %v3009 = vld [vmem:[#allocation2 + $0x6d8] sm:$0xff]
        %v3010 = vld [vmem:[#allocation2 + $0x6e0] sm:$0xff]
        %v3011 = vld [vmem:[#allocation2 + $0x6e8] sm:$0xff]
        %v3012 = vld [vmem:[#allocation2 + $0x6f0] sm:$0xff]
        %v3013 = vld [vmem:[#allocation2 + $0x6f8] sm:$0xff]
        %v3014 = vld [vmem:[#allocation2 + $0x700] sm:$0xff]
        %v3015 = vld [vmem:[#allocation2 + $0x708] sm:$0xff]
        %v3016 = vld [vmem:[#allocation2 + $0x710] sm:$0xff]
        %v3017 = vld [vmem:[#allocation2 + $0x718] sm:$0xff]
        %v3018 = vld [vmem:[#allocation2 + $0x720] sm:$0xff]
        %v3019 = vld [vmem:[#allocation2 + $0x728] sm:$0xff]
        %v3020 = vld [vmem:[#allocation2 + $0x730] sm:$0xff]
        %v3021 = vld [vmem:[#allocation2 + $0x738] sm:$0xff]
        %v3022 = vld [vmem:[#allocation2 + $0x740] sm:$0xff]
        %v3023 = vld [vmem:[#allocation2 + $0x748] sm:$0xff]
        %v3024 = vld [vmem:[#allocation2 + $0x750] sm:$0xff]
        %v3025 = vld [vmem:[#allocation2 + $0x758] sm:$0xff]
        %v3026 = vld [vmem:[#allocation2 + $0x760] sm:$0xff]
        %v3027 = vld [vmem:[#allocation2 + $0x768] sm:$0xff]
        %v3028 = vld [vmem:[#allocation2 + $0x770] sm:$0xff]
        %v3029 = vld [vmem:[#allocation2 + $0x778] sm:$0xff]
        %v3030 = vld [vmem:[#allocation2 + $0x780] sm:$0xff]
        %v3031 = vld [vmem:[#allocation2 + $0x788] sm:$0xff]
        %v3032 = vld [vmem:[#allocation2 + $0x790] sm:$0xff]
        %v3033 = vld [vmem:[#allocation2 + $0x798] sm:$0xff]
        %v3034 = vld [vmem:[#allocation2 + $0x7a0] sm:$0xff]
        %v3035 = vld [vmem:[#allocation2 + $0x7a8] sm:$0xff]
        %v3036 = vld [vmem:[#allocation2 + $0x7b0] sm:$0xff]
        %v3037 = vld [vmem:[#allocation2 + $0x7b8] sm:$0xff]
        %v3038 = vld [vmem:[#allocation2 + $0x7c0] sm:$0xff]
        %v3039 = vld [vmem:[#allocation2 + $0x7c8] sm:$0xff]
        %v3040 = vld [vmem:[#allocation2 + $0x7d0] sm:$0xff]
        %v3041 = vld [vmem:[#allocation2 + $0x7d8] sm:$0xff]
        %v3042 = vld [vmem:[#allocation2 + $0x7e0] sm:$0xff]
        %v3043 = vld [vmem:[#allocation2 + $0x7e8] sm:$0xff]
        %v3044 = vld [vmem:[#allocation2 + $0x7f0] sm:$0xff]
        %v3045 = vld [vmem:[#allocation2 + $0x7f8] sm:$0xff]
        %v3046 = vld [vmem:[#allocation2 + $0x800] sm:$0xff]
        %v3047 = vld [vmem:[#allocation2 + $0x808] sm:$0xff]
        %v3048 = vld [vmem:[#allocation2 + $0x810] sm:$0xff]
        %v3049 = vld [vmem:[#allocation2 + $0x818] sm:$0xff]
        %v3050 = vld [vmem:[#allocation2 + $0x820] sm:$0xff]
        %v3051 = vld [vmem:[#allocation2 + $0x828] sm:$0xff]
        %v3052 = vld [vmem:[#allocation2 + $0x830] sm:$0xff]
        %v3053 = vld [vmem:[#allocation2 + $0x838] sm:$0xff]
        %v3054 = vld [vmem:[#allocation2 + $0x840] sm:$0xff]
        %v3055 = vld [vmem:[#allocation2 + $0x848] sm:$0xff]
        %v3056 = vld [vmem:[#allocation2 + $0x850] sm:$0xff]
        %v3057 = vld [vmem:[#allocation2 + $0x858] sm:$0xff]
        %v3058 = vld [vmem:[#allocation2 + $0x860] sm:$0xff]
        %v3059 = vld [vmem:[#allocation2 + $0x868] sm:$0xff]
        %v3060 = vld [vmem:[#allocation2 + $0x870] sm:$0xff]
        %v3061 = vld [vmem:[#allocation2 + $0x878] sm:$0xff]
        %v3062 = vld [vmem:[#allocation2 + $0x880] sm:$0xff]
        %v3063 = vld [vmem:[#allocation2 + $0x888] sm:$0xff]
        %v3064 = vld [vmem:[#allocation2 + $0x890] sm:$0xff]
        %v3065 = vld [vmem:[#allocation2 + $0x898] sm:$0xff]
        %v3066 = vld [vmem:[#allocation2 + $0x8a0] sm:$0xff]
        %v3067 = vld [vmem:[#allocation2 + $0x8a8] sm:$0xff]
        %v3068 = vld [vmem:[#allocation2 + $0x8b0] sm:$0xff]
        %v3069 = vld [vmem:[#allocation2 + $0x8b8] sm:$0xff]
        %v3070 = vld [vmem:[#allocation2 + $0x8c0] sm:$0xff]
        %v3071 = vld [vmem:[#allocation2 + $0x8c8] sm:$0xff]
        %v3072 = vld [vmem:[#allocation2 + $0x8d0] sm:$0xff]
        %v3073 = vld [vmem:[#allocation2 + $0x8d8] sm:$0xff]
        %v3074 = vld [vmem:[#allocation2 + $0x8e0] sm:$0xff]
        %v3075 = vld [vmem:[#allocation2 + $0x8e8] sm:$0xff]
        %v3076 = vld [vmem:[#allocation2 + $0x8f0] sm:$0xff]
        %v3077 = vld [vmem:[#allocation2 + $0x8f8] sm:$0xff]
        %v3078 = vld [vmem:[#allocation2 + $0x900] sm:$0xff]
        %v3079 = vld [vmem:[#allocation2 + $0x908] sm:$0xff]
        %v3080 = vld [vmem:[#allocation2 + $0x910] sm:$0xff]
        %v3081 = vld [vmem:[#allocation2 + $0x918] sm:$0xff]
        %v3082 = vld [vmem:[#allocation2 + $0x920] sm:$0xff]
        %v3083 = vld [vmem:[#allocation2 + $0x928] sm:$0xff]
        %v3084 = vld [vmem:[#allocation2 + $0x930] sm:$0xff]
        %v3085 = vld [vmem:[#allocation2 + $0x938] sm:$0xff]
        %v3086 = vld [vmem:[#allocation2 + $0x940] sm:$0xff]
        %v3087 = vld [vmem:[#allocation2 + $0x948] sm:$0xff]
        %v3088 = vld [vmem:[#allocation2 + $0x950] sm:$0xff]
        %v3089 = vld [vmem:[#allocation2 + $0x958] sm:$0xff]
        %v3090 = vld [vmem:[#allocation2 + $0x960] sm:$0xff]
        %v3091 = vld [vmem:[#allocation2 + $0x968] sm:$0xff]
        %v3092 = vld [vmem:[#allocation2 + $0x970] sm:$0xff]
        %v3093 = vld [vmem:[#allocation2 + $0x978] sm:$0xff]
        %v3094 = vld [vmem:[#allocation2 + $0x980] sm:$0xff]
        %v3095 = vld [vmem:[#allocation2 + $0x988] sm:$0xff]
        %v3096 = vld [vmem:[#allocation2 + $0x990] sm:$0xff]
        %v3097 = vld [vmem:[#allocation2 + $0x998] sm:$0xff]
        %v3098 = vld [vmem:[#allocation2 + $0x9a0] sm:$0xff]
        %v3099 = vld [vmem:[#allocation2 + $0x9a8] sm:$0xff]
        %v3100 = vld [vmem:[#allocation2 + $0x9b0] sm:$0xff]
        %v3101 = vld [vmem:[#allocation2 + $0x9b8] sm:$0xff]
        %v3102 = vld [vmem:[#allocation2 + $0x9c0] sm:$0xff]
        %v3103 = vld [vmem:[#allocation2 + $0x9c8] sm:$0xff]
        %v3104 = vld [vmem:[#allocation2 + $0x9d0] sm:$0xff]
        %v3105 = vld [vmem:[#allocation2 + $0x9d8] sm:$0xff]
        %v3106 = vld [vmem:[#allocation2 + $0x9e0] sm:$0xff]
        %v3107 = vld [vmem:[#allocation2 + $0x9e8] sm:$0xff]
        %v3108 = vld [vmem:[#allocation2 + $0x9f0] sm:$0xff]
        %v3109 = vld [vmem:[#allocation2 + $0x9f8] sm:$0xff]
        %v3110 = vld [vmem:[#allocation2 + $0xa00] sm:$0xff]
        %v3111 = vld [vmem:[#allocation2 + $0xa08] sm:$0xff]
        %v3112 = vld [vmem:[#allocation2 + $0xa10] sm:$0xff]
        %v3113 = vld [vmem:[#allocation2 + $0xa18] sm:$0xff]
        %v3114 = vld [vmem:[#allocation2 + $0xa20] sm:$0xff]
        %v3115 = vld [vmem:[#allocation2 + $0xa28] sm:$0xff]
        %v3116 = vld [vmem:[#allocation2 + $0xa30] sm:$0xff]
        %v3117 = vld [vmem:[#allocation2 + $0xa38] sm:$0xff]
        %v3118 = vld [vmem:[#allocation2 + $0xa40] sm:$0xff]
        %v3119 = vld [vmem:[#allocation2 + $0xa48] sm:$0xff]
        %v3120 = vld [vmem:[#allocation2 + $0xa50] sm:$0xff]
        %v3121 = vld [vmem:[#allocation2 + $0xa58] sm:$0xff]
        %v3122 = vld [vmem:[#allocation2 + $0xa60] sm:$0xff]
        %v3123 = vld [vmem:[#allocation2 + $0xa68] sm:$0xff]
        %v3124 = vld [vmem:[#allocation2 + $0xa70] sm:$0xff]
        %v3125 = vld [vmem:[#allocation2 + $0xa78] sm:$0xff]
        %v3126 = vld [vmem:[#allocation2 + $0xa80] sm:$0xff]
        %v3127 = vld [vmem:[#allocation2 + $0xa88] sm:$0xff]
        %v3128 = vld [vmem:[#allocation2 + $0xa90] sm:$0xff]
        %v3129 = vld [vmem:[#allocation2 + $0xa98] sm:$0xff]
        %v3130 = vld [vmem:[#allocation2 + $0xaa0] sm:$0xff]
        %v3131 = vld [vmem:[#allocation2 + $0xaa8] sm:$0xff]
        %v3132 = vld [vmem:[#allocation2 + $0xab0] sm:$0xff]
        %v3133 = vld [vmem:[#allocation2 + $0xab8] sm:$0xff]
        %v3134 = vld [vmem:[#allocation2 + $0xac0] sm:$0xff]
        %v3135 = vld [vmem:[#allocation2 + $0xac8] sm:$0xff]
        %v3136 = vld [vmem:[#allocation2 + $0xad0] sm:$0xff]
        %v3137 = vld [vmem:[#allocation2 + $0xad8] sm:$0xff]
        %v3138 = vld [vmem:[#allocation2 + $0xae0] sm:$0xff]
        %v3139 = vld [vmem:[#allocation2 + $0xae8] sm:$0xff]
        %v3140 = vld [vmem:[#allocation2 + $0xaf0] sm:$0xff]
        %v3141 = vld [vmem:[#allocation2 + $0xaf8] sm:$0xff]
        %v3142 = vld [vmem:[#allocation2 + $0xb00] sm:$0xff]
        %v3143 = vld [vmem:[#allocation2 + $0xb08] sm:$0xff]
        %v3144 = vld [vmem:[#allocation2 + $0xb10] sm:$0xff]
        %v3145 = vld [vmem:[#allocation2 + $0xb18] sm:$0xff]
        %v3146 = vld [vmem:[#allocation2 + $0xb20] sm:$0xff]
        %v3147 = vld [vmem:[#allocation2 + $0xb28] sm:$0xff]
        %v3148 = vld [vmem:[#allocation2 + $0xb30] sm:$0xff]
        %v3149 = vld [vmem:[#allocation2 + $0xb38] sm:$0xff]
        %v3150 = vld [vmem:[#allocation2 + $0xb40] sm:$0xff]
        %v3151 = vld [vmem:[#allocation2 + $0xb48] sm:$0xff]
        %v3152 = vld [vmem:[#allocation2 + $0xb50] sm:$0xff]
        %v3153 = vld [vmem:[#allocation2 + $0xb58] sm:$0xff]
        %v3154 = vld [vmem:[#allocation2 + $0xb60] sm:$0xff]
        %v3155 = vld [vmem:[#allocation2 + $0xb68] sm:$0xff]
        %v3156 = vld [vmem:[#allocation2 + $0xb70] sm:$0xff]
        %v3157 = vld [vmem:[#allocation2 + $0xb78] sm:$0xff]
        %v3158 = vld [vmem:[#allocation2 + $0xb80] sm:$0xff]
        %v3159 = vld [vmem:[#allocation2 + $0xb88] sm:$0xff]
        %v3160 = vld [vmem:[#allocation2 + $0xb90] sm:$0xff]
        %v3161 = vld [vmem:[#allocation2 + $0xb98] sm:$0xff]
        %v3162 = vld [vmem:[#allocation2 + $0xba0] sm:$0xff]
        %v3163 = vld [vmem:[#allocation2 + $0xba8] sm:$0xff]
        %v3164 = vld [vmem:[#allocation2 + $0xbb0] sm:$0xff]
        %v3165 = vld [vmem:[#allocation2 + $0xbb8] sm:$0xff]
        %v3166 = vld [vmem:[#allocation2 + $0xbc0] sm:$0xff]
        %v3167 = vld [vmem:[#allocation2 + $0xbc8] sm:$0xff]
        %v3168 = vld [vmem:[#allocation11] sm:$0xff]
        %v3169 = vld [vmem:[#allocation11 + $0x8] sm:$0xff]
        %v3170 = vld [vmem:[#allocation11 + $0x10] sm:$0xff]
        %v3171 = vld [vmem:[#allocation11 + $0x18] sm:$0xff]
        %v3172 = vld [vmem:[#allocation11 + $0x20] sm:$0xff]
        %v3173 = vld [vmem:[#allocation11 + $0x28] sm:$0xff]
        %v3174 = vld [vmem:[#allocation11 + $0x30] sm:$0xff]
        %v3175 = vld [vmem:[#allocation11 + $0x38] sm:$0xff]
        %v3176 = vld [vmem:[#allocation11 + $0x40] sm:$0xff]
        %v3177 = vld [vmem:[#allocation11 + $0x48] sm:$0xff]
        %v3178 = vld [vmem:[#allocation11 + $0x50] sm:$0xff]
        %v3179 = vld [vmem:[#allocation11 + $0x58] sm:$0xff]
        %v3180 = vld [vmem:[#allocation11 + $0x60] sm:$0xff]
        %v3181 = vld [vmem:[#allocation11 + $0x68] sm:$0xff]
        %v3182 = vld [vmem:[#allocation11 + $0x70] sm:$0xff]
        %v3183 = vld [vmem:[#allocation11 + $0x78] sm:$0xff]
        %v3184 = vld [vmem:[#allocation11 + $0x80] sm:$0xff]
        %v3185 = vld [vmem:[#allocation11 + $0x88] sm:$0xff]
        %v3186 = vld [vmem:[#allocation11 + $0x90] sm:$0xff]
        %v3187 = vld [vmem:[#allocation11 + $0x98] sm:$0xff]
        %v3188 = vld [vmem:[#allocation11 + $0xa0] sm:$0xff]
        %v3189 = vld [vmem:[#allocation11 + $0xa8] sm:$0xff]
        %v3190 = vld [vmem:[#allocation11 + $0xb0] sm:$0xff]
        %v3191 = vld [vmem:[#allocation11 + $0xb8] sm:$0xff]
        %v3192 = vld [vmem:[#allocation11 + $0xc0] sm:$0xff]
        %v3193 = vld [vmem:[#allocation11 + $0xc8] sm:$0xff]
        %v3194 = vld [vmem:[#allocation11 + $0xd0] sm:$0xff]
        %v3195 = vld [vmem:[#allocation11 + $0xd8] sm:$0xff]
        %v3196 = vld [vmem:[#allocation11 + $0xe0] sm:$0xff]
        %v3197 = vld [vmem:[#allocation11 + $0xe8] sm:$0xff]
        %v3198 = vld [vmem:[#allocation11 + $0xf0] sm:$0xff]
        %v3199 = vld [vmem:[#allocation11 + $0xf8] sm:$0xff]
        %v3200 = vld [vmem:[#allocation11 + $0x100] sm:$0xff]
        %v3201 = vld [vmem:[#allocation11 + $0x108] sm:$0xff]
        %v3202 = vld [vmem:[#allocation11 + $0x110] sm:$0xff]
        %v3203 = vld [vmem:[#allocation11 + $0x118] sm:$0xff]
        %v3204 = vld [vmem:[#allocation11 + $0x120] sm:$0xff]
        %v3205 = vld [vmem:[#allocation11 + $0x128] sm:$0xff]
        %v3206 = vld [vmem:[#allocation11 + $0x130] sm:$0xff]
        %v3207 = vld [vmem:[#allocation11 + $0x138] sm:$0xff]
        %v3208 = vld [vmem:[#allocation11 + $0x140] sm:$0xff]
        %v3209 = vld [vmem:[#allocation11 + $0x148] sm:$0xff]
        %vm3210 = vcmask 588800
        %v3212 = vsel %vm3210, %v2789, 0
        %3214 = vmatpush.msra.mxu0 0.0
        %3215 = vmatpush.msra.mxu0 0.0
        %3216 = vmatpush.msra.mxu0 0.0
        %3217 = vmatpush.msra.mxu0 0.0
        %3218 = vmatpush.msra.mxu0 0.0
        %3219 = vmatpush.msra.mxu0 0.0
        %3220 = vmatpush.msra.mxu0 0.0
        %3221 = vmatpush.msra.mxu0 %v3126
        %3222 = vmatpush.msra.mxu0 %v3084
        %3223 = vmatpush.msra.mxu0 %v3042
        %3224 = vmatpush.msra.mxu0 %v3000
        %3225 = vmatpush.msra.mxu0 %v2958
        %3226 = vmatpush.msra.mxu0 %v2916
        %3227 = vmatpush.msra.mxu0 %v2874
        %3228 = vmatpush.msra.mxu0 %v2832
        %3229 = vmatpush.msra.mxu0 %v2790
        %3230 = vmatmul.f32.gmra.mxu0 %v3212
        %v3231 = vpop.f32.mrf.mxu0
        %v3232 = vadd.f32 %v3168, %v3231
        %3233 = vdwg.mxu0
        %3234 = vmatpush.msra.mxu0 0.0
        %3235 = vmatpush.msra.mxu0 0.0
        %3236 = vmatpush.msra.mxu0 0.0
        %3237 = vmatpush.msra.mxu0 0.0
        %3238 = vmatpush.msra.mxu0 0.0
        %3239 = vmatpush.msra.mxu0 0.0
        %3240 = vmatpush.msra.mxu0 0.0
        %3241 = vmatpush.msra.mxu0 %v3127
        %3242 = vmatpush.msra.mxu0 %v3085
        %3243 = vmatpush.msra.mxu0 %v3043
        %3244 = vmatpush.msra.mxu0 %v3001
        %3245 = vmatpush.msra.mxu0 %v2959
        %3246 = vmatpush.msra.mxu0 %v2917
        %3247 = vmatpush.msra.mxu0 %v2875
        %3248 = vmatpush.msra.mxu0 %v2833
        %3249 = vmatpush.msra.mxu0 %v2791
        %3250 = vmatmul.f32.gmra.mxu0 %v3212
        %v3251 = vpop.f32.mrf.mxu0
        %v3252 = vadd.f32 %v3169, %v3251
        %3253 = vdwg.mxu0
        %3254 = vmatpush.msra.mxu0 0.0
        %3255 = vmatpush.msra.mxu0 0.0
        %3256 = vmatpush.msra.mxu0 0.0
        %3257 = vmatpush.msra.mxu0 0.0
        %3258 = vmatpush.msra.mxu0 0.0
        %3259 = vmatpush.msra.mxu0 0.0
        %3260 = vmatpush.msra.mxu0 0.0
        %3261 = vmatpush.msra.mxu0 %v3128
        %3262 = vmatpush.msra.mxu0 %v3086
        %3263 = vmatpush.msra.mxu0 %v3044
        %3264 = vmatpush.msra.mxu0 %v3002
        %3265 = vmatpush.msra.mxu0 %v2960
        %3266 = vmatpush.msra.mxu0 %v2918
        %3267 = vmatpush.msra.mxu0 %v2876
        %3268 = vmatpush.msra.mxu0 %v2834
        %3269 = vmatpush.msra.mxu0 %v2792
        %3270 = vmatmul.f32.gmra.mxu0 %v3212
        %v3271 = vpop.f32.mrf.mxu0
        %v3272 = vadd.f32 %v3170, %v3271
        %3273 = vdwg.mxu0
        %3274 = vmatpush.msra.mxu0 0.0
        %3275 = vmatpush.msra.mxu0 0.0
        %3276 = vmatpush.msra.mxu0 0.0
        %3277 = vmatpush.msra.mxu0 0.0
        %3278 = vmatpush.msra.mxu0 0.0
        %3279 = vmatpush.msra.mxu0 0.0
        %3280 = vmatpush.msra.mxu0 0.0
        %3281 = vmatpush.msra.mxu0 %v3129
        %3282 = vmatpush.msra.mxu0 %v3087
        %3283 = vmatpush.msra.mxu0 %v3045
        %3284 = vmatpush.msra.mxu0 %v3003
        %3285 = vmatpush.msra.mxu0 %v2961
        %3286 = vmatpush.msra.mxu0 %v2919
        %3287 = vmatpush.msra.mxu0 %v2877
        %3288 = vmatpush.msra.mxu0 %v2835
        %3289 = vmatpush.msra.mxu0 %v2793
        %3290 = vmatmul.f32.gmra.mxu0 %v3212
        %v3291 = vpop.f32.mrf.mxu0
        %v3292 = vadd.f32 %v3171, %v3291
        %3293 = vdwg.mxu0
        %3294 = vmatpush.msra.mxu0 0.0
        %3295 = vmatpush.msra.mxu0 0.0
        %3296 = vmatpush.msra.mxu0 0.0
        %3297 = vmatpush.msra.mxu0 0.0
        %3298 = vmatpush.msra.mxu0 0.0
        %3299 = vmatpush.msra.mxu0 0.0
        %3300 = vmatpush.msra.mxu0 0.0
        %3301 = vmatpush.msra.mxu0 %v3130
        %3302 = vmatpush.msra.mxu0 %v3088
        %3303 = vmatpush.msra.mxu0 %v3046
        %3304 = vmatpush.msra.mxu0 %v3004
        %3305 = vmatpush.msra.mxu0 %v2962
        %3306 = vmatpush.msra.mxu0 %v2920
        %3307 = vmatpush.msra.mxu0 %v2878
        %3308 = vmatpush.msra.mxu0 %v2836
        %3309 = vmatpush.msra.mxu0 %v2794
        %3310 = vmatmul.f32.gmra.mxu0 %v3212
        %v3311 = vpop.f32.mrf.mxu0
        %v3312 = vadd.f32 %v3172, %v3311
        %3313 = vdwg.mxu0
        %3314 = vmatpush.msra.mxu0 0.0
        %3315 = vmatpush.msra.mxu0 0.0
        %3316 = vmatpush.msra.mxu0 0.0
        %3317 = vmatpush.msra.mxu0 0.0
        %3318 = vmatpush.msra.mxu0 0.0
        %3319 = vmatpush.msra.mxu0 0.0
        %3320 = vmatpush.msra.mxu0 0.0
        %3321 = vmatpush.msra.mxu0 %v3131
        %3322 = vmatpush.msra.mxu0 %v3089
        %3323 = vmatpush.msra.mxu0 %v3047
        %3324 = vmatpush.msra.mxu0 %v3005
        %3325 = vmatpush.msra.mxu0 %v2963
        %3326 = vmatpush.msra.mxu0 %v2921
        %3327 = vmatpush.msra.mxu0 %v2879
        %3328 = vmatpush.msra.mxu0 %v2837
        %3329 = vmatpush.msra.mxu0 %v2795
        %3330 = vmatmul.f32.gmra.mxu0 %v3212
        %v3331 = vpop.f32.mrf.mxu0
        %v3332 = vadd.f32 %v3173, %v3331
        %3333 = vdwg.mxu0
        %3334 = vmatpush.msra.mxu0 0.0
        %3335 = vmatpush.msra.mxu0 0.0
        %3336 = vmatpush.msra.mxu0 0.0
        %3337 = vmatpush.msra.mxu0 0.0
        %3338 = vmatpush.msra.mxu0 0.0
        %3339 = vmatpush.msra.mxu0 0.0
        %3340 = vmatpush.msra.mxu0 0.0
        %3341 = vmatpush.msra.mxu0 %v3132
        %3342 = vmatpush.msra.mxu0 %v3090
        %3343 = vmatpush.msra.mxu0 %v3048
        %3344 = vmatpush.msra.mxu0 %v3006
        %3345 = vmatpush.msra.mxu0 %v2964
        %3346 = vmatpush.msra.mxu0 %v2922
        %3347 = vmatpush.msra.mxu0 %v2880
        %3348 = vmatpush.msra.mxu0 %v2838
        %3349 = vmatpush.msra.mxu0 %v2796
        %3350 = vmatmul.f32.gmra.mxu0 %v3212
        %v3351 = vpop.f32.mrf.mxu0
        %v3352 = vadd.f32 %v3174, %v3351
        %3353 = vdwg.mxu0
        %3354 = vmatpush.msra.mxu0 0.0
        %3355 = vmatpush.msra.mxu0 0.0
        %3356 = vmatpush.msra.mxu0 0.0
        %3357 = vmatpush.msra.mxu0 0.0
        %3358 = vmatpush.msra.mxu0 0.0
        %3359 = vmatpush.msra.mxu0 0.0
        %3360 = vmatpush.msra.mxu0 0.0
        %3361 = vmatpush.msra.mxu0 %v3133
        %3362 = vmatpush.msra.mxu0 %v3091
        %3363 = vmatpush.msra.mxu0 %v3049
        %3364 = vmatpush.msra.mxu0 %v3007
        %3365 = vmatpush.msra.mxu0 %v2965
        %3366 = vmatpush.msra.mxu0 %v2923
        %3367 = vmatpush.msra.mxu0 %v2881
        %3368 = vmatpush.msra.mxu0 %v2839
        %3369 = vmatpush.msra.mxu0 %v2797
        %3370 = vmatmul.f32.gmra.mxu0 %v3212
        %v3371 = vpop.f32.mrf.mxu0
        %v3372 = vadd.f32 %v3175, %v3371
        %3373 = vdwg.mxu0
        %3374 = vmatpush.msra.mxu0 0.0
        %3375 = vmatpush.msra.mxu0 0.0
        %3376 = vmatpush.msra.mxu0 0.0
        %3377 = vmatpush.msra.mxu0 0.0
        %3378 = vmatpush.msra.mxu0 0.0
        %3379 = vmatpush.msra.mxu0 0.0
        %3380 = vmatpush.msra.mxu0 0.0
        %3381 = vmatpush.msra.mxu0 %v3134
        %3382 = vmatpush.msra.mxu0 %v3092
        %3383 = vmatpush.msra.mxu0 %v3050
        %3384 = vmatpush.msra.mxu0 %v3008
        %3385 = vmatpush.msra.mxu0 %v2966
        %3386 = vmatpush.msra.mxu0 %v2924
        %3387 = vmatpush.msra.mxu0 %v2882
        %3388 = vmatpush.msra.mxu0 %v2840
        %3389 = vmatpush.msra.mxu0 %v2798
        %3390 = vmatmul.f32.gmra.mxu0 %v3212
        %v3391 = vpop.f32.mrf.mxu0
        %v3392 = vadd.f32 %v3176, %v3391
        %3393 = vdwg.mxu0
        %3394 = vmatpush.msra.mxu0 0.0
        %3395 = vmatpush.msra.mxu0 0.0
        %3396 = vmatpush.msra.mxu0 0.0
        %3397 = vmatpush.msra.mxu0 0.0
        %3398 = vmatpush.msra.mxu0 0.0
        %3399 = vmatpush.msra.mxu0 0.0
        %3400 = vmatpush.msra.mxu0 0.0
        %3401 = vmatpush.msra.mxu0 %v3135
        %3402 = vmatpush.msra.mxu0 %v3093
        %3403 = vmatpush.msra.mxu0 %v3051
        %3404 = vmatpush.msra.mxu0 %v3009
        %3405 = vmatpush.msra.mxu0 %v2967
        %3406 = vmatpush.msra.mxu0 %v2925
        %3407 = vmatpush.msra.mxu0 %v2883
        %3408 = vmatpush.msra.mxu0 %v2841
        %3409 = vmatpush.msra.mxu0 %v2799
        %3410 = vmatmul.f32.gmra.mxu0 %v3212
        %v3411 = vpop.f32.mrf.mxu0
        %v3412 = vadd.f32 %v3177, %v3411
        %3413 = vdwg.mxu0
        %3414 = vmatpush.msra.mxu0 0.0
        %3415 = vmatpush.msra.mxu0 0.0
        %3416 = vmatpush.msra.mxu0 0.0
        %3417 = vmatpush.msra.mxu0 0.0
        %3418 = vmatpush.msra.mxu0 0.0
        %3419 = vmatpush.msra.mxu0 0.0
        %3420 = vmatpush.msra.mxu0 0.0
        %3421 = vmatpush.msra.mxu0 %v3136
        %3422 = vmatpush.msra.mxu0 %v3094
        %3423 = vmatpush.msra.mxu0 %v3052
        %3424 = vmatpush.msra.mxu0 %v3010
        %3425 = vmatpush.msra.mxu0 %v2968
        %3426 = vmatpush.msra.mxu0 %v2926
        %3427 = vmatpush.msra.mxu0 %v2884
        %3428 = vmatpush.msra.mxu0 %v2842
        %3429 = vmatpush.msra.mxu0 %v2800
        %3430 = vmatmul.f32.gmra.mxu0 %v3212
        %v3431 = vpop.f32.mrf.mxu0
        %v3432 = vadd.f32 %v3178, %v3431
        %3433 = vdwg.mxu0
        %3434 = vmatpush.msra.mxu0 0.0
        %3435 = vmatpush.msra.mxu0 0.0
        %3436 = vmatpush.msra.mxu0 0.0
        %3437 = vmatpush.msra.mxu0 0.0
        %3438 = vmatpush.msra.mxu0 0.0
        %3439 = vmatpush.msra.mxu0 0.0
        %3440 = vmatpush.msra.mxu0 0.0
        %3441 = vmatpush.msra.mxu0 %v3137
        %3442 = vmatpush.msra.mxu0 %v3095
        %3443 = vmatpush.msra.mxu0 %v3053
        %3444 = vmatpush.msra.mxu0 %v3011
        %3445 = vmatpush.msra.mxu0 %v2969
        %3446 = vmatpush.msra.mxu0 %v2927
        %3447 = vmatpush.msra.mxu0 %v2885
        %3448 = vmatpush.msra.mxu0 %v2843
        %3449 = vmatpush.msra.mxu0 %v2801
        %3450 = vmatmul.f32.gmra.mxu0 %v3212
        %v3451 = vpop.f32.mrf.mxu0
        %v3452 = vadd.f32 %v3179, %v3451
        %3453 = vdwg.mxu0
        %3454 = vmatpush.msra.mxu0 0.0
        %3455 = vmatpush.msra.mxu0 0.0
        %3456 = vmatpush.msra.mxu0 0.0
        %3457 = vmatpush.msra.mxu0 0.0
        %3458 = vmatpush.msra.mxu0 0.0
        %3459 = vmatpush.msra.mxu0 0.0
        %3460 = vmatpush.msra.mxu0 0.0
        %3461 = vmatpush.msra.mxu0 %v3138
        %3462 = vmatpush.msra.mxu0 %v3096
        %3463 = vmatpush.msra.mxu0 %v3054
        %3464 = vmatpush.msra.mxu0 %v3012
        %3465 = vmatpush.msra.mxu0 %v2970
        %3466 = vmatpush.msra.mxu0 %v2928
        %3467 = vmatpush.msra.mxu0 %v2886
        %3468 = vmatpush.msra.mxu0 %v2844
        %3469 = vmatpush.msra.mxu0 %v2802
        %3470 = vmatmul.f32.gmra.mxu0 %v3212
        %v3471 = vpop.f32.mrf.mxu0
        %v3472 = vadd.f32 %v3180, %v3471
        %3473 = vdwg.mxu0
        %3474 = vmatpush.msra.mxu0 0.0
        %3475 = vmatpush.msra.mxu0 0.0
        %3476 = vmatpush.msra.mxu0 0.0
        %3477 = vmatpush.msra.mxu0 0.0
        %3478 = vmatpush.msra.mxu0 0.0
        %3479 = vmatpush.msra.mxu0 0.0
        %3480 = vmatpush.msra.mxu0 0.0
        %3481 = vmatpush.msra.mxu0 %v3139
        %3482 = vmatpush.msra.mxu0 %v3097
        %3483 = vmatpush.msra.mxu0 %v3055
        %3484 = vmatpush.msra.mxu0 %v3013
        %3485 = vmatpush.msra.mxu0 %v2971
        %3486 = vmatpush.msra.mxu0 %v2929
        %3487 = vmatpush.msra.mxu0 %v2887
        %3488 = vmatpush.msra.mxu0 %v2845
        %3489 = vmatpush.msra.mxu0 %v2803
        %3490 = vmatmul.f32.gmra.mxu0 %v3212
        %v3491 = vpop.f32.mrf.mxu0
        %v3492 = vadd.f32 %v3181, %v3491
        %3493 = vdwg.mxu0
        %3494 = vmatpush.msra.mxu0 0.0
        %3495 = vmatpush.msra.mxu0 0.0
        %3496 = vmatpush.msra.mxu0 0.0
        %3497 = vmatpush.msra.mxu0 0.0
        %3498 = vmatpush.msra.mxu0 0.0
        %3499 = vmatpush.msra.mxu0 0.0
        %3500 = vmatpush.msra.mxu0 0.0
        %3501 = vmatpush.msra.mxu0 %v3140
        %3502 = vmatpush.msra.mxu0 %v3098
        %3503 = vmatpush.msra.mxu0 %v3056
        %3504 = vmatpush.msra.mxu0 %v3014
        %3505 = vmatpush.msra.mxu0 %v2972
        %3506 = vmatpush.msra.mxu0 %v2930
        %3507 = vmatpush.msra.mxu0 %v2888
        %3508 = vmatpush.msra.mxu0 %v2846
        %3509 = vmatpush.msra.mxu0 %v2804
        %3510 = vmatmul.f32.gmra.mxu0 %v3212
        %v3511 = vpop.f32.mrf.mxu0
        %v3512 = vadd.f32 %v3182, %v3511
        %3513 = vdwg.mxu0
        %3514 = vmatpush.msra.mxu0 0.0
        %3515 = vmatpush.msra.mxu0 0.0
        %3516 = vmatpush.msra.mxu0 0.0
        %3517 = vmatpush.msra.mxu0 0.0
        %3518 = vmatpush.msra.mxu0 0.0
        %3519 = vmatpush.msra.mxu0 0.0
        %3520 = vmatpush.msra.mxu0 0.0
        %3521 = vmatpush.msra.mxu0 %v3141
        %3522 = vmatpush.msra.mxu0 %v3099
        %3523 = vmatpush.msra.mxu0 %v3057
        %3524 = vmatpush.msra.mxu0 %v3015
        %3525 = vmatpush.msra.mxu0 %v2973
        %3526 = vmatpush.msra.mxu0 %v2931
        %3527 = vmatpush.msra.mxu0 %v2889
        %3528 = vmatpush.msra.mxu0 %v2847
        %3529 = vmatpush.msra.mxu0 %v2805
        %3530 = vmatmul.f32.gmra.mxu0 %v3212
        %v3531 = vpop.f32.mrf.mxu0
        %v3532 = vadd.f32 %v3183, %v3531
        %3533 = vdwg.mxu0
        %3534 = vmatpush.msra.mxu0 0.0
        %3535 = vmatpush.msra.mxu0 0.0
        %3536 = vmatpush.msra.mxu0 0.0
        %3537 = vmatpush.msra.mxu0 0.0
        %3538 = vmatpush.msra.mxu0 0.0
        %3539 = vmatpush.msra.mxu0 0.0
        %3540 = vmatpush.msra.mxu0 0.0
        %3541 = vmatpush.msra.mxu0 %v3142
        %3542 = vmatpush.msra.mxu0 %v3100
        %3543 = vmatpush.msra.mxu0 %v3058
        %3544 = vmatpush.msra.mxu0 %v3016
        %3545 = vmatpush.msra.mxu0 %v2974
        %3546 = vmatpush.msra.mxu0 %v2932
        %3547 = vmatpush.msra.mxu0 %v2890
        %3548 = vmatpush.msra.mxu0 %v2848
        %3549 = vmatpush.msra.mxu0 %v2806
        %3550 = vmatmul.f32.gmra.mxu0 %v3212
        %v3551 = vpop.f32.mrf.mxu0
        %v3552 = vadd.f32 %v3184, %v3551
        %3553 = vdwg.mxu0
        %3554 = vmatpush.msra.mxu0 0.0
        %3555 = vmatpush.msra.mxu0 0.0
        %3556 = vmatpush.msra.mxu0 0.0
        %3557 = vmatpush.msra.mxu0 0.0
        %3558 = vmatpush.msra.mxu0 0.0
        %3559 = vmatpush.msra.mxu0 0.0
        %3560 = vmatpush.msra.mxu0 0.0
        %3561 = vmatpush.msra.mxu0 %v3143
        %3562 = vmatpush.msra.mxu0 %v3101
        %3563 = vmatpush.msra.mxu0 %v3059
        %3564 = vmatpush.msra.mxu0 %v3017
        %3565 = vmatpush.msra.mxu0 %v2975
        %3566 = vmatpush.msra.mxu0 %v2933
        %3567 = vmatpush.msra.mxu0 %v2891
        %3568 = vmatpush.msra.mxu0 %v2849
        %3569 = vmatpush.msra.mxu0 %v2807
        %3570 = vmatmul.f32.gmra.mxu0 %v3212
        %v3571 = vpop.f32.mrf.mxu0
        %v3572 = vadd.f32 %v3185, %v3571
        %3573 = vdwg.mxu0
        %3574 = vmatpush.msra.mxu0 0.0
        %3575 = vmatpush.msra.mxu0 0.0
        %3576 = vmatpush.msra.mxu0 0.0
        %3577 = vmatpush.msra.mxu0 0.0
        %3578 = vmatpush.msra.mxu0 0.0
        %3579 = vmatpush.msra.mxu0 0.0
        %3580 = vmatpush.msra.mxu0 0.0
        %3581 = vmatpush.msra.mxu0 %v3144
        %3582 = vmatpush.msra.mxu0 %v3102
        %3583 = vmatpush.msra.mxu0 %v3060
        %3584 = vmatpush.msra.mxu0 %v3018
        %3585 = vmatpush.msra.mxu0 %v2976
        %3586 = vmatpush.msra.mxu0 %v2934
        %3587 = vmatpush.msra.mxu0 %v2892
        %3588 = vmatpush.msra.mxu0 %v2850
        %3589 = vmatpush.msra.mxu0 %v2808
        %3590 = vmatmul.f32.gmra.mxu0 %v3212
        %v3591 = vpop.f32.mrf.mxu0
        %v3592 = vadd.f32 %v3186, %v3591
        %3593 = vdwg.mxu0
        %3594 = vmatpush.msra.mxu0 0.0
        %3595 = vmatpush.msra.mxu0 0.0
        %3596 = vmatpush.msra.mxu0 0.0
        %3597 = vmatpush.msra.mxu0 0.0
        %3598 = vmatpush.msra.mxu0 0.0
        %3599 = vmatpush.msra.mxu0 0.0
        %3600 = vmatpush.msra.mxu0 0.0
        %3601 = vmatpush.msra.mxu0 %v3145
        %3602 = vmatpush.msra.mxu0 %v3103
        %3603 = vmatpush.msra.mxu0 %v3061
        %3604 = vmatpush.msra.mxu0 %v3019
        %3605 = vmatpush.msra.mxu0 %v2977
        %3606 = vmatpush.msra.mxu0 %v2935
        %3607 = vmatpush.msra.mxu0 %v2893
        %3608 = vmatpush.msra.mxu0 %v2851
        %3609 = vmatpush.msra.mxu0 %v2809
        %3610 = vmatmul.f32.gmra.mxu0 %v3212
        %v3611 = vpop.f32.mrf.mxu0
        %v3612 = vadd.f32 %v3187, %v3611
        %3613 = vdwg.mxu0
        %3614 = vmatpush.msra.mxu0 0.0
        %3615 = vmatpush.msra.mxu0 0.0
        %3616 = vmatpush.msra.mxu0 0.0
        %3617 = vmatpush.msra.mxu0 0.0
        %3618 = vmatpush.msra.mxu0 0.0
        %3619 = vmatpush.msra.mxu0 0.0
        %3620 = vmatpush.msra.mxu0 0.0
        %3621 = vmatpush.msra.mxu0 %v3146
        %3622 = vmatpush.msra.mxu0 %v3104
        %3623 = vmatpush.msra.mxu0 %v3062
        %3624 = vmatpush.msra.mxu0 %v3020
        %3625 = vmatpush.msra.mxu0 %v2978
        %3626 = vmatpush.msra.mxu0 %v2936
        %3627 = vmatpush.msra.mxu0 %v2894
        %3628 = vmatpush.msra.mxu0 %v2852
        %3629 = vmatpush.msra.mxu0 %v2810
        %3630 = vmatmul.f32.gmra.mxu0 %v3212
        %v3631 = vpop.f32.mrf.mxu0
        %v3632 = vadd.f32 %v3188, %v3631
        %3633 = vdwg.mxu0
        %3634 = vmatpush.msra.mxu0 0.0
        %3635 = vmatpush.msra.mxu0 0.0
        %3636 = vmatpush.msra.mxu0 0.0
        %3637 = vmatpush.msra.mxu0 0.0
        %3638 = vmatpush.msra.mxu0 0.0
        %3639 = vmatpush.msra.mxu0 0.0
        %3640 = vmatpush.msra.mxu0 0.0
        %3641 = vmatpush.msra.mxu0 %v3147
        %3642 = vmatpush.msra.mxu0 %v3105
        %3643 = vmatpush.msra.mxu0 %v3063
        %3644 = vmatpush.msra.mxu0 %v3021
        %3645 = vmatpush.msra.mxu0 %v2979
        %3646 = vmatpush.msra.mxu0 %v2937
        %3647 = vmatpush.msra.mxu0 %v2895
        %3648 = vmatpush.msra.mxu0 %v2853
        %3649 = vmatpush.msra.mxu0 %v2811
        %3650 = vmatmul.f32.gmra.mxu0 %v3212
        %v3651 = vpop.f32.mrf.mxu0
        %v3652 = vadd.f32 %v3189, %v3651
        %3653 = vdwg.mxu0
        %3654 = vmatpush.msra.mxu0 0.0
        %3655 = vmatpush.msra.mxu0 0.0
        %3656 = vmatpush.msra.mxu0 0.0
        %3657 = vmatpush.msra.mxu0 0.0
        %3658 = vmatpush.msra.mxu0 0.0
        %3659 = vmatpush.msra.mxu0 0.0
        %3660 = vmatpush.msra.mxu0 0.0
        %3661 = vmatpush.msra.mxu0 %v3148
        %3662 = vmatpush.msra.mxu0 %v3106
        %3663 = vmatpush.msra.mxu0 %v3064
        %3664 = vmatpush.msra.mxu0 %v3022
        %3665 = vmatpush.msra.mxu0 %v2980
        %3666 = vmatpush.msra.mxu0 %v2938
        %3667 = vmatpush.msra.mxu0 %v2896
        %3668 = vmatpush.msra.mxu0 %v2854
        %3669 = vmatpush.msra.mxu0 %v2812
        %3670 = vmatmul.f32.gmra.mxu0 %v3212
        %v3671 = vpop.f32.mrf.mxu0
        %v3672 = vadd.f32 %v3190, %v3671
        %3673 = vdwg.mxu0
        %3674 = vmatpush.msra.mxu0 0.0
        %3675 = vmatpush.msra.mxu0 0.0
        %3676 = vmatpush.msra.mxu0 0.0
        %3677 = vmatpush.msra.mxu0 0.0
        %3678 = vmatpush.msra.mxu0 0.0
        %3679 = vmatpush.msra.mxu0 0.0
        %3680 = vmatpush.msra.mxu0 0.0
        %3681 = vmatpush.msra.mxu0 %v3149
        %3682 = vmatpush.msra.mxu0 %v3107
        %3683 = vmatpush.msra.mxu0 %v3065
        %3684 = vmatpush.msra.mxu0 %v3023
        %3685 = vmatpush.msra.mxu0 %v2981
        %3686 = vmatpush.msra.mxu0 %v2939
        %3687 = vmatpush.msra.mxu0 %v2897
        %3688 = vmatpush.msra.mxu0 %v2855
        %3689 = vmatpush.msra.mxu0 %v2813
        %3690 = vmatmul.f32.gmra.mxu0 %v3212
        %v3691 = vpop.f32.mrf.mxu0
        %v3692 = vadd.f32 %v3191, %v3691
        %3693 = vdwg.mxu0
        %3694 = vmatpush.msra.mxu0 0.0
        %3695 = vmatpush.msra.mxu0 0.0
        %3696 = vmatpush.msra.mxu0 0.0
        %3697 = vmatpush.msra.mxu0 0.0
        %3698 = vmatpush.msra.mxu0 0.0
        %3699 = vmatpush.msra.mxu0 0.0
        %3700 = vmatpush.msra.mxu0 0.0
        %3701 = vmatpush.msra.mxu0 %v3150
        %3702 = vmatpush.msra.mxu0 %v3108
        %3703 = vmatpush.msra.mxu0 %v3066
        %3704 = vmatpush.msra.mxu0 %v3024
        %3705 = vmatpush.msra.mxu0 %v2982
        %3706 = vmatpush.msra.mxu0 %v2940
        %3707 = vmatpush.msra.mxu0 %v2898
        %3708 = vmatpush.msra.mxu0 %v2856
        %3709 = vmatpush.msra.mxu0 %v2814
        %3710 = vmatmul.f32.gmra.mxu0 %v3212
        %v3711 = vpop.f32.mrf.mxu0
        %v3712 = vadd.f32 %v3192, %v3711
        %3713 = vdwg.mxu0
        %3714 = vmatpush.msra.mxu0 0.0
        %3715 = vmatpush.msra.mxu0 0.0
        %3716 = vmatpush.msra.mxu0 0.0
        %3717 = vmatpush.msra.mxu0 0.0
        %3718 = vmatpush.msra.mxu0 0.0
        %3719 = vmatpush.msra.mxu0 0.0
        %3720 = vmatpush.msra.mxu0 0.0
        %3721 = vmatpush.msra.mxu0 %v3151
        %3722 = vmatpush.msra.mxu0 %v3109
        %3723 = vmatpush.msra.mxu0 %v3067
        %3724 = vmatpush.msra.mxu0 %v3025
        %3725 = vmatpush.msra.mxu0 %v2983
        %3726 = vmatpush.msra.mxu0 %v2941
        %3727 = vmatpush.msra.mxu0 %v2899
        %3728 = vmatpush.msra.mxu0 %v2857
        %3729 = vmatpush.msra.mxu0 %v2815
        %3730 = vmatmul.f32.gmra.mxu0 %v3212
        %v3731 = vpop.f32.mrf.mxu0
        %v3732 = vadd.f32 %v3193, %v3731
        %3733 = vdwg.mxu0
        %3734 = vmatpush.msra.mxu0 0.0
        %3735 = vmatpush.msra.mxu0 0.0
        %3736 = vmatpush.msra.mxu0 0.0
        %3737 = vmatpush.msra.mxu0 0.0
        %3738 = vmatpush.msra.mxu0 0.0
        %3739 = vmatpush.msra.mxu0 0.0
        %3740 = vmatpush.msra.mxu0 0.0
        %3741 = vmatpush.msra.mxu0 %v3152
        %3742 = vmatpush.msra.mxu0 %v3110
        %3743 = vmatpush.msra.mxu0 %v3068
        %3744 = vmatpush.msra.mxu0 %v3026
        %3745 = vmatpush.msra.mxu0 %v2984
        %3746 = vmatpush.msra.mxu0 %v2942
        %3747 = vmatpush.msra.mxu0 %v2900
        %3748 = vmatpush.msra.mxu0 %v2858
        %3749 = vmatpush.msra.mxu0 %v2816
        %3750 = vmatmul.f32.gmra.mxu0 %v3212
        %v3751 = vpop.f32.mrf.mxu0
        %v3752 = vadd.f32 %v3194, %v3751
        %3753 = vdwg.mxu0
        %3754 = vmatpush.msra.mxu0 0.0
        %3755 = vmatpush.msra.mxu0 0.0
        %3756 = vmatpush.msra.mxu0 0.0
        %3757 = vmatpush.msra.mxu0 0.0
        %3758 = vmatpush.msra.mxu0 0.0
        %3759 = vmatpush.msra.mxu0 0.0
        %3760 = vmatpush.msra.mxu0 0.0
        %3761 = vmatpush.msra.mxu0 %v3153
        %3762 = vmatpush.msra.mxu0 %v3111
        %3763 = vmatpush.msra.mxu0 %v3069
        %3764 = vmatpush.msra.mxu0 %v3027
        %3765 = vmatpush.msra.mxu0 %v2985
        %3766 = vmatpush.msra.mxu0 %v2943
        %3767 = vmatpush.msra.mxu0 %v2901
        %3768 = vmatpush.msra.mxu0 %v2859
        %3769 = vmatpush.msra.mxu0 %v2817
        %3770 = vmatmul.f32.gmra.mxu0 %v3212
        %v3771 = vpop.f32.mrf.mxu0
        %v3772 = vadd.f32 %v3195, %v3771
        %3773 = vdwg.mxu0
        %3774 = vmatpush.msra.mxu0 0.0
        %3775 = vmatpush.msra.mxu0 0.0
        %3776 = vmatpush.msra.mxu0 0.0
        %3777 = vmatpush.msra.mxu0 0.0
        %3778 = vmatpush.msra.mxu0 0.0
        %3779 = vmatpush.msra.mxu0 0.0
        %3780 = vmatpush.msra.mxu0 0.0
        %3781 = vmatpush.msra.mxu0 %v3154
        %3782 = vmatpush.msra.mxu0 %v3112
        %3783 = vmatpush.msra.mxu0 %v3070
        %3784 = vmatpush.msra.mxu0 %v3028
        %3785 = vmatpush.msra.mxu0 %v2986
        %3786 = vmatpush.msra.mxu0 %v2944
        %3787 = vmatpush.msra.mxu0 %v2902
        %3788 = vmatpush.msra.mxu0 %v2860
        %3789 = vmatpush.msra.mxu0 %v2818
        %3790 = vmatmul.f32.gmra.mxu0 %v3212
        %v3791 = vpop.f32.mrf.mxu0
        %v3792 = vadd.f32 %v3196, %v3791
        %3793 = vdwg.mxu0
        %3794 = vmatpush.msra.mxu0 0.0
        %3795 = vmatpush.msra.mxu0 0.0
        %3796 = vmatpush.msra.mxu0 0.0
        %3797 = vmatpush.msra.mxu0 0.0
        %3798 = vmatpush.msra.mxu0 0.0
        %3799 = vmatpush.msra.mxu0 0.0
        %3800 = vmatpush.msra.mxu0 0.0
        %3801 = vmatpush.msra.mxu0 %v3155
        %3802 = vmatpush.msra.mxu0 %v3113
        %3803 = vmatpush.msra.mxu0 %v3071
        %3804 = vmatpush.msra.mxu0 %v3029
        %3805 = vmatpush.msra.mxu0 %v2987
        %3806 = vmatpush.msra.mxu0 %v2945
        %3807 = vmatpush.msra.mxu0 %v2903
        %3808 = vmatpush.msra.mxu0 %v2861
        %3809 = vmatpush.msra.mxu0 %v2819
        %3810 = vmatmul.f32.gmra.mxu0 %v3212
        %v3811 = vpop.f32.mrf.mxu0
        %v3812 = vadd.f32 %v3197, %v3811
        %3813 = vdwg.mxu0
        %3814 = vmatpush.msra.mxu0 0.0
        %3815 = vmatpush.msra.mxu0 0.0
        %3816 = vmatpush.msra.mxu0 0.0
        %3817 = vmatpush.msra.mxu0 0.0
        %3818 = vmatpush.msra.mxu0 0.0
        %3819 = vmatpush.msra.mxu0 0.0
        %3820 = vmatpush.msra.mxu0 0.0
        %3821 = vmatpush.msra.mxu0 %v3156
        %3822 = vmatpush.msra.mxu0 %v3114
        %3823 = vmatpush.msra.mxu0 %v3072
        %3824 = vmatpush.msra.mxu0 %v3030
        %3825 = vmatpush.msra.mxu0 %v2988
        %3826 = vmatpush.msra.mxu0 %v2946
        %3827 = vmatpush.msra.mxu0 %v2904
        %3828 = vmatpush.msra.mxu0 %v2862
        %3829 = vmatpush.msra.mxu0 %v2820
        %3830 = vmatmul.f32.gmra.mxu0 %v3212
        %v3831 = vpop.f32.mrf.mxu0
        %v3832 = vadd.f32 %v3198, %v3831
        %3833 = vdwg.mxu0
        %3834 = vmatpush.msra.mxu0 0.0
        %3835 = vmatpush.msra.mxu0 0.0
        %3836 = vmatpush.msra.mxu0 0.0
        %3837 = vmatpush.msra.mxu0 0.0
        %3838 = vmatpush.msra.mxu0 0.0
        %3839 = vmatpush.msra.mxu0 0.0
        %3840 = vmatpush.msra.mxu0 0.0
        %3841 = vmatpush.msra.mxu0 %v3157
        %3842 = vmatpush.msra.mxu0 %v3115
        %3843 = vmatpush.msra.mxu0 %v3073
        %3844 = vmatpush.msra.mxu0 %v3031
        %3845 = vmatpush.msra.mxu0 %v2989
        %3846 = vmatpush.msra.mxu0 %v2947
        %3847 = vmatpush.msra.mxu0 %v2905
        %3848 = vmatpush.msra.mxu0 %v2863
        %3849 = vmatpush.msra.mxu0 %v2821
        %3850 = vmatmul.f32.gmra.mxu0 %v3212
        %v3851 = vpop.f32.mrf.mxu0
        %v3852 = vadd.f32 %v3199, %v3851
        %3853 = vdwg.mxu0
        %3854 = vmatpush.msra.mxu0 0.0
        %3855 = vmatpush.msra.mxu0 0.0
        %3856 = vmatpush.msra.mxu0 0.0
        %3857 = vmatpush.msra.mxu0 0.0
        %3858 = vmatpush.msra.mxu0 0.0
        %3859 = vmatpush.msra.mxu0 0.0
        %3860 = vmatpush.msra.mxu0 0.0
        %3861 = vmatpush.msra.mxu0 %v3158
        %3862 = vmatpush.msra.mxu0 %v3116
        %3863 = vmatpush.msra.mxu0 %v3074
        %3864 = vmatpush.msra.mxu0 %v3032
        %3865 = vmatpush.msra.mxu0 %v2990
        %3866 = vmatpush.msra.mxu0 %v2948
        %3867 = vmatpush.msra.mxu0 %v2906
        %3868 = vmatpush.msra.mxu0 %v2864
        %3869 = vmatpush.msra.mxu0 %v2822
        %3870 = vmatmul.f32.gmra.mxu0 %v3212
        %v3871 = vpop.f32.mrf.mxu0
        %v3872 = vadd.f32 %v3200, %v3871
        %3873 = vdwg.mxu0
        %3874 = vmatpush.msra.mxu0 0.0
        %3875 = vmatpush.msra.mxu0 0.0
        %3876 = vmatpush.msra.mxu0 0.0
        %3877 = vmatpush.msra.mxu0 0.0
        %3878 = vmatpush.msra.mxu0 0.0
        %3879 = vmatpush.msra.mxu0 0.0
        %3880 = vmatpush.msra.mxu0 0.0
        %3881 = vmatpush.msra.mxu0 %v3159
        %3882 = vmatpush.msra.mxu0 %v3117
        %3883 = vmatpush.msra.mxu0 %v3075
        %3884 = vmatpush.msra.mxu0 %v3033
        %3885 = vmatpush.msra.mxu0 %v2991
        %3886 = vmatpush.msra.mxu0 %v2949
        %3887 = vmatpush.msra.mxu0 %v2907
        %3888 = vmatpush.msra.mxu0 %v2865
        %3889 = vmatpush.msra.mxu0 %v2823
        %3890 = vmatmul.f32.gmra.mxu0 %v3212
        %v3891 = vpop.f32.mrf.mxu0
        %v3892 = vadd.f32 %v3201, %v3891
        %3893 = vdwg.mxu0
        %3894 = vmatpush.msra.mxu0 0.0
        %3895 = vmatpush.msra.mxu0 0.0
        %3896 = vmatpush.msra.mxu0 0.0
        %3897 = vmatpush.msra.mxu0 0.0
        %3898 = vmatpush.msra.mxu0 0.0
        %3899 = vmatpush.msra.mxu0 0.0
        %3900 = vmatpush.msra.mxu0 0.0
        %3901 = vmatpush.msra.mxu0 %v3160
        %3902 = vmatpush.msra.mxu0 %v3118
        %3903 = vmatpush.msra.mxu0 %v3076
        %3904 = vmatpush.msra.mxu0 %v3034
        %3905 = vmatpush.msra.mxu0 %v2992
        %3906 = vmatpush.msra.mxu0 %v2950
        %3907 = vmatpush.msra.mxu0 %v2908
        %3908 = vmatpush.msra.mxu0 %v2866
        %3909 = vmatpush.msra.mxu0 %v2824
        %3910 = vmatmul.f32.gmra.mxu0 %v3212
        %v3911 = vpop.f32.mrf.mxu0
        %v3912 = vadd.f32 %v3202, %v3911
        %3913 = vdwg.mxu0
        %3914 = vmatpush.msra.mxu0 0.0
        %3915 = vmatpush.msra.mxu0 0.0
        %3916 = vmatpush.msra.mxu0 0.0
        %3917 = vmatpush.msra.mxu0 0.0
        %3918 = vmatpush.msra.mxu0 0.0
        %3919 = vmatpush.msra.mxu0 0.0
        %3920 = vmatpush.msra.mxu0 0.0
        %3921 = vmatpush.msra.mxu0 %v3161
        %3922 = vmatpush.msra.mxu0 %v3119
        %3923 = vmatpush.msra.mxu0 %v3077
        %3924 = vmatpush.msra.mxu0 %v3035
        %3925 = vmatpush.msra.mxu0 %v2993
        %3926 = vmatpush.msra.mxu0 %v2951
        %3927 = vmatpush.msra.mxu0 %v2909
        %3928 = vmatpush.msra.mxu0 %v2867
        %3929 = vmatpush.msra.mxu0 %v2825
        %3930 = vmatmul.f32.gmra.mxu0 %v3212
        %v3931 = vpop.f32.mrf.mxu0
        %v3932 = vadd.f32 %v3203, %v3931
        %3933 = vdwg.mxu0
        %3934 = vmatpush.msra.mxu0 0.0
        %3935 = vmatpush.msra.mxu0 0.0
        %3936 = vmatpush.msra.mxu0 0.0
        %3937 = vmatpush.msra.mxu0 0.0
        %3938 = vmatpush.msra.mxu0 0.0
        %3939 = vmatpush.msra.mxu0 0.0
        %3940 = vmatpush.msra.mxu0 0.0
        %3941 = vmatpush.msra.mxu0 %v3162
        %3942 = vmatpush.msra.mxu0 %v3120
        %3943 = vmatpush.msra.mxu0 %v3078
        %3944 = vmatpush.msra.mxu0 %v3036
        %3945 = vmatpush.msra.mxu0 %v2994
        %3946 = vmatpush.msra.mxu0 %v2952
        %3947 = vmatpush.msra.mxu0 %v2910
        %3948 = vmatpush.msra.mxu0 %v2868
        %3949 = vmatpush.msra.mxu0 %v2826
        %3950 = vmatmul.f32.gmra.mxu0 %v3212
        %v3951 = vpop.f32.mrf.mxu0
        %v3952 = vadd.f32 %v3204, %v3951
        %3953 = vdwg.mxu0
        %3954 = vmatpush.msra.mxu0 0.0
        %3955 = vmatpush.msra.mxu0 0.0
        %3956 = vmatpush.msra.mxu0 0.0
        %3957 = vmatpush.msra.mxu0 0.0
        %3958 = vmatpush.msra.mxu0 0.0
        %3959 = vmatpush.msra.mxu0 0.0
        %3960 = vmatpush.msra.mxu0 0.0
        %3961 = vmatpush.msra.mxu0 %v3163
        %3962 = vmatpush.msra.mxu0 %v3121
        %3963 = vmatpush.msra.mxu0 %v3079
        %3964 = vmatpush.msra.mxu0 %v3037
        %3965 = vmatpush.msra.mxu0 %v2995
        %3966 = vmatpush.msra.mxu0 %v2953
        %3967 = vmatpush.msra.mxu0 %v2911
        %3968 = vmatpush.msra.mxu0 %v2869
        %3969 = vmatpush.msra.mxu0 %v2827
        %3970 = vmatmul.f32.gmra.mxu0 %v3212
        %v3971 = vpop.f32.mrf.mxu0
        %v3972 = vadd.f32 %v3205, %v3971
        %3973 = vdwg.mxu0
        %3974 = vmatpush.msra.mxu0 0.0
        %3975 = vmatpush.msra.mxu0 0.0
        %3976 = vmatpush.msra.mxu0 0.0
        %3977 = vmatpush.msra.mxu0 0.0
        %3978 = vmatpush.msra.mxu0 0.0
        %3979 = vmatpush.msra.mxu0 0.0
        %3980 = vmatpush.msra.mxu0 0.0
        %3981 = vmatpush.msra.mxu0 %v3164
        %3982 = vmatpush.msra.mxu0 %v3122
        %3983 = vmatpush.msra.mxu0 %v3080
        %3984 = vmatpush.msra.mxu0 %v3038
        %3985 = vmatpush.msra.mxu0 %v2996
        %3986 = vmatpush.msra.mxu0 %v2954
        %3987 = vmatpush.msra.mxu0 %v2912
        %3988 = vmatpush.msra.mxu0 %v2870
        %3989 = vmatpush.msra.mxu0 %v2828
        %3990 = vmatmul.f32.gmra.mxu0 %v3212
        %v3991 = vpop.f32.mrf.mxu0
        %v3992 = vadd.f32 %v3206, %v3991
        %3993 = vdwg.mxu0
        %3994 = vmatpush.msra.mxu0 0.0
        %3995 = vmatpush.msra.mxu0 0.0
        %3996 = vmatpush.msra.mxu0 0.0
        %3997 = vmatpush.msra.mxu0 0.0
        %3998 = vmatpush.msra.mxu0 0.0
        %3999 = vmatpush.msra.mxu0 0.0
        %4000 = vmatpush.msra.mxu0 0.0
        %4001 = vmatpush.msra.mxu0 %v3165
        %4002 = vmatpush.msra.mxu0 %v3123
        %4003 = vmatpush.msra.mxu0 %v3081
        %4004 = vmatpush.msra.mxu0 %v3039
        %4005 = vmatpush.msra.mxu0 %v2997
        %4006 = vmatpush.msra.mxu0 %v2955
        %4007 = vmatpush.msra.mxu0 %v2913
        %4008 = vmatpush.msra.mxu0 %v2871
        %4009 = vmatpush.msra.mxu0 %v2829
        %4010 = vmatmul.f32.gmra.mxu0 %v3212
        %v4011 = vpop.f32.mrf.mxu0
        %v4012 = vadd.f32 %v3207, %v4011
        %4013 = vdwg.mxu0
        %4014 = vmatpush.msra.mxu0 0.0
        %4015 = vmatpush.msra.mxu0 0.0
        %4016 = vmatpush.msra.mxu0 0.0
        %4017 = vmatpush.msra.mxu0 0.0
        %4018 = vmatpush.msra.mxu0 0.0
        %4019 = vmatpush.msra.mxu0 0.0
        %4020 = vmatpush.msra.mxu0 0.0
        %4021 = vmatpush.msra.mxu0 %v3166
        %4022 = vmatpush.msra.mxu0 %v3124
        %4023 = vmatpush.msra.mxu0 %v3082
        %4024 = vmatpush.msra.mxu0 %v3040
        %4025 = vmatpush.msra.mxu0 %v2998
        %4026 = vmatpush.msra.mxu0 %v2956
        %4027 = vmatpush.msra.mxu0 %v2914
        %4028 = vmatpush.msra.mxu0 %v2872
        %4029 = vmatpush.msra.mxu0 %v2830
        %4030 = vmatmul.f32.gmra.mxu0 %v3212
        %v4031 = vpop.f32.mrf.mxu0
        %v4032 = vadd.f32 %v3208, %v4031
        %4033 = vdwg.mxu0
        %4034 = vmatpush.msra.mxu0 0.0
        %4035 = vmatpush.msra.mxu0 0.0
        %4036 = vmatpush.msra.mxu0 0.0
        %4037 = vmatpush.msra.mxu0 0.0
        %4038 = vmatpush.msra.mxu0 0.0
        %4039 = vmatpush.msra.mxu0 0.0
        %4040 = vmatpush.msra.mxu0 0.0
        %4041 = vmatpush.msra.mxu0 %v3167
        %4042 = vmatpush.msra.mxu0 %v3125
        %4043 = vmatpush.msra.mxu0 %v3083
        %4044 = vmatpush.msra.mxu0 %v3041
        %4045 = vmatpush.msra.mxu0 %v2999
        %4046 = vmatpush.msra.mxu0 %v2957
        %4047 = vmatpush.msra.mxu0 %v2915
        %4048 = vmatpush.msra.mxu0 %v2873
        %4049 = vmatpush.msra.mxu0 %v2831
        %4050 = vmatmul.f32.gmra.mxu0 %v3212
        %v4051 = vpop.f32.mrf.mxu0
        %v4052 = vadd.f32 %v3209, %v4051
        %4053 = vdwg.mxu0
        %v4054 = vmax.f32 %v3232, 0.0
        %v4055 = vmax.f32 %v3252, 0.0
        %v4056 = vmax.f32 %v3272, 0.0
        %v4057 = vmax.f32 %v3292, 0.0
        %v4058 = vmax.f32 %v3312, 0.0
        %v4059 = vmax.f32 %v3332, 0.0
        %v4060 = vmax.f32 %v3352, 0.0
        %v4061 = vmax.f32 %v3372, 0.0
        %v4062 = vmax.f32 %v3392, 0.0
        %v4063 = vmax.f32 %v3412, 0.0
        %v4064 = vmax.f32 %v3432, 0.0
        %v4065 = vmax.f32 %v3452, 0.0
        %v4066 = vmax.f32 %v3472, 0.0
        %v4067 = vmax.f32 %v3492, 0.0
        %v4068 = vmax.f32 %v3512, 0.0
        %v4069 = vmax.f32 %v3532, 0.0
        %v4070 = vmax.f32 %v3552, 0.0
        %v4071 = vmax.f32 %v3572, 0.0
        %v4072 = vmax.f32 %v3592, 0.0
        %v4073 = vmax.f32 %v3612, 0.0
        %v4074 = vmax.f32 %v3632, 0.0
        %v4075 = vmax.f32 %v3652, 0.0
        %v4076 = vmax.f32 %v3672, 0.0
        %v4077 = vmax.f32 %v3692, 0.0
        %v4078 = vmax.f32 %v3712, 0.0
        %v4079 = vmax.f32 %v3732, 0.0
        %v4080 = vmax.f32 %v3752, 0.0
        %v4081 = vmax.f32 %v3772, 0.0
        %v4082 = vmax.f32 %v3792, 0.0
        %v4083 = vmax.f32 %v3812, 0.0
        %v4084 = vmax.f32 %v3832, 0.0
        %v4085 = vmax.f32 %v3852, 0.0
        %v4086 = vmax.f32 %v3872, 0.0
        %v4087 = vmax.f32 %v3892, 0.0
        %v4088 = vmax.f32 %v3912, 0.0
        %v4089 = vmax.f32 %v3932, 0.0
        %v4090 = vmax.f32 %v3952, 0.0
        %v4091 = vmax.f32 %v3972, 0.0
        %v4092 = vmax.f32 %v3992, 0.0
        %v4093 = vmax.f32 %v4012, 0.0
        %v4094 = vmax.f32 %v4032, 0.0
        %v4095 = vmax.f32 %v4052, 0.0
        %4096 = vst [vmem:[#allocation2] sm:$0xff] %v4054
        %4097 = vst [vmem:[#allocation2 + $0x8] sm:$0xff] %v4055
        %4098 = vst [vmem:[#allocation2 + $0x10] sm:$0xff] %v4056
        %4099 = vst [vmem:[#allocation2 + $0x18] sm:$0xff] %v4057
        %4100 = vst [vmem:[#allocation2 + $0x20] sm:$0xff] %v4058
        %4101 = vst [vmem:[#allocation2 + $0x28] sm:$0xff] %v4059
        %4102 = vst [vmem:[#allocation2 + $0x30] sm:$0xff] %v4060
        %4103 = vst [vmem:[#allocation2 + $0x38] sm:$0xff] %v4061
        %4104 = vst [vmem:[#allocation2 + $0x40] sm:$0xff] %v4062
        %4105 = vst [vmem:[#allocation2 + $0x48] sm:$0xff] %v4063
        %4106 = vst [vmem:[#allocation2 + $0x50] sm:$0xff] %v4064
        %4107 = vst [vmem:[#allocation2 + $0x58] sm:$0xff] %v4065
        %4108 = vst [vmem:[#allocation2 + $0x60] sm:$0xff] %v4066
        %4109 = vst [vmem:[#allocation2 + $0x68] sm:$0xff] %v4067
        %4110 = vst [vmem:[#allocation2 + $0x70] sm:$0xff] %v4068
        %4111 = vst [vmem:[#allocation2 + $0x78] sm:$0xff] %v4069
        %4112 = vst [vmem:[#allocation2 + $0x80] sm:$0xff] %v4070
        %4113 = vst [vmem:[#allocation2 + $0x88] sm:$0xff] %v4071
        %4114 = vst [vmem:[#allocation2 + $0x90] sm:$0xff] %v4072
        %4115 = vst [vmem:[#allocation2 + $0x98] sm:$0xff] %v4073
        %4116 = vst [vmem:[#allocation2 + $0xa0] sm:$0xff] %v4074
        %4117 = vst [vmem:[#allocation2 + $0xa8] sm:$0xff] %v4075
        %4118 = vst [vmem:[#allocation2 + $0xb0] sm:$0xff] %v4076
        %4119 = vst [vmem:[#allocation2 + $0xb8] sm:$0xff] %v4077
        %4120 = vst [vmem:[#allocation2 + $0xc0] sm:$0xff] %v4078
        %4121 = vst [vmem:[#allocation2 + $0xc8] sm:$0xff] %v4079
        %4122 = vst [vmem:[#allocation2 + $0xd0] sm:$0xff] %v4080
        %4123 = vst [vmem:[#allocation2 + $0xd8] sm:$0xff] %v4081
        %4124 = vst [vmem:[#allocation2 + $0xe0] sm:$0xff] %v4082
        %4125 = vst [vmem:[#allocation2 + $0xe8] sm:$0xff] %v4083
        %4126 = vst [vmem:[#allocation2 + $0xf0] sm:$0xff] %v4084
        %4127 = vst [vmem:[#allocation2 + $0xf8] sm:$0xff] %v4085
        %4128 = vst [vmem:[#allocation2 + $0x100] sm:$0xff] %v4086
        %4129 = vst [vmem:[#allocation2 + $0x108] sm:$0xff] %v4087
        %4130 = vst [vmem:[#allocation2 + $0x110] sm:$0xff] %v4088
        %4131 = vst [vmem:[#allocation2 + $0x118] sm:$0xff] %v4089
        %4132 = vst [vmem:[#allocation2 + $0x120] sm:$0xff] %v4090
        %4133 = vst [vmem:[#allocation2 + $0x128] sm:$0xff] %v4091
        %4134 = vst [vmem:[#allocation2 + $0x130] sm:$0xff] %v4092
        %4135 = vst [vmem:[#allocation2 + $0x138] sm:$0xff] %v4093
        %4136 = vst [vmem:[#allocation2 + $0x140] sm:$0xff] %v4094
        %4137 = vst [vmem:[#allocation2 + $0x148] sm:$0xff] %v4095
        %4180 = vrot.lane.b32.xlu0 %v4054, 1
        %v4181 = vpop.permute.xlu0 %4180
        %4182 = vrot.lane.b32.xlu0 %v4055, 1
        %v4183 = vpop.permute.xlu0 %4182
        %4184 = vrot.lane.b32.xlu0 %v4056, 1
        %v4185 = vpop.permute.xlu0 %4184
        %4186 = vrot.lane.b32.xlu0 %v4057, 1
        %v4187 = vpop.permute.xlu0 %4186
        %4188 = vrot.lane.b32.xlu0 %v4058, 1
        %v4189 = vpop.permute.xlu0 %4188
        %4190 = vrot.lane.b32.xlu0 %v4059, 1
        %v4191 = vpop.permute.xlu0 %4190
        %4192 = vrot.lane.b32.xlu0 %v4060, 1
        %v4193 = vpop.permute.xlu0 %4192
        %4194 = vrot.lane.b32.xlu0 %v4061, 1
        %v4195 = vpop.permute.xlu0 %4194
        %4196 = vrot.lane.b32.xlu0 %v4062, 1
        %v4197 = vpop.permute.xlu0 %4196
        %4198 = vrot.lane.b32.xlu0 %v4063, 1
        %v4199 = vpop.permute.xlu0 %4198
        %4200 = vrot.lane.b32.xlu0 %v4064, 1
        %v4201 = vpop.permute.xlu0 %4200
        %4202 = vrot.lane.b32.xlu0 %v4065, 1
        %v4203 = vpop.permute.xlu0 %4202
        %4204 = vrot.lane.b32.xlu0 %v4066, 1
        %v4205 = vpop.permute.xlu0 %4204
        %4206 = vrot.lane.b32.xlu0 %v4067, 1
        %v4207 = vpop.permute.xlu0 %4206
        %4208 = vrot.lane.b32.xlu0 %v4068, 1
        %v4209 = vpop.permute.xlu0 %4208
        %4210 = vrot.lane.b32.xlu0 %v4069, 1
        %v4211 = vpop.permute.xlu0 %4210
        %4212 = vrot.lane.b32.xlu0 %v4070, 1
        %v4213 = vpop.permute.xlu0 %4212
        %4214 = vrot.lane.b32.xlu0 %v4071, 1
        %v4215 = vpop.permute.xlu0 %4214
        %4216 = vrot.lane.b32.xlu0 %v4072, 1
        %v4217 = vpop.permute.xlu0 %4216
        %4218 = vrot.lane.b32.xlu0 %v4073, 1
        %v4219 = vpop.permute.xlu0 %4218
        %4220 = vrot.lane.b32.xlu0 %v4074, 1
        %v4221 = vpop.permute.xlu0 %4220
        %4222 = vrot.lane.b32.xlu0 %v4075, 1
        %v4223 = vpop.permute.xlu0 %4222
        %4224 = vrot.lane.b32.xlu0 %v4076, 1
        %v4225 = vpop.permute.xlu0 %4224
        %4226 = vrot.lane.b32.xlu0 %v4077, 1
        %v4227 = vpop.permute.xlu0 %4226
        %4228 = vrot.lane.b32.xlu0 %v4078, 1
        %v4229 = vpop.permute.xlu0 %4228
        %4230 = vrot.lane.b32.xlu0 %v4079, 1
        %v4231 = vpop.permute.xlu0 %4230
        %4232 = vrot.lane.b32.xlu0 %v4080, 1
        %v4233 = vpop.permute.xlu0 %4232
        %4234 = vrot.lane.b32.xlu0 %v4081, 1
        %v4235 = vpop.permute.xlu0 %4234
        %4236 = vrot.lane.b32.xlu0 %v4082, 1
        %v4237 = vpop.permute.xlu0 %4236
        %4238 = vrot.lane.b32.xlu0 %v4083, 1
        %v4239 = vpop.permute.xlu0 %4238
        %4240 = vrot.lane.b32.xlu0 %v4084, 1
        %v4241 = vpop.permute.xlu0 %4240
        %4242 = vrot.lane.b32.xlu0 %v4085, 1
        %v4243 = vpop.permute.xlu0 %4242
        %4244 = vrot.lane.b32.xlu0 %v4086, 1
        %v4245 = vpop.permute.xlu0 %4244
        %4246 = vrot.lane.b32.xlu0 %v4087, 1
        %v4247 = vpop.permute.xlu0 %4246
        %4248 = vrot.lane.b32.xlu0 %v4088, 1
        %v4249 = vpop.permute.xlu0 %4248
        %4250 = vrot.lane.b32.xlu0 %v4089, 1
        %v4251 = vpop.permute.xlu0 %4250
        %4252 = vrot.lane.b32.xlu0 %v4090, 1
        %v4253 = vpop.permute.xlu0 %4252
        %4254 = vrot.lane.b32.xlu0 %v4091, 1
        %v4255 = vpop.permute.xlu0 %4254
        %4256 = vrot.lane.b32.xlu0 %v4092, 1
        %v4257 = vpop.permute.xlu0 %4256
        %4258 = vrot.lane.b32.xlu0 %v4093, 1
        %v4259 = vpop.permute.xlu0 %4258
        %4260 = vrot.lane.b32.xlu0 %v4094, 1
        %v4261 = vpop.permute.xlu0 %4260
        %4262 = vrot.lane.b32.xlu0 %v4095, 1
        %v4263 = vpop.permute.xlu0 %4262
        %v4264 = vsel %vm2199, %v4181, %v4183
        %v4265 = vsel %vm2199, %v4183, %v4185
        %v4266 = vsel %vm2199, %v4185, %v4187
        %v4267 = vsel %vm2199, %v4187, %v4189
        %v4268 = vsel %vm2199, %v4189, %v4191
        %v4269 = vsel %vm2199, %v4191, %v4193
        %v4270 = vsel %vm2199, %v4193, %v4195
        %v4271 = vsel %vm2199, %v4195, %v4197
        %v4272 = vsel %vm2199, %v4197, %v4199
        %v4273 = vsel %vm2199, %v4199, %v4201
        %v4274 = vsel %vm2199, %v4201, %v4203
        %v4275 = vsel %vm2199, %v4203, %v4205
        %v4276 = vsel %vm2199, %v4205, %v4207
        %v4277 = vsel %vm2199, %v4207, %v4209
        %v4278 = vsel %vm2199, %v4209, %v4211
        %v4279 = vsel %vm2199, %v4211, %v4213
        %v4280 = vsel %vm2199, %v4213, %v4215
        %v4281 = vsel %vm2199, %v4215, %v4217
        %v4282 = vsel %vm2199, %v4217, %v4219
        %v4283 = vsel %vm2199, %v4219, %v4221
        %v4284 = vsel %vm2199, %v4221, %v4223
        %v4285 = vsel %vm2199, %v4223, %v4225
        %v4286 = vsel %vm2199, %v4225, %v4227
        %v4287 = vsel %vm2199, %v4227, %v4229
        %v4288 = vsel %vm2199, %v4229, %v4231
        %v4289 = vsel %vm2199, %v4231, %v4233
        %v4290 = vsel %vm2199, %v4233, %v4235
        %v4291 = vsel %vm2199, %v4235, %v4237
        %v4292 = vsel %vm2199, %v4237, %v4239
        %v4293 = vsel %vm2199, %v4239, %v4241
        %v4294 = vsel %vm2199, %v4241, %v4243
        %v4295 = vsel %vm2199, %v4243, %v4245
        %v4296 = vsel %vm2199, %v4245, %v4247
        %v4297 = vsel %vm2199, %v4247, %v4249
        %v4298 = vsel %vm2199, %v4249, %v4251
        %v4299 = vsel %vm2199, %v4251, %v4253
        %v4300 = vsel %vm2199, %v4253, %v4255
        %v4301 = vsel %vm2199, %v4255, %v4257
        %v4302 = vsel %vm2199, %v4257, %v4259
        %v4303 = vsel %vm2199, %v4259, %v4261
        %v4304 = vsel %vm2199, %v4261, %v4263
        %v4347 = vsel %vm2199, 0.0, %v4181
        %4348 = vst [vmem:[#allocation2 + $0x150] sm:$0xff] %v4347
        %4349 = vst [vmem:[#allocation2 + $0x158] sm:$0xff] %v4264
        %4350 = vst [vmem:[#allocation2 + $0x160] sm:$0xff] %v4265
        %4351 = vst [vmem:[#allocation2 + $0x168] sm:$0xff] %v4266
        %4352 = vst [vmem:[#allocation2 + $0x170] sm:$0xff] %v4267
        %4353 = vst [vmem:[#allocation2 + $0x178] sm:$0xff] %v4268
        %4354 = vst [vmem:[#allocation2 + $0x180] sm:$0xff] %v4269
        %4355 = vst [vmem:[#allocation2 + $0x188] sm:$0xff] %v4270
        %4356 = vst [vmem:[#allocation2 + $0x190] sm:$0xff] %v4271
        %4357 = vst [vmem:[#allocation2 + $0x198] sm:$0xff] %v4272
        %4358 = vst [vmem:[#allocation2 + $0x1a0] sm:$0xff] %v4273
        %4359 = vst [vmem:[#allocation2 + $0x1a8] sm:$0xff] %v4274
        %4360 = vst [vmem:[#allocation2 + $0x1b0] sm:$0xff] %v4275
        %4361 = vst [vmem:[#allocation2 + $0x1b8] sm:$0xff] %v4276
        %4362 = vst [vmem:[#allocation2 + $0x1c0] sm:$0xff] %v4277
        %4363 = vst [vmem:[#allocation2 + $0x1c8] sm:$0xff] %v4278
        %4364 = vst [vmem:[#allocation2 + $0x1d0] sm:$0xff] %v4279
        %4365 = vst [vmem:[#allocation2 + $0x1d8] sm:$0xff] %v4280
        %4366 = vst [vmem:[#allocation2 + $0x1e0] sm:$0xff] %v4281
        %4367 = vst [vmem:[#allocation2 + $0x1e8] sm:$0xff] %v4282
        %4368 = vst [vmem:[#allocation2 + $0x1f0] sm:$0xff] %v4283
        %4369 = vst [vmem:[#allocation2 + $0x1f8] sm:$0xff] %v4284
        %4370 = vst [vmem:[#allocation2 + $0x200] sm:$0xff] %v4285
        %4371 = vst [vmem:[#allocation2 + $0x208] sm:$0xff] %v4286
        %4372 = vst [vmem:[#allocation2 + $0x210] sm:$0xff] %v4287
        %4373 = vst [vmem:[#allocation2 + $0x218] sm:$0xff] %v4288
        %4374 = vst [vmem:[#allocation2 + $0x220] sm:$0xff] %v4289
        %4375 = vst [vmem:[#allocation2 + $0x228] sm:$0xff] %v4290
        %4376 = vst [vmem:[#allocation2 + $0x230] sm:$0xff] %v4291
        %4377 = vst [vmem:[#allocation2 + $0x238] sm:$0xff] %v4292
        %4378 = vst [vmem:[#allocation2 + $0x240] sm:$0xff] %v4293
        %4379 = vst [vmem:[#allocation2 + $0x248] sm:$0xff] %v4294
        %4380 = vst [vmem:[#allocation2 + $0x250] sm:$0xff] %v4295
        %4381 = vst [vmem:[#allocation2 + $0x258] sm:$0xff] %v4296
        %4382 = vst [vmem:[#allocation2 + $0x260] sm:$0xff] %v4297
        %4383 = vst [vmem:[#allocation2 + $0x268] sm:$0xff] %v4298
        %4384 = vst [vmem:[#allocation2 + $0x270] sm:$0xff] %v4299
        %4385 = vst [vmem:[#allocation2 + $0x278] sm:$0xff] %v4300
        %4386 = vst [vmem:[#allocation2 + $0x280] sm:$0xff] %v4301
        %4387 = vst [vmem:[#allocation2 + $0x288] sm:$0xff] %v4302
        %4388 = vst [vmem:[#allocation2 + $0x290] sm:$0xff] %v4303
        %4389 = vst [vmem:[#allocation2 + $0x298] sm:$0xff] %v4304
        %4390 = vst [vmem:[#allocation2 + $0x2a0] sm:$0xff] 0.0
        %4391 = vst [vmem:[#allocation2 + $0x2a8] sm:$0xff] %v4054
        %4392 = vst [vmem:[#allocation2 + $0x2b0] sm:$0xff] %v4055
        %4393 = vst [vmem:[#allocation2 + $0x2b8] sm:$0xff] %v4056
        %4394 = vst [vmem:[#allocation2 + $0x2c0] sm:$0xff] %v4057
        %4395 = vst [vmem:[#allocation2 + $0x2c8] sm:$0xff] %v4058
        %4396 = vst [vmem:[#allocation2 + $0x2d0] sm:$0xff] %v4059
        %4397 = vst [vmem:[#allocation2 + $0x2d8] sm:$0xff] %v4060
        %4398 = vst [vmem:[#allocation2 + $0x2e0] sm:$0xff] %v4061
        %4399 = vst [vmem:[#allocation2 + $0x2e8] sm:$0xff] %v4062
        %4400 = vst [vmem:[#allocation2 + $0x2f0] sm:$0xff] %v4063
        %4401 = vst [vmem:[#allocation2 + $0x2f8] sm:$0xff] %v4064
        %4402 = vst [vmem:[#allocation2 + $0x300] sm:$0xff] %v4065
        %4403 = vst [vmem:[#allocation2 + $0x308] sm:$0xff] %v4066
        %4404 = vst [vmem:[#allocation2 + $0x310] sm:$0xff] %v4067
        %4405 = vst [vmem:[#allocation2 + $0x318] sm:$0xff] %v4068
        %4406 = vst [vmem:[#allocation2 + $0x320] sm:$0xff] %v4069
        %4407 = vst [vmem:[#allocation2 + $0x328] sm:$0xff] %v4070
        %4408 = vst [vmem:[#allocation2 + $0x330] sm:$0xff] %v4071
        %4409 = vst [vmem:[#allocation2 + $0x338] sm:$0xff] %v4072
        %4410 = vst [vmem:[#allocation2 + $0x340] sm:$0xff] %v4073
        %4411 = vst [vmem:[#allocation2 + $0x348] sm:$0xff] %v4074
        %4412 = vst [vmem:[#allocation2 + $0x350] sm:$0xff] %v4075
        %4413 = vst [vmem:[#allocation2 + $0x358] sm:$0xff] %v4076
        %4414 = vst [vmem:[#allocation2 + $0x360] sm:$0xff] %v4077
        %4415 = vst [vmem:[#allocation2 + $0x368] sm:$0xff] %v4078
        %4416 = vst [vmem:[#allocation2 + $0x370] sm:$0xff] %v4079
        %4417 = vst [vmem:[#allocation2 + $0x378] sm:$0xff] %v4080
        %4418 = vst [vmem:[#allocation2 + $0x380] sm:$0xff] %v4081
        %4419 = vst [vmem:[#allocation2 + $0x388] sm:$0xff] %v4082
        %4420 = vst [vmem:[#allocation2 + $0x390] sm:$0xff] %v4083
        %4421 = vst [vmem:[#allocation2 + $0x398] sm:$0xff] %v4084
        %4422 = vst [vmem:[#allocation2 + $0x3a0] sm:$0xff] %v4085
        %4423 = vst [vmem:[#allocation2 + $0x3a8] sm:$0xff] %v4086
        %4424 = vst [vmem:[#allocation2 + $0x3b0] sm:$0xff] %v4087
        %4425 = vst [vmem:[#allocation2 + $0x3b8] sm:$0xff] %v4088
        %4426 = vst [vmem:[#allocation2 + $0x3c0] sm:$0xff] %v4089
        %4427 = vst [vmem:[#allocation2 + $0x3c8] sm:$0xff] %v4090
        %4428 = vst [vmem:[#allocation2 + $0x3d0] sm:$0xff] %v4091
        %4429 = vst [vmem:[#allocation2 + $0x3d8] sm:$0xff] %v4092
        %4430 = vst [vmem:[#allocation2 + $0x3e0] sm:$0xff] %v4093
        %4431 = vst [vmem:[#allocation2 + $0x3e8] sm:$0xff] %v4094
        %4432 = vst [vmem:[#allocation2 + $0x3f0] sm:$0xff] 0.0
        %4433 = vst [vmem:[#allocation2 + $0x3f8] sm:$0xff] %v4347
        %4434 = vst [vmem:[#allocation2 + $0x400] sm:$0xff] %v4264
        %4435 = vst [vmem:[#allocation2 + $0x408] sm:$0xff] %v4265
        %4436 = vst [vmem:[#allocation2 + $0x410] sm:$0xff] %v4266
        %4437 = vst [vmem:[#allocation2 + $0x418] sm:$0xff] %v4267
        %4438 = vst [vmem:[#allocation2 + $0x420] sm:$0xff] %v4268
        %4439 = vst [vmem:[#allocation2 + $0x428] sm:$0xff] %v4269
        %4440 = vst [vmem:[#allocation2 + $0x430] sm:$0xff] %v4270
        %4441 = vst [vmem:[#allocation2 + $0x438] sm:$0xff] %v4271
        %4442 = vst [vmem:[#allocation2 + $0x440] sm:$0xff] %v4272
        %4443 = vst [vmem:[#allocation2 + $0x448] sm:$0xff] %v4273
        %4444 = vst [vmem:[#allocation2 + $0x450] sm:$0xff] %v4274
        %4445 = vst [vmem:[#allocation2 + $0x458] sm:$0xff] %v4275
        %4446 = vst [vmem:[#allocation2 + $0x460] sm:$0xff] %v4276
        %4447 = vst [vmem:[#allocation2 + $0x468] sm:$0xff] %v4277
        %4448 = vst [vmem:[#allocation2 + $0x470] sm:$0xff] %v4278
        %4449 = vst [vmem:[#allocation2 + $0x478] sm:$0xff] %v4279
        %4450 = vst [vmem:[#allocation2 + $0x480] sm:$0xff] %v4280
        %4451 = vst [vmem:[#allocation2 + $0x488] sm:$0xff] %v4281
        %4452 = vst [vmem:[#allocation2 + $0x490] sm:$0xff] %v4282
        %4453 = vst [vmem:[#allocation2 + $0x498] sm:$0xff] %v4283
        %4454 = vst [vmem:[#allocation2 + $0x4a0] sm:$0xff] %v4284
        %4455 = vst [vmem:[#allocation2 + $0x4a8] sm:$0xff] %v4285
        %4456 = vst [vmem:[#allocation2 + $0x4b0] sm:$0xff] %v4286
        %4457 = vst [vmem:[#allocation2 + $0x4b8] sm:$0xff] %v4287
        %4458 = vst [vmem:[#allocation2 + $0x4c0] sm:$0xff] %v4288
        %4459 = vst [vmem:[#allocation2 + $0x4c8] sm:$0xff] %v4289
        %4460 = vst [vmem:[#allocation2 + $0x4d0] sm:$0xff] %v4290
        %4461 = vst [vmem:[#allocation2 + $0x4d8] sm:$0xff] %v4291
        %4462 = vst [vmem:[#allocation2 + $0x4e0] sm:$0xff] %v4292
        %4463 = vst [vmem:[#allocation2 + $0x4e8] sm:$0xff] %v4293
        %4464 = vst [vmem:[#allocation2 + $0x4f0] sm:$0xff] %v4294
        %4465 = vst [vmem:[#allocation2 + $0x4f8] sm:$0xff] %v4295
        %4466 = vst [vmem:[#allocation2 + $0x500] sm:$0xff] %v4296
        %4467 = vst [vmem:[#allocation2 + $0x508] sm:$0xff] %v4297
        %4468 = vst [vmem:[#allocation2 + $0x510] sm:$0xff] %v4298
        %4469 = vst [vmem:[#allocation2 + $0x518] sm:$0xff] %v4299
        %4470 = vst [vmem:[#allocation2 + $0x520] sm:$0xff] %v4300
        %4471 = vst [vmem:[#allocation2 + $0x528] sm:$0xff] %v4301
        %4472 = vst [vmem:[#allocation2 + $0x530] sm:$0xff] %v4302
        %4473 = vst [vmem:[#allocation2 + $0x538] sm:$0xff] %v4303
        %v4474 = vld [vmem:[#allocation13] sm:$0xff]
        %v4475 = vld [vmem:[#allocation13 + $0x8] sm:$0xf]
        %v4476 = vld [vmem:[#allocation2] sm:$0xff]
        %v4477 = vld [vmem:[#allocation2 + $0x8] sm:$0xff]
        %v4478 = vld [vmem:[#allocation2 + $0x10] sm:$0xff]
        %v4479 = vld [vmem:[#allocation2 + $0x18] sm:$0xff]
        %v4480 = vld [vmem:[#allocation2 + $0x20] sm:$0xff]
        %v4481 = vld [vmem:[#allocation2 + $0x28] sm:$0xff]
        %v4482 = vld [vmem:[#allocation2 + $0x30] sm:$0xff]
        %v4483 = vld [vmem:[#allocation2 + $0x38] sm:$0xff]
        %v4484 = vld [vmem:[#allocation2 + $0x40] sm:$0xff]
        %v4485 = vld [vmem:[#allocation2 + $0x48] sm:$0xff]
        %v4486 = vld [vmem:[#allocation2 + $0x50] sm:$0xff]
        %v4487 = vld [vmem:[#allocation2 + $0x58] sm:$0xff]
        %v4488 = vld [vmem:[#allocation2 + $0x60] sm:$0xff]
        %v4489 = vld [vmem:[#allocation2 + $0x68] sm:$0xff]
        %v4490 = vld [vmem:[#allocation2 + $0x70] sm:$0xff]
        %v4491 = vld [vmem:[#allocation2 + $0x78] sm:$0xff]
        %v4492 = vld [vmem:[#allocation2 + $0x80] sm:$0xff]
        %v4493 = vld [vmem:[#allocation2 + $0x88] sm:$0xff]
        %v4494 = vld [vmem:[#allocation2 + $0x90] sm:$0xff]
        %v4495 = vld [vmem:[#allocation2 + $0x98] sm:$0xff]
        %v4496 = vld [vmem:[#allocation2 + $0xa0] sm:$0xff]
        %v4497 = vld [vmem:[#allocation2 + $0xa8] sm:$0xff]
        %v4498 = vld [vmem:[#allocation2 + $0xb0] sm:$0xff]
        %v4499 = vld [vmem:[#allocation2 + $0xb8] sm:$0xff]
        %v4500 = vld [vmem:[#allocation2 + $0xc0] sm:$0xff]
        %v4501 = vld [vmem:[#allocation2 + $0xc8] sm:$0xff]
        %v4502 = vld [vmem:[#allocation2 + $0xd0] sm:$0xff]
        %v4503 = vld [vmem:[#allocation2 + $0xd8] sm:$0xff]
        %v4504 = vld [vmem:[#allocation2 + $0xe0] sm:$0xff]
        %v4505 = vld [vmem:[#allocation2 + $0xe8] sm:$0xff]
        %v4506 = vld [vmem:[#allocation2 + $0xf0] sm:$0xff]
        %v4507 = vld [vmem:[#allocation2 + $0xf8] sm:$0xff]
        %v4508 = vld [vmem:[#allocation2 + $0x100] sm:$0xff]
        %v4509 = vld [vmem:[#allocation2 + $0x108] sm:$0xff]
        %v4510 = vld [vmem:[#allocation2 + $0x110] sm:$0xff]
        %v4511 = vld [vmem:[#allocation2 + $0x118] sm:$0xff]
        %v4512 = vld [vmem:[#allocation2 + $0x120] sm:$0xff]
        %v4513 = vld [vmem:[#allocation2 + $0x128] sm:$0xff]
        %v4514 = vld [vmem:[#allocation2 + $0x130] sm:$0xff]
        %v4515 = vld [vmem:[#allocation2 + $0x138] sm:$0xff]
        %v4516 = vld [vmem:[#allocation2 + $0x140] sm:$0xff]
        %v4517 = vld [vmem:[#allocation2 + $0x148] sm:$0xff]
        %v4518 = vld [vmem:[#allocation2 + $0x150] sm:$0xff]
        %v4519 = vld [vmem:[#allocation2 + $0x158] sm:$0xff]
        %v4520 = vld [vmem:[#allocation2 + $0x160] sm:$0xff]
        %v4521 = vld [vmem:[#allocation2 + $0x168] sm:$0xff]
        %v4522 = vld [vmem:[#allocation2 + $0x170] sm:$0xff]
        %v4523 = vld [vmem:[#allocation2 + $0x178] sm:$0xff]
        %v4524 = vld [vmem:[#allocation2 + $0x180] sm:$0xff]
        %v4525 = vld [vmem:[#allocation2 + $0x188] sm:$0xff]
        %v4526 = vld [vmem:[#allocation2 + $0x190] sm:$0xff]
        %v4527 = vld [vmem:[#allocation2 + $0x198] sm:$0xff]
        %v4528 = vld [vmem:[#allocation2 + $0x1a0] sm:$0xff]
        %v4529 = vld [vmem:[#allocation2 + $0x1a8] sm:$0xff]
        %v4530 = vld [vmem:[#allocation2 + $0x1b0] sm:$0xff]
        %v4531 = vld [vmem:[#allocation2 + $0x1b8] sm:$0xff]
        %v4532 = vld [vmem:[#allocation2 + $0x1c0] sm:$0xff]
        %v4533 = vld [vmem:[#allocation2 + $0x1c8] sm:$0xff]
        %v4534 = vld [vmem:[#allocation2 + $0x1d0] sm:$0xff]
        %v4535 = vld [vmem:[#allocation2 + $0x1d8] sm:$0xff]
        %v4536 = vld [vmem:[#allocation2 + $0x1e0] sm:$0xff]
        %v4537 = vld [vmem:[#allocation2 + $0x1e8] sm:$0xff]
        %v4538 = vld [vmem:[#allocation2 + $0x1f0] sm:$0xff]
        %v4539 = vld [vmem:[#allocation2 + $0x1f8] sm:$0xff]
        %v4540 = vld [vmem:[#allocation2 + $0x200] sm:$0xff]
        %v4541 = vld [vmem:[#allocation2 + $0x208] sm:$0xff]
        %v4542 = vld [vmem:[#allocation2 + $0x210] sm:$0xff]
        %v4543 = vld [vmem:[#allocation2 + $0x218] sm:$0xff]
        %v4544 = vld [vmem:[#allocation2 + $0x220] sm:$0xff]
        %v4545 = vld [vmem:[#allocation2 + $0x228] sm:$0xff]
        %v4546 = vld [vmem:[#allocation2 + $0x230] sm:$0xff]
        %v4547 = vld [vmem:[#allocation2 + $0x238] sm:$0xff]
        %v4548 = vld [vmem:[#allocation2 + $0x240] sm:$0xff]
        %v4549 = vld [vmem:[#allocation2 + $0x248] sm:$0xff]
        %v4550 = vld [vmem:[#allocation2 + $0x250] sm:$0xff]
        %v4551 = vld [vmem:[#allocation2 + $0x258] sm:$0xff]
        %v4552 = vld [vmem:[#allocation2 + $0x260] sm:$0xff]
        %v4553 = vld [vmem:[#allocation2 + $0x268] sm:$0xff]
        %v4554 = vld [vmem:[#allocation2 + $0x270] sm:$0xff]
        %v4555 = vld [vmem:[#allocation2 + $0x278] sm:$0xff]
        %v4556 = vld [vmem:[#allocation2 + $0x280] sm:$0xff]
        %v4557 = vld [vmem:[#allocation2 + $0x288] sm:$0xff]
        %v4558 = vld [vmem:[#allocation2 + $0x290] sm:$0xff]
        %v4559 = vld [vmem:[#allocation2 + $0x298] sm:$0xff]
        %v4560 = vld [vmem:[#allocation2 + $0x2a0] sm:$0xff]
        %v4561 = vld [vmem:[#allocation2 + $0x2a8] sm:$0xff]
        %v4562 = vld [vmem:[#allocation2 + $0x2b0] sm:$0xff]
        %v4563 = vld [vmem:[#allocation2 + $0x2b8] sm:$0xff]
        %v4564 = vld [vmem:[#allocation2 + $0x2c0] sm:$0xff]
        %v4565 = vld [vmem:[#allocation2 + $0x2c8] sm:$0xff]
        %v4566 = vld [vmem:[#allocation2 + $0x2d0] sm:$0xff]
        %v4567 = vld [vmem:[#allocation2 + $0x2d8] sm:$0xff]
        %v4568 = vld [vmem:[#allocation2 + $0x2e0] sm:$0xff]
        %v4569 = vld [vmem:[#allocation2 + $0x2e8] sm:$0xff]
        %v4570 = vld [vmem:[#allocation2 + $0x2f0] sm:$0xff]
        %v4571 = vld [vmem:[#allocation2 + $0x2f8] sm:$0xff]
        %v4572 = vld [vmem:[#allocation2 + $0x300] sm:$0xff]
        %v4573 = vld [vmem:[#allocation2 + $0x308] sm:$0xff]
        %v4574 = vld [vmem:[#allocation2 + $0x310] sm:$0xff]
        %v4575 = vld [vmem:[#allocation2 + $0x318] sm:$0xff]
        %v4576 = vld [vmem:[#allocation2 + $0x320] sm:$0xff]
        %v4577 = vld [vmem:[#allocation2 + $0x328] sm:$0xff]
        %v4578 = vld [vmem:[#allocation2 + $0x330] sm:$0xff]
        %v4579 = vld [vmem:[#allocation2 + $0x338] sm:$0xff]
        %v4580 = vld [vmem:[#allocation2 + $0x340] sm:$0xff]
        %v4581 = vld [vmem:[#allocation2 + $0x348] sm:$0xff]
        %v4582 = vld [vmem:[#allocation2 + $0x350] sm:$0xff]
        %v4583 = vld [vmem:[#allocation2 + $0x358] sm:$0xff]
        %v4584 = vld [vmem:[#allocation2 + $0x360] sm:$0xff]
        %v4585 = vld [vmem:[#allocation2 + $0x368] sm:$0xff]
        %v4586 = vld [vmem:[#allocation2 + $0x370] sm:$0xff]
        %v4587 = vld [vmem:[#allocation2 + $0x378] sm:$0xff]
        %v4588 = vld [vmem:[#allocation2 + $0x380] sm:$0xff]
        %v4589 = vld [vmem:[#allocation2 + $0x388] sm:$0xff]
        %v4590 = vld [vmem:[#allocation2 + $0x390] sm:$0xff]
        %v4591 = vld [vmem:[#allocation2 + $0x398] sm:$0xff]
        %v4592 = vld [vmem:[#allocation2 + $0x3a0] sm:$0xff]
        %v4593 = vld [vmem:[#allocation2 + $0x3a8] sm:$0xff]
        %v4594 = vld [vmem:[#allocation2 + $0x3b0] sm:$0xff]
        %v4595 = vld [vmem:[#allocation2 + $0x3b8] sm:$0xff]
        %v4596 = vld [vmem:[#allocation2 + $0x3c0] sm:$0xff]
        %v4597 = vld [vmem:[#allocation2 + $0x3c8] sm:$0xff]
        %v4598 = vld [vmem:[#allocation2 + $0x3d0] sm:$0xff]
        %v4599 = vld [vmem:[#allocation2 + $0x3d8] sm:$0xff]
        %v4600 = vld [vmem:[#allocation2 + $0x3e0] sm:$0xff]
        %v4601 = vld [vmem:[#allocation2 + $0x3e8] sm:$0xff]
        %v4602 = vld [vmem:[#allocation2 + $0x3f0] sm:$0xff]
        %v4603 = vld [vmem:[#allocation2 + $0x3f8] sm:$0xff]
        %v4604 = vld [vmem:[#allocation2 + $0x400] sm:$0xff]
        %v4605 = vld [vmem:[#allocation2 + $0x408] sm:$0xff]
        %v4606 = vld [vmem:[#allocation2 + $0x410] sm:$0xff]
        %v4607 = vld [vmem:[#allocation2 + $0x418] sm:$0xff]
        %v4608 = vld [vmem:[#allocation2 + $0x420] sm:$0xff]
        %v4609 = vld [vmem:[#allocation2 + $0x428] sm:$0xff]
        %v4610 = vld [vmem:[#allocation2 + $0x430] sm:$0xff]
        %v4611 = vld [vmem:[#allocation2 + $0x438] sm:$0xff]
        %v4612 = vld [vmem:[#allocation2 + $0x440] sm:$0xff]
        %v4613 = vld [vmem:[#allocation2 + $0x448] sm:$0xff]
        %v4614 = vld [vmem:[#allocation2 + $0x450] sm:$0xff]
        %v4615 = vld [vmem:[#allocation2 + $0x458] sm:$0xff]
        %v4616 = vld [vmem:[#allocation2 + $0x460] sm:$0xff]
        %v4617 = vld [vmem:[#allocation2 + $0x468] sm:$0xff]
        %v4618 = vld [vmem:[#allocation2 + $0x470] sm:$0xff]
        %v4619 = vld [vmem:[#allocation2 + $0x478] sm:$0xff]
        %v4620 = vld [vmem:[#allocation2 + $0x480] sm:$0xff]
        %v4621 = vld [vmem:[#allocation2 + $0x488] sm:$0xff]
        %v4622 = vld [vmem:[#allocation2 + $0x490] sm:$0xff]
        %v4623 = vld [vmem:[#allocation2 + $0x498] sm:$0xff]
        %v4624 = vld [vmem:[#allocation2 + $0x4a0] sm:$0xff]
        %v4625 = vld [vmem:[#allocation2 + $0x4a8] sm:$0xff]
        %v4626 = vld [vmem:[#allocation2 + $0x4b0] sm:$0xff]
        %v4627 = vld [vmem:[#allocation2 + $0x4b8] sm:$0xff]
        %v4628 = vld [vmem:[#allocation2 + $0x4c0] sm:$0xff]
        %v4629 = vld [vmem:[#allocation2 + $0x4c8] sm:$0xff]
        %v4630 = vld [vmem:[#allocation2 + $0x4d0] sm:$0xff]
        %v4631 = vld [vmem:[#allocation2 + $0x4d8] sm:$0xff]
        %v4632 = vld [vmem:[#allocation2 + $0x4e0] sm:$0xff]
        %v4633 = vld [vmem:[#allocation2 + $0x4e8] sm:$0xff]
        %v4634 = vld [vmem:[#allocation2 + $0x4f0] sm:$0xff]
        %v4635 = vld [vmem:[#allocation2 + $0x4f8] sm:$0xff]
        %v4636 = vld [vmem:[#allocation2 + $0x500] sm:$0xff]
        %v4637 = vld [vmem:[#allocation2 + $0x508] sm:$0xff]
        %v4638 = vld [vmem:[#allocation2 + $0x510] sm:$0xff]
        %v4639 = vld [vmem:[#allocation2 + $0x518] sm:$0xff]
        %v4640 = vld [vmem:[#allocation2 + $0x520] sm:$0xff]
        %v4641 = vld [vmem:[#allocation2 + $0x528] sm:$0xff]
        %v4642 = vld [vmem:[#allocation2 + $0x530] sm:$0xff]
        %v4643 = vld [vmem:[#allocation2 + $0x538] sm:$0xff]
        %v4644 = vld [vmem:[#allocation14] sm:$0xff]
        %v4645 = vld [vmem:[#allocation14 + $0x8] sm:$0xff]
        %v4646 = vld [vmem:[#allocation14 + $0x10] sm:$0xff]
        %v4647 = vld [vmem:[#allocation14 + $0x18] sm:$0xff]
        %v4648 = vld [vmem:[#allocation14 + $0x20] sm:$0xff]
        %v4649 = vld [vmem:[#allocation14 + $0x28] sm:$0xff]
        %v4650 = vld [vmem:[#allocation14 + $0x30] sm:$0xff]
        %v4651 = vld [vmem:[#allocation14 + $0x38] sm:$0xff]
        %v4652 = vld [vmem:[#allocation14 + $0x40] sm:$0xff]
        %v4653 = vld [vmem:[#allocation14 + $0x48] sm:$0xff]
        %v4654 = vld [vmem:[#allocation14 + $0x50] sm:$0xff]
        %v4655 = vld [vmem:[#allocation14 + $0x58] sm:$0xff]
        %v4656 = vld [vmem:[#allocation14 + $0x60] sm:$0xff]
        %v4657 = vld [vmem:[#allocation14 + $0x68] sm:$0xff]
        %v4658 = vld [vmem:[#allocation14 + $0x70] sm:$0xff]
        %v4659 = vld [vmem:[#allocation14 + $0x78] sm:$0xff]
        %v4660 = vld [vmem:[#allocation14 + $0x80] sm:$0xff]
        %v4661 = vld [vmem:[#allocation14 + $0x88] sm:$0xff]
        %v4662 = vld [vmem:[#allocation14 + $0x90] sm:$0xff]
        %v4663 = vld [vmem:[#allocation14 + $0x98] sm:$0xff]
        %v4664 = vld [vmem:[#allocation14 + $0xa0] sm:$0xff]
        %v4665 = vld [vmem:[#allocation14 + $0xa8] sm:$0xff]
        %v4666 = vld [vmem:[#allocation14 + $0xb0] sm:$0xff]
        %v4667 = vld [vmem:[#allocation14 + $0xb8] sm:$0xff]
        %v4668 = vld [vmem:[#allocation14 + $0xc0] sm:$0xff]
        %v4669 = vld [vmem:[#allocation14 + $0xc8] sm:$0xff]
        %v4670 = vld [vmem:[#allocation14 + $0xd0] sm:$0xff]
        %v4671 = vld [vmem:[#allocation14 + $0xd8] sm:$0xff]
        %v4672 = vld [vmem:[#allocation14 + $0xe0] sm:$0xff]
        %v4673 = vld [vmem:[#allocation14 + $0xe8] sm:$0xff]
        %v4674 = vld [vmem:[#allocation14 + $0xf0] sm:$0xff]
        %v4675 = vld [vmem:[#allocation14 + $0xf8] sm:$0xff]
        %v4676 = vld [vmem:[#allocation14 + $0x100] sm:$0xff]
        %v4677 = vld [vmem:[#allocation14 + $0x108] sm:$0xff]
        %v4678 = vld [vmem:[#allocation14 + $0x110] sm:$0xff]
        %v4679 = vld [vmem:[#allocation14 + $0x118] sm:$0xff]
        %v4680 = vld [vmem:[#allocation14 + $0x120] sm:$0xff]
        %v4681 = vld [vmem:[#allocation14 + $0x128] sm:$0xff]
        %v4682 = vld [vmem:[#allocation14 + $0x130] sm:$0xff]
        %v4683 = vld [vmem:[#allocation14 + $0x138] sm:$0xff]
        %v4684 = vld [vmem:[#allocation14 + $0x140] sm:$0xff]
        %v4685 = vld [vmem:[#allocation14 + $0x148] sm:$0xff]
        %v4686 = vld [vmem:[#allocation14 + $0x150] sm:$0xf]
        %v4687 = vld [vmem:[#allocation14 + $0x158] sm:$0xf]
        %v4688 = vld [vmem:[#allocation14 + $0x160] sm:$0xf]
        %v4689 = vld [vmem:[#allocation14 + $0x168] sm:$0xf]
        %v4690 = vld [vmem:[#allocation14 + $0x170] sm:$0xf]
        %v4691 = vld [vmem:[#allocation14 + $0x178] sm:$0xf]
        %v4692 = vld [vmem:[#allocation14 + $0x180] sm:$0xf]
        %v4693 = vld [vmem:[#allocation14 + $0x188] sm:$0xf]
        %v4694 = vld [vmem:[#allocation14 + $0x190] sm:$0xf]
        %v4695 = vld [vmem:[#allocation14 + $0x198] sm:$0xf]
        %v4696 = vld [vmem:[#allocation14 + $0x1a0] sm:$0xf]
        %v4697 = vld [vmem:[#allocation14 + $0x1a8] sm:$0xf]
        %v4698 = vld [vmem:[#allocation14 + $0x1b0] sm:$0xf]
        %v4699 = vld [vmem:[#allocation14 + $0x1b8] sm:$0xf]
        %v4700 = vld [vmem:[#allocation14 + $0x1c0] sm:$0xf]
        %v4701 = vld [vmem:[#allocation14 + $0x1c8] sm:$0xf]
        %v4702 = vld [vmem:[#allocation14 + $0x1d0] sm:$0xf]
        %v4703 = vld [vmem:[#allocation14 + $0x1d8] sm:$0xf]
        %v4704 = vld [vmem:[#allocation14 + $0x1e0] sm:$0xf]
        %v4705 = vld [vmem:[#allocation14 + $0x1e8] sm:$0xf]
        %v4706 = vld [vmem:[#allocation14 + $0x1f0] sm:$0xf]
        %v4707 = vld [vmem:[#allocation14 + $0x1f8] sm:$0xf]
        %v4708 = vld [vmem:[#allocation14 + $0x200] sm:$0xf]
        %v4709 = vld [vmem:[#allocation14 + $0x208] sm:$0xf]
        %v4710 = vld [vmem:[#allocation14 + $0x210] sm:$0xf]
        %v4711 = vld [vmem:[#allocation14 + $0x218] sm:$0xf]
        %v4712 = vld [vmem:[#allocation14 + $0x220] sm:$0xf]
        %v4713 = vld [vmem:[#allocation14 + $0x228] sm:$0xf]
        %v4714 = vld [vmem:[#allocation14 + $0x230] sm:$0xf]
        %v4715 = vld [vmem:[#allocation14 + $0x238] sm:$0xf]
        %v4716 = vld [vmem:[#allocation14 + $0x240] sm:$0xf]
        %v4717 = vld [vmem:[#allocation14 + $0x248] sm:$0xf]
        %v4718 = vld [vmem:[#allocation14 + $0x250] sm:$0xf]
        %v4719 = vld [vmem:[#allocation14 + $0x258] sm:$0xf]
        %v4720 = vld [vmem:[#allocation14 + $0x260] sm:$0xf]
        %v4721 = vld [vmem:[#allocation14 + $0x268] sm:$0xf]
        %v4722 = vld [vmem:[#allocation14 + $0x270] sm:$0xf]
        %v4723 = vld [vmem:[#allocation14 + $0x278] sm:$0xf]
        %v4724 = vld [vmem:[#allocation14 + $0x280] sm:$0xf]
        %v4725 = vld [vmem:[#allocation14 + $0x288] sm:$0xf]
        %v4726 = vld [vmem:[#allocation14 + $0x290] sm:$0xf]
        %v4727 = vld [vmem:[#allocation14 + $0x298] sm:$0xf]
        %vm4728 = vcmask 261120
        %v4730 = vsel %vm4728, %v4474, 0
        %v4733 = vsel %vm4728, %v4475, 0
        %4735 = vmatpush.msra.mxu0 0.0
        %4736 = vmatpush.msra.mxu0 0.0
        %4737 = vmatpush.msra.mxu0 0.0
        %4738 = vmatpush.msra.mxu0 0.0
        %4739 = vmatpush.msra.mxu0 0.0
        %4740 = vmatpush.msra.mxu0 0.0
        %4741 = vmatpush.msra.mxu0 0.0
        %4742 = vmatpush.msra.mxu0 0.0
        %4743 = vmatpush.msra.mxu0 0.0
        %4744 = vmatpush.msra.mxu0 0.0
        %4745 = vmatpush.msra.mxu0 0.0
        %4746 = vmatpush.msra.mxu0 0.0
        %4747 = vmatpush.msra.mxu0 %v4602
        %4748 = vmatpush.msra.mxu0 %v4560
        %4749 = vmatpush.msra.mxu0 %v4518
        %4750 = vmatpush.msra.mxu0 %v4476
        %4751 = vmatmul.f32.gmra.mxu0 %v4730
        %v4752 = vpop.f32.mrf.mxu0
        %v4753 = vadd.f32 %v4644, %v4752
        %4754 = vmatmul.f32.gmra.mxu0 %v4733
        %v4755 = vpop.f32.mrf.mxu0
        %v4756 = vadd.f32 %v4686, %v4755
        %4757 = vdwg.mxu0
        %4758 = vmatpush.msra.mxu0 0.0
        %4759 = vmatpush.msra.mxu0 0.0
        %4760 = vmatpush.msra.mxu0 0.0
        %4761 = vmatpush.msra.mxu0 0.0
        %4762 = vmatpush.msra.mxu0 0.0
        %4763 = vmatpush.msra.mxu0 0.0
        %4764 = vmatpush.msra.mxu0 0.0
        %4765 = vmatpush.msra.mxu0 0.0
        %4766 = vmatpush.msra.mxu0 0.0
        %4767 = vmatpush.msra.mxu0 0.0
        %4768 = vmatpush.msra.mxu0 0.0
        %4769 = vmatpush.msra.mxu0 0.0
        %4770 = vmatpush.msra.mxu0 %v4603
        %4771 = vmatpush.msra.mxu0 %v4561
        %4772 = vmatpush.msra.mxu0 %v4519
        %4773 = vmatpush.msra.mxu0 %v4477
        %4774 = vmatmul.f32.gmra.mxu0 %v4730
        %v4775 = vpop.f32.mrf.mxu0
        %v4776 = vadd.f32 %v4645, %v4775
        %4777 = vmatmul.f32.gmra.mxu0 %v4733
        %v4778 = vpop.f32.mrf.mxu0
        %v4779 = vadd.f32 %v4687, %v4778
        %4780 = vdwg.mxu0
        %4781 = vmatpush.msra.mxu0 0.0
        %4782 = vmatpush.msra.mxu0 0.0
        %4783 = vmatpush.msra.mxu0 0.0
        %4784 = vmatpush.msra.mxu0 0.0
        %4785 = vmatpush.msra.mxu0 0.0
        %4786 = vmatpush.msra.mxu0 0.0
        %4787 = vmatpush.msra.mxu0 0.0
        %4788 = vmatpush.msra.mxu0 0.0
        %4789 = vmatpush.msra.mxu0 0.0
        %4790 = vmatpush.msra.mxu0 0.0
        %4791 = vmatpush.msra.mxu0 0.0
        %4792 = vmatpush.msra.mxu0 0.0
        %4793 = vmatpush.msra.mxu0 %v4604
        %4794 = vmatpush.msra.mxu0 %v4562
        %4795 = vmatpush.msra.mxu0 %v4520
        %4796 = vmatpush.msra.mxu0 %v4478
        %4797 = vmatmul.f32.gmra.mxu0 %v4730
        %v4798 = vpop.f32.mrf.mxu0
        %v4799 = vadd.f32 %v4646, %v4798
        %4800 = vmatmul.f32.gmra.mxu0 %v4733
        %v4801 = vpop.f32.mrf.mxu0
        %v4802 = vadd.f32 %v4688, %v4801
        %4803 = vdwg.mxu0
        %4804 = vmatpush.msra.mxu0 0.0
        %4805 = vmatpush.msra.mxu0 0.0
        %4806 = vmatpush.msra.mxu0 0.0
        %4807 = vmatpush.msra.mxu0 0.0
        %4808 = vmatpush.msra.mxu0 0.0
        %4809 = vmatpush.msra.mxu0 0.0
        %4810 = vmatpush.msra.mxu0 0.0
        %4811 = vmatpush.msra.mxu0 0.0
        %4812 = vmatpush.msra.mxu0 0.0
        %4813 = vmatpush.msra.mxu0 0.0
        %4814 = vmatpush.msra.mxu0 0.0
        %4815 = vmatpush.msra.mxu0 0.0
        %4816 = vmatpush.msra.mxu0 %v4605
        %4817 = vmatpush.msra.mxu0 %v4563
        %4818 = vmatpush.msra.mxu0 %v4521
        %4819 = vmatpush.msra.mxu0 %v4479
        %4820 = vmatmul.f32.gmra.mxu0 %v4730
        %v4821 = vpop.f32.mrf.mxu0
        %v4822 = vadd.f32 %v4647, %v4821
        %4823 = vmatmul.f32.gmra.mxu0 %v4733
        %v4824 = vpop.f32.mrf.mxu0
        %v4825 = vadd.f32 %v4689, %v4824
        %4826 = vdwg.mxu0
        %4827 = vmatpush.msra.mxu0 0.0
        %4828 = vmatpush.msra.mxu0 0.0
        %4829 = vmatpush.msra.mxu0 0.0
        %4830 = vmatpush.msra.mxu0 0.0
        %4831 = vmatpush.msra.mxu0 0.0
        %4832 = vmatpush.msra.mxu0 0.0
        %4833 = vmatpush.msra.mxu0 0.0
        %4834 = vmatpush.msra.mxu0 0.0
        %4835 = vmatpush.msra.mxu0 0.0
        %4836 = vmatpush.msra.mxu0 0.0
        %4837 = vmatpush.msra.mxu0 0.0
        %4838 = vmatpush.msra.mxu0 0.0
        %4839 = vmatpush.msra.mxu0 %v4606
        %4840 = vmatpush.msra.mxu0 %v4564
        %4841 = vmatpush.msra.mxu0 %v4522
        %4842 = vmatpush.msra.mxu0 %v4480
        %4843 = vmatmul.f32.gmra.mxu0 %v4730
        %v4844 = vpop.f32.mrf.mxu0
        %v4845 = vadd.f32 %v4648, %v4844
        %4846 = vmatmul.f32.gmra.mxu0 %v4733
        %v4847 = vpop.f32.mrf.mxu0
        %v4848 = vadd.f32 %v4690, %v4847
        %4849 = vdwg.mxu0
        %4850 = vmatpush.msra.mxu0 0.0
        %4851 = vmatpush.msra.mxu0 0.0
        %4852 = vmatpush.msra.mxu0 0.0
        %4853 = vmatpush.msra.mxu0 0.0
        %4854 = vmatpush.msra.mxu0 0.0
        %4855 = vmatpush.msra.mxu0 0.0
        %4856 = vmatpush.msra.mxu0 0.0
        %4857 = vmatpush.msra.mxu0 0.0
        %4858 = vmatpush.msra.mxu0 0.0
        %4859 = vmatpush.msra.mxu0 0.0
        %4860 = vmatpush.msra.mxu0 0.0
        %4861 = vmatpush.msra.mxu0 0.0
        %4862 = vmatpush.msra.mxu0 %v4607
        %4863 = vmatpush.msra.mxu0 %v4565
        %4864 = vmatpush.msra.mxu0 %v4523
        %4865 = vmatpush.msra.mxu0 %v4481
        %4866 = vmatmul.f32.gmra.mxu0 %v4730
        %v4867 = vpop.f32.mrf.mxu0
        %v4868 = vadd.f32 %v4649, %v4867
        %4869 = vmatmul.f32.gmra.mxu0 %v4733
        %v4870 = vpop.f32.mrf.mxu0
        %v4871 = vadd.f32 %v4691, %v4870
        %4872 = vdwg.mxu0
        %4873 = vmatpush.msra.mxu0 0.0
        %4874 = vmatpush.msra.mxu0 0.0
        %4875 = vmatpush.msra.mxu0 0.0
        %4876 = vmatpush.msra.mxu0 0.0
        %4877 = vmatpush.msra.mxu0 0.0
        %4878 = vmatpush.msra.mxu0 0.0
        %4879 = vmatpush.msra.mxu0 0.0
        %4880 = vmatpush.msra.mxu0 0.0
        %4881 = vmatpush.msra.mxu0 0.0
        %4882 = vmatpush.msra.mxu0 0.0
        %4883 = vmatpush.msra.mxu0 0.0
        %4884 = vmatpush.msra.mxu0 0.0
        %4885 = vmatpush.msra.mxu0 %v4608
        %4886 = vmatpush.msra.mxu0 %v4566
        %4887 = vmatpush.msra.mxu0 %v4524
        %4888 = vmatpush.msra.mxu0 %v4482
        %4889 = vmatmul.f32.gmra.mxu0 %v4730
        %v4890 = vpop.f32.mrf.mxu0
        %v4891 = vadd.f32 %v4650, %v4890
        %4892 = vmatmul.f32.gmra.mxu0 %v4733
        %v4893 = vpop.f32.mrf.mxu0
        %v4894 = vadd.f32 %v4692, %v4893
        %4895 = vdwg.mxu0
        %4896 = vmatpush.msra.mxu0 0.0
        %4897 = vmatpush.msra.mxu0 0.0
        %4898 = vmatpush.msra.mxu0 0.0
        %4899 = vmatpush.msra.mxu0 0.0
        %4900 = vmatpush.msra.mxu0 0.0
        %4901 = vmatpush.msra.mxu0 0.0
        %4902 = vmatpush.msra.mxu0 0.0
        %4903 = vmatpush.msra.mxu0 0.0
        %4904 = vmatpush.msra.mxu0 0.0
        %4905 = vmatpush.msra.mxu0 0.0
        %4906 = vmatpush.msra.mxu0 0.0
        %4907 = vmatpush.msra.mxu0 0.0
        %4908 = vmatpush.msra.mxu0 %v4609
        %4909 = vmatpush.msra.mxu0 %v4567
        %4910 = vmatpush.msra.mxu0 %v4525
        %4911 = vmatpush.msra.mxu0 %v4483
        %4912 = vmatmul.f32.gmra.mxu0 %v4730
        %v4913 = vpop.f32.mrf.mxu0
        %v4914 = vadd.f32 %v4651, %v4913
        %4915 = vmatmul.f32.gmra.mxu0 %v4733
        %v4916 = vpop.f32.mrf.mxu0
        %v4917 = vadd.f32 %v4693, %v4916
        %4918 = vdwg.mxu0
        %4919 = vmatpush.msra.mxu0 0.0
        %4920 = vmatpush.msra.mxu0 0.0
        %4921 = vmatpush.msra.mxu0 0.0
        %4922 = vmatpush.msra.mxu0 0.0
        %4923 = vmatpush.msra.mxu0 0.0
        %4924 = vmatpush.msra.mxu0 0.0
        %4925 = vmatpush.msra.mxu0 0.0
        %4926 = vmatpush.msra.mxu0 0.0
        %4927 = vmatpush.msra.mxu0 0.0
        %4928 = vmatpush.msra.mxu0 0.0
        %4929 = vmatpush.msra.mxu0 0.0
        %4930 = vmatpush.msra.mxu0 0.0
        %4931 = vmatpush.msra.mxu0 %v4610
        %4932 = vmatpush.msra.mxu0 %v4568
        %4933 = vmatpush.msra.mxu0 %v4526
        %4934 = vmatpush.msra.mxu0 %v4484
        %4935 = vmatmul.f32.gmra.mxu0 %v4730
        %v4936 = vpop.f32.mrf.mxu0
        %v4937 = vadd.f32 %v4652, %v4936
        %4938 = vmatmul.f32.gmra.mxu0 %v4733
        %v4939 = vpop.f32.mrf.mxu0
        %v4940 = vadd.f32 %v4694, %v4939
        %4941 = vdwg.mxu0
        %4942 = vmatpush.msra.mxu0 0.0
        %4943 = vmatpush.msra.mxu0 0.0
        %4944 = vmatpush.msra.mxu0 0.0
        %4945 = vmatpush.msra.mxu0 0.0
        %4946 = vmatpush.msra.mxu0 0.0
        %4947 = vmatpush.msra.mxu0 0.0
        %4948 = vmatpush.msra.mxu0 0.0
        %4949 = vmatpush.msra.mxu0 0.0
        %4950 = vmatpush.msra.mxu0 0.0
        %4951 = vmatpush.msra.mxu0 0.0
        %4952 = vmatpush.msra.mxu0 0.0
        %4953 = vmatpush.msra.mxu0 0.0
        %4954 = vmatpush.msra.mxu0 %v4611
        %4955 = vmatpush.msra.mxu0 %v4569
        %4956 = vmatpush.msra.mxu0 %v4527
        %4957 = vmatpush.msra.mxu0 %v4485
        %4958 = vmatmul.f32.gmra.mxu0 %v4730
        %v4959 = vpop.f32.mrf.mxu0
        %v4960 = vadd.f32 %v4653, %v4959
        %4961 = vmatmul.f32.gmra.mxu0 %v4733
        %v4962 = vpop.f32.mrf.mxu0
        %v4963 = vadd.f32 %v4695, %v4962
        %4964 = vdwg.mxu0
        %4965 = vmatpush.msra.mxu0 0.0
        %4966 = vmatpush.msra.mxu0 0.0
        %4967 = vmatpush.msra.mxu0 0.0
        %4968 = vmatpush.msra.mxu0 0.0
        %4969 = vmatpush.msra.mxu0 0.0
        %4970 = vmatpush.msra.mxu0 0.0
        %4971 = vmatpush.msra.mxu0 0.0
        %4972 = vmatpush.msra.mxu0 0.0
        %4973 = vmatpush.msra.mxu0 0.0
        %4974 = vmatpush.msra.mxu0 0.0
        %4975 = vmatpush.msra.mxu0 0.0
        %4976 = vmatpush.msra.mxu0 0.0
        %4977 = vmatpush.msra.mxu0 %v4612
        %4978 = vmatpush.msra.mxu0 %v4570
        %4979 = vmatpush.msra.mxu0 %v4528
        %4980 = vmatpush.msra.mxu0 %v4486
        %4981 = vmatmul.f32.gmra.mxu0 %v4730
        %v4982 = vpop.f32.mrf.mxu0
        %v4983 = vadd.f32 %v4654, %v4982
        %4984 = vmatmul.f32.gmra.mxu0 %v4733
        %v4985 = vpop.f32.mrf.mxu0
        %v4986 = vadd.f32 %v4696, %v4985
        %4987 = vdwg.mxu0
        %4988 = vmatpush.msra.mxu0 0.0
        %4989 = vmatpush.msra.mxu0 0.0
        %4990 = vmatpush.msra.mxu0 0.0
        %4991 = vmatpush.msra.mxu0 0.0
        %4992 = vmatpush.msra.mxu0 0.0
        %4993 = vmatpush.msra.mxu0 0.0
        %4994 = vmatpush.msra.mxu0 0.0
        %4995 = vmatpush.msra.mxu0 0.0
        %4996 = vmatpush.msra.mxu0 0.0
        %4997 = vmatpush.msra.mxu0 0.0
        %4998 = vmatpush.msra.mxu0 0.0
        %4999 = vmatpush.msra.mxu0 0.0
        %5000 = vmatpush.msra.mxu0 %v4613
        %5001 = vmatpush.msra.mxu0 %v4571
        %5002 = vmatpush.msra.mxu0 %v4529
        %5003 = vmatpush.msra.mxu0 %v4487
        %5004 = vmatmul.f32.gmra.mxu0 %v4730
        %v5005 = vpop.f32.mrf.mxu0
        %v5006 = vadd.f32 %v4655, %v5005
        %5007 = vmatmul.f32.gmra.mxu0 %v4733
        %v5008 = vpop.f32.mrf.mxu0
        %v5009 = vadd.f32 %v4697, %v5008
        %5010 = vdwg.mxu0
        %5011 = vmatpush.msra.mxu0 0.0
        %5012 = vmatpush.msra.mxu0 0.0
        %5013 = vmatpush.msra.mxu0 0.0
        %5014 = vmatpush.msra.mxu0 0.0
        %5015 = vmatpush.msra.mxu0 0.0
        %5016 = vmatpush.msra.mxu0 0.0
        %5017 = vmatpush.msra.mxu0 0.0
        %5018 = vmatpush.msra.mxu0 0.0
        %5019 = vmatpush.msra.mxu0 0.0
        %5020 = vmatpush.msra.mxu0 0.0
        %5021 = vmatpush.msra.mxu0 0.0
        %5022 = vmatpush.msra.mxu0 0.0
        %5023 = vmatpush.msra.mxu0 %v4614
        %5024 = vmatpush.msra.mxu0 %v4572
        %5025 = vmatpush.msra.mxu0 %v4530
        %5026 = vmatpush.msra.mxu0 %v4488
        %5027 = vmatmul.f32.gmra.mxu0 %v4730
        %v5028 = vpop.f32.mrf.mxu0
        %v5029 = vadd.f32 %v4656, %v5028
        %5030 = vmatmul.f32.gmra.mxu0 %v4733
        %v5031 = vpop.f32.mrf.mxu0
        %v5032 = vadd.f32 %v4698, %v5031
        %5033 = vdwg.mxu0
        %5034 = vmatpush.msra.mxu0 0.0
        %5035 = vmatpush.msra.mxu0 0.0
        %5036 = vmatpush.msra.mxu0 0.0
        %5037 = vmatpush.msra.mxu0 0.0
        %5038 = vmatpush.msra.mxu0 0.0
        %5039 = vmatpush.msra.mxu0 0.0
        %5040 = vmatpush.msra.mxu0 0.0
        %5041 = vmatpush.msra.mxu0 0.0
        %5042 = vmatpush.msra.mxu0 0.0
        %5043 = vmatpush.msra.mxu0 0.0
        %5044 = vmatpush.msra.mxu0 0.0
        %5045 = vmatpush.msra.mxu0 0.0
        %5046 = vmatpush.msra.mxu0 %v4615
        %5047 = vmatpush.msra.mxu0 %v4573
        %5048 = vmatpush.msra.mxu0 %v4531
        %5049 = vmatpush.msra.mxu0 %v4489
        %5050 = vmatmul.f32.gmra.mxu0 %v4730
        %v5051 = vpop.f32.mrf.mxu0
        %v5052 = vadd.f32 %v4657, %v5051
        %5053 = vmatmul.f32.gmra.mxu0 %v4733
        %v5054 = vpop.f32.mrf.mxu0
        %v5055 = vadd.f32 %v4699, %v5054
        %5056 = vdwg.mxu0
        %5057 = vmatpush.msra.mxu0 0.0
        %5058 = vmatpush.msra.mxu0 0.0
        %5059 = vmatpush.msra.mxu0 0.0
        %5060 = vmatpush.msra.mxu0 0.0
        %5061 = vmatpush.msra.mxu0 0.0
        %5062 = vmatpush.msra.mxu0 0.0
        %5063 = vmatpush.msra.mxu0 0.0
        %5064 = vmatpush.msra.mxu0 0.0
        %5065 = vmatpush.msra.mxu0 0.0
        %5066 = vmatpush.msra.mxu0 0.0
        %5067 = vmatpush.msra.mxu0 0.0
        %5068 = vmatpush.msra.mxu0 0.0
        %5069 = vmatpush.msra.mxu0 %v4616
        %5070 = vmatpush.msra.mxu0 %v4574
        %5071 = vmatpush.msra.mxu0 %v4532
        %5072 = vmatpush.msra.mxu0 %v4490
        %5073 = vmatmul.f32.gmra.mxu0 %v4730
        %v5074 = vpop.f32.mrf.mxu0
        %v5075 = vadd.f32 %v4658, %v5074
        %5076 = vmatmul.f32.gmra.mxu0 %v4733
        %v5077 = vpop.f32.mrf.mxu0
        %v5078 = vadd.f32 %v4700, %v5077
        %5079 = vdwg.mxu0
        %5080 = vmatpush.msra.mxu0 0.0
        %5081 = vmatpush.msra.mxu0 0.0
        %5082 = vmatpush.msra.mxu0 0.0
        %5083 = vmatpush.msra.mxu0 0.0
        %5084 = vmatpush.msra.mxu0 0.0
        %5085 = vmatpush.msra.mxu0 0.0
        %5086 = vmatpush.msra.mxu0 0.0
        %5087 = vmatpush.msra.mxu0 0.0
        %5088 = vmatpush.msra.mxu0 0.0
        %5089 = vmatpush.msra.mxu0 0.0
        %5090 = vmatpush.msra.mxu0 0.0
        %5091 = vmatpush.msra.mxu0 0.0
        %5092 = vmatpush.msra.mxu0 %v4617
        %5093 = vmatpush.msra.mxu0 %v4575
        %5094 = vmatpush.msra.mxu0 %v4533
        %5095 = vmatpush.msra.mxu0 %v4491
        %5096 = vmatmul.f32.gmra.mxu0 %v4730
        %v5097 = vpop.f32.mrf.mxu0
        %v5098 = vadd.f32 %v4659, %v5097
        %5099 = vmatmul.f32.gmra.mxu0 %v4733
        %v5100 = vpop.f32.mrf.mxu0
        %v5101 = vadd.f32 %v4701, %v5100
        %5102 = vdwg.mxu0
        %5103 = vmatpush.msra.mxu0 0.0
        %5104 = vmatpush.msra.mxu0 0.0
        %5105 = vmatpush.msra.mxu0 0.0
        %5106 = vmatpush.msra.mxu0 0.0
        %5107 = vmatpush.msra.mxu0 0.0
        %5108 = vmatpush.msra.mxu0 0.0
        %5109 = vmatpush.msra.mxu0 0.0
        %5110 = vmatpush.msra.mxu0 0.0
        %5111 = vmatpush.msra.mxu0 0.0
        %5112 = vmatpush.msra.mxu0 0.0
        %5113 = vmatpush.msra.mxu0 0.0
        %5114 = vmatpush.msra.mxu0 0.0
        %5115 = vmatpush.msra.mxu0 %v4618
        %5116 = vmatpush.msra.mxu0 %v4576
        %5117 = vmatpush.msra.mxu0 %v4534
        %5118 = vmatpush.msra.mxu0 %v4492
        %5119 = vmatmul.f32.gmra.mxu0 %v4730
        %v5120 = vpop.f32.mrf.mxu0
        %v5121 = vadd.f32 %v4660, %v5120
        %5122 = vmatmul.f32.gmra.mxu0 %v4733
        %v5123 = vpop.f32.mrf.mxu0
        %v5124 = vadd.f32 %v4702, %v5123
        %5125 = vdwg.mxu0
        %5126 = vmatpush.msra.mxu0 0.0
        %5127 = vmatpush.msra.mxu0 0.0
        %5128 = vmatpush.msra.mxu0 0.0
        %5129 = vmatpush.msra.mxu0 0.0
        %5130 = vmatpush.msra.mxu0 0.0
        %5131 = vmatpush.msra.mxu0 0.0
        %5132 = vmatpush.msra.mxu0 0.0
        %5133 = vmatpush.msra.mxu0 0.0
        %5134 = vmatpush.msra.mxu0 0.0
        %5135 = vmatpush.msra.mxu0 0.0
        %5136 = vmatpush.msra.mxu0 0.0
        %5137 = vmatpush.msra.mxu0 0.0
        %5138 = vmatpush.msra.mxu0 %v4619
        %5139 = vmatpush.msra.mxu0 %v4577
        %5140 = vmatpush.msra.mxu0 %v4535
        %5141 = vmatpush.msra.mxu0 %v4493
        %5142 = vmatmul.f32.gmra.mxu0 %v4730
        %v5143 = vpop.f32.mrf.mxu0
        %v5144 = vadd.f32 %v4661, %v5143
        %5145 = vmatmul.f32.gmra.mxu0 %v4733
        %v5146 = vpop.f32.mrf.mxu0
        %v5147 = vadd.f32 %v4703, %v5146
        %5148 = vdwg.mxu0
        %5149 = vmatpush.msra.mxu0 0.0
        %5150 = vmatpush.msra.mxu0 0.0
        %5151 = vmatpush.msra.mxu0 0.0
        %5152 = vmatpush.msra.mxu0 0.0
        %5153 = vmatpush.msra.mxu0 0.0
        %5154 = vmatpush.msra.mxu0 0.0
        %5155 = vmatpush.msra.mxu0 0.0
        %5156 = vmatpush.msra.mxu0 0.0
        %5157 = vmatpush.msra.mxu0 0.0
        %5158 = vmatpush.msra.mxu0 0.0
        %5159 = vmatpush.msra.mxu0 0.0
        %5160 = vmatpush.msra.mxu0 0.0
        %5161 = vmatpush.msra.mxu0 %v4620
        %5162 = vmatpush.msra.mxu0 %v4578
        %5163 = vmatpush.msra.mxu0 %v4536
        %5164 = vmatpush.msra.mxu0 %v4494
        %5165 = vmatmul.f32.gmra.mxu0 %v4730
        %v5166 = vpop.f32.mrf.mxu0
        %v5167 = vadd.f32 %v4662, %v5166
        %5168 = vmatmul.f32.gmra.mxu0 %v4733
        %v5169 = vpop.f32.mrf.mxu0
        %v5170 = vadd.f32 %v4704, %v5169
        %5171 = vdwg.mxu0
        %5172 = vmatpush.msra.mxu0 0.0
        %5173 = vmatpush.msra.mxu0 0.0
        %5174 = vmatpush.msra.mxu0 0.0
        %5175 = vmatpush.msra.mxu0 0.0
        %5176 = vmatpush.msra.mxu0 0.0
        %5177 = vmatpush.msra.mxu0 0.0
        %5178 = vmatpush.msra.mxu0 0.0
        %5179 = vmatpush.msra.mxu0 0.0
        %5180 = vmatpush.msra.mxu0 0.0
        %5181 = vmatpush.msra.mxu0 0.0
        %5182 = vmatpush.msra.mxu0 0.0
        %5183 = vmatpush.msra.mxu0 0.0
        %5184 = vmatpush.msra.mxu0 %v4621
        %5185 = vmatpush.msra.mxu0 %v4579
        %5186 = vmatpush.msra.mxu0 %v4537
        %5187 = vmatpush.msra.mxu0 %v4495
        %5188 = vmatmul.f32.gmra.mxu0 %v4730
        %v5189 = vpop.f32.mrf.mxu0
        %v5190 = vadd.f32 %v4663, %v5189
        %5191 = vmatmul.f32.gmra.mxu0 %v4733
        %v5192 = vpop.f32.mrf.mxu0
        %v5193 = vadd.f32 %v4705, %v5192
        %5194 = vdwg.mxu0
        %5195 = vmatpush.msra.mxu0 0.0
        %5196 = vmatpush.msra.mxu0 0.0
        %5197 = vmatpush.msra.mxu0 0.0
        %5198 = vmatpush.msra.mxu0 0.0
        %5199 = vmatpush.msra.mxu0 0.0
        %5200 = vmatpush.msra.mxu0 0.0
        %5201 = vmatpush.msra.mxu0 0.0
        %5202 = vmatpush.msra.mxu0 0.0
        %5203 = vmatpush.msra.mxu0 0.0
        %5204 = vmatpush.msra.mxu0 0.0
        %5205 = vmatpush.msra.mxu0 0.0
        %5206 = vmatpush.msra.mxu0 0.0
        %5207 = vmatpush.msra.mxu0 %v4622
        %5208 = vmatpush.msra.mxu0 %v4580
        %5209 = vmatpush.msra.mxu0 %v4538
        %5210 = vmatpush.msra.mxu0 %v4496
        %5211 = vmatmul.f32.gmra.mxu0 %v4730
        %v5212 = vpop.f32.mrf.mxu0
        %v5213 = vadd.f32 %v4664, %v5212
        %5214 = vmatmul.f32.gmra.mxu0 %v4733
        %v5215 = vpop.f32.mrf.mxu0
        %v5216 = vadd.f32 %v4706, %v5215
        %5217 = vdwg.mxu0
        %5218 = vmatpush.msra.mxu0 0.0
        %5219 = vmatpush.msra.mxu0 0.0
        %5220 = vmatpush.msra.mxu0 0.0
        %5221 = vmatpush.msra.mxu0 0.0
        %5222 = vmatpush.msra.mxu0 0.0
        %5223 = vmatpush.msra.mxu0 0.0
        %5224 = vmatpush.msra.mxu0 0.0
        %5225 = vmatpush.msra.mxu0 0.0
        %5226 = vmatpush.msra.mxu0 0.0
        %5227 = vmatpush.msra.mxu0 0.0
        %5228 = vmatpush.msra.mxu0 0.0
        %5229 = vmatpush.msra.mxu0 0.0
        %5230 = vmatpush.msra.mxu0 %v4623
        %5231 = vmatpush.msra.mxu0 %v4581
        %5232 = vmatpush.msra.mxu0 %v4539
        %5233 = vmatpush.msra.mxu0 %v4497
        %5234 = vmatmul.f32.gmra.mxu0 %v4730
        %v5235 = vpop.f32.mrf.mxu0
        %v5236 = vadd.f32 %v4665, %v5235
        %5237 = vmatmul.f32.gmra.mxu0 %v4733
        %v5238 = vpop.f32.mrf.mxu0
        %v5239 = vadd.f32 %v4707, %v5238
        %5240 = vdwg.mxu0
        %5241 = vmatpush.msra.mxu0 0.0
        %5242 = vmatpush.msra.mxu0 0.0
        %5243 = vmatpush.msra.mxu0 0.0
        %5244 = vmatpush.msra.mxu0 0.0
        %5245 = vmatpush.msra.mxu0 0.0
        %5246 = vmatpush.msra.mxu0 0.0
        %5247 = vmatpush.msra.mxu0 0.0
        %5248 = vmatpush.msra.mxu0 0.0
        %5249 = vmatpush.msra.mxu0 0.0
        %5250 = vmatpush.msra.mxu0 0.0
        %5251 = vmatpush.msra.mxu0 0.0
        %5252 = vmatpush.msra.mxu0 0.0
        %5253 = vmatpush.msra.mxu0 %v4624
        %5254 = vmatpush.msra.mxu0 %v4582
        %5255 = vmatpush.msra.mxu0 %v4540
        %5256 = vmatpush.msra.mxu0 %v4498
        %5257 = vmatmul.f32.gmra.mxu0 %v4730
        %v5258 = vpop.f32.mrf.mxu0
        %v5259 = vadd.f32 %v4666, %v5258
        %5260 = vmatmul.f32.gmra.mxu0 %v4733
        %v5261 = vpop.f32.mrf.mxu0
        %v5262 = vadd.f32 %v4708, %v5261
        %5263 = vdwg.mxu0
        %5264 = vmatpush.msra.mxu0 0.0
        %5265 = vmatpush.msra.mxu0 0.0
        %5266 = vmatpush.msra.mxu0 0.0
        %5267 = vmatpush.msra.mxu0 0.0
        %5268 = vmatpush.msra.mxu0 0.0
        %5269 = vmatpush.msra.mxu0 0.0
        %5270 = vmatpush.msra.mxu0 0.0
        %5271 = vmatpush.msra.mxu0 0.0
        %5272 = vmatpush.msra.mxu0 0.0
        %5273 = vmatpush.msra.mxu0 0.0
        %5274 = vmatpush.msra.mxu0 0.0
        %5275 = vmatpush.msra.mxu0 0.0
        %5276 = vmatpush.msra.mxu0 %v4625
        %5277 = vmatpush.msra.mxu0 %v4583
        %5278 = vmatpush.msra.mxu0 %v4541
        %5279 = vmatpush.msra.mxu0 %v4499
        %5280 = vmatmul.f32.gmra.mxu0 %v4730
        %v5281 = vpop.f32.mrf.mxu0
        %v5282 = vadd.f32 %v4667, %v5281
        %5283 = vmatmul.f32.gmra.mxu0 %v4733
        %v5284 = vpop.f32.mrf.mxu0
        %v5285 = vadd.f32 %v4709, %v5284
        %5286 = vdwg.mxu0
        %5287 = vmatpush.msra.mxu0 0.0
        %5288 = vmatpush.msra.mxu0 0.0
        %5289 = vmatpush.msra.mxu0 0.0
        %5290 = vmatpush.msra.mxu0 0.0
        %5291 = vmatpush.msra.mxu0 0.0
        %5292 = vmatpush.msra.mxu0 0.0
        %5293 = vmatpush.msra.mxu0 0.0
        %5294 = vmatpush.msra.mxu0 0.0
        %5295 = vmatpush.msra.mxu0 0.0
        %5296 = vmatpush.msra.mxu0 0.0
        %5297 = vmatpush.msra.mxu0 0.0
        %5298 = vmatpush.msra.mxu0 0.0
        %5299 = vmatpush.msra.mxu0 %v4626
        %5300 = vmatpush.msra.mxu0 %v4584
        %5301 = vmatpush.msra.mxu0 %v4542
        %5302 = vmatpush.msra.mxu0 %v4500
        %5303 = vmatmul.f32.gmra.mxu0 %v4730
        %v5304 = vpop.f32.mrf.mxu0
        %v5305 = vadd.f32 %v4668, %v5304
        %5306 = vmatmul.f32.gmra.mxu0 %v4733
        %v5307 = vpop.f32.mrf.mxu0
        %v5308 = vadd.f32 %v4710, %v5307
        %5309 = vdwg.mxu0
        %5310 = vmatpush.msra.mxu0 0.0
        %5311 = vmatpush.msra.mxu0 0.0
        %5312 = vmatpush.msra.mxu0 0.0
        %5313 = vmatpush.msra.mxu0 0.0
        %5314 = vmatpush.msra.mxu0 0.0
        %5315 = vmatpush.msra.mxu0 0.0
        %5316 = vmatpush.msra.mxu0 0.0
        %5317 = vmatpush.msra.mxu0 0.0
        %5318 = vmatpush.msra.mxu0 0.0
        %5319 = vmatpush.msra.mxu0 0.0
        %5320 = vmatpush.msra.mxu0 0.0
        %5321 = vmatpush.msra.mxu0 0.0
        %5322 = vmatpush.msra.mxu0 %v4627
        %5323 = vmatpush.msra.mxu0 %v4585
        %5324 = vmatpush.msra.mxu0 %v4543
        %5325 = vmatpush.msra.mxu0 %v4501
        %5326 = vmatmul.f32.gmra.mxu0 %v4730
        %v5327 = vpop.f32.mrf.mxu0
        %v5328 = vadd.f32 %v4669, %v5327
        %5329 = vmatmul.f32.gmra.mxu0 %v4733
        %v5330 = vpop.f32.mrf.mxu0
        %v5331 = vadd.f32 %v4711, %v5330
        %5332 = vdwg.mxu0
        %5333 = vmatpush.msra.mxu0 0.0
        %5334 = vmatpush.msra.mxu0 0.0
        %5335 = vmatpush.msra.mxu0 0.0
        %5336 = vmatpush.msra.mxu0 0.0
        %5337 = vmatpush.msra.mxu0 0.0
        %5338 = vmatpush.msra.mxu0 0.0
        %5339 = vmatpush.msra.mxu0 0.0
        %5340 = vmatpush.msra.mxu0 0.0
        %5341 = vmatpush.msra.mxu0 0.0
        %5342 = vmatpush.msra.mxu0 0.0
        %5343 = vmatpush.msra.mxu0 0.0
        %5344 = vmatpush.msra.mxu0 0.0
        %5345 = vmatpush.msra.mxu0 %v4628
        %5346 = vmatpush.msra.mxu0 %v4586
        %5347 = vmatpush.msra.mxu0 %v4544
        %5348 = vmatpush.msra.mxu0 %v4502
        %5349 = vmatmul.f32.gmra.mxu0 %v4730
        %v5350 = vpop.f32.mrf.mxu0
        %v5351 = vadd.f32 %v4670, %v5350
        %5352 = vmatmul.f32.gmra.mxu0 %v4733
        %v5353 = vpop.f32.mrf.mxu0
        %v5354 = vadd.f32 %v4712, %v5353
        %5355 = vdwg.mxu0
        %5356 = vmatpush.msra.mxu0 0.0
        %5357 = vmatpush.msra.mxu0 0.0
        %5358 = vmatpush.msra.mxu0 0.0
        %5359 = vmatpush.msra.mxu0 0.0
        %5360 = vmatpush.msra.mxu0 0.0
        %5361 = vmatpush.msra.mxu0 0.0
        %5362 = vmatpush.msra.mxu0 0.0
        %5363 = vmatpush.msra.mxu0 0.0
        %5364 = vmatpush.msra.mxu0 0.0
        %5365 = vmatpush.msra.mxu0 0.0
        %5366 = vmatpush.msra.mxu0 0.0
        %5367 = vmatpush.msra.mxu0 0.0
        %5368 = vmatpush.msra.mxu0 %v4629
        %5369 = vmatpush.msra.mxu0 %v4587
        %5370 = vmatpush.msra.mxu0 %v4545
        %5371 = vmatpush.msra.mxu0 %v4503
        %5372 = vmatmul.f32.gmra.mxu0 %v4730
        %v5373 = vpop.f32.mrf.mxu0
        %v5374 = vadd.f32 %v4671, %v5373
        %5375 = vmatmul.f32.gmra.mxu0 %v4733
        %v5376 = vpop.f32.mrf.mxu0
        %v5377 = vadd.f32 %v4713, %v5376
        %5378 = vdwg.mxu0
        %5379 = vmatpush.msra.mxu0 0.0
        %5380 = vmatpush.msra.mxu0 0.0
        %5381 = vmatpush.msra.mxu0 0.0
        %5382 = vmatpush.msra.mxu0 0.0
        %5383 = vmatpush.msra.mxu0 0.0
        %5384 = vmatpush.msra.mxu0 0.0
        %5385 = vmatpush.msra.mxu0 0.0
        %5386 = vmatpush.msra.mxu0 0.0
        %5387 = vmatpush.msra.mxu0 0.0
        %5388 = vmatpush.msra.mxu0 0.0
        %5389 = vmatpush.msra.mxu0 0.0
        %5390 = vmatpush.msra.mxu0 0.0
        %5391 = vmatpush.msra.mxu0 %v4630
        %5392 = vmatpush.msra.mxu0 %v4588
        %5393 = vmatpush.msra.mxu0 %v4546
        %5394 = vmatpush.msra.mxu0 %v4504
        %5395 = vmatmul.f32.gmra.mxu0 %v4730
        %v5396 = vpop.f32.mrf.mxu0
        %v5397 = vadd.f32 %v4672, %v5396
        %5398 = vmatmul.f32.gmra.mxu0 %v4733
        %v5399 = vpop.f32.mrf.mxu0
        %v5400 = vadd.f32 %v4714, %v5399
        %5401 = vdwg.mxu0
        %5402 = vmatpush.msra.mxu0 0.0
        %5403 = vmatpush.msra.mxu0 0.0
        %5404 = vmatpush.msra.mxu0 0.0
        %5405 = vmatpush.msra.mxu0 0.0
        %5406 = vmatpush.msra.mxu0 0.0
        %5407 = vmatpush.msra.mxu0 0.0
        %5408 = vmatpush.msra.mxu0 0.0
        %5409 = vmatpush.msra.mxu0 0.0
        %5410 = vmatpush.msra.mxu0 0.0
        %5411 = vmatpush.msra.mxu0 0.0
        %5412 = vmatpush.msra.mxu0 0.0
        %5413 = vmatpush.msra.mxu0 0.0
        %5414 = vmatpush.msra.mxu0 %v4631
        %5415 = vmatpush.msra.mxu0 %v4589
        %5416 = vmatpush.msra.mxu0 %v4547
        %5417 = vmatpush.msra.mxu0 %v4505
        %5418 = vmatmul.f32.gmra.mxu0 %v4730
        %v5419 = vpop.f32.mrf.mxu0
        %v5420 = vadd.f32 %v4673, %v5419
        %5421 = vmatmul.f32.gmra.mxu0 %v4733
        %v5422 = vpop.f32.mrf.mxu0
        %v5423 = vadd.f32 %v4715, %v5422
        %5424 = vdwg.mxu0
        %5425 = vmatpush.msra.mxu0 0.0
        %5426 = vmatpush.msra.mxu0 0.0
        %5427 = vmatpush.msra.mxu0 0.0
        %5428 = vmatpush.msra.mxu0 0.0
        %5429 = vmatpush.msra.mxu0 0.0
        %5430 = vmatpush.msra.mxu0 0.0
        %5431 = vmatpush.msra.mxu0 0.0
        %5432 = vmatpush.msra.mxu0 0.0
        %5433 = vmatpush.msra.mxu0 0.0
        %5434 = vmatpush.msra.mxu0 0.0
        %5435 = vmatpush.msra.mxu0 0.0
        %5436 = vmatpush.msra.mxu0 0.0
        %5437 = vmatpush.msra.mxu0 %v4632
        %5438 = vmatpush.msra.mxu0 %v4590
        %5439 = vmatpush.msra.mxu0 %v4548
        %5440 = vmatpush.msra.mxu0 %v4506
        %5441 = vmatmul.f32.gmra.mxu0 %v4730
        %v5442 = vpop.f32.mrf.mxu0
        %v5443 = vadd.f32 %v4674, %v5442
        %5444 = vmatmul.f32.gmra.mxu0 %v4733
        %v5445 = vpop.f32.mrf.mxu0
        %v5446 = vadd.f32 %v4716, %v5445
        %5447 = vdwg.mxu0
        %5448 = vmatpush.msra.mxu0 0.0
        %5449 = vmatpush.msra.mxu0 0.0
        %5450 = vmatpush.msra.mxu0 0.0
        %5451 = vmatpush.msra.mxu0 0.0
        %5452 = vmatpush.msra.mxu0 0.0
        %5453 = vmatpush.msra.mxu0 0.0
        %5454 = vmatpush.msra.mxu0 0.0
        %5455 = vmatpush.msra.mxu0 0.0
        %5456 = vmatpush.msra.mxu0 0.0
        %5457 = vmatpush.msra.mxu0 0.0
        %5458 = vmatpush.msra.mxu0 0.0
        %5459 = vmatpush.msra.mxu0 0.0
        %5460 = vmatpush.msra.mxu0 %v4633
        %5461 = vmatpush.msra.mxu0 %v4591
        %5462 = vmatpush.msra.mxu0 %v4549
        %5463 = vmatpush.msra.mxu0 %v4507
        %5464 = vmatmul.f32.gmra.mxu0 %v4730
        %v5465 = vpop.f32.mrf.mxu0
        %v5466 = vadd.f32 %v4675, %v5465
        %5467 = vmatmul.f32.gmra.mxu0 %v4733
        %v5468 = vpop.f32.mrf.mxu0
        %v5469 = vadd.f32 %v4717, %v5468
        %5470 = vdwg.mxu0
        %5471 = vmatpush.msra.mxu0 0.0
        %5472 = vmatpush.msra.mxu0 0.0
        %5473 = vmatpush.msra.mxu0 0.0
        %5474 = vmatpush.msra.mxu0 0.0
        %5475 = vmatpush.msra.mxu0 0.0
        %5476 = vmatpush.msra.mxu0 0.0
        %5477 = vmatpush.msra.mxu0 0.0
        %5478 = vmatpush.msra.mxu0 0.0
        %5479 = vmatpush.msra.mxu0 0.0
        %5480 = vmatpush.msra.mxu0 0.0
        %5481 = vmatpush.msra.mxu0 0.0
        %5482 = vmatpush.msra.mxu0 0.0
        %5483 = vmatpush.msra.mxu0 %v4634
        %5484 = vmatpush.msra.mxu0 %v4592
        %5485 = vmatpush.msra.mxu0 %v4550
        %5486 = vmatpush.msra.mxu0 %v4508
        %5487 = vmatmul.f32.gmra.mxu0 %v4730
        %v5488 = vpop.f32.mrf.mxu0
        %v5489 = vadd.f32 %v4676, %v5488
        %5490 = vmatmul.f32.gmra.mxu0 %v4733
        %v5491 = vpop.f32.mrf.mxu0
        %v5492 = vadd.f32 %v4718, %v5491
        %5493 = vdwg.mxu0
        %5494 = vmatpush.msra.mxu0 0.0
        %5495 = vmatpush.msra.mxu0 0.0
        %5496 = vmatpush.msra.mxu0 0.0
        %5497 = vmatpush.msra.mxu0 0.0
        %5498 = vmatpush.msra.mxu0 0.0
        %5499 = vmatpush.msra.mxu0 0.0
        %5500 = vmatpush.msra.mxu0 0.0
        %5501 = vmatpush.msra.mxu0 0.0
        %5502 = vmatpush.msra.mxu0 0.0
        %5503 = vmatpush.msra.mxu0 0.0
        %5504 = vmatpush.msra.mxu0 0.0
        %5505 = vmatpush.msra.mxu0 0.0
        %5506 = vmatpush.msra.mxu0 %v4635
        %5507 = vmatpush.msra.mxu0 %v4593
        %5508 = vmatpush.msra.mxu0 %v4551
        %5509 = vmatpush.msra.mxu0 %v4509
        %5510 = vmatmul.f32.gmra.mxu0 %v4730
        %v5511 = vpop.f32.mrf.mxu0
        %v5512 = vadd.f32 %v4677, %v5511
        %5513 = vmatmul.f32.gmra.mxu0 %v4733
        %v5514 = vpop.f32.mrf.mxu0
        %v5515 = vadd.f32 %v4719, %v5514
        %5516 = vdwg.mxu0
        %5517 = vmatpush.msra.mxu0 0.0
        %5518 = vmatpush.msra.mxu0 0.0
        %5519 = vmatpush.msra.mxu0 0.0
        %5520 = vmatpush.msra.mxu0 0.0
        %5521 = vmatpush.msra.mxu0 0.0
        %5522 = vmatpush.msra.mxu0 0.0
        %5523 = vmatpush.msra.mxu0 0.0
        %5524 = vmatpush.msra.mxu0 0.0
        %5525 = vmatpush.msra.mxu0 0.0
        %5526 = vmatpush.msra.mxu0 0.0
        %5527 = vmatpush.msra.mxu0 0.0
        %5528 = vmatpush.msra.mxu0 0.0
        %5529 = vmatpush.msra.mxu0 %v4636
        %5530 = vmatpush.msra.mxu0 %v4594
        %5531 = vmatpush.msra.mxu0 %v4552
        %5532 = vmatpush.msra.mxu0 %v4510
        %5533 = vmatmul.f32.gmra.mxu0 %v4730
        %v5534 = vpop.f32.mrf.mxu0
        %v5535 = vadd.f32 %v4678, %v5534
        %5536 = vmatmul.f32.gmra.mxu0 %v4733
        %v5537 = vpop.f32.mrf.mxu0
        %v5538 = vadd.f32 %v4720, %v5537
        %5539 = vdwg.mxu0
        %5540 = vmatpush.msra.mxu0 0.0
        %5541 = vmatpush.msra.mxu0 0.0
        %5542 = vmatpush.msra.mxu0 0.0
        %5543 = vmatpush.msra.mxu0 0.0
        %5544 = vmatpush.msra.mxu0 0.0
        %5545 = vmatpush.msra.mxu0 0.0
        %5546 = vmatpush.msra.mxu0 0.0
        %5547 = vmatpush.msra.mxu0 0.0
        %5548 = vmatpush.msra.mxu0 0.0
        %5549 = vmatpush.msra.mxu0 0.0
        %5550 = vmatpush.msra.mxu0 0.0
        %5551 = vmatpush.msra.mxu0 0.0
        %5552 = vmatpush.msra.mxu0 %v4637
        %5553 = vmatpush.msra.mxu0 %v4595
        %5554 = vmatpush.msra.mxu0 %v4553
        %5555 = vmatpush.msra.mxu0 %v4511
        %5556 = vmatmul.f32.gmra.mxu0 %v4730
        %v5557 = vpop.f32.mrf.mxu0
        %v5558 = vadd.f32 %v4679, %v5557
        %5559 = vmatmul.f32.gmra.mxu0 %v4733
        %v5560 = vpop.f32.mrf.mxu0
        %v5561 = vadd.f32 %v4721, %v5560
        %5562 = vdwg.mxu0
        %5563 = vmatpush.msra.mxu0 0.0
        %5564 = vmatpush.msra.mxu0 0.0
        %5565 = vmatpush.msra.mxu0 0.0
        %5566 = vmatpush.msra.mxu0 0.0
        %5567 = vmatpush.msra.mxu0 0.0
        %5568 = vmatpush.msra.mxu0 0.0
        %5569 = vmatpush.msra.mxu0 0.0
        %5570 = vmatpush.msra.mxu0 0.0
        %5571 = vmatpush.msra.mxu0 0.0
        %5572 = vmatpush.msra.mxu0 0.0
        %5573 = vmatpush.msra.mxu0 0.0
        %5574 = vmatpush.msra.mxu0 0.0
        %5575 = vmatpush.msra.mxu0 %v4638
        %5576 = vmatpush.msra.mxu0 %v4596
        %5577 = vmatpush.msra.mxu0 %v4554
        %5578 = vmatpush.msra.mxu0 %v4512
        %5579 = vmatmul.f32.gmra.mxu0 %v4730
        %v5580 = vpop.f32.mrf.mxu0
        %v5581 = vadd.f32 %v4680, %v5580
        %5582 = vmatmul.f32.gmra.mxu0 %v4733
        %v5583 = vpop.f32.mrf.mxu0
        %v5584 = vadd.f32 %v4722, %v5583
        %5585 = vdwg.mxu0
        %5586 = vmatpush.msra.mxu0 0.0
        %5587 = vmatpush.msra.mxu0 0.0
        %5588 = vmatpush.msra.mxu0 0.0
        %5589 = vmatpush.msra.mxu0 0.0
        %5590 = vmatpush.msra.mxu0 0.0
        %5591 = vmatpush.msra.mxu0 0.0
        %5592 = vmatpush.msra.mxu0 0.0
        %5593 = vmatpush.msra.mxu0 0.0
        %5594 = vmatpush.msra.mxu0 0.0
        %5595 = vmatpush.msra.mxu0 0.0
        %5596 = vmatpush.msra.mxu0 0.0
        %5597 = vmatpush.msra.mxu0 0.0
        %5598 = vmatpush.msra.mxu0 %v4639
        %5599 = vmatpush.msra.mxu0 %v4597
        %5600 = vmatpush.msra.mxu0 %v4555
        %5601 = vmatpush.msra.mxu0 %v4513
        %5602 = vmatmul.f32.gmra.mxu0 %v4730
        %v5603 = vpop.f32.mrf.mxu0
        %v5604 = vadd.f32 %v4681, %v5603
        %5605 = vmatmul.f32.gmra.mxu0 %v4733
        %v5606 = vpop.f32.mrf.mxu0
        %v5607 = vadd.f32 %v4723, %v5606
        %5608 = vdwg.mxu0
        %5609 = vmatpush.msra.mxu0 0.0
        %5610 = vmatpush.msra.mxu0 0.0
        %5611 = vmatpush.msra.mxu0 0.0
        %5612 = vmatpush.msra.mxu0 0.0
        %5613 = vmatpush.msra.mxu0 0.0
        %5614 = vmatpush.msra.mxu0 0.0
        %5615 = vmatpush.msra.mxu0 0.0
        %5616 = vmatpush.msra.mxu0 0.0
        %5617 = vmatpush.msra.mxu0 0.0
        %5618 = vmatpush.msra.mxu0 0.0
        %5619 = vmatpush.msra.mxu0 0.0
        %5620 = vmatpush.msra.mxu0 0.0
        %5621 = vmatpush.msra.mxu0 %v4640
        %5622 = vmatpush.msra.mxu0 %v4598
        %5623 = vmatpush.msra.mxu0 %v4556
        %5624 = vmatpush.msra.mxu0 %v4514
        %5625 = vmatmul.f32.gmra.mxu0 %v4730
        %v5626 = vpop.f32.mrf.mxu0
        %v5627 = vadd.f32 %v4682, %v5626
        %5628 = vmatmul.f32.gmra.mxu0 %v4733
        %v5629 = vpop.f32.mrf.mxu0
        %v5630 = vadd.f32 %v4724, %v5629
        %5631 = vdwg.mxu0
        %5632 = vmatpush.msra.mxu0 0.0
        %5633 = vmatpush.msra.mxu0 0.0
        %5634 = vmatpush.msra.mxu0 0.0
        %5635 = vmatpush.msra.mxu0 0.0
        %5636 = vmatpush.msra.mxu0 0.0
        %5637 = vmatpush.msra.mxu0 0.0
        %5638 = vmatpush.msra.mxu0 0.0
        %5639 = vmatpush.msra.mxu0 0.0
        %5640 = vmatpush.msra.mxu0 0.0
        %5641 = vmatpush.msra.mxu0 0.0
        %5642 = vmatpush.msra.mxu0 0.0
        %5643 = vmatpush.msra.mxu0 0.0
        %5644 = vmatpush.msra.mxu0 %v4641
        %5645 = vmatpush.msra.mxu0 %v4599
        %5646 = vmatpush.msra.mxu0 %v4557
        %5647 = vmatpush.msra.mxu0 %v4515
        %5648 = vmatmul.f32.gmra.mxu0 %v4730
        %v5649 = vpop.f32.mrf.mxu0
        %v5650 = vadd.f32 %v4683, %v5649
        %5651 = vmatmul.f32.gmra.mxu0 %v4733
        %v5652 = vpop.f32.mrf.mxu0
        %v5653 = vadd.f32 %v4725, %v5652
        %5654 = vdwg.mxu0
        %5655 = vmatpush.msra.mxu0 0.0
        %5656 = vmatpush.msra.mxu0 0.0
        %5657 = vmatpush.msra.mxu0 0.0
        %5658 = vmatpush.msra.mxu0 0.0
        %5659 = vmatpush.msra.mxu0 0.0
        %5660 = vmatpush.msra.mxu0 0.0
        %5661 = vmatpush.msra.mxu0 0.0
        %5662 = vmatpush.msra.mxu0 0.0
        %5663 = vmatpush.msra.mxu0 0.0
        %5664 = vmatpush.msra.mxu0 0.0
        %5665 = vmatpush.msra.mxu0 0.0
        %5666 = vmatpush.msra.mxu0 0.0
        %5667 = vmatpush.msra.mxu0 %v4642
        %5668 = vmatpush.msra.mxu0 %v4600
        %5669 = vmatpush.msra.mxu0 %v4558
        %5670 = vmatpush.msra.mxu0 %v4516
        %5671 = vmatmul.f32.gmra.mxu0 %v4730
        %v5672 = vpop.f32.mrf.mxu0
        %v5673 = vadd.f32 %v4684, %v5672
        %5674 = vmatmul.f32.gmra.mxu0 %v4733
        %v5675 = vpop.f32.mrf.mxu0
        %v5676 = vadd.f32 %v4726, %v5675
        %5677 = vdwg.mxu0
        %5678 = vmatpush.msra.mxu0 0.0
        %5679 = vmatpush.msra.mxu0 0.0
        %5680 = vmatpush.msra.mxu0 0.0
        %5681 = vmatpush.msra.mxu0 0.0
        %5682 = vmatpush.msra.mxu0 0.0
        %5683 = vmatpush.msra.mxu0 0.0
        %5684 = vmatpush.msra.mxu0 0.0
        %5685 = vmatpush.msra.mxu0 0.0
        %5686 = vmatpush.msra.mxu0 0.0
        %5687 = vmatpush.msra.mxu0 0.0
        %5688 = vmatpush.msra.mxu0 0.0
        %5689 = vmatpush.msra.mxu0 0.0
        %5690 = vmatpush.msra.mxu0 %v4643
        %5691 = vmatpush.msra.mxu0 %v4601
        %5692 = vmatpush.msra.mxu0 %v4559
        %5693 = vmatpush.msra.mxu0 %v4517
        %5694 = vmatmul.f32.gmra.mxu0 %v4730
        %v5695 = vpop.f32.mrf.mxu0
        %v5696 = vadd.f32 %v4685, %v5695
        %5697 = vmatmul.f32.gmra.mxu0 %v4733
        %v5698 = vpop.f32.mrf.mxu0
        %v5699 = vadd.f32 %v4727, %v5698
        %5700 = vdwg.mxu0
        %5701 = vst [vmem:[%s428] sm:$0xff] %v4753
        %5702 = vst [vmem:[%s428 + $0x8] sm:$0xff] %v4776
        %5703 = vst [vmem:[%s428 + $0x10] sm:$0xff] %v4799
        %5704 = vst [vmem:[%s428 + $0x18] sm:$0xff] %v4822
        %5705 = vst [vmem:[%s428 + $0x20] sm:$0xff] %v4845
        %5706 = vst [vmem:[%s428 + $0x28] sm:$0xff] %v4868
        %5707 = vst [vmem:[%s428 + $0x30] sm:$0xff] %v4891
        %5708 = vst [vmem:[%s428 + $0x38] sm:$0xff] %v4914
        %5709 = vst [vmem:[%s428 + $0x40] sm:$0xff] %v4937
        %5710 = vst [vmem:[%s428 + $0x48] sm:$0xff] %v4960
        %5711 = vst [vmem:[%s428 + $0x50] sm:$0xff] %v4983
        %5712 = vst [vmem:[%s428 + $0x58] sm:$0xff] %v5006
        %5713 = vst [vmem:[%s428 + $0x60] sm:$0xff] %v5029
        %5714 = vst [vmem:[%s428 + $0x68] sm:$0xff] %v5052
        %5715 = vst [vmem:[%s428 + $0x70] sm:$0xff] %v5075
        %5716 = vst [vmem:[%s428 + $0x78] sm:$0xff] %v5098
        %5717 = vst [vmem:[%s428 + $0x80] sm:$0xff] %v5121
        %5718 = vst [vmem:[%s428 + $0x88] sm:$0xff] %v5144
        %5719 = vst [vmem:[%s428 + $0x90] sm:$0xff] %v5167
        %5720 = vst [vmem:[%s428 + $0x98] sm:$0xff] %v5190
        %5721 = vst [vmem:[%s428 + $0xa0] sm:$0xff] %v5213
        %5722 = vst [vmem:[%s428 + $0xa8] sm:$0xff] %v5236
        %5723 = vst [vmem:[%s428 + $0xb0] sm:$0xff] %v5259
        %5724 = vst [vmem:[%s428 + $0xb8] sm:$0xff] %v5282
        %5725 = vst [vmem:[%s428 + $0xc0] sm:$0xff] %v5305
        %5726 = vst [vmem:[%s428 + $0xc8] sm:$0xff] %v5328
        %5727 = vst [vmem:[%s428 + $0xd0] sm:$0xff] %v5351
        %5728 = vst [vmem:[%s428 + $0xd8] sm:$0xff] %v5374
        %5729 = vst [vmem:[%s428 + $0xe0] sm:$0xff] %v5397
        %5730 = vst [vmem:[%s428 + $0xe8] sm:$0xff] %v5420
        %5731 = vst [vmem:[%s428 + $0xf0] sm:$0xff] %v5443
        %5732 = vst [vmem:[%s428 + $0xf8] sm:$0xff] %v5466
        %5733 = vst [vmem:[%s428 + $0x100] sm:$0xff] %v5489
        %5734 = vst [vmem:[%s428 + $0x108] sm:$0xff] %v5512
        %5735 = vst [vmem:[%s428 + $0x110] sm:$0xff] %v5535
        %5736 = vst [vmem:[%s428 + $0x118] sm:$0xff] %v5558
        %5737 = vst [vmem:[%s428 + $0x120] sm:$0xff] %v5581
        %5738 = vst [vmem:[%s428 + $0x128] sm:$0xff] %v5604
        %5739 = vst [vmem:[%s428 + $0x130] sm:$0xff] %v5627
        %5740 = vst [vmem:[%s428 + $0x138] sm:$0xff] %v5650
        %5741 = vst [vmem:[%s428 + $0x140] sm:$0xff] %v5673
        %5742 = vst [vmem:[%s428 + $0x148] sm:$0xff] %v5696
        %5743 = vst [vmem:[%s428 + $0x150] sm:$0xf] %v4756
        %5744 = vst [vmem:[%s428 + $0x158] sm:$0xf] %v4779
        %5745 = vst [vmem:[%s428 + $0x160] sm:$0xf] %v4802
        %5746 = vst [vmem:[%s428 + $0x168] sm:$0xf] %v4825
        %5747 = vst [vmem:[%s428 + $0x170] sm:$0xf] %v4848
        %5748 = vst [vmem:[%s428 + $0x178] sm:$0xf] %v4871
        %5749 = vst [vmem:[%s428 + $0x180] sm:$0xf] %v4894
        %5750 = vst [vmem:[%s428 + $0x188] sm:$0xf] %v4917
        %5751 = vst [vmem:[%s428 + $0x190] sm:$0xf] %v4940
        %5752 = vst [vmem:[%s428 + $0x198] sm:$0xf] %v4963
        %5753 = vst [vmem:[%s428 + $0x1a0] sm:$0xf] %v4986
        %5754 = vst [vmem:[%s428 + $0x1a8] sm:$0xf] %v5009
        %5755 = vst [vmem:[%s428 + $0x1b0] sm:$0xf] %v5032
        %5756 = vst [vmem:[%s428 + $0x1b8] sm:$0xf] %v5055
        %5757 = vst [vmem:[%s428 + $0x1c0] sm:$0xf] %v5078
        %5758 = vst [vmem:[%s428 + $0x1c8] sm:$0xf] %v5101
        %5759 = vst [vmem:[%s428 + $0x1d0] sm:$0xf] %v5124
        %5760 = vst [vmem:[%s428 + $0x1d8] sm:$0xf] %v5147
        %5761 = vst [vmem:[%s428 + $0x1e0] sm:$0xf] %v5170
        %5762 = vst [vmem:[%s428 + $0x1e8] sm:$0xf] %v5193
        %5763 = vst [vmem:[%s428 + $0x1f0] sm:$0xf] %v5216
        %5764 = vst [vmem:[%s428 + $0x1f8] sm:$0xf] %v5239
        %5765 = vst [vmem:[%s428 + $0x200] sm:$0xf] %v5262
        %5766 = vst [vmem:[%s428 + $0x208] sm:$0xf] %v5285
        %5767 = vst [vmem:[%s428 + $0x210] sm:$0xf] %v5308
        %5768 = vst [vmem:[%s428 + $0x218] sm:$0xf] %v5331
        %5769 = vst [vmem:[%s428 + $0x220] sm:$0xf] %v5354
        %5770 = vst [vmem:[%s428 + $0x228] sm:$0xf] %v5377
        %5771 = vst [vmem:[%s428 + $0x230] sm:$0xf] %v5400
        %5772 = vst [vmem:[%s428 + $0x238] sm:$0xf] %v5423
        %5773 = vst [vmem:[%s428 + $0x240] sm:$0xf] %v5446
        %5774 = vst [vmem:[%s428 + $0x248] sm:$0xf] %v5469
        %5775 = vst [vmem:[%s428 + $0x250] sm:$0xf] %v5492
        %5776 = vst [vmem:[%s428 + $0x258] sm:$0xf] %v5515
        %5777 = vst [vmem:[%s428 + $0x260] sm:$0xf] %v5538
        %5778 = vst [vmem:[%s428 + $0x268] sm:$0xf] %v5561
        %5779 = vst [vmem:[%s428 + $0x270] sm:$0xf] %v5584
        %5780 = vst [vmem:[%s428 + $0x278] sm:$0xf] %v5607
        %5781 = vst [vmem:[%s428 + $0x280] sm:$0xf] %v5630
        %5782 = vst [vmem:[%s428 + $0x288] sm:$0xf] %v5653
        %5783 = vst [vmem:[%s428 + $0x290] sm:$0xf] %v5676
        %5784 = vst [vmem:[%s428 + $0x298] sm:$0xf] %v5699
        %p5785 = scmp.lt.s32.totalorder %s26, 1
        %s5786 = scalar_select %p5785, %s26, 1
        %s5787 = smul.addr %s5786, 84
        %s5788 = smul.addr %s5787, 8
        %s5789 = scalar_lea.vmem %s8, %s5788
        // Predicated region
        $region85: #{tpu_custom_call.1} parent=51 // pred_check
          %p5790 = pneg %p217
        $region86: #{tpu_custom_call.1} parent=51 // pred_check_branch
          %5792 = sbr.rel (%p5790) target = $region88
        $region87: #{tpu_custom_call.1} parent=51 // pred_region
          _
        $region88: #{tpu_custom_call.1} parent=51 // pred_fallthru
          _
      $region52: #{tpu_custom_call.1} parent=5 // pred_fallthru
        _
      %p5793 = scmp.le.s32.totalorder 2, %s21
      // Predicated region
      $region89: #{tpu_custom_call.1} parent=5 // pred_check
        %p5794 = pneg %p5793
      $region90: #{tpu_custom_call.1} parent=5 // pred_check_branch
        %5796 = sbr.rel (%p5794) target = $region92
      $region91: #{tpu_custom_call.1} parent=5 // pred_region
        %s5797 = ssub.s32 %s21, 2
        // Predicated region
        $region93: #{tpu_custom_call.1} parent=91 // pred_check
          %p5798 = pneg %p223
        $region94: #{tpu_custom_call.1} parent=91 // pred_check_branch
          %5800 = sbr.rel (%p5798) target = $region96
        $region95: #{tpu_custom_call.1} parent=91 // pred_region
          %p5801 = scmp.lt.s32.totalorder %s27, 1
          %s5802 = scalar_select %p5801, %s27, 1
          %s5803 = smul.addr %s5802, 84
          %s5804 = smul.addr %s5803, 8
          %s5805 = scalar_lea.vmem %s8, %s5804
        $region96: #{tpu_custom_call.1} parent=91 // pred_fallthru
          _
      $region92: #{tpu_custom_call.1} parent=5 // pred_fallthru
        _
    $region6: #{tpu_custom_call.1} parent=1 // loop_footer
      %s25 = sadd.s32 1, %s21
    $region7: #{tpu_custom_call.1} parent=1 // loop_footer_branch
      %20 = sbr.rel target = $region3
    $region8: #{tpu_custom_call.1} parent=1 // loop_exit
      _
    %5806 = vsyncpa [#allocation4], 1
    %s5807 = scalar_lea.sflag [#allocation4], 1
    %5808 = vsyncpa %s5807, 1
    %5809 = vsyncpa [#allocation6], 1
    %5810 = vsyncpa [#allocation9], 1
    %5811 = vsyncpa [#allocation12], 1
    %5812 = vsyncpa [#allocation15], 1

</llo_original>
